<compile_context>
chip_gen: v7x
topology: tpu7x:2x2x1
jax: 0.10.0
libtpu: 0.0.40
codegen_flags: <defaults>
</compile_context>

<pallas_src>
import functools

import numpy as np
import jax
import jax.numpy as jnp
from jax.experimental import pallas as pl
from jax.experimental.pallas import tpu as pltpu

LANE = 128                     # lane width; Cout is padded to this
LEAKY_SLOPE = 0.2
BN_EPS = 1e-5                  # PyTorch BatchNorm2d default
FUSED_Y_VMEM_LIMIT = 6 << 20   # max bytes of whole-layer y kept in VMEM scratch


def _round_up(x, m):
    return ((x + m - 1) // m) * m


def _choose_tm(M):
    """Row-tile: full (8-padded) M when small, else the <=512 tile with least padding."""
    if M <= 512:
        return _round_up(M, 8)
    best, best_pad = 512, _round_up(M, 512) - M
    for cand in (448, 384, 320, 256):
        pad = _round_up(M, cand) - M
        if pad < best_pad:
            best, best_pad = cand, pad
    return best


# ----------------------------- Pallas kernels ------------------------------

def _convt_bn_leaky_kernel(a_ref, b_ref, bias_ref, gamma_ref, beta_ref,
                           o_ref, y_buf, sum_ref, sq_ref, *, m_true, tm):
    """Fused ConvT-GEMM + BatchNorm(train) + LeakyReLU over a 2-phase grid.

    Grid = (2, n_tiles):
      phase 0: y_tile = A_tile @ B + bias  -> VMEM scratch; accumulate stats
               (rows >= m_true are padding and masked out of the statistics).
      phase 1: scale/shift from accumulated stats, affine + LeakyReLU -> out.
    """
    phase = pl.program_id(0)
    i = pl.program_id(1)

    @pl.when(phase == 0)
    def _():
        @pl.when(i == 0)
        def _():
            sum_ref[...] = jnp.zeros_like(sum_ref)
            sq_ref[...] = jnp.zeros_like(sq_ref)

        y = jnp.dot(a_ref[...], b_ref[...],
                    preferred_element_type=jnp.float32) + bias_ref[...]
        y_buf[i] = y
        rows = i * tm + jax.lax.broadcasted_iota(jnp.int32, y.shape, 0)
        mask = (rows < m_true).astype(jnp.float32)
        ym = y * mask
        sum_ref[...] += jnp.sum(ym, axis=0, keepdims=True)
        sq_ref[...] += jnp.sum(ym * ym, axis=0, keepdims=True)

    @pl.when(phase == 1)
    def _():
        inv_m = 1.0 / float(m_true)
        mean = sum_ref[...] * inv_m
        var = jnp.maximum(sq_ref[...] * inv_m - mean * mean, 0.0)
        scale = gamma_ref[...] * jax.lax.rsqrt(var + BN_EPS)
        shift = beta_ref[...] - mean * scale
        yn = y_buf[i] * scale + shift
        o_ref[...] = jnp.where(yn >= 0.0, yn, LEAKY_SLOPE * yn).astype(o_ref.dtype)


def convt_bn_leaky_fused(a, b, bias, gamma, beta, m_true, tm):
    """a:(Mp,Kp) bf16, b:(Kp,Np) bf16, bias/gamma/beta:(1,Np) f32 -> (Mp,Np) bf16."""
    Mp, Kp = a.shape
    _, Np = b.shape
    n_tiles = Mp // tm
    kernel = functools.partial(_convt_bn_leaky_kernel, m_true=m_true, tm=tm)
    return pl.pallas_call(
        kernel,
        out_shape=jax.ShapeDtypeStruct((Mp, Np), jnp.bfloat16),
        grid_spec=pltpu.PrefetchScalarGridSpec(
            num_scalar_prefetch=0,
            grid=(2, n_tiles),
            in_specs=[
                # phase 1 never uses A -> pin it to block 0 (a single re-fetch).
                pl.BlockSpec((tm, Kp), lambda p, i: ((1 - p) * i, 0)),
                pl.BlockSpec((Kp, Np), lambda p, i: (0, 0)),
                pl.BlockSpec((1, Np), lambda p, i: (0, 0)),
                pl.BlockSpec((1, Np), lambda p, i: (0, 0)),
                pl.BlockSpec((1, Np), lambda p, i: (0, 0)),
            ],
            out_specs=pl.BlockSpec((tm, Np), lambda p, i: (i, 0)),
            scratch_shapes=[pltpu.VMEM((n_tiles, tm, Np), jnp.float32),
                            pltpu.VMEM((1, Np), jnp.float32),
                            pltpu.VMEM((1, Np), jnp.float32)]),
        # stats accumulate across tiles and phase order matters -> sequential.
        compiler_params=pltpu.CompilerParams(
            dimension_semantics=("arbitrary", "arbitrary")),
    )(a, b, bias, gamma, beta)


def _gemm_bn_stats_kernel(a_ref, b_ref, bias_ref, o_ref, sum_ref, sq_ref, *, m_true):
    """Fallback path: one M-tile of (A @ B + bias) with fused channel stats."""
    i = pl.program_id(0)
    y = jnp.dot(a_ref[...], b_ref[...],
                preferred_element_type=jnp.float32) + bias_ref[...]
    o_ref[...] = y

    @pl.when(i == 0)
    def _():
        sum_ref[...] = jnp.zeros_like(sum_ref)
        sq_ref[...] = jnp.zeros_like(sq_ref)

    rows = i * y.shape[0] + jax.lax.broadcasted_iota(jnp.int32, y.shape, 0)
    mask = (rows < m_true).astype(jnp.float32)
    ym = y * mask
    sum_ref[...] += jnp.sum(ym, axis=0, keepdims=True)
    sq_ref[...] += jnp.sum(ym * ym, axis=0, keepdims=True)


def gemm_bn_stats(a, b, bias, m_true, tm):
    Mp, Kp = a.shape
    _, Np = b.shape
    kernel = functools.partial(_gemm_bn_stats_kernel, m_true=m_true)
    return pl.pallas_call(
        kernel,
        out_shape=(jax.ShapeDtypeStruct((Mp, Np), jnp.float32),
                   jax.ShapeDtypeStruct((1, Np), jnp.float32),
                   jax.ShapeDtypeStruct((1, Np), jnp.float32)),
        grid_spec=pltpu.PrefetchScalarGridSpec(
            num_scalar_prefetch=0,
            grid=(Mp // tm,),
            in_specs=[pl.BlockSpec((tm, Kp), lambda i: (i, 0)),
                      pl.BlockSpec((Kp, Np), lambda i: (0, 0)),
                      pl.BlockSpec((1, Np), lambda i: (0, 0))],
            out_specs=(pl.BlockSpec((tm, Np), lambda i: (i, 0)),
                       pl.BlockSpec((1, Np), lambda i: (0, 0)),
                       pl.BlockSpec((1, Np), lambda i: (0, 0))),
        ),
        compiler_params=pltpu.CompilerParams(
            dimension_semantics=("arbitrary",)),
    )(a, b, bias)


def _affine_leaky_kernel(y_ref, scale_ref, shift_ref, o_ref):
    y = y_ref[...] * scale_ref[...] + shift_ref[...]
    o_ref[...] = jnp.where(y >= 0.0, y, LEAKY_SLOPE * y).astype(o_ref.dtype)


def affine_leaky(y, scale, shift, tm):
    """Fallback: per-channel affine (folded BN) + LeakyReLU(0.2), bf16 out."""
    Mp, Np = y.shape
    return pl.pallas_call(
        _affine_leaky_kernel,
        out_shape=jax.ShapeDtypeStruct((Mp, Np), jnp.bfloat16),
        grid_spec=pltpu.PrefetchScalarGridSpec(
            num_scalar_prefetch=0,
            grid=(Mp // tm,),
            in_specs=[pl.BlockSpec((tm, Np), lambda i: (i, 0)),
                      pl.BlockSpec((1, Np), lambda i: (0, 0)),
                      pl.BlockSpec((1, Np), lambda i: (0, 0))],
            out_specs=pl.BlockSpec((tm, Np), lambda i: (i, 0)),
        ),
        compiler_params=pltpu.CompilerParams(
            dimension_semantics=("parallel",)),
    )(y, scale, shift)


def _gemm_tanh_kernel(a_ref, b_ref, bias_ref, o_ref):
    y = jnp.dot(a_ref[...], b_ref[...],
                preferred_element_type=jnp.float32) + bias_ref[...]
    o_ref[...] = jnp.tanh(y)


def gemm_tanh(a, b, bias, tm):
    """Final layer: (A @ B + bias) with tanh fused into the epilogue."""
    Mp, Kp = a.shape
    _, Np = b.shape
    return pl.pallas_call(
        _gemm_tanh_kernel,
        out_shape=jax.ShapeDtypeStruct((Mp, Np), jnp.float32),
        grid_spec=pltpu.PrefetchScalarGridSpec(
            num_scalar_prefetch=0,
            grid=(Mp // tm,),
            in_specs=[pl.BlockSpec((tm, Kp), lambda i: (i, 0)),
                      pl.BlockSpec((Kp, Np), lambda i: (0, 0)),
                      pl.BlockSpec((1, Np), lambda i: (0, 0))],
            out_specs=pl.BlockSpec((tm, Np), lambda i: (i, 0)),
        ),
        compiler_params=pltpu.CompilerParams(
            dimension_semantics=("parallel",)),   # independent M tiles -> megacore
    )(a, b, bias)


# ------------------------- layer glue (plain JAX) --------------------------

def _im2col_for_conv_transpose(x, k, s):
    """ConvTranspose2d == zero-insert(stride) + pad(k-1) + stride-1 conv with
    flipped weights.  Returns cols (B*Hout*Wout, k*k*Cin) and (Hout, Wout)."""
    B, Hin, Win, Cin = x.shape
    Hd, Wd = (Hin - 1) * s + 1, (Win - 1) * s + 1
    Hout, Wout = (Hin - 1) * s + k, (Win - 1) * s + k
    xd = jnp.zeros((B, Hd, Wd, Cin), x.dtype).at[:, ::s, ::s, :].set(x)
    xp = jnp.pad(xd, ((0, 0), (k - 1, k - 1), (k - 1, k - 1), (0, 0)))
    patches = jnp.stack(
        [jnp.stack([xp[:, ky:ky + Hout, kx:kx + Wout, :] for kx in range(k)],
                   axis=3) for ky in range(k)],
        axis=3)                                  # (B, Hout, Wout, ky, kx, Cin)
    cols = patches.reshape(B * Hout * Wout, k * k * Cin)
    return cols, Hout, Wout
    # TODO(synk): for large batches, gather patches in-kernel (pl.ANY + manual
    # DMA) instead of materializing the k^2-expanded im2col matrix in HBM.


def _weight_to_gemm(W):
    """W: (Cin, Cout, k, k) -> (k*k*Cin, Cout) with flipped taps, (ky,kx,ci) order."""
    Cin, Cout, k, _ = W.shape
    Wf = W[:, :, ::-1, ::-1]                     # flip for the conv equivalence
    return jnp.transpose(Wf, (2, 3, 0, 1)).reshape(k * k * Cin, Cout)


def conv_transpose_block(x, w, k, s, last):
    """One generator block: ConvTranspose2d [+ BatchNorm2d + LeakyReLU | + Tanh]."""
    B, Hin, Win, Cin = x.shape
    Cout = w['W'].shape[1]
    cols, Hout, Wout = _im2col_for_conv_transpose(x, k, s)
    Wmat = _weight_to_gemm(w['W'])

    M, Kd = cols.shape
    tm = _choose_tm(M)
    Mp = _round_up(M, tm)
    Kp = _round_up(Kd, LANE)                     # full K stays resident in VMEM
    Np = _round_up(Cout, LANE)

    # bf16 GEMM operands (f32 MXU accumulate); epilogue math stays f32.
    cols_p = jnp.pad(cols.astype(jnp.bfloat16), ((0, Mp - M), (0, Kp - Kd)))
    Wmat_p = jnp.pad(Wmat.astype(jnp.bfloat16), ((0, Kp - Kd), (0, Np - Cout)))
    bias_p = jnp.pad(w['b'], (0, Np - Cout)).reshape(1, Np)

    if last:
        out = gemm_tanh(cols_p, Wmat_p, bias_p, tm)          # conv^T + bias + tanh
    else:
        gamma_p = jnp.pad(w['gamma'], (0, Np - Cout)).reshape(1, Np)
        beta_p = jnp.pad(w['beta'], (0, Np - Cout)).reshape(1, Np)
        if Mp * Np * 4 <= FUSED_Y_VMEM_LIMIT:
            # single fused call: conv^T GEMM + BN stats + affine + LeakyReLU
            out = convt_bn_leaky_fused(cols_p, Wmat_p, bias_p,
                                       gamma_p, beta_p, M, tm)
        else:
            # fallback: y too big for a VMEM-resident scratch
            y, s_sum, s_sq = gemm_bn_stats(cols_p, Wmat_p, bias_p, M, tm)
            mean = s_sum[0] / M
            var = jnp.maximum(s_sq[0] / M - mean * mean, 0.0)   # biased (train BN)
            scale = gamma_p[0] * jax.lax.rsqrt(var + BN_EPS)
            shift = beta_p[0] - mean * scale
            out = affine_leaky(y, scale.reshape(1, Np), shift.reshape(1, Np), tm)

    return out[:M, :Cout].reshape(B, Hout, Wout, Cout)


def generador_forward(z, weights, cfg):
    """z: (B, noiseDim) -> NCHW (B, numChan, H, W); matches GeneradorGAN.forward."""
    B, nd = z.shape
    x = z.reshape(B, 1, 1, nd)                   # == input.view(B, inDim, 1, 1) in NHWC
    for w, (k, s, last) in zip(weights, cfg):
        x = conv_transpose_block(x, w, k, s, last)
    return jnp.transpose(x, (0, 3, 1, 2))        # back to NCHW like PyTorch


# -------------------------- parameters / reference -------------------------

def init_params(key, noise_dim, num_chan, hidden_dim):
    cfg = [(3, 2, False),   # ConvT(noise, 8h)  + BN + LeakyReLU
           (4, 1, False),   # ConvT(8h, 4h)     + BN + LeakyReLU
           (3, 2, False),   # ConvT(4h, 2h)     + BN + LeakyReLU
           (3, 2, False),   # ConvT(2h, h)      + BN + LeakyReLU
           (4, 2, True)]    # ConvT(h, numChan) + Tanh
    chans = [(noise_dim, hidden_dim * 8), (hidden_dim * 8, hidden_dim * 4),
             (hidden_dim * 4, hidden_dim * 2), (hidden_dim * 2, hidden_dim),
             (hidden_dim, num_chan)]
    weights = []
    for (cin, cout), (k, _, _) in zip(chans, cfg):
        key, kw, kb = jax.random.split(key, 3)
        bound = 1.0 / np.sqrt(cin * k * k)
        weights.append(dict(
            W=jax.random.uniform(kw, (cin, cout, k, k), jnp.float32, -bound, bound),
            b=jax.random.uniform(kb, (cout,), jnp.float32, -bound, bound),
            gamma=jnp.ones((cout,), jnp.float32),
            beta=jnp.zeros((cout,), jnp.float32)))
    return weights, cfg


def reference_forward(z, weights, cfg):
    """Pure-JAX reference (same math, same bf16-operand / f32-accumulate matmul
    precision and bf16 inter-layer activation storage as the kernels)."""
    B, nd = z.shape
    x = z.reshape(B, 1, 1, nd)
    for w, (k, s, last) in zip(weights, cfg):
        Bx, Hin, Win, Cin = x.shape
        Hout, Wout = (Hin - 1) * s + k, (Win - 1) * s + k
        xd = jnp.zeros((Bx, (Hin - 1) * s + 1, (Win - 1) * s + 1, Cin),
                       x.dtype).at[:, ::s, ::s, :].set(x)
        xp = jnp.pad(xd, ((0, 0), (k - 1, k - 1), (k - 1, k - 1), (0, 0)))
        Wc = jnp.transpose(w['W'][:, :, ::-1, ::-1], (2, 3, 0, 1))
        y = jnp.zeros((Bx, Hout, Wout, w['W'].shape[1]), jnp.float32)
        for ky in range(k):
            for kx in range(k):
                y = y + jnp.einsum(
                    'bhwc,cd->bhwd',
                    xp[:, ky:ky + Hout, kx:kx + Wout, :].astype(jnp.bfloat16),
                    Wc[ky, kx].astype(jnp.bfloat16),
                    preferred_element_type=jnp.float32)
        y = y + w['b']
        if last:
            x = jnp.tanh(y)
        else:
            mean = jnp.mean(y, axis=(0, 1, 2))
            var = jnp.mean((y - mean) ** 2, axis=(0, 1, 2))
            yn = (y - mean) / jnp.sqrt(var + BN_EPS) * w['gamma'] + w['beta']
            x = jnp.where(yn >= 0.0, yn, LEAKY_SLOPE * yn).astype(jnp.bfloat16)
    return jnp.transpose(x, (0, 3, 1, 2))


# ----------------------------------- main -----------------------------------

if __name__ == "__main__":
    BATCH, NOISE_DIM, NUM_CHAN, HIDDEN_DIM = 2, 16, 3, 8   # small, deterministic

    key = jax.random.PRNGKey(0)
    key, kz = jax.random.split(key)
    weights, cfg = init_params(key, NOISE_DIM, NUM_CHAN, HIDDEN_DIM)
    z = jax.random.normal(kz, (BATCH, NOISE_DIM), jnp.float32)

    fwd = jax.jit(functools.partial(generador_forward, cfg=cfg))
    out = fwd(z, weights)
    out = jax.block_until_ready(out)

    # Expected output spatial size: 1 ->3 ->6 ->13 ->27 ->56
    assert out.shape == (BATCH, NUM_CHAN, 56, 56), out.shape

    ref = jax.block_until_ready(reference_forward(z, weights, cfg))
    # bf16 operands + bf16 inter-layer activations -> loose-ish tolerance
    np.testing.assert_allclose(np.asarray(out), np.asarray(ref),
                               rtol=2e-2, atol=2e-2)

    print("KERNEL_OK")
</pallas_src>

<mosaic_0001>
module attributes {stable_mosaic.version = 11 : i64} {
  func.func @_convt_bn_leaky_kernel(%arg0: i32, %arg1: i32, %arg2: memref<24x256xbf16, #tpu.memory_space<vmem>>, %arg3: memref<256x128xbf16, #tpu.memory_space<vmem>>, %arg4: memref<1x128xf32, #tpu.memory_space<vmem>>, %arg5: memref<1x128xf32, #tpu.memory_space<vmem>>, %arg6: memref<1x128xf32, #tpu.memory_space<vmem>>, %arg7: memref<24x128xbf16, #tpu.memory_space<vmem>>, %arg8: memref<1x24x128xf32, #tpu.memory_space<vmem>>, %arg9: memref<1x128xf32, #tpu.memory_space<vmem>>, %arg10: memref<1x128xf32, #tpu.memory_space<vmem>>) attributes {dimension_semantics = [#tpu.dimension_semantics<arbitrary>, #tpu.dimension_semantics<arbitrary>], iteration_bounds = array<i64: 2, 1>, scalar_prefetch = 0 : i64, scratch_operands = 3 : i64, tpu.core_type = #tpu.core_type<tc>, window_params = [{transform_indices = @transform_0, window_bounds = array<i64: 24, 256>}, {pipeline_mode = #tpu.pipeline_mode<synchronous>, transform_indices = @transform_1, window_bounds = array<i64: 256, 128>}, {pipeline_mode = #tpu.pipeline_mode<synchronous>, transform_indices = @transform_2, window_bounds = array<i64: 1, 128>}, {pipeline_mode = #tpu.pipeline_mode<synchronous>, transform_indices = @transform_3, window_bounds = array<i64: 1, 128>}, {pipeline_mode = #tpu.pipeline_mode<synchronous>, transform_indices = @transform_4, window_bounds = array<i64: 1, 128>}, {transform_indices = @transform_5, window_bounds = array<i64: 24, 128>}]} {
    %c0_i32 = arith.constant 0 : i32
    %0 = arith.cmpi eq, %arg0, %c0_i32 : i32
    %1 = arith.extui %0 : i1 to i32
    %c0_i32_0 = arith.constant 0 : i32
    %2 = arith.cmpi ne, %1, %c0_i32_0 : i32
    scf.if %2 {
      %c0_i32_2 = arith.constant 0 : i32
      %6 = arith.cmpi eq, %arg1, %c0_i32_2 : i32
      %7 = arith.extui %6 : i1 to i32
      %c0_i32_3 = arith.constant 0 : i32
      %8 = arith.cmpi ne, %7, %c0_i32_3 : i32
      scf.if %8 {
        %cst_21 = arith.constant 0.000000e+00 : f32
        %39 = vector.broadcast %cst_21 : f32 to vector<1x128xf32>
        %c0_22 = arith.constant 0 : index
        %c0_23 = arith.constant 0 : index
        %40 = vector.load %arg9[%c0_22, %c0_23] : memref<1x128xf32, #tpu.memory_space<vmem>>, vector<1x128xf32>
        tpu.vector_store %arg9[%c0_22, %c0_23], %39 {strides = array<i32>} : memref<1x128xf32, #tpu.memory_space<vmem>>, vector<1x128xf32>,
        %cst_24 = arith.constant 0.000000e+00 : f32
        %41 = vector.broadcast %cst_24 : f32 to vector<1x128xf32>
        %c0_25 = arith.constant 0 : index
        %c0_26 = arith.constant 0 : index
        %42 = vector.load %arg10[%c0_25, %c0_26] : memref<1x128xf32, #tpu.memory_space<vmem>>, vector<1x128xf32>
        tpu.vector_store %arg10[%c0_25, %c0_26], %41 {strides = array<i32>} : memref<1x128xf32, #tpu.memory_space<vmem>>, vector<1x128xf32>,
      } else {
      }
      %c0 = arith.constant 0 : index
      %c0_4 = arith.constant 0 : index
      %9 = vector.load %arg2[%c0, %c0_4] : memref<24x256xbf16, #tpu.memory_space<vmem>>, vector<24x256xbf16>
      %c0_5 = arith.constant 0 : index
      %c0_6 = arith.constant 0 : index
      %10 = vector.load %arg3[%c0_5, %c0_6] : memref<256x128xbf16, #tpu.memory_space<vmem>>, vector<256x128xbf16>
      %cst = arith.constant dense<0.000000e+00> : vector<24x128xf32>
      %11 = tpu.matmul %9, %10, %cst {dimension_numbers = #tpu.dot_dimension_numbers<[1], [0], [0], [1], [0, 0, 1, 1], [], []>} : vector<24x256xbf16>, vector<256x128xbf16>, vector<24x128xf32> -> vector<24x128xf32>
      %c0_7 = arith.constant 0 : index
      %c0_8 = arith.constant 0 : index
      %12 = vector.load %arg4[%c0_7, %c0_8] : memref<1x128xf32, #tpu.memory_space<vmem>>, vector<1x128xf32>
      %13 = vector.broadcast %12 : vector<1x128xf32> to vector<24x128xf32>
      %14 = arith.addf %11, %13 : vector<24x128xf32>
      %15 = arith.index_cast %arg1 : i32 to index
      %c0_9 = arith.constant 0 : index
      %c0_10 = arith.constant 0 : index
      %16 = vector.load %arg8[%15, %c0_9, %c0_10] : memref<1x24x128xf32, #tpu.memory_space<vmem>>, vector<1x24x128xf32>
      %17 = vector.shape_cast %16 : vector<1x24x128xf32> to vector<24x128xf32>
      %18 = vector.shape_cast %14 : vector<24x128xf32> to vector<1x24x128xf32>
      tpu.vector_store %arg8[%15, %c0_9, %c0_10], %18 {strides = array<i32>} : memref<1x24x128xf32, #tpu.memory_space<vmem>>, vector<1x24x128xf32>,
      %c24_i32 = arith.constant 24 : i32
      %19 = arith.muli %arg1, %c24_i32 : i32
      %20 = tpu.iota {dimensions = array<i32: 0>} : vector<24x128xi32>
      %21 = vector.broadcast %19 : i32 to vector<24x128xi32>
      %22 = arith.addi %21, %20 : vector<24x128xi32>
      %c18_i32 = arith.constant 18 : i32
      %23 = vector.broadcast %c18_i32 : i32 to vector<24x128xi32>
      %24 = arith.cmpi slt, %22, %23 : vector<24x128xi32>
      %25 = arith.extui %24 : vector<24x128xi1> to vector<24x128xi32>
      %26 = arith.sitofp %25 : vector<24x128xi32> to vector<24x128xf32>
      %27 = arith.mulf %14, %26 : vector<24x128xf32>
      %c0_11 = arith.constant 0 : index
      %c0_12 = arith.constant 0 : index
      %28 = vector.load %arg9[%c0_11, %c0_12] : memref<1x128xf32, #tpu.memory_space<vmem>>, vector<1x128xf32>
      %cst_13 = arith.constant dense<0.000000e+00> : vector<128xf32>
      %29 = vector.multi_reduction <add>, %27, %cst_13 [0] : vector<24x128xf32> to vector<128xf32>
      %30 = vector.shape_cast %29 : vector<128xf32> to vector<1x128xf32>
      %31 = arith.addf %28, %30 : vector<1x128xf32>
      %c0_14 = arith.constant 0 : index
      %c0_15 = arith.constant 0 : index
      %32 = vector.load %arg9[%c0_14, %c0_15] : memref<1x128xf32, #tpu.memory_space<vmem>>, vector<1x128xf32>
      tpu.vector_store %arg9[%c0_14, %c0_15], %31 {strides = array<i32>} : memref<1x128xf32, #tpu.memory_space<vmem>>, vector<1x128xf32>,
      %c0_16 = arith.constant 0 : index
      %c0_17 = arith.constant 0 : index
      %33 = vector.load %arg10[%c0_16, %c0_17] : memref<1x128xf32, #tpu.memory_space<vmem>>, vector<1x128xf32>
      %34 = arith.mulf %27, %27 : vector<24x128xf32>
      %cst_18 = arith.constant dense<0.000000e+00> : vector<128xf32>
      %35 = vector.multi_reduction <add>, %34, %cst_18 [0] : vector<24x128xf32> to vector<128xf32>
      %36 = vector.shape_cast %35 : vector<128xf32> to vector<1x128xf32>
      %37 = arith.addf %33, %36 : vector<1x128xf32>
      %c0_19 = arith.constant 0 : index
      %c0_20 = arith.constant 0 : index
      %38 = vector.load %arg10[%c0_19, %c0_20] : memref<1x128xf32, #tpu.memory_space<vmem>>, vector<1x128xf32>
      tpu.vector_store %arg10[%c0_19, %c0_20], %37 {strides = array<i32>} : memref<1x128xf32, #tpu.memory_space<vmem>>, vector<1x128xf32>,
    } else {
    }
    %c1_i32 = arith.constant 1 : i32
    %3 = arith.cmpi eq, %arg0, %c1_i32 : i32
    %4 = arith.extui %3 : i1 to i32
    %c0_i32_1 = arith.constant 0 : i32
    %5 = arith.cmpi ne, %4, %c0_i32_1 : i32
    scf.if %5 {
      %c0 = arith.constant 0 : index
      %c0_2 = arith.constant 0 : index
      %6 = vector.load %arg9[%c0, %c0_2] : memref<1x128xf32, #tpu.memory_space<vmem>>, vector<1x128xf32>
      %cst = arith.constant 0.055555556 : f32
      %7 = vector.broadcast %cst : f32 to vector<1x128xf32>
      %8 = arith.mulf %6, %7 : vector<1x128xf32>
      %c0_3 = arith.constant 0 : index
      %c0_4 = arith.constant 0 : index
      %9 = vector.load %arg10[%c0_3, %c0_4] : memref<1x128xf32, #tpu.memory_space<vmem>>, vector<1x128xf32>
      %cst_5 = arith.constant 0.055555556 : f32
      %10 = vector.broadcast %cst_5 : f32 to vector<1x128xf32>
      %11 = arith.mulf %9, %10 : vector<1x128xf32>
      %12 = arith.mulf %8, %8 : vector<1x128xf32>
      %13 = arith.subf %11, %12 : vector<1x128xf32>
      %cst_6 = arith.constant 0.000000e+00 : f32
      %14 = vector.broadcast %cst_6 : f32 to vector<1x128xf32>
      %15 = arith.maximumf %13, %14 : vector<1x128xf32>
      %c0_7 = arith.constant 0 : index
      %c0_8 = arith.constant 0 : index
      %16 = vector.load %arg5[%c0_7, %c0_8] : memref<1x128xf32, #tpu.memory_space<vmem>>, vector<1x128xf32>
      %cst_9 = arith.constant 9.99999974E-6 : f32
      %17 = vector.broadcast %cst_9 : f32 to vector<1x128xf32>
      %18 = arith.addf %15, %17 : vector<1x128xf32>
      %19 = math.rsqrt %18 : vector<1x128xf32>
      %20 = arith.mulf %16, %19 : vector<1x128xf32>
      %c0_10 = arith.constant 0 : index
      %c0_11 = arith.constant 0 : index
      %21 = vector.load %arg6[%c0_10, %c0_11] : memref<1x128xf32, #tpu.memory_space<vmem>>, vector<1x128xf32>
      %22 = arith.mulf %8, %20 : vector<1x128xf32>
      %23 = arith.subf %21, %22 : vector<1x128xf32>
      %24 = arith.index_cast %arg1 : i32 to index
      %c0_12 = arith.constant 0 : index
      %c0_13 = arith.constant 0 : index
      %25 = vector.load %arg8[%24, %c0_12, %c0_13] : memref<1x24x128xf32, #tpu.memory_space<vmem>>, vector<1x24x128xf32>
      %26 = vector.shape_cast %25 : vector<1x24x128xf32> to vector<24x128xf32>
      %27 = vector.broadcast %20 : vector<1x128xf32> to vector<24x128xf32>
      %28 = arith.mulf %26, %27 : vector<24x128xf32>
      %29 = vector.broadcast %23 : vector<1x128xf32> to vector<24x128xf32>
      %30 = arith.addf %28, %29 : vector<24x128xf32>
      %cst_14 = arith.constant 0.000000e+00 : f32
      %31 = vector.broadcast %cst_14 : f32 to vector<24x128xf32>
      %32 = arith.cmpf oge, %30, %31 : vector<24x128xf32>
      %cst_15 = arith.constant 2.000000e-01 : f32
      %33 = vector.broadcast %cst_15 : f32 to vector<24x128xf32>
      %34 = arith.mulf %33, %30 : vector<24x128xf32>
      %35 = arith.select %32, %30, %34 : vector<24x128xi1>, vector<24x128xf32>
      %36 = arith.truncf %35 : vector<24x128xf32> to vector<24x128xbf16>
      %c0_16 = arith.constant 0 : index
      %c0_17 = arith.constant 0 : index
      %37 = vector.load %arg7[%c0_16, %c0_17] : memref<24x128xbf16, #tpu.memory_space<vmem>>, vector<24x128xbf16>
      tpu.vector_store %arg7[%c0_16, %c0_17], %36 {strides = array<i32>} : memref<24x128xbf16, #tpu.memory_space<vmem>>, vector<24x128xbf16>,
    } else {
    }
    return
  }
  func.func @transform_0(%arg0: i32, %arg1: i32) -> (i32, i32) {
    %c1_i32 = arith.constant 1 : i32
    %0 = arith.subi %c1_i32, %arg0 : i32
    %1 = arith.muli %0, %arg1 : i32
    %c0_i32 = arith.constant 0 : i32
    %c0_i32_0 = arith.constant 0 : i32
    return %1, %c0_i32 : i32, i32
  }
  func.func @transform_1(%arg0: i32, %arg1: i32) -> (i32, i32) {
    %c0_i32 = arith.constant 0 : i32
    %c0_i32_0 = arith.constant 0 : i32
    %c0_i32_1 = arith.constant 0 : i32
    return %c0_i32, %c0_i32_0 : i32, i32
  }
  func.func @transform_2(%arg0: i32, %arg1: i32) -> (i32, i32) {
    %c0_i32 = arith.constant 0 : i32
    %c0_i32_0 = arith.constant 0 : i32
    %c0_i32_1 = arith.constant 0 : i32
    return %c0_i32, %c0_i32_0 : i32, i32
  }
  func.func @transform_3(%arg0: i32, %arg1: i32) -> (i32, i32) {
    %c0_i32 = arith.constant 0 : i32
    %c0_i32_0 = arith.constant 0 : i32
    %c0_i32_1 = arith.constant 0 : i32
    return %c0_i32, %c0_i32_0 : i32, i32
  }
  func.func @transform_4(%arg0: i32, %arg1: i32) -> (i32, i32) {
    %c0_i32 = arith.constant 0 : i32
    %c0_i32_0 = arith.constant 0 : i32
    %c0_i32_1 = arith.constant 0 : i32
    return %c0_i32, %c0_i32_0 : i32, i32
  }
  func.func @transform_5(%arg0: i32, %arg1: i32) -> (i32, i32) {
    %c0_i32 = arith.constant 0 : i32
    %c0_i32_0 = arith.constant 0 : i32
    return %arg1, %c0_i32 : i32, i32
  }
}

module attributes {stable_mosaic.version = 11 : i64} {
  func.func @_convt_bn_leaky_kernel(%arg0: i32, %arg1: i32, %arg2: memref<72x1024xbf16, #tpu.memory_space<vmem>>, %arg3: memref<1024x128xbf16, #tpu.memory_space<vmem>>, %arg4: memref<1x128xf32, #tpu.memory_space<vmem>>, %arg5: memref<1x128xf32, #tpu.memory_space<vmem>>, %arg6: memref<1x128xf32, #tpu.memory_space<vmem>>, %arg7: memref<72x128xbf16, #tpu.memory_space<vmem>>, %arg8: memref<1x72x128xf32, #tpu.memory_space<vmem>>, %arg9: memref<1x128xf32, #tpu.memory_space<vmem>>, %arg10: memref<1x128xf32, #tpu.memory_space<vmem>>) attributes {dimension_semantics = [#tpu.dimension_semantics<arbitrary>, #tpu.dimension_semantics<arbitrary>], iteration_bounds = array<i64: 2, 1>, scalar_prefetch = 0 : i64, scratch_operands = 3 : i64, tpu.core_type = #tpu.core_type<tc>, window_params = [{transform_indices = @transform_0, window_bounds = array<i64: 72, 1024>}, {pipeline_mode = #tpu.pipeline_mode<synchronous>, transform_indices = @transform_1, window_bounds = array<i64: 1024, 128>}, {pipeline_mode = #tpu.pipeline_mode<synchronous>, transform_indices = @transform_2, window_bounds = array<i64: 1, 128>}, {pipeline_mode = #tpu.pipeline_mode<synchronous>, transform_indices = @transform_3, window_bounds = array<i64: 1, 128>}, {pipeline_mode = #tpu.pipeline_mode<synchronous>, transform_indices = @transform_4, window_bounds = array<i64: 1, 128>}, {transform_indices = @transform_5, window_bounds = array<i64: 72, 128>}]} {
    %c0_i32 = arith.constant 0 : i32
    %0 = arith.cmpi eq, %arg0, %c0_i32 : i32
    %1 = arith.extui %0 : i1 to i32
    %c0_i32_0 = arith.constant 0 : i32
    %2 = arith.cmpi ne, %1, %c0_i32_0 : i32
    scf.if %2 {
      %c0_i32_2 = arith.constant 0 : i32
      %6 = arith.cmpi eq, %arg1, %c0_i32_2 : i32
      %7 = arith.extui %6 : i1 to i32
      %c0_i32_3 = arith.constant 0 : i32
      %8 = arith.cmpi ne, %7, %c0_i32_3 : i32
      scf.if %8 {
        %cst_22 = arith.constant 0.000000e+00 : f32
        %39 = vector.broadcast %cst_22 : f32 to vector<1x128xf32>
        %c0_23 = arith.constant 0 : index
        %c0_24 = arith.constant 0 : index
        %40 = vector.load %arg9[%c0_23, %c0_24] : memref<1x128xf32, #tpu.memory_space<vmem>>, vector<1x128xf32>
        tpu.vector_store %arg9[%c0_23, %c0_24], %39 {strides = array<i32>} : memref<1x128xf32, #tpu.memory_space<vmem>>, vector<1x128xf32>,
        %cst_25 = arith.constant 0.000000e+00 : f32
        %41 = vector.broadcast %cst_25 : f32 to vector<1x128xf32>
        %c0_26 = arith.constant 0 : index
        %c0_27 = arith.constant 0 : index
        %42 = vector.load %arg10[%c0_26, %c0_27] : memref<1x128xf32, #tpu.memory_space<vmem>>, vector<1x128xf32>
        tpu.vector_store %arg10[%c0_26, %c0_27], %41 {strides = array<i32>} : memref<1x128xf32, #tpu.memory_space<vmem>>, vector<1x128xf32>,
      } else {
      }
      %c0 = arith.constant 0 : index
      %c0_4 = arith.constant 0 : index
      %9 = vector.load %arg2[%c0, %c0_4] : memref<72x1024xbf16, #tpu.memory_space<vmem>>, vector<72x1024xbf16>
      %c0_5 = arith.constant 0 : index
      %c0_6 = arith.constant 0 : index
      %10 = vector.load %arg3[%c0_5, %c0_6] : memref<1024x128xbf16, #tpu.memory_space<vmem>>, vector<1024x128xbf16>
      %cst = arith.constant dense<0.000000e+00> : vector<72x128xf32>
      %11 = tpu.matmul %9, %10, %cst {dimension_numbers = #tpu.dot_dimension_numbers<[1], [0], [0], [1], [0, 0, 1, 1], [], []>} : vector<72x1024xbf16>, vector<1024x128xbf16>, vector<72x128xf32> -> vector<72x128xf32>
      %c0_7 = arith.constant 0 : index
      %c0_8 = arith.constant 0 : index
      %12 = vector.load %arg4[%c0_7, %c0_8] : memref<1x128xf32, #tpu.memory_space<vmem>>, vector<1x128xf32>
      %13 = vector.broadcast %12 : vector<1x128xf32> to vector<72x128xf32>
      %14 = arith.addf %11, %13 : vector<72x128xf32>
      %15 = arith.index_cast %arg1 : i32 to index
      %c0_9 = arith.constant 0 : index
      %c0_10 = arith.constant 0 : index
      %16 = vector.load %arg8[%15, %c0_9, %c0_10] : memref<1x72x128xf32, #tpu.memory_space<vmem>>, vector<1x72x128xf32>
      %17 = vector.shape_cast %16 : vector<1x72x128xf32> to vector<72x128xf32>
      %18 = vector.shape_cast %14 : vector<72x128xf32> to vector<1x72x128xf32>
      tpu.vector_store %arg8[%15, %c0_9, %c0_10], %18 {strides = array<i32>} : memref<1x72x128xf32, #tpu.memory_space<vmem>>, vector<1x72x128xf32>,
      %c72_i32 = arith.constant 72 : i32
      %19 = arith.muli %arg1, %c72_i32 : i32
      %20 = tpu.iota {dimensions = array<i32: 0>} : vector<72x128xi32>
      %21 = vector.broadcast %19 : i32 to vector<72x128xi32>
      %22 = arith.addi %21, %20 : vector<72x128xi32>
      %c72_i32_11 = arith.constant 72 : i32
      %23 = vector.broadcast %c72_i32_11 : i32 to vector<72x128xi32>
      %24 = arith.cmpi slt, %22, %23 : vector<72x128xi32>
      %25 = arith.extui %24 : vector<72x128xi1> to vector<72x128xi32>
      %26 = arith.sitofp %25 : vector<72x128xi32> to vector<72x128xf32>
      %27 = arith.mulf %14, %26 : vector<72x128xf32>
      %c0_12 = arith.constant 0 : index
      %c0_13 = arith.constant 0 : index
      %28 = vector.load %arg9[%c0_12, %c0_13] : memref<1x128xf32, #tpu.memory_space<vmem>>, vector<1x128xf32>
      %cst_14 = arith.constant dense<0.000000e+00> : vector<128xf32>
      %29 = vector.multi_reduction <add>, %27, %cst_14 [0] : vector<72x128xf32> to vector<128xf32>
      %30 = vector.shape_cast %29 : vector<128xf32> to vector<1x128xf32>
      %31 = arith.addf %28, %30 : vector<1x128xf32>
      %c0_15 = arith.constant 0 : index
      %c0_16 = arith.constant 0 : index
      %32 = vector.load %arg9[%c0_15, %c0_16] : memref<1x128xf32, #tpu.memory_space<vmem>>, vector<1x128xf32>
      tpu.vector_store %arg9[%c0_15, %c0_16], %31 {strides = array<i32>} : memref<1x128xf32, #tpu.memory_space<vmem>>, vector<1x128xf32>,
      %c0_17 = arith.constant 0 : index
      %c0_18 = arith.constant 0 : index
      %33 = vector.load %arg10[%c0_17, %c0_18] : memref<1x128xf32, #tpu.memory_space<vmem>>, vector<1x128xf32>
      %34 = arith.mulf %27, %27 : vector<72x128xf32>
      %cst_19 = arith.constant dense<0.000000e+00> : vector<128xf32>
      %35 = vector.multi_reduction <add>, %34, %cst_19 [0] : vector<72x128xf32> to vector<128xf32>
      %36 = vector.shape_cast %35 : vector<128xf32> to vector<1x128xf32>
      %37 = arith.addf %33, %36 : vector<1x128xf32>
      %c0_20 = arith.constant 0 : index
      %c0_21 = arith.constant 0 : index
      %38 = vector.load %arg10[%c0_20, %c0_21] : memref<1x128xf32, #tpu.memory_space<vmem>>, vector<1x128xf32>
      tpu.vector_store %arg10[%c0_20, %c0_21], %37 {strides = array<i32>} : memref<1x128xf32, #tpu.memory_space<vmem>>, vector<1x128xf32>,
    } else {
    }
    %c1_i32 = arith.constant 1 : i32
    %3 = arith.cmpi eq, %arg0, %c1_i32 : i32
    %4 = arith.extui %3 : i1 to i32
    %c0_i32_1 = arith.constant 0 : i32
    %5 = arith.cmpi ne, %4, %c0_i32_1 : i32
    scf.if %5 {
      %c0 = arith.constant 0 : index
      %c0_2 = arith.constant 0 : index
      %6 = vector.load %arg9[%c0, %c0_2] : memref<1x128xf32, #tpu.memory_space<vmem>>, vector<1x128xf32>
      %cst = arith.constant 0.013888889 : f32
      %7 = vector.broadcast %cst : f32 to vector<1x128xf32>
      %8 = arith.mulf %6, %7 : vector<1x128xf32>
      %c0_3 = arith.constant 0 : index
      %c0_4 = arith.constant 0 : index
      %9 = vector.load %arg10[%c0_3, %c0_4] : memref<1x128xf32, #tpu.memory_space<vmem>>, vector<1x128xf32>
      %cst_5 = arith.constant 0.013888889 : f32
      %10 = vector.broadcast %cst_5 : f32 to vector<1x128xf32>
      %11 = arith.mulf %9, %10 : vector<1x128xf32>
      %12 = arith.mulf %8, %8 : vector<1x128xf32>
      %13 = arith.subf %11, %12 : vector<1x128xf32>
      %cst_6 = arith.constant 0.000000e+00 : f32
      %14 = vector.broadcast %cst_6 : f32 to vector<1x128xf32>
      %15 = arith.maximumf %13, %14 : vector<1x128xf32>
      %c0_7 = arith.constant 0 : index
      %c0_8 = arith.constant 0 : index
      %16 = vector.load %arg5[%c0_7, %c0_8] : memref<1x128xf32, #tpu.memory_space<vmem>>, vector<1x128xf32>
      %cst_9 = arith.constant 9.99999974E-6 : f32
      %17 = vector.broadcast %cst_9 : f32 to vector<1x128xf32>
      %18 = arith.addf %15, %17 : vector<1x128xf32>
      %19 = math.rsqrt %18 : vector<1x128xf32>
      %20 = arith.mulf %16, %19 : vector<1x128xf32>
      %c0_10 = arith.constant 0 : index
      %c0_11 = arith.constant 0 : index
      %21 = vector.load %arg6[%c0_10, %c0_11] : memref<1x128xf32, #tpu.memory_space<vmem>>, vector<1x128xf32>
      %22 = arith.mulf %8, %20 : vector<1x128xf32>
      %23 = arith.subf %21, %22 : vector<1x128xf32>
      %24 = arith.index_cast %arg1 : i32 to index
      %c0_12 = arith.constant 0 : index
      %c0_13 = arith.constant 0 : index
      %25 = vector.load %arg8[%24, %c0_12, %c0_13] : memref<1x72x128xf32, #tpu.memory_space<vmem>>, vector<1x72x128xf32>
      %26 = vector.shape_cast %25 : vector<1x72x128xf32> to vector<72x128xf32>
      %27 = vector.broadcast %20 : vector<1x128xf32> to vector<72x128xf32>
      %28 = arith.mulf %26, %27 : vector<72x128xf32>
      %29 = vector.broadcast %23 : vector<1x128xf32> to vector<72x128xf32>
      %30 = arith.addf %28, %29 : vector<72x128xf32>
      %cst_14 = arith.constant 0.000000e+00 : f32
      %31 = vector.broadcast %cst_14 : f32 to vector<72x128xf32>
      %32 = arith.cmpf oge, %30, %31 : vector<72x128xf32>
      %cst_15 = arith.constant 2.000000e-01 : f32
      %33 = vector.broadcast %cst_15 : f32 to vector<72x128xf32>
      %34 = arith.mulf %33, %30 : vector<72x128xf32>
      %35 = arith.select %32, %30, %34 : vector<72x128xi1>, vector<72x128xf32>
      %36 = arith.truncf %35 : vector<72x128xf32> to vector<72x128xbf16>
      %c0_16 = arith.constant 0 : index
      %c0_17 = arith.constant 0 : index
      %37 = vector.load %arg7[%c0_16, %c0_17] : memref<72x128xbf16, #tpu.memory_space<vmem>>, vector<72x128xbf16>
      tpu.vector_store %arg7[%c0_16, %c0_17], %36 {strides = array<i32>} : memref<72x128xbf16, #tpu.memory_space<vmem>>, vector<72x128xbf16>,
    } else {
    }
    return
  }
  func.func @transform_0(%arg0: i32, %arg1: i32) -> (i32, i32) {
    %c1_i32 = arith.constant 1 : i32
    %0 = arith.subi %c1_i32, %arg0 : i32
    %1 = arith.muli %0, %arg1 : i32
    %c0_i32 = arith.constant 0 : i32
    %c0_i32_0 = arith.constant 0 : i32
    return %1, %c0_i32 : i32, i32
  }
  func.func @transform_1(%arg0: i32, %arg1: i32) -> (i32, i32) {
    %c0_i32 = arith.constant 0 : i32
    %c0_i32_0 = arith.constant 0 : i32
    %c0_i32_1 = arith.constant 0 : i32
    return %c0_i32, %c0_i32_0 : i32, i32
  }
  func.func @transform_2(%arg0: i32, %arg1: i32) -> (i32, i32) {
    %c0_i32 = arith.constant 0 : i32
    %c0_i32_0 = arith.constant 0 : i32
    %c0_i32_1 = arith.constant 0 : i32
    return %c0_i32, %c0_i32_0 : i32, i32
  }
  func.func @transform_3(%arg0: i32, %arg1: i32) -> (i32, i32) {
    %c0_i32 = arith.constant 0 : i32
    %c0_i32_0 = arith.constant 0 : i32
    %c0_i32_1 = arith.constant 0 : i32
    return %c0_i32, %c0_i32_0 : i32, i32
  }
  func.func @transform_4(%arg0: i32, %arg1: i32) -> (i32, i32) {
    %c0_i32 = arith.constant 0 : i32
    %c0_i32_0 = arith.constant 0 : i32
    %c0_i32_1 = arith.constant 0 : i32
    return %c0_i32, %c0_i32_0 : i32, i32
  }
  func.func @transform_5(%arg0: i32, %arg1: i32) -> (i32, i32) {
    %c0_i32 = arith.constant 0 : i32
    %c0_i32_0 = arith.constant 0 : i32
    return %arg1, %c0_i32 : i32, i32
  }
}

module attributes {stable_mosaic.version = 11 : i64} {
  func.func @_convt_bn_leaky_kernel(%arg0: i32, %arg1: i32, %arg2: memref<344x384xbf16, #tpu.memory_space<vmem>>, %arg3: memref<384x128xbf16, #tpu.memory_space<vmem>>, %arg4: memref<1x128xf32, #tpu.memory_space<vmem>>, %arg5: memref<1x128xf32, #tpu.memory_space<vmem>>, %arg6: memref<1x128xf32, #tpu.memory_space<vmem>>, %arg7: memref<344x128xbf16, #tpu.memory_space<vmem>>, %arg8: memref<1x344x128xf32, #tpu.memory_space<vmem>>, %arg9: memref<1x128xf32, #tpu.memory_space<vmem>>, %arg10: memref<1x128xf32, #tpu.memory_space<vmem>>) attributes {dimension_semantics = [#tpu.dimension_semantics<arbitrary>, #tpu.dimension_semantics<arbitrary>], iteration_bounds = array<i64: 2, 1>, scalar_prefetch = 0 : i64, scratch_operands = 3 : i64, tpu.core_type = #tpu.core_type<tc>, window_params = [{transform_indices = @transform_0, window_bounds = array<i64: 344, 384>}, {pipeline_mode = #tpu.pipeline_mode<synchronous>, transform_indices = @transform_1, window_bounds = array<i64: 384, 128>}, {pipeline_mode = #tpu.pipeline_mode<synchronous>, transform_indices = @transform_2, window_bounds = array<i64: 1, 128>}, {pipeline_mode = #tpu.pipeline_mode<synchronous>, transform_indices = @transform_3, window_bounds = array<i64: 1, 128>}, {pipeline_mode = #tpu.pipeline_mode<synchronous>, transform_indices = @transform_4, window_bounds = array<i64: 1, 128>}, {transform_indices = @transform_5, window_bounds = array<i64: 344, 128>}]} {
    %c0_i32 = arith.constant 0 : i32
    %0 = arith.cmpi eq, %arg0, %c0_i32 : i32
    %1 = arith.extui %0 : i1 to i32
    %c0_i32_0 = arith.constant 0 : i32
    %2 = arith.cmpi ne, %1, %c0_i32_0 : i32
    scf.if %2 {
      %c0_i32_2 = arith.constant 0 : i32
      %6 = arith.cmpi eq, %arg1, %c0_i32_2 : i32
      %7 = arith.extui %6 : i1 to i32
      %c0_i32_3 = arith.constant 0 : i32
      %8 = arith.cmpi ne, %7, %c0_i32_3 : i32
      scf.if %8 {
        %cst_21 = arith.constant 0.000000e+00 : f32
        %39 = vector.broadcast %cst_21 : f32 to vector<1x128xf32>
        %c0_22 = arith.constant 0 : index
        %c0_23 = arith.constant 0 : index
        %40 = vector.load %arg9[%c0_22, %c0_23] : memref<1x128xf32, #tpu.memory_space<vmem>>, vector<1x128xf32>
        tpu.vector_store %arg9[%c0_22, %c0_23], %39 {strides = array<i32>} : memref<1x128xf32, #tpu.memory_space<vmem>>, vector<1x128xf32>,
        %cst_24 = arith.constant 0.000000e+00 : f32
        %41 = vector.broadcast %cst_24 : f32 to vector<1x128xf32>
        %c0_25 = arith.constant 0 : index
        %c0_26 = arith.constant 0 : index
        %42 = vector.load %arg10[%c0_25, %c0_26] : memref<1x128xf32, #tpu.memory_space<vmem>>, vector<1x128xf32>
        tpu.vector_store %arg10[%c0_25, %c0_26], %41 {strides = array<i32>} : memref<1x128xf32, #tpu.memory_space<vmem>>, vector<1x128xf32>,
      } else {
      }
      %c0 = arith.constant 0 : index
      %c0_4 = arith.constant 0 : index
      %9 = vector.load %arg2[%c0, %c0_4] : memref<344x384xbf16, #tpu.memory_space<vmem>>, vector<344x384xbf16>
      %c0_5 = arith.constant 0 : index
      %c0_6 = arith.constant 0 : index
      %10 = vector.load %arg3[%c0_5, %c0_6] : memref<384x128xbf16, #tpu.memory_space<vmem>>, vector<384x128xbf16>
      %cst = arith.constant dense<0.000000e+00> : vector<344x128xf32>
      %11 = tpu.matmul %9, %10, %cst {dimension_numbers = #tpu.dot_dimension_numbers<[1], [0], [0], [1], [0, 0, 1, 1], [], []>} : vector<344x384xbf16>, vector<384x128xbf16>, vector<344x128xf32> -> vector<344x128xf32>
      %c0_7 = arith.constant 0 : index
      %c0_8 = arith.constant 0 : index
      %12 = vector.load %arg4[%c0_7, %c0_8] : memref<1x128xf32, #tpu.memory_space<vmem>>, vector<1x128xf32>
      %13 = vector.broadcast %12 : vector<1x128xf32> to vector<344x128xf32>
      %14 = arith.addf %11, %13 : vector<344x128xf32>
      %15 = arith.index_cast %arg1 : i32 to index
      %c0_9 = arith.constant 0 : index
      %c0_10 = arith.constant 0 : index
      %16 = vector.load %arg8[%15, %c0_9, %c0_10] : memref<1x344x128xf32, #tpu.memory_space<vmem>>, vector<1x344x128xf32>
      %17 = vector.shape_cast %16 : vector<1x344x128xf32> to vector<344x128xf32>
      %18 = vector.shape_cast %14 : vector<344x128xf32> to vector<1x344x128xf32>
      tpu.vector_store %arg8[%15, %c0_9, %c0_10], %18 {strides = array<i32>} : memref<1x344x128xf32, #tpu.memory_space<vmem>>, vector<1x344x128xf32>,
      %c344_i32 = arith.constant 344 : i32
      %19 = arith.muli %arg1, %c344_i32 : i32
      %20 = tpu.iota {dimensions = array<i32: 0>} : vector<344x128xi32>
      %21 = vector.broadcast %19 : i32 to vector<344x128xi32>
      %22 = arith.addi %21, %20 : vector<344x128xi32>
      %c338_i32 = arith.constant 338 : i32
      %23 = vector.broadcast %c338_i32 : i32 to vector<344x128xi32>
      %24 = arith.cmpi slt, %22, %23 : vector<344x128xi32>
      %25 = arith.extui %24 : vector<344x128xi1> to vector<344x128xi32>
      %26 = arith.sitofp %25 : vector<344x128xi32> to vector<344x128xf32>
      %27 = arith.mulf %14, %26 : vector<344x128xf32>
      %c0_11 = arith.constant 0 : index
      %c0_12 = arith.constant 0 : index
      %28 = vector.load %arg9[%c0_11, %c0_12] : memref<1x128xf32, #tpu.memory_space<vmem>>, vector<1x128xf32>
      %cst_13 = arith.constant dense<0.000000e+00> : vector<128xf32>
      %29 = vector.multi_reduction <add>, %27, %cst_13 [0] : vector<344x128xf32> to vector<128xf32>
      %30 = vector.shape_cast %29 : vector<128xf32> to vector<1x128xf32>
      %31 = arith.addf %28, %30 : vector<1x128xf32>
      %c0_14 = arith.constant 0 : index
      %c0_15 = arith.constant 0 : index
      %32 = vector.load %arg9[%c0_14, %c0_15] : memref<1x128xf32, #tpu.memory_space<vmem>>, vector<1x128xf32>
      tpu.vector_store %arg9[%c0_14, %c0_15], %31 {strides = array<i32>} : memref<1x128xf32, #tpu.memory_space<vmem>>, vector<1x128xf32>,
      %c0_16 = arith.constant 0 : index
      %c0_17 = arith.constant 0 : index
      %33 = vector.load %arg10[%c0_16, %c0_17] : memref<1x128xf32, #tpu.memory_space<vmem>>, vector<1x128xf32>
      %34 = arith.mulf %27, %27 : vector<344x128xf32>
      %cst_18 = arith.constant dense<0.000000e+00> : vector<128xf32>
      %35 = vector.multi_reduction <add>, %34, %cst_18 [0] : vector<344x128xf32> to vector<128xf32>
      %36 = vector.shape_cast %35 : vector<128xf32> to vector<1x128xf32>
      %37 = arith.addf %33, %36 : vector<1x128xf32>
      %c0_19 = arith.constant 0 : index
      %c0_20 = arith.constant 0 : index
      %38 = vector.load %arg10[%c0_19, %c0_20] : memref<1x128xf32, #tpu.memory_space<vmem>>, vector<1x128xf32>
      tpu.vector_store %arg10[%c0_19, %c0_20], %37 {strides = array<i32>} : memref<1x128xf32, #tpu.memory_space<vmem>>, vector<1x128xf32>,
    } else {
    }
    %c1_i32 = arith.constant 1 : i32
    %3 = arith.cmpi eq, %arg0, %c1_i32 : i32
    %4 = arith.extui %3 : i1 to i32
    %c0_i32_1 = arith.constant 0 : i32
    %5 = arith.cmpi ne, %4, %c0_i32_1 : i32
    scf.if %5 {
      %c0 = arith.constant 0 : index
      %c0_2 = arith.constant 0 : index
      %6 = vector.load %arg9[%c0, %c0_2] : memref<1x128xf32, #tpu.memory_space<vmem>>, vector<1x128xf32>
      %cst = arith.constant 2.958580e-03 : f32
      %7 = vector.broadcast %cst : f32 to vector<1x128xf32>
      %8 = arith.mulf %6, %7 : vector<1x128xf32>
      %c0_3 = arith.constant 0 : index
      %c0_4 = arith.constant 0 : index
      %9 = vector.load %arg10[%c0_3, %c0_4] : memref<1x128xf32, #tpu.memory_space<vmem>>, vector<1x128xf32>
      %cst_5 = arith.constant 2.958580e-03 : f32
      %10 = vector.broadcast %cst_5 : f32 to vector<1x128xf32>
      %11 = arith.mulf %9, %10 : vector<1x128xf32>
      %12 = arith.mulf %8, %8 : vector<1x128xf32>
      %13 = arith.subf %11, %12 : vector<1x128xf32>
      %cst_6 = arith.constant 0.000000e+00 : f32
      %14 = vector.broadcast %cst_6 : f32 to vector<1x128xf32>
      %15 = arith.maximumf %13, %14 : vector<1x128xf32>
      %c0_7 = arith.constant 0 : index
      %c0_8 = arith.constant 0 : index
      %16 = vector.load %arg5[%c0_7, %c0_8] : memref<1x128xf32, #tpu.memory_space<vmem>>, vector<1x128xf32>
      %cst_9 = arith.constant 9.99999974E-6 : f32
      %17 = vector.broadcast %cst_9 : f32 to vector<1x128xf32>
      %18 = arith.addf %15, %17 : vector<1x128xf32>
      %19 = math.rsqrt %18 : vector<1x128xf32>
      %20 = arith.mulf %16, %19 : vector<1x128xf32>
      %c0_10 = arith.constant 0 : index
      %c0_11 = arith.constant 0 : index
      %21 = vector.load %arg6[%c0_10, %c0_11] : memref<1x128xf32, #tpu.memory_space<vmem>>, vector<1x128xf32>
      %22 = arith.mulf %8, %20 : vector<1x128xf32>
      %23 = arith.subf %21, %22 : vector<1x128xf32>
      %24 = arith.index_cast %arg1 : i32 to index
      %c0_12 = arith.constant 0 : index
      %c0_13 = arith.constant 0 : index
      %25 = vector.load %arg8[%24, %c0_12, %c0_13] : memref<1x344x128xf32, #tpu.memory_space<vmem>>, vector<1x344x128xf32>
      %26 = vector.shape_cast %25 : vector<1x344x128xf32> to vector<344x128xf32>
      %27 = vector.broadcast %20 : vector<1x128xf32> to vector<344x128xf32>
      %28 = arith.mulf %26, %27 : vector<344x128xf32>
      %29 = vector.broadcast %23 : vector<1x128xf32> to vector<344x128xf32>
      %30 = arith.addf %28, %29 : vector<344x128xf32>
      %cst_14 = arith.constant 0.000000e+00 : f32
      %31 = vector.broadcast %cst_14 : f32 to vector<344x128xf32>
      %32 = arith.cmpf oge, %30, %31 : vector<344x128xf32>
      %cst_15 = arith.constant 2.000000e-01 : f32
      %33 = vector.broadcast %cst_15 : f32 to vector<344x128xf32>
      %34 = arith.mulf %33, %30 : vector<344x128xf32>
      %35 = arith.select %32, %30, %34 : vector<344x128xi1>, vector<344x128xf32>
      %36 = arith.truncf %35 : vector<344x128xf32> to vector<344x128xbf16>
      %c0_16 = arith.constant 0 : index
      %c0_17 = arith.constant 0 : index
      %37 = vector.load %arg7[%c0_16, %c0_17] : memref<344x128xbf16, #tpu.memory_space<vmem>>, vector<344x128xbf16>
      tpu.vector_store %arg7[%c0_16, %c0_17], %36 {strides = array<i32>} : memref<344x128xbf16, #tpu.memory_space<vmem>>, vector<344x128xbf16>,
    } else {
    }
    return
  }
  func.func @transform_0(%arg0: i32, %arg1: i32) -> (i32, i32) {
    %c1_i32 = arith.constant 1 : i32
    %0 = arith.subi %c1_i32, %arg0 : i32
    %1 = arith.muli %0, %arg1 : i32
    %c0_i32 = arith.constant 0 : i32
    %c0_i32_0 = arith.constant 0 : i32
    return %1, %c0_i32 : i32, i32
  }
  func.func @transform_1(%arg0: i32, %arg1: i32) -> (i32, i32) {
    %c0_i32 = arith.constant 0 : i32
    %c0_i32_0 = arith.constant 0 : i32
    %c0_i32_1 = arith.constant 0 : i32
    return %c0_i32, %c0_i32_0 : i32, i32
  }
  func.func @transform_2(%arg0: i32, %arg1: i32) -> (i32, i32) {
    %c0_i32 = arith.constant 0 : i32
    %c0_i32_0 = arith.constant 0 : i32
    %c0_i32_1 = arith.constant 0 : i32
    return %c0_i32, %c0_i32_0 : i32, i32
  }
  func.func @transform_3(%arg0: i32, %arg1: i32) -> (i32, i32) {
    %c0_i32 = arith.constant 0 : i32
    %c0_i32_0 = arith.constant 0 : i32
    %c0_i32_1 = arith.constant 0 : i32
    return %c0_i32, %c0_i32_0 : i32, i32
  }
  func.func @transform_4(%arg0: i32, %arg1: i32) -> (i32, i32) {
    %c0_i32 = arith.constant 0 : i32
    %c0_i32_0 = arith.constant 0 : i32
    %c0_i32_1 = arith.constant 0 : i32
    return %c0_i32, %c0_i32_0 : i32, i32
  }
  func.func @transform_5(%arg0: i32, %arg1: i32) -> (i32, i32) {
    %c0_i32 = arith.constant 0 : i32
    %c0_i32_0 = arith.constant 0 : i32
    return %arg1, %c0_i32 : i32, i32
  }
}

module attributes {stable_mosaic.version = 11 : i64} {
  func.func @_convt_bn_leaky_kernel(%arg0: i32, %arg1: i32, %arg2: memref<512x256xbf16, #tpu.memory_space<vmem>>, %arg3: memref<256x128xbf16, #tpu.memory_space<vmem>>, %arg4: memref<1x128xf32, #tpu.memory_space<vmem>>, %arg5: memref<1x128xf32, #tpu.memory_space<vmem>>, %arg6: memref<1x128xf32, #tpu.memory_space<vmem>>, %arg7: memref<512x128xbf16, #tpu.memory_space<vmem>>, %arg8: memref<3x512x128xf32, #tpu.memory_space<vmem>>, %arg9: memref<1x128xf32, #tpu.memory_space<vmem>>, %arg10: memref<1x128xf32, #tpu.memory_space<vmem>>) attributes {dimension_semantics = [#tpu.dimension_semantics<arbitrary>, #tpu.dimension_semantics<arbitrary>], iteration_bounds = array<i64: 2, 3>, scalar_prefetch = 0 : i64, scratch_operands = 3 : i64, tpu.core_type = #tpu.core_type<tc>, window_params = [{transform_indices = @transform_0, window_bounds = array<i64: 512, 256>}, {pipeline_mode = #tpu.pipeline_mode<synchronous>, transform_indices = @transform_1, window_bounds = array<i64: 256, 128>}, {pipeline_mode = #tpu.pipeline_mode<synchronous>, transform_indices = @transform_2, window_bounds = array<i64: 1, 128>}, {pipeline_mode = #tpu.pipeline_mode<synchronous>, transform_indices = @transform_3, window_bounds = array<i64: 1, 128>}, {pipeline_mode = #tpu.pipeline_mode<synchronous>, transform_indices = @transform_4, window_bounds = array<i64: 1, 128>}, {transform_indices = @transform_5, window_bounds = array<i64: 512, 128>}]} {
    %c0_i32 = arith.constant 0 : i32
    %0 = arith.cmpi eq, %arg0, %c0_i32 : i32
    %1 = arith.extui %0 : i1 to i32
    %c0_i32_0 = arith.constant 0 : i32
    %2 = arith.cmpi ne, %1, %c0_i32_0 : i32
    scf.if %2 {
      %c0_i32_2 = arith.constant 0 : i32
      %6 = arith.cmpi eq, %arg1, %c0_i32_2 : i32
      %7 = arith.extui %6 : i1 to i32
      %c0_i32_3 = arith.constant 0 : i32
      %8 = arith.cmpi ne, %7, %c0_i32_3 : i32
      scf.if %8 {
        %cst_21 = arith.constant 0.000000e+00 : f32
        %39 = vector.broadcast %cst_21 : f32 to vector<1x128xf32>
        %c0_22 = arith.constant 0 : index
        %c0_23 = arith.constant 0 : index
        %40 = vector.load %arg9[%c0_22, %c0_23] : memref<1x128xf32, #tpu.memory_space<vmem>>, vector<1x128xf32>
        tpu.vector_store %arg9[%c0_22, %c0_23], %39 {strides = array<i32>} : memref<1x128xf32, #tpu.memory_space<vmem>>, vector<1x128xf32>,
        %cst_24 = arith.constant 0.000000e+00 : f32
        %41 = vector.broadcast %cst_24 : f32 to vector<1x128xf32>
        %c0_25 = arith.constant 0 : index
        %c0_26 = arith.constant 0 : index
        %42 = vector.load %arg10[%c0_25, %c0_26] : memref<1x128xf32, #tpu.memory_space<vmem>>, vector<1x128xf32>
        tpu.vector_store %arg10[%c0_25, %c0_26], %41 {strides = array<i32>} : memref<1x128xf32, #tpu.memory_space<vmem>>, vector<1x128xf32>,
      } else {
      }
      %c0 = arith.constant 0 : index
      %c0_4 = arith.constant 0 : index
      %9 = vector.load %arg2[%c0, %c0_4] : memref<512x256xbf16, #tpu.memory_space<vmem>>, vector<512x256xbf16>
      %c0_5 = arith.constant 0 : index
      %c0_6 = arith.constant 0 : index
      %10 = vector.load %arg3[%c0_5, %c0_6] : memref<256x128xbf16, #tpu.memory_space<vmem>>, vector<256x128xbf16>
      %cst = arith.constant dense<0.000000e+00> : vector<512x128xf32>
      %11 = tpu.matmul %9, %10, %cst {dimension_numbers = #tpu.dot_dimension_numbers<[1], [0], [0], [1], [0, 0, 1, 1], [], []>} : vector<512x256xbf16>, vector<256x128xbf16>, vector<512x128xf32> -> vector<512x128xf32>
      %c0_7 = arith.constant 0 : index
      %c0_8 = arith.constant 0 : index
      %12 = vector.load %arg4[%c0_7, %c0_8] : memref<1x128xf32, #tpu.memory_space<vmem>>, vector<1x128xf32>
      %13 = vector.broadcast %12 : vector<1x128xf32> to vector<512x128xf32>
      %14 = arith.addf %11, %13 : vector<512x128xf32>
      %15 = arith.index_cast %arg1 : i32 to index
      %c0_9 = arith.constant 0 : index
      %c0_10 = arith.constant 0 : index
      %16 = vector.load %arg8[%15, %c0_9, %c0_10] : memref<3x512x128xf32, #tpu.memory_space<vmem>>, vector<1x512x128xf32>
      %17 = vector.shape_cast %16 : vector<1x512x128xf32> to vector<512x128xf32>
      %18 = vector.shape_cast %14 : vector<512x128xf32> to vector<1x512x128xf32>
      tpu.vector_store %arg8[%15, %c0_9, %c0_10], %18 {strides = array<i32>} : memref<3x512x128xf32, #tpu.memory_space<vmem>>, vector<1x512x128xf32>,
      %c512_i32 = arith.constant 512 : i32
      %19 = arith.muli %arg1, %c512_i32 : i32
      %20 = tpu.iota {dimensions = array<i32: 0>} : vector<512x128xi32>
      %21 = vector.broadcast %19 : i32 to vector<512x128xi32>
      %22 = arith.addi %21, %20 : vector<512x128xi32>
      %c1458_i32 = arith.constant 1458 : i32
      %23 = vector.broadcast %c1458_i32 : i32 to vector<512x128xi32>
      %24 = arith.cmpi slt, %22, %23 : vector<512x128xi32>
      %25 = arith.extui %24 : vector<512x128xi1> to vector<512x128xi32>
      %26 = arith.sitofp %25 : vector<512x128xi32> to vector<512x128xf32>
      %27 = arith.mulf %14, %26 : vector<512x128xf32>
      %c0_11 = arith.constant 0 : index
      %c0_12 = arith.constant 0 : index
      %28 = vector.load %arg9[%c0_11, %c0_12] : memref<1x128xf32, #tpu.memory_space<vmem>>, vector<1x128xf32>
      %cst_13 = arith.constant dense<0.000000e+00> : vector<128xf32>
      %29 = vector.multi_reduction <add>, %27, %cst_13 [0] : vector<512x128xf32> to vector<128xf32>
      %30 = vector.shape_cast %29 : vector<128xf32> to vector<1x128xf32>
      %31 = arith.addf %28, %30 : vector<1x128xf32>
      %c0_14 = arith.constant 0 : index
      %c0_15 = arith.constant 0 : index
      %32 = vector.load %arg9[%c0_14, %c0_15] : memref<1x128xf32, #tpu.memory_space<vmem>>, vector<1x128xf32>
      tpu.vector_store %arg9[%c0_14, %c0_15], %31 {strides = array<i32>} : memref<1x128xf32, #tpu.memory_space<vmem>>, vector<1x128xf32>,
      %c0_16 = arith.constant 0 : index
      %c0_17 = arith.constant 0 : index
      %33 = vector.load %arg10[%c0_16, %c0_17] : memref<1x128xf32, #tpu.memory_space<vmem>>, vector<1x128xf32>
      %34 = arith.mulf %27, %27 : vector<512x128xf32>
      %cst_18 = arith.constant dense<0.000000e+00> : vector<128xf32>
      %35 = vector.multi_reduction <add>, %34, %cst_18 [0] : vector<512x128xf32> to vector<128xf32>
      %36 = vector.shape_cast %35 : vector<128xf32> to vector<1x128xf32>
      %37 = arith.addf %33, %36 : vector<1x128xf32>
      %c0_19 = arith.constant 0 : index
      %c0_20 = arith.constant 0 : index
      %38 = vector.load %arg10[%c0_19, %c0_20] : memref<1x128xf32, #tpu.memory_space<vmem>>, vector<1x128xf32>
      tpu.vector_store %arg10[%c0_19, %c0_20], %37 {strides = array<i32>} : memref<1x128xf32, #tpu.memory_space<vmem>>, vector<1x128xf32>,
    } else {
    }
    %c1_i32 = arith.constant 1 : i32
    %3 = arith.cmpi eq, %arg0, %c1_i32 : i32
    %4 = arith.extui %3 : i1 to i32
    %c0_i32_1 = arith.constant 0 : i32
    %5 = arith.cmpi ne, %4, %c0_i32_1 : i32
    scf.if %5 {
      %c0 = arith.constant 0 : index
      %c0_2 = arith.constant 0 : index
      %6 = vector.load %arg9[%c0, %c0_2] : memref<1x128xf32, #tpu.memory_space<vmem>>, vector<1x128xf32>
      %cst = arith.constant 6.85871055E-4 : f32
      %7 = vector.broadcast %cst : f32 to vector<1x128xf32>
      %8 = arith.mulf %6, %7 : vector<1x128xf32>
      %c0_3 = arith.constant 0 : index
      %c0_4 = arith.constant 0 : index
      %9 = vector.load %arg10[%c0_3, %c0_4] : memref<1x128xf32, #tpu.memory_space<vmem>>, vector<1x128xf32>
      %cst_5 = arith.constant 6.85871055E-4 : f32
      %10 = vector.broadcast %cst_5 : f32 to vector<1x128xf32>
      %11 = arith.mulf %9, %10 : vector<1x128xf32>
      %12 = arith.mulf %8, %8 : vector<1x128xf32>
      %13 = arith.subf %11, %12 : vector<1x128xf32>
      %cst_6 = arith.constant 0.000000e+00 : f32
      %14 = vector.broadcast %cst_6 : f32 to vector<1x128xf32>
      %15 = arith.maximumf %13, %14 : vector<1x128xf32>
      %c0_7 = arith.constant 0 : index
      %c0_8 = arith.constant 0 : index
      %16 = vector.load %arg5[%c0_7, %c0_8] : memref<1x128xf32, #tpu.memory_space<vmem>>, vector<1x128xf32>
      %cst_9 = arith.constant 9.99999974E-6 : f32
      %17 = vector.broadcast %cst_9 : f32 to vector<1x128xf32>
      %18 = arith.addf %15, %17 : vector<1x128xf32>
      %19 = math.rsqrt %18 : vector<1x128xf32>
      %20 = arith.mulf %16, %19 : vector<1x128xf32>
      %c0_10 = arith.constant 0 : index
      %c0_11 = arith.constant 0 : index
      %21 = vector.load %arg6[%c0_10, %c0_11] : memref<1x128xf32, #tpu.memory_space<vmem>>, vector<1x128xf32>
      %22 = arith.mulf %8, %20 : vector<1x128xf32>
      %23 = arith.subf %21, %22 : vector<1x128xf32>
      %24 = arith.index_cast %arg1 : i32 to index
      %c0_12 = arith.constant 0 : index
      %c0_13 = arith.constant 0 : index
      %25 = vector.load %arg8[%24, %c0_12, %c0_13] : memref<3x512x128xf32, #tpu.memory_space<vmem>>, vector<1x512x128xf32>
      %26 = vector.shape_cast %25 : vector<1x512x128xf32> to vector<512x128xf32>
      %27 = vector.broadcast %20 : vector<1x128xf32> to vector<512x128xf32>
      %28 = arith.mulf %26, %27 : vector<512x128xf32>
      %29 = vector.broadcast %23 : vector<1x128xf32> to vector<512x128xf32>
      %30 = arith.addf %28, %29 : vector<512x128xf32>
      %cst_14 = arith.constant 0.000000e+00 : f32
      %31 = vector.broadcast %cst_14 : f32 to vector<512x128xf32>
      %32 = arith.cmpf oge, %30, %31 : vector<512x128xf32>
      %cst_15 = arith.constant 2.000000e-01 : f32
      %33 = vector.broadcast %cst_15 : f32 to vector<512x128xf32>
      %34 = arith.mulf %33, %30 : vector<512x128xf32>
      %35 = arith.select %32, %30, %34 : vector<512x128xi1>, vector<512x128xf32>
      %36 = arith.truncf %35 : vector<512x128xf32> to vector<512x128xbf16>
      %c0_16 = arith.constant 0 : index
      %c0_17 = arith.constant 0 : index
      %37 = vector.load %arg7[%c0_16, %c0_17] : memref<512x128xbf16, #tpu.memory_space<vmem>>, vector<512x128xbf16>
      tpu.vector_store %arg7[%c0_16, %c0_17], %36 {strides = array<i32>} : memref<512x128xbf16, #tpu.memory_space<vmem>>, vector<512x128xbf16>,
    } else {
    }
    return
  }
  func.func @transform_0(%arg0: i32, %arg1: i32) -> (i32, i32) {
    %c1_i32 = arith.constant 1 : i32
    %0 = arith.subi %c1_i32, %arg0 : i32
    %1 = arith.muli %0, %arg1 : i32
    %c0_i32 = arith.constant 0 : i32
    %c0_i32_0 = arith.constant 0 : i32
    return %1, %c0_i32 : i32, i32
  }
  func.func @transform_1(%arg0: i32, %arg1: i32) -> (i32, i32) {
    %c0_i32 = arith.constant 0 : i32
    %c0_i32_0 = arith.constant 0 : i32
    %c0_i32_1 = arith.constant 0 : i32
    return %c0_i32, %c0_i32_0 : i32, i32
  }
  func.func @transform_2(%arg0: i32, %arg1: i32) -> (i32, i32) {
    %c0_i32 = arith.constant 0 : i32
    %c0_i32_0 = arith.constant 0 : i32
    %c0_i32_1 = arith.constant 0 : i32
    return %c0_i32, %c0_i32_0 : i32, i32
  }
  func.func @transform_3(%arg0: i32, %arg1: i32) -> (i32, i32) {
    %c0_i32 = arith.constant 0 : i32
    %c0_i32_0 = arith.constant 0 : i32
    %c0_i32_1 = arith.constant 0 : i32
    return %c0_i32, %c0_i32_0 : i32, i32
  }
  func.func @transform_4(%arg0: i32, %arg1: i32) -> (i32, i32) {
    %c0_i32 = arith.constant 0 : i32
    %c0_i32_0 = arith.constant 0 : i32
    %c0_i32_1 = arith.constant 0 : i32
    return %c0_i32, %c0_i32_0 : i32, i32
  }
  func.func @transform_5(%arg0: i32, %arg1: i32) -> (i32, i32) {
    %c0_i32 = arith.constant 0 : i32
    %c0_i32_0 = arith.constant 0 : i32
    return %arg1, %c0_i32 : i32, i32
  }
}

module attributes {stable_mosaic.version = 11 : i64} {
  func.func @_gemm_tanh_kernel(%arg0: i32, %arg1: memref<448x128xbf16, #tpu.memory_space<vmem>>, %arg2: memref<128x128xbf16, #tpu.memory_space<vmem>>, %arg3: memref<1x128xf32, #tpu.memory_space<vmem>>, %arg4: memref<448x128xf32, #tpu.memory_space<vmem>>) attributes {dimension_semantics = [#tpu.dimension_semantics<parallel>], iteration_bounds = array<i64: 14>, scalar_prefetch = 0 : i64, scratch_operands = 0 : i64, tpu.core_type = #tpu.core_type<tc>, window_params = [{transform_indices = @transform_0, window_bounds = array<i64: 448, 128>}, {pipeline_mode = #tpu.pipeline_mode<synchronous>, transform_indices = @transform_1, window_bounds = array<i64: 128, 128>}, {pipeline_mode = #tpu.pipeline_mode<synchronous>, transform_indices = @transform_2, window_bounds = array<i64: 1, 128>}, {transform_indices = @transform_3, window_bounds = array<i64: 448, 128>}]} {
    %c0 = arith.constant 0 : index
    %c0_0 = arith.constant 0 : index
    %0 = vector.load %arg1[%c0, %c0_0] : memref<448x128xbf16, #tpu.memory_space<vmem>>, vector<448x128xbf16>
    %c0_1 = arith.constant 0 : index
    %c0_2 = arith.constant 0 : index
    %1 = vector.load %arg2[%c0_1, %c0_2] : memref<128x128xbf16, #tpu.memory_space<vmem>>, vector<128x128xbf16>
    %cst = arith.constant dense<0.000000e+00> : vector<448x128xf32>
    %2 = tpu.matmul %0, %1, %cst {dimension_numbers = #tpu.dot_dimension_numbers<[1], [0], [0], [1], [0, 0, 1, 1], [], []>} : vector<448x128xbf16>, vector<128x128xbf16>, vector<448x128xf32> -> vector<448x128xf32>
    %c0_3 = arith.constant 0 : index
    %c0_4 = arith.constant 0 : index
    %3 = vector.load %arg3[%c0_3, %c0_4] : memref<1x128xf32, #tpu.memory_space<vmem>>, vector<1x128xf32>
    %4 = vector.broadcast %3 : vector<1x128xf32> to vector<448x128xf32>
    %5 = arith.addf %2, %4 : vector<448x128xf32>
    %6 = math.tanh %5 : vector<448x128xf32>
    %c0_5 = arith.constant 0 : index
    %c0_6 = arith.constant 0 : index
    %7 = vector.load %arg4[%c0_5, %c0_6] : memref<448x128xf32, #tpu.memory_space<vmem>>, vector<448x128xf32>
    tpu.vector_store %arg4[%c0_5, %c0_6], %6 {strides = array<i32>} : memref<448x128xf32, #tpu.memory_space<vmem>>, vector<448x128xf32>,
    return
  }
  func.func @transform_0(%arg0: i32) -> (i32, i32) {
    %c0_i32 = arith.constant 0 : i32
    %c0_i32_0 = arith.constant 0 : i32
    return %arg0, %c0_i32 : i32, i32
  }
  func.func @transform_1(%arg0: i32) -> (i32, i32) {
    %c0_i32 = arith.constant 0 : i32
    %c0_i32_0 = arith.constant 0 : i32
    %c0_i32_1 = arith.constant 0 : i32
    return %c0_i32, %c0_i32_0 : i32, i32
  }
  func.func @transform_2(%arg0: i32) -> (i32, i32) {
    %c0_i32 = arith.constant 0 : i32
    %c0_i32_0 = arith.constant 0 : i32
    %c0_i32_1 = arith.constant 0 : i32
    return %c0_i32, %c0_i32_0 : i32, i32
  }
  func.func @transform_3(%arg0: i32) -> (i32, i32) {
    %c0_i32 = arith.constant 0 : i32
    %c0_i32_0 = arith.constant 0 : i32
    return %arg0, %c0_i32 : i32, i32
  }
}

</mosaic_0001>

<llo_original>
// kernel: generador_forward.5
$region0: #{generador_forward.5}
  #allocation0 [shape = 'u32[]', space=smem, size = 0x4, offset = 0x4, fixed_abs, tag = 'smem constant byte address 0x4 - core index']
  #allocation1 [shape = 'u32[144,128]{1,0:T(1,128)}', space=vmem, size = 0x12000, scoped, tag = 'internal scratch']
  #allocation2 [shape = 'f32[1,24,128]{2,1,0:T(8,128)}', space=vmem, size = 0x3000, scoped, tag = 'scratch operand']
  #allocation3 [shape = 'f32[1,128]{1,0:T(1,128)}', space=vmem, size = 0x200, scoped, tag = 'scratch operand']
  #allocation4 [shape = 'f32[1,128]{1,0:T(1,128)}', space=vmem, size = 0x200, scoped, tag = 'scratch operand']
  %s0 = inlined_call_operand.vmem [shape: bf16[24,256], index: 0, kind: input, shape index: {}]
  %s1 = inlined_call_operand.vmem [shape: bf16[256,128], index: 1, kind: input, shape index: {}]
  %s2 = inlined_call_operand.vmem [shape: f32[1,128], index: 2, kind: input, shape index: {}]
  %s3 = inlined_call_operand.vmem [shape: f32[1,128], index: 3, kind: input, shape index: {}]
  %s4 = inlined_call_operand.vmem [shape: f32[1,128], index: 4, kind: input, shape index: {}]
  %s5 = inlined_call_operand.vmem [shape: bf16[24,128], index: 5, kind: output, shape index: {}]
  %s6 = sld [smem:[#allocation0]]
  $region65: #{generador_forward.5} parent=0
    _
  %s8 = ssub.s32 1, %s6
  %s9 = scalar_select 0, %s8, %s6
  loop: start=0, step=1, limit=4
  $region2: #{generador_forward.5} parent=0 // loop_pre_header
    _
  $region3: #{generador_forward.5} parent=0 // loop_header
    %s11 = sphi 0, %s15
    %p12 = scmp.ge.s32.totalorder %s11, 4
    %s18 = sphi 0, %s30
    %s19 = sphi 0, %s26
    %s20 = sphi 0, %s18
    %s21 = sphi 0, %s19
    %s22 = sphi 0, %s20
    %s23 = sphi 0, %s21
    %s37 = sphi 0, %s39
    %s40 = sphi 0, %s37
    %s41 = sphi 0, %s40
    %s57 = sphi 0, %s41
    %s61 = sphi 0, %s61
    %s63 = sphi 0, %s61
    %s64 = sphi 0, %s63
    %s78 = sphi 0, %s64
    %s82 = sphi 0, %s82
    %s84 = sphi 0, %s82
    %s85 = sphi 0, %s84
    %s99 = sphi 0, %s85
    %s103 = sphi 0, %s103
    %s105 = sphi 0, %s103
    %s106 = sphi 0, %s105
    %s120 = sphi 0, %s106
    %s124 = sphi 0, %s124
    %s126 = sphi 0, %s124
    %s127 = sphi 0, %s126
    %s141 = sphi 0, %s127
    %s147 = sphi 0, %s149
    %s150 = sphi 0, %s147
    %s151 = sphi 0, %s150
    %s167 = sphi 0, %s151
  $region4: #{generador_forward.5} parent=0 // loop_header_branch
    %14 = sbr.rel (%p12) target = $region8
  $region5: #{generador_forward.5} parent=0 // loop_body
    %s16 = ssub.s32 %s11, 1
    %s17 = ssub.s32 %s11, 2
    %s24 = sadd.s32 1, %s19
    %p25 = scmp.ge.s32.totalorder %s24, 1
    %s26 = scalar_select %p25, 0, %s24
    %s27 = sadd.s32 1, %s18
    %s28 = scalar_select %p25, %s27, %s18
    %p29 = scmp.ge.s32.totalorder %s28, 2
    %s30 = scalar_select %p29, 0, %s28
    %s31 = ssub.s32 1, %s18
    %s32 = smul.u32 %s31, %s19
    %s33 = ssub.s32 1, %s30
    %s34 = smul.u32 %s33, %s26
    %s35 = ssub.s32 %s32, %s34
    %p36 = scmp.eq.s32.totalorder %s35, 0
    %s38 = sadd.s32 %s37, 1
    %s39 = scalar_select %p36, %s37, %s38
    %p42 = pneg %p36
    %p43 = scmp.eq.s32.totalorder %s11, 1
    %p44 = por %p42, %p43
    %p45 = scmp.ne.s32.totalorder %s37, %s40
    %p46 = scmp.eq.s32.totalorder %s11, 0
    %p47 = por %p45, %p46
    %p48 = scmp.ne.s32.totalorder %s37, %s40
    %p49 = scmp.eq.s32.totalorder %s16, 1
    %p50 = por %p48, %p49
    %p51 = scmp.ne.s32.totalorder %s40, %s41
    %p52 = scmp.eq.s32.totalorder %s16, 0
    %p53 = por %p51, %p52
    %p54 = scmp.ne.s32.totalorder %s40, %s41
    %p55 = scmp.eq.s32.totalorder %s17, 1
    %p56 = por %p54, %p55
    %p58 = scmp.ne.s32.totalorder %s41, %s57
    %p59 = scmp.eq.s32.totalorder %s17, 0
    %p60 = por %p58, %p59
    %s62 = sadd.s32 %s61, 1
    %p65 = scmp.eq.s32.totalorder %s11, 1
    %p66 = scmp.ne.s32.totalorder %s61, %s63
    %p67 = scmp.eq.s32.totalorder %s11, 0
    %p68 = por %p66, %p67
    %p69 = scmp.ne.s32.totalorder %s61, %s63
    %p70 = scmp.eq.s32.totalorder %s16, 1
    %p71 = por %p69, %p70
    %p72 = scmp.ne.s32.totalorder %s63, %s64
    %p73 = scmp.eq.s32.totalorder %s16, 0
    %p74 = por %p72, %p73
    %p75 = scmp.ne.s32.totalorder %s63, %s64
    %p76 = scmp.eq.s32.totalorder %s17, 1
    %p77 = por %p75, %p76
    %p79 = scmp.ne.s32.totalorder %s64, %s78
    %p80 = scmp.eq.s32.totalorder %s17, 0
    %p81 = por %p79, %p80
    %s83 = sadd.s32 %s82, 1
    %p86 = scmp.eq.s32.totalorder %s11, 1
    %p87 = scmp.ne.s32.totalorder %s82, %s84
    %p88 = scmp.eq.s32.totalorder %s11, 0
    %p89 = por %p87, %p88
    %p90 = scmp.ne.s32.totalorder %s82, %s84
    %p91 = scmp.eq.s32.totalorder %s16, 1
    %p92 = por %p90, %p91
    %p93 = scmp.ne.s32.totalorder %s84, %s85
    %p94 = scmp.eq.s32.totalorder %s16, 0
    %p95 = por %p93, %p94
    %p96 = scmp.ne.s32.totalorder %s84, %s85
    %p97 = scmp.eq.s32.totalorder %s17, 1
    %p98 = por %p96, %p97
    %p100 = scmp.ne.s32.totalorder %s85, %s99
    %p101 = scmp.eq.s32.totalorder %s17, 0
    %p102 = por %p100, %p101
    %s104 = sadd.s32 %s103, 1
    %p107 = scmp.eq.s32.totalorder %s11, 1
    %p108 = scmp.ne.s32.totalorder %s103, %s105
    %p109 = scmp.eq.s32.totalorder %s11, 0
    %p110 = por %p108, %p109
    %p111 = scmp.ne.s32.totalorder %s103, %s105
    %p112 = scmp.eq.s32.totalorder %s16, 1
    %p113 = por %p111, %p112
    %p114 = scmp.ne.s32.totalorder %s105, %s106
    %p115 = scmp.eq.s32.totalorder %s16, 0
    %p116 = por %p114, %p115
    %p117 = scmp.ne.s32.totalorder %s105, %s106
    %p118 = scmp.eq.s32.totalorder %s17, 1
    %p119 = por %p117, %p118
    %p121 = scmp.ne.s32.totalorder %s106, %s120
    %p122 = scmp.eq.s32.totalorder %s17, 0
    %p123 = por %p121, %p122
    %s125 = sadd.s32 %s124, 1
    %p128 = scmp.eq.s32.totalorder %s11, 1
    %p129 = scmp.ne.s32.totalorder %s124, %s126
    %p130 = scmp.eq.s32.totalorder %s11, 0
    %p131 = por %p129, %p130
    %p132 = scmp.ne.s32.totalorder %s124, %s126
    %p133 = scmp.eq.s32.totalorder %s16, 1
    %p134 = por %p132, %p133
    %p135 = scmp.ne.s32.totalorder %s126, %s127
    %p136 = scmp.eq.s32.totalorder %s16, 0
    %p137 = por %p135, %p136
    %p138 = scmp.ne.s32.totalorder %s126, %s127
    %p139 = scmp.eq.s32.totalorder %s17, 1
    %p140 = por %p138, %p139
    %p142 = scmp.ne.s32.totalorder %s127, %s141
    %p143 = scmp.eq.s32.totalorder %s17, 0
    %p144 = por %p142, %p143
    %s145 = ssub.s32 %s19, %s26
    %p146 = scmp.eq.s32.totalorder %s145, 0
    %s148 = sadd.s32 %s147, 1
    %s149 = scalar_select %p146, %s147, %s148
    %p152 = pneg %p146
    %p153 = scmp.eq.s32.totalorder %s11, 1
    %p154 = por %p152, %p153
    %p155 = scmp.ne.s32.totalorder %s147, %s150
    %p156 = scmp.eq.s32.totalorder %s11, 0
    %p157 = por %p155, %p156
    %p158 = scmp.ne.s32.totalorder %s147, %s150
    %p159 = scmp.eq.s32.totalorder %s16, 1
    %p160 = por %p158, %p159
    %p161 = scmp.ne.s32.totalorder %s150, %s151
    %p162 = scmp.eq.s32.totalorder %s16, 0
    %p163 = por %p161, %p162
    %p164 = scmp.ne.s32.totalorder %s150, %s151
    %p165 = scmp.eq.s32.totalorder %s17, 1
    %p166 = por %p164, %p165
    %p168 = scmp.ne.s32.totalorder %s151, %s167
    %p169 = scmp.eq.s32.totalorder %s17, 0
    %p170 = por %p168, %p169
    %p171 = scmp.le.s32.totalorder 1, %s11
    %p172 = scmp.lt.s32.totalorder %s11, 3
    %p173 = pnand %p171, %p172
    %p174 = pneg %p173
    // Predicated region
    $region9: #{generador_forward.5} parent=5 // pred_check
      _
    $region10: #{generador_forward.5} parent=5 // pred_check_branch
      %176 = sbr.rel (%p173) target = $region12
    $region11: #{generador_forward.5} parent=5 // pred_region
      %s177 = ssub.s32 %s11, 1
      // Predicated region
      $region13: #{generador_forward.5} parent=11 // pred_check
        %p178 = pneg %p74
      $region14: #{generador_forward.5} parent=11 // pred_check_branch
        %180 = sbr.rel (%p178) target = $region16
      $region15: #{generador_forward.5} parent=11 // pred_region
        _
      $region16: #{generador_forward.5} parent=11 // pred_fallthru
        _
      // Predicated region
      $region17: #{generador_forward.5} parent=11 // pred_check
        %p181 = pneg %p95
      $region18: #{generador_forward.5} parent=11 // pred_check_branch
        %183 = sbr.rel (%p181) target = $region20
      $region19: #{generador_forward.5} parent=11 // pred_region
        _
      $region20: #{generador_forward.5} parent=11 // pred_fallthru
        _
      // Predicated region
      $region21: #{generador_forward.5} parent=11 // pred_check
        %p184 = pneg %p116
      $region22: #{generador_forward.5} parent=11 // pred_check_branch
        %186 = sbr.rel (%p184) target = $region24
      $region23: #{generador_forward.5} parent=11 // pred_region
        _
      $region24: #{generador_forward.5} parent=11 // pred_fallthru
        _
      // Predicated region
      $region25: #{generador_forward.5} parent=11 // pred_check
        %p187 = pneg %p137
      $region26: #{generador_forward.5} parent=11 // pred_check_branch
        %189 = sbr.rel (%p187) target = $region28
      $region27: #{generador_forward.5} parent=11 // pred_region
        _
      $region28: #{generador_forward.5} parent=11 // pred_fallthru
        _
    $region12: #{generador_forward.5} parent=5 // pred_fallthru
      _
    %p190 = scmp.lt.s32.totalorder %s11, 2
    // Predicated region
    $region29: #{generador_forward.5} parent=5 // pred_check
      %p191 = pneg %p190
    $region30: #{generador_forward.5} parent=5 // pred_check_branch
      %193 = sbr.rel (%p191) target = $region32
    $region31: #{generador_forward.5} parent=5 // pred_region
      // Predicated region
      $region33: #{generador_forward.5} parent=31 // pred_check
        %p194 = pneg %p47
      $region34: #{generador_forward.5} parent=31 // pred_check_branch
        %196 = sbr.rel (%p194) target = $region36
      $region35: #{generador_forward.5} parent=31 // pred_region
        %s197 = ssub.s32 1, %s18
        %s198 = smul.u32 %s197, %s19
        %s199 = smul.u32 3, %s198
        %p200 = scmp.lt.s32.totalorder %s199, 2
        %s201 = scalar_select %p200, %s199, 2
        %s202 = smul.addr %s201, 2
        %s203 = smul.addr %s202, 4
        %s204 = scalar_lea.vmem %s0, %s203
        %s205 = ssub.s32 1, %s18
        %s206 = smul.u32 %s205, %s19
        %s207 = smul.u32 3, %s206
      $region36: #{generador_forward.5} parent=31 // pred_fallthru
        _
    $region32: #{generador_forward.5} parent=5 // pred_fallthru
      _
    %p208 = scmp.le.s32.totalorder 1, %s11
    %p209 = scmp.lt.s32.totalorder %s11, 3
    %p210 = pnand %p208, %p209
    %p211 = pneg %p210
    // Predicated region
    $region37: #{generador_forward.5} parent=5 // pred_check
      _
    $region38: #{generador_forward.5} parent=5 // pred_check_branch
      %213 = sbr.rel (%p210) target = $region40
    $region39: #{generador_forward.5} parent=5 // pred_region
      %s214 = ssub.s32 %s11, 1
      %s215 = ssub.s32 1, %s20
      %s216 = smul.u32 %s215, %s21
      %s217 = smul.u32 3, %s216
      %p218 = scmp.lt.s32.totalorder %s217, 2
      %s219 = scalar_select %p218, %s217, 2
      %s220 = smul.addr %s219, 2
      %s221 = smul.addr %s220, 4
      %s222 = scalar_lea.vmem %s0, %s221
      %p223 = pneg %p53
      %p224 = pneg %p50
      %p225 = pneg %p74
      %p226 = pneg %p71
      %p227 = pneg %p95
      %p228 = pneg %p92
      %p229 = pneg %p116
      %p230 = pneg %p113
      %p231 = pneg %p137
      %p232 = pneg %p134
      %p233 = pneg %p163
      %p234 = pneg %p160
      %s235 = smul.u32 3, %s21
      %p236 = scmp.lt.s32.totalorder %s235, 2
      %s237 = scalar_select %p236, %s235, 2
      %s238 = smul.addr %s237, 4
      %s239 = scalar_lea.vmem %s5, %s238
      %s240 = ssub.s32 1, %s20
      %s241 = smul.u32 %s240, %s21
      %s242 = smul.u32 3, %s241
      %p243 = scmp.lt.s32.totalorder %s242, 2
      %s244 = scalar_select %p243, %s242, 2
      %s245 = smul.addr %s244, 2
      %s246 = smul.addr %s245, 4
      %s247 = scalar_lea.vmem %s0, %s246
      %s248 = ssub.s32 1, %s20
      %s249 = smul.u32 %s248, %s21
      %s250 = smul.u32 3, %s249
      %s251 = smul.u32 3, %s21
      %p252 = scmp.lt.s32.totalorder %s251, 2
      %s253 = scalar_select %p252, %s251, 2
      %s254 = smul.addr %s253, 4
      %s255 = scalar_lea.vmem %s5, %s254
      %s256 = smul.u32 3, %s21
      %p258 = scmp.eq.s32.totalorder %s20, 0
      // Predicated region
      $region41: #{generador_forward.5} parent=39 // pred_check
        %p259 = pneg %p258
      $region42: #{generador_forward.5} parent=39 // pred_check_branch
        %261 = sbr.rel (%p259) target = $region44
      $region43: #{generador_forward.5} parent=39 // pred_region
        %p262 = scmp.eq.s32.totalorder %s21, 0
        // Predicated region
        $region45: #{generador_forward.5} parent=43 // pred_check
          %p263 = pneg %p262
        $region46: #{generador_forward.5} parent=43 // pred_check_branch
          %265 = sbr.rel (%p263) target = $region48
        $region47: #{generador_forward.5} parent=43 // pred_region
          %266 = vst [vmem:[#allocation3] sm:$0x1] 0.0
          %267 = vst [vmem:[#allocation4] sm:$0x1] 0.0
        $region48: #{generador_forward.5} parent=43 // pred_fallthru
          _
        %v268 = vld [vmem:[%s247] sm:$0xff]
        %v269 = vld [vmem:[%s247 + $0x8] sm:$0xff]
        %v270 = vld [vmem:[%s247 + $0x10] sm:$0xff]
        %v271 = vld [vmem:[%s1] sm:$0xf]
        %v272 = vld [vmem:[%s1 + $0x4] sm:$0xf]
        %v273 = vld [vmem:[%s1 + $0x8] sm:$0xf]
        %v274 = vld [vmem:[%s1 + $0xc] sm:$0xf]
        %v275 = vld [vmem:[%s1 + $0x10] sm:$0xf]
        %v276 = vld [vmem:[%s1 + $0x14] sm:$0xf]
        %v277 = vld [vmem:[%s1 + $0x18] sm:$0xf]
        %v278 = vld [vmem:[%s1 + $0x1c] sm:$0xf]
        %v279 = vld [vmem:[%s1 + $0x20] sm:$0xf]
        %v280 = vld [vmem:[%s1 + $0x24] sm:$0xf]
        %v281 = vld [vmem:[%s1 + $0x28] sm:$0xf]
        %v282 = vld [vmem:[%s1 + $0x2c] sm:$0xf]
        %v283 = vld [vmem:[%s1 + $0x30] sm:$0xf]
        %v284 = vld [vmem:[%s1 + $0x34] sm:$0xf]
        %v285 = vld [vmem:[%s1 + $0x38] sm:$0xf]
        %v286 = vld [vmem:[%s1 + $0x3c] sm:$0xf]
        %v287 = vld [vmem:[%s1 + $0x40] sm:$0xf]
        %v288 = vld [vmem:[%s1 + $0x44] sm:$0xf]
        %v289 = vld [vmem:[%s1 + $0x48] sm:$0xf]
        %v290 = vld [vmem:[%s1 + $0x4c] sm:$0xf]
        %v291 = vld [vmem:[%s1 + $0x50] sm:$0xf]
        %v292 = vld [vmem:[%s1 + $0x54] sm:$0xf]
        %v293 = vld [vmem:[%s1 + $0x58] sm:$0xf]
        %v294 = vld [vmem:[%s1 + $0x5c] sm:$0xf]
        %v295 = vld [vmem:[%s1 + $0x60] sm:$0xf]
        %v296 = vld [vmem:[%s1 + $0x64] sm:$0xf]
        %v297 = vld [vmem:[%s1 + $0x68] sm:$0xf]
        %v298 = vld [vmem:[%s1 + $0x6c] sm:$0xf]
        %v299 = vld [vmem:[%s1 + $0x70] sm:$0xf]
        %v300 = vld [vmem:[%s1 + $0x74] sm:$0xf]
        %v301 = vld [vmem:[%s1 + $0x78] sm:$0xf]
        %v302 = vld [vmem:[%s1 + $0x7c] sm:$0xf]
        %v303 = vld [vmem:[%s2] sm:$0x1]
        %v305 = vlaneseq
        %v306 = vshrl.u32 %v305, 7
        %v307 = vsub.s32 0, %v306
        %v308 = vrot.slane %v303, %v307
        %v313 = vunpack.c.l.b16 %v268
        %v314 = vunpack.c.h.b16 %v268
        %v315 = vunpack.c.l.b16 %v269
        %v316 = vunpack.c.h.b16 %v269
        %v317 = vunpack.c.l.b16 %v270
        %v318 = vunpack.c.h.b16 %v270
        %v319 = vpack.c.b16 %v315, %v313
        %v320 = vpack.c.b16 %v316, %v314
        %v321 = vpack.c.b16 %v317, %v317
        %v322 = vpack.c.b16 %v318, %v318
        %v359 = vunpack.c.l.b16 %v271
        %v360 = vunpack.c.l.b16 %v272
        %v361 = vunpack.c.l.b16 %v273
        %v362 = vunpack.c.l.b16 %v274
        %v363 = vunpack.c.l.b16 %v275
        %v364 = vunpack.c.l.b16 %v276
        %v365 = vunpack.c.l.b16 %v277
        %v366 = vunpack.c.l.b16 %v278
        %v367 = vunpack.c.l.b16 %v279
        %v368 = vunpack.c.l.b16 %v280
        %v369 = vunpack.c.l.b16 %v281
        %v370 = vunpack.c.l.b16 %v282
        %v371 = vunpack.c.l.b16 %v283
        %v372 = vunpack.c.l.b16 %v284
        %v373 = vunpack.c.l.b16 %v285
        %v374 = vunpack.c.l.b16 %v286
        %v375 = vunpack.c.l.b16 %v287
        %v376 = vunpack.c.l.b16 %v288
        %v377 = vunpack.c.l.b16 %v289
        %v378 = vunpack.c.l.b16 %v290
        %v379 = vunpack.c.l.b16 %v291
        %v380 = vunpack.c.l.b16 %v292
        %v381 = vunpack.c.l.b16 %v293
        %v382 = vunpack.c.l.b16 %v294
        %v383 = vunpack.c.l.b16 %v295
        %v384 = vunpack.c.l.b16 %v296
        %v385 = vunpack.c.l.b16 %v297
        %v386 = vunpack.c.l.b16 %v298
        %v387 = vunpack.c.l.b16 %v299
        %v388 = vunpack.c.l.b16 %v300
        %v389 = vunpack.c.l.b16 %v301
        %v390 = vunpack.c.l.b16 %v302
        %v391 = vpack.c.b16 %v360, %v359
        %v392 = vpack.c.b16 %v362, %v361
        %v393 = vpack.c.b16 %v364, %v363
        %v394 = vpack.c.b16 %v366, %v365
        %v395 = vpack.c.b16 %v368, %v367
        %v396 = vpack.c.b16 %v370, %v369
        %v397 = vpack.c.b16 %v372, %v371
        %v398 = vpack.c.b16 %v374, %v373
        %v399 = vpack.c.b16 %v376, %v375
        %v400 = vpack.c.b16 %v378, %v377
        %v401 = vpack.c.b16 %v380, %v379
        %v402 = vpack.c.b16 %v382, %v381
        %v403 = vpack.c.b16 %v384, %v383
        %v404 = vpack.c.b16 %v386, %v385
        %v405 = vpack.c.b16 %v388, %v387
        %v406 = vpack.c.b16 %v390, %v389
        %423 = vmatprep.subr.bf16.mxu0 0
        %424 = vmatpush1.bf16.msra.mxu0 %v391
        %425 = vmatprep.subr.bf16.mxu0 0
        %426 = vmatpush1.bf16.msra.mxu0 %v392
        %427 = vmatprep.subr.bf16.mxu0 0
        %428 = vmatpush1.bf16.msra.mxu0 %v393
        %429 = vmatprep.subr.bf16.mxu0 0
        %430 = vmatpush1.bf16.msra.mxu0 %v394
        %431 = vmatprep.subr.bf16.mxu0 0
        %432 = vmatpush1.bf16.msra.mxu0 %v395
        %433 = vmatprep.subr.bf16.mxu0 0
        %434 = vmatpush1.bf16.msra.mxu0 %v396
        %435 = vmatprep.subr.bf16.mxu0 0
        %436 = vmatpush1.bf16.msra.mxu0 %v397
        %437 = vmatprep.subr.bf16.mxu0 0
        %438 = vmatpush1.bf16.msra.mxu0 %v398
        %439 = vmatprep.subr.bf16.mxu0 0
        %440 = vmatpush1.bf16.msra.mxu0 %v399
        %441 = vmatprep.subr.bf16.mxu0 0
        %442 = vmatpush1.bf16.msra.mxu0 %v400
        %443 = vmatprep.subr.bf16.mxu0 0
        %444 = vmatpush1.bf16.msra.mxu0 %v401
        %445 = vmatprep.subr.bf16.mxu0 0
        %446 = vmatpush1.bf16.msra.mxu0 %v402
        %447 = vmatprep.subr.bf16.mxu0 0
        %448 = vmatpush1.bf16.msra.mxu0 %v403
        %449 = vmatprep.subr.bf16.mxu0 0
        %450 = vmatpush1.bf16.msra.mxu0 %v404
        %451 = vmatprep.subr.bf16.mxu0 0
        %452 = vmatpush1.bf16.msra.mxu0 %v405
        %453 = vmatprep.subr.bf16.mxu0 0
        %454 = vmatpush1.bf16.msra.mxu0 %v406
        %455 = vmatprep.mubr.bf16.mxu0 %v320
        %456 = vmatmul.mubr.bf16.gmra.mrb[0].mxu0 %v319
        %v457 = vpop.f32.mrb[0].mxu0
        %v458 = vadd.f32 %v308, %v457
        %v459 = vpop.f32.mrb[0].mxu0
        %v460 = vpop.f32.mrb[0].mxu0
        %v461 = vadd.f32 %v308, %v460
        %v462 = vpop.f32.mrb[0].mxu0
        %463 = vmatprep.mubr.bf16.mxu0 %v322
        %464 = vmatmul.mubr.bf16.gmra.mrb[0].mxu0 %v321
        %v465 = vpop.f32.mrb[0].mxu0
        %v466 = vadd.f32 %v308, %v465
        %v467 = vpop.f32.mrb[0].mxu0
        %v468 = vpop.f32.mrb[0].mxu0
        %v469 = vpop.f32.mrb[0].mxu0
        %470 = vdwg.mxu0
        %s471 = smul.u32 %s21, 24
        %s472 = scalar_lea.vmem [#allocation2], %s471
        %473 = vst [vmem:[%s472] sm:$0xff] %v458
        %474 = vst [vmem:[%s472 + $0x8] sm:$0xff] %v461
        %475 = vst [vmem:[%s472 + $0x10] sm:$0xff] %v466
        %v476 = vlaneseq
        %v477 = vshrl.u32 %v476, 7
        %v478 = vadd.s32 %v477, 8
        %v479 = vadd.s32 %v477, 16
        %v480 = vstv %s471
        %v481 = vadd.s32 %v480, %v477
        %v482 = vadd.s32 %v480, %v478
        %v483 = vadd.s32 %v480, %v479
        %vm484 = vcmp.lt.s32.totalorder %v481, 18
        %vm485 = vcmp.lt.s32.totalorder %v482, 18
        %vm486 = vcmp.lt.s32.totalorder %v483, 18
        %v487 = vsel %vm484, 1, 0
        %v488 = vsel %vm485, 1, 0
        %v489 = vsel %vm486, 1, 0
        %v490 = vcvt.s32.f32 %v487
        %v491 = vcvt.s32.f32 %v488
        %v492 = vcvt.s32.f32 %v489
        %v493 = vmul.f32 %v458, %v490
        %v494 = vmul.f32 %v461, %v491
        %v495 = vmul.f32 %v466, %v492
        %v496 = vld [vmem:[#allocation3] sm:$0x1]
        %v497 = vadd.f32 %v493, %v494
        %v498 = vadd.f32 %v497, %v495
        %v499 = vrot.slane %v498, 4
        %v500 = vadd.f32 %v498, %v499
        %v501 = vrot.slane %v500, 2
        %v502 = vadd.f32 %v500, %v501
        %v503 = vrot.slane %v502, 1
        %v504 = vadd.f32 %v502, %v503
        %v505 = vadd.f32 %v496, %v504
        %506 = vst [vmem:[#allocation3] sm:$0x1] %v505
        %v507 = vld [vmem:[#allocation4] sm:$0x1]
        %v508 = vmul.f32 %v493, %v493
        %v509 = vmul.f32 %v494, %v494
        %v510 = vmul.f32 %v495, %v495
        %v511 = vadd.f32 %v508, %v509
        %v512 = vadd.f32 %v511, %v510
        %v513 = vrot.slane %v512, 4
        %v514 = vadd.f32 %v512, %v513
        %v515 = vrot.slane %v514, 2
        %v516 = vadd.f32 %v514, %v515
        %v517 = vrot.slane %v516, 1
        %v518 = vadd.f32 %v516, %v517
        %v519 = vadd.f32 %v507, %v518
        %520 = vst [vmem:[#allocation4] sm:$0x1] %v519
      $region44: #{generador_forward.5} parent=39 // pred_fallthru
        _
      %p521 = scmp.eq.s32.totalorder %s20, 1
      // Predicated region
      $region49: #{generador_forward.5} parent=39 // pred_check
        %p522 = pneg %p521
      $region50: #{generador_forward.5} parent=39 // pred_check_branch
        %524 = sbr.rel (%p522) target = $region52
      $region51: #{generador_forward.5} parent=39 // pred_region
        %v525 = vld [vmem:[#allocation3] sm:$0x1]
        %v526 = vmul.f32 %v525, 0.055555556
        %v527 = vld [vmem:[#allocation4] sm:$0x1]
        %v528 = vmul.f32 %v527, 0.055555556
        %v529 = vmul.f32 %v526, %v526
        %v530 = vsub.f32 %v528, %v529
        %v531 = vmax.f32 %v530, 0.0
        %v532 = vld [vmem:[%s3] sm:$0x1]
        %v533 = vadd.f32 %v531, 1e-05
        %v534 = vrsqrt.pop %v533
        %v535 = vmul.f32 %v532, %v534
        %v536 = vld [vmem:[%s4] sm:$0x1]
        %v537 = vmul.f32 %v526, %v535
        %v538 = vsub.f32 %v536, %v537
        %s539 = smul.u32 %s21, 24
        %s540 = scalar_lea.vmem [#allocation2], %s539
        %v541 = vld [vmem:[%s540] sm:$0xff]
        %v542 = vld [vmem:[%s540 + $0x8] sm:$0xff]
        %v543 = vld [vmem:[%s540 + $0x10] sm:$0xff]
        %v545 = vlaneseq
        %v546 = vshrl.u32 %v545, 7
        %v547 = vsub.s32 0, %v546
        %v548 = vrot.slane %v535, %v547
        %v550 = vmul.f32 %v541, %v548
        %v551 = vmul.f32 %v542, %v548
        %v552 = vmul.f32 %v543, %v548
        %v554 = vlaneseq
        %v555 = vshrl.u32 %v554, 7
        %v556 = vsub.s32 0, %v555
        %v557 = vrot.slane %v538, %v556
        %v559 = vadd.f32 %v550, %v557
        %v560 = vadd.f32 %v551, %v557
        %v561 = vadd.f32 %v552, %v557
        %vm562 = vcmp.ge.f32.partialorder %v559, 0.0
        %vm563 = vcmp.ge.f32.partialorder %v560, 0.0
        %vm564 = vcmp.ge.f32.partialorder %v561, 0.0
        %v565 = vmul.f32 %v559, 0.2
        %v566 = vmul.f32 %v560, 0.2
        %v567 = vmul.f32 %v561, 0.2
        %v568 = vsel %vm562, %v559, %v565
        %v569 = vsel %vm563, %v560, %v566
        %v570 = vsel %vm564, %v561, %v567
        %v571 = vpack.c.bf16 %v569, %v568
        %v572 = vpack.c.bf16 %v570, %v570
        %v575 = vunpack.c.l.b16 %v571
        %v576 = vunpack.c.h.b16 %v571
        %v577 = vunpack.c.l.b16 %v572
        %v578 = vpack.c.b16 %v575, %v575
        %v579 = vpack.c.b16 %v576, %v576
        %v580 = vpack.c.b16 %v577, %v577
        %584 = vst [vmem:[%s255] sm:$0xf] %v578
        %585 = vst [vmem:[%s255 + $0x4] sm:$0xf] %v579
        %586 = vst [vmem:[%s255 + $0x8] sm:$0xf] %v580
      $region52: #{generador_forward.5} parent=39 // pred_fallthru
        _
      %s587 = smul.u32 3, %s21
      %p588 = scmp.lt.s32.totalorder %s587, 2
      %s589 = scalar_select %p588, %s587, 2
      %s590 = smul.addr %s589, 4
      %s591 = scalar_lea.vmem %s5, %s590
      // Predicated region
      $region53: #{generador_forward.5} parent=39 // pred_check
        %p592 = pneg %p160
      $region54: #{generador_forward.5} parent=39 // pred_check_branch
        %594 = sbr.rel (%p592) target = $region56
      $region55: #{generador_forward.5} parent=39 // pred_region
        %s595 = smul.u32 3, %s21
      $region56: #{generador_forward.5} parent=39 // pred_fallthru
        _
      // Predicated region
      $region57: #{generador_forward.5} parent=39 // pred_check
        %p596 = pneg %p160
      $region58: #{generador_forward.5} parent=39 // pred_check_branch
        %598 = sbr.rel (%p596) target = $region60
      $region59: #{generador_forward.5} parent=39 // pred_region
        %s599 = smul.u32 3, %s21
        %p600 = scmp.lt.s32.totalorder %s599, 2
        %s601 = scalar_select %p600, %s599, 2
        %s602 = smul.addr %s601, 4
        %s603 = scalar_lea.vmem %s5, %s602
      $region60: #{generador_forward.5} parent=39 // pred_fallthru
        _
    $region40: #{generador_forward.5} parent=5 // pred_fallthru
      _
    %p604 = scmp.le.s32.totalorder 2, %s11
    // Predicated region
    $region61: #{generador_forward.5} parent=5 // pred_check
      %p605 = pneg %p604
    $region62: #{generador_forward.5} parent=5 // pred_check_branch
      %607 = sbr.rel (%p605) target = $region64
    $region63: #{generador_forward.5} parent=5 // pred_region
      %s608 = ssub.s32 %s11, 2
    $region64: #{generador_forward.5} parent=5 // pred_fallthru
      _
  $region6: #{generador_forward.5} parent=0 // loop_footer
    %s15 = sadd.s32 1, %s11
  $region7: #{generador_forward.5} parent=0 // loop_footer_branch
    %10 = sbr.rel target = $region3
  $region8: #{generador_forward.5} parent=0 // loop_exit
    _

// kernel: generador_forward.6
$region0: #{generador_forward.6}
  #allocation0 [shape = 'u32[]', space=smem, size = 0x4, offset = 0x4, fixed_abs, tag = 'smem constant byte address 0x4 - core index']
  #allocation1 [shape = 'u32[144,128]{1,0:T(1,128)}', space=vmem, size = 0x12000, scoped, tag = 'internal scratch']
  #allocation2 [shape = 'f32[1,72,128]{2,1,0:T(8,128)}', space=vmem, size = 0x9000, scoped, tag = 'scratch operand']
  #allocation3 [shape = 'f32[1,128]{1,0:T(1,128)}', space=vmem, size = 0x200, scoped, tag = 'scratch operand']
  #allocation4 [shape = 'f32[1,128]{1,0:T(1,128)}', space=vmem, size = 0x200, scoped, tag = 'scratch operand']
  %s0 = inlined_call_operand.vmem [shape: bf16[72,1024], index: 0, kind: input, shape index: {}]
  %s1 = inlined_call_operand.vmem [shape: bf16[1024,128], index: 1, kind: input, shape index: {}]
  %s2 = inlined_call_operand.vmem [shape: f32[1,128], index: 2, kind: input, shape index: {}]
  %s3 = inlined_call_operand.vmem [shape: f32[1,128], index: 3, kind: input, shape index: {}]
  %s4 = inlined_call_operand.vmem [shape: f32[1,128], index: 4, kind: input, shape index: {}]
  %s5 = inlined_call_operand.vmem [shape: bf16[72,128], index: 5, kind: output, shape index: {}]
  %s6 = sld [smem:[#allocation0]]
  $region65: #{generador_forward.6} parent=0
    _
  %s8 = ssub.s32 1, %s6
  %s9 = scalar_select 0, %s8, %s6
  loop: start=0, step=1, limit=4
  $region2: #{generador_forward.6} parent=0 // loop_pre_header
    _
  $region3: #{generador_forward.6} parent=0 // loop_header
    %s11 = sphi 0, %s15
    %p12 = scmp.ge.s32.totalorder %s11, 4
    %s18 = sphi 0, %s30
    %s19 = sphi 0, %s26
    %s20 = sphi 0, %s18
    %s21 = sphi 0, %s19
    %s22 = sphi 0, %s20
    %s23 = sphi 0, %s21
    %s37 = sphi 0, %s39
    %s40 = sphi 0, %s37
    %s41 = sphi 0, %s40
    %s57 = sphi 0, %s41
    %s61 = sphi 0, %s61
    %s63 = sphi 0, %s61
    %s64 = sphi 0, %s63
    %s78 = sphi 0, %s64
    %s82 = sphi 0, %s82
    %s84 = sphi 0, %s82
    %s85 = sphi 0, %s84
    %s99 = sphi 0, %s85
    %s103 = sphi 0, %s103
    %s105 = sphi 0, %s103
    %s106 = sphi 0, %s105
    %s120 = sphi 0, %s106
    %s124 = sphi 0, %s124
    %s126 = sphi 0, %s124
    %s127 = sphi 0, %s126
    %s141 = sphi 0, %s127
    %s147 = sphi 0, %s149
    %s150 = sphi 0, %s147
    %s151 = sphi 0, %s150
    %s167 = sphi 0, %s151
  $region4: #{generador_forward.6} parent=0 // loop_header_branch
    %14 = sbr.rel (%p12) target = $region8
  $region5: #{generador_forward.6} parent=0 // loop_body
    %s16 = ssub.s32 %s11, 1
    %s17 = ssub.s32 %s11, 2
    %s24 = sadd.s32 1, %s19
    %p25 = scmp.ge.s32.totalorder %s24, 1
    %s26 = scalar_select %p25, 0, %s24
    %s27 = sadd.s32 1, %s18
    %s28 = scalar_select %p25, %s27, %s18
    %p29 = scmp.ge.s32.totalorder %s28, 2
    %s30 = scalar_select %p29, 0, %s28
    %s31 = ssub.s32 1, %s18
    %s32 = smul.u32 %s31, %s19
    %s33 = ssub.s32 1, %s30
    %s34 = smul.u32 %s33, %s26
    %s35 = ssub.s32 %s32, %s34
    %p36 = scmp.eq.s32.totalorder %s35, 0
    %s38 = sadd.s32 %s37, 1
    %s39 = scalar_select %p36, %s37, %s38
    %p42 = pneg %p36
    %p43 = scmp.eq.s32.totalorder %s11, 1
    %p44 = por %p42, %p43
    %p45 = scmp.ne.s32.totalorder %s37, %s40
    %p46 = scmp.eq.s32.totalorder %s11, 0
    %p47 = por %p45, %p46
    %p48 = scmp.ne.s32.totalorder %s37, %s40
    %p49 = scmp.eq.s32.totalorder %s16, 1
    %p50 = por %p48, %p49
    %p51 = scmp.ne.s32.totalorder %s40, %s41
    %p52 = scmp.eq.s32.totalorder %s16, 0
    %p53 = por %p51, %p52
    %p54 = scmp.ne.s32.totalorder %s40, %s41
    %p55 = scmp.eq.s32.totalorder %s17, 1
    %p56 = por %p54, %p55
    %p58 = scmp.ne.s32.totalorder %s41, %s57
    %p59 = scmp.eq.s32.totalorder %s17, 0
    %p60 = por %p58, %p59
    %s62 = sadd.s32 %s61, 1
    %p65 = scmp.eq.s32.totalorder %s11, 1
    %p66 = scmp.ne.s32.totalorder %s61, %s63
    %p67 = scmp.eq.s32.totalorder %s11, 0
    %p68 = por %p66, %p67
    %p69 = scmp.ne.s32.totalorder %s61, %s63
    %p70 = scmp.eq.s32.totalorder %s16, 1
    %p71 = por %p69, %p70
    %p72 = scmp.ne.s32.totalorder %s63, %s64
    %p73 = scmp.eq.s32.totalorder %s16, 0
    %p74 = por %p72, %p73
    %p75 = scmp.ne.s32.totalorder %s63, %s64
    %p76 = scmp.eq.s32.totalorder %s17, 1
    %p77 = por %p75, %p76
    %p79 = scmp.ne.s32.totalorder %s64, %s78
    %p80 = scmp.eq.s32.totalorder %s17, 0
    %p81 = por %p79, %p80
    %s83 = sadd.s32 %s82, 1
    %p86 = scmp.eq.s32.totalorder %s11, 1
    %p87 = scmp.ne.s32.totalorder %s82, %s84
    %p88 = scmp.eq.s32.totalorder %s11, 0
    %p89 = por %p87, %p88
    %p90 = scmp.ne.s32.totalorder %s82, %s84
    %p91 = scmp.eq.s32.totalorder %s16, 1
    %p92 = por %p90, %p91
    %p93 = scmp.ne.s32.totalorder %s84, %s85
    %p94 = scmp.eq.s32.totalorder %s16, 0
    %p95 = por %p93, %p94
    %p96 = scmp.ne.s32.totalorder %s84, %s85
    %p97 = scmp.eq.s32.totalorder %s17, 1
    %p98 = por %p96, %p97
    %p100 = scmp.ne.s32.totalorder %s85, %s99
    %p101 = scmp.eq.s32.totalorder %s17, 0
    %p102 = por %p100, %p101
    %s104 = sadd.s32 %s103, 1
    %p107 = scmp.eq.s32.totalorder %s11, 1
    %p108 = scmp.ne.s32.totalorder %s103, %s105
    %p109 = scmp.eq.s32.totalorder %s11, 0
    %p110 = por %p108, %p109
    %p111 = scmp.ne.s32.totalorder %s103, %s105
    %p112 = scmp.eq.s32.totalorder %s16, 1
    %p113 = por %p111, %p112
    %p114 = scmp.ne.s32.totalorder %s105, %s106
    %p115 = scmp.eq.s32.totalorder %s16, 0
    %p116 = por %p114, %p115
    %p117 = scmp.ne.s32.totalorder %s105, %s106
    %p118 = scmp.eq.s32.totalorder %s17, 1
    %p119 = por %p117, %p118
    %p121 = scmp.ne.s32.totalorder %s106, %s120
    %p122 = scmp.eq.s32.totalorder %s17, 0
    %p123 = por %p121, %p122
    %s125 = sadd.s32 %s124, 1
    %p128 = scmp.eq.s32.totalorder %s11, 1
    %p129 = scmp.ne.s32.totalorder %s124, %s126
    %p130 = scmp.eq.s32.totalorder %s11, 0
    %p131 = por %p129, %p130
    %p132 = scmp.ne.s32.totalorder %s124, %s126
    %p133 = scmp.eq.s32.totalorder %s16, 1
    %p134 = por %p132, %p133
    %p135 = scmp.ne.s32.totalorder %s126, %s127
    %p136 = scmp.eq.s32.totalorder %s16, 0
    %p137 = por %p135, %p136
    %p138 = scmp.ne.s32.totalorder %s126, %s127
    %p139 = scmp.eq.s32.totalorder %s17, 1
    %p140 = por %p138, %p139
    %p142 = scmp.ne.s32.totalorder %s127, %s141
    %p143 = scmp.eq.s32.totalorder %s17, 0
    %p144 = por %p142, %p143
    %s145 = ssub.s32 %s19, %s26
    %p146 = scmp.eq.s32.totalorder %s145, 0
    %s148 = sadd.s32 %s147, 1
    %s149 = scalar_select %p146, %s147, %s148
    %p152 = pneg %p146
    %p153 = scmp.eq.s32.totalorder %s11, 1
    %p154 = por %p152, %p153
    %p155 = scmp.ne.s32.totalorder %s147, %s150
    %p156 = scmp.eq.s32.totalorder %s11, 0
    %p157 = por %p155, %p156
    %p158 = scmp.ne.s32.totalorder %s147, %s150
    %p159 = scmp.eq.s32.totalorder %s16, 1
    %p160 = por %p158, %p159
    %p161 = scmp.ne.s32.totalorder %s150, %s151
    %p162 = scmp.eq.s32.totalorder %s16, 0
    %p163 = por %p161, %p162
    %p164 = scmp.ne.s32.totalorder %s150, %s151
    %p165 = scmp.eq.s32.totalorder %s17, 1
    %p166 = por %p164, %p165
    %p168 = scmp.ne.s32.totalorder %s151, %s167
    %p169 = scmp.eq.s32.totalorder %s17, 0
    %p170 = por %p168, %p169
    %p171 = scmp.le.s32.totalorder 1, %s11
    %p172 = scmp.lt.s32.totalorder %s11, 3
    %p173 = pnand %p171, %p172
    %p174 = pneg %p173
    // Predicated region
    $region9: #{generador_forward.6} parent=5 // pred_check
      _
    $region10: #{generador_forward.6} parent=5 // pred_check_branch
      %176 = sbr.rel (%p173) target = $region12
    $region11: #{generador_forward.6} parent=5 // pred_region
      %s177 = ssub.s32 %s11, 1
      // Predicated region
      $region13: #{generador_forward.6} parent=11 // pred_check
        %p178 = pneg %p74
      $region14: #{generador_forward.6} parent=11 // pred_check_branch
        %180 = sbr.rel (%p178) target = $region16
      $region15: #{generador_forward.6} parent=11 // pred_region
        _
      $region16: #{generador_forward.6} parent=11 // pred_fallthru
        _
      // Predicated region
      $region17: #{generador_forward.6} parent=11 // pred_check
        %p181 = pneg %p95
      $region18: #{generador_forward.6} parent=11 // pred_check_branch
        %183 = sbr.rel (%p181) target = $region20
      $region19: #{generador_forward.6} parent=11 // pred_region
        _
      $region20: #{generador_forward.6} parent=11 // pred_fallthru
        _
      // Predicated region
      $region21: #{generador_forward.6} parent=11 // pred_check
        %p184 = pneg %p116
      $region22: #{generador_forward.6} parent=11 // pred_check_branch
        %186 = sbr.rel (%p184) target = $region24
      $region23: #{generador_forward.6} parent=11 // pred_region
        _
      $region24: #{generador_forward.6} parent=11 // pred_fallthru
        _
      // Predicated region
      $region25: #{generador_forward.6} parent=11 // pred_check
        %p187 = pneg %p137
      $region26: #{generador_forward.6} parent=11 // pred_check_branch
        %189 = sbr.rel (%p187) target = $region28
      $region27: #{generador_forward.6} parent=11 // pred_region
        _
      $region28: #{generador_forward.6} parent=11 // pred_fallthru
        _
    $region12: #{generador_forward.6} parent=5 // pred_fallthru
      _
    %p190 = scmp.lt.s32.totalorder %s11, 2
    // Predicated region
    $region29: #{generador_forward.6} parent=5 // pred_check
      %p191 = pneg %p190
    $region30: #{generador_forward.6} parent=5 // pred_check_branch
      %193 = sbr.rel (%p191) target = $region32
    $region31: #{generador_forward.6} parent=5 // pred_region
      // Predicated region
      $region33: #{generador_forward.6} parent=31 // pred_check
        %p194 = pneg %p47
      $region34: #{generador_forward.6} parent=31 // pred_check_branch
        %196 = sbr.rel (%p194) target = $region36
      $region35: #{generador_forward.6} parent=31 // pred_region
        %s197 = ssub.s32 1, %s18
        %s198 = smul.u32 %s197, %s19
        %s199 = smul.u32 9, %s198
        %p200 = scmp.lt.s32.totalorder %s199, 8
        %s201 = scalar_select %p200, %s199, 8
        %s202 = smul.addr %s201, 8
        %s203 = smul.addr %s202, 4
        %s204 = scalar_lea.vmem %s0, %s203
        %s205 = ssub.s32 1, %s18
        %s206 = smul.u32 %s205, %s19
        %s207 = smul.u32 9, %s206
      $region36: #{generador_forward.6} parent=31 // pred_fallthru
        _
    $region32: #{generador_forward.6} parent=5 // pred_fallthru
      _
    %p208 = scmp.le.s32.totalorder 1, %s11
    %p209 = scmp.lt.s32.totalorder %s11, 3
    %p210 = pnand %p208, %p209
    %p211 = pneg %p210
    // Predicated region
    $region37: #{generador_forward.6} parent=5 // pred_check
      _
    $region38: #{generador_forward.6} parent=5 // pred_check_branch
      %213 = sbr.rel (%p210) target = $region40
    $region39: #{generador_forward.6} parent=5 // pred_region
      %s214 = ssub.s32 %s11, 1
      %s215 = ssub.s32 1, %s20
      %s216 = smul.u32 %s215, %s21
      %s217 = smul.u32 9, %s216
      %p218 = scmp.lt.s32.totalorder %s217, 8
      %s219 = scalar_select %p218, %s217, 8
      %s220 = smul.addr %s219, 8
      %s221 = smul.addr %s220, 4
      %s222 = scalar_lea.vmem %s0, %s221
      %p223 = pneg %p53
      %p224 = pneg %p50
      %p225 = pneg %p74
      %p226 = pneg %p71
      %p227 = pneg %p95
      %p228 = pneg %p92
      %p229 = pneg %p116
      %p230 = pneg %p113
      %p231 = pneg %p137
      %p232 = pneg %p134
      %p233 = pneg %p163
      %p234 = pneg %p160
      %s235 = smul.u32 9, %s21
      %p236 = scmp.lt.s32.totalorder %s235, 8
      %s237 = scalar_select %p236, %s235, 8
      %s238 = smul.addr %s237, 4
      %s239 = scalar_lea.vmem %s5, %s238
      %s240 = ssub.s32 1, %s20
      %s241 = smul.u32 %s240, %s21
      %s242 = smul.u32 9, %s241
      %p243 = scmp.lt.s32.totalorder %s242, 8
      %s244 = scalar_select %p243, %s242, 8
      %s245 = smul.addr %s244, 8
      %s246 = smul.addr %s245, 4
      %s247 = scalar_lea.vmem %s0, %s246
      %s248 = ssub.s32 1, %s20
      %s249 = smul.u32 %s248, %s21
      %s250 = smul.u32 9, %s249
      %s251 = smul.u32 9, %s21
      %p252 = scmp.lt.s32.totalorder %s251, 8
      %s253 = scalar_select %p252, %s251, 8
      %s254 = smul.addr %s253, 4
      %s255 = scalar_lea.vmem %s5, %s254
      %s256 = smul.u32 9, %s21
      %p258 = scmp.eq.s32.totalorder %s20, 0
      // Predicated region
      $region41: #{generador_forward.6} parent=39 // pred_check
        %p259 = pneg %p258
      $region42: #{generador_forward.6} parent=39 // pred_check_branch
        %261 = sbr.rel (%p259) target = $region44
      $region43: #{generador_forward.6} parent=39 // pred_region
        %p262 = scmp.eq.s32.totalorder %s21, 0
        // Predicated region
        $region45: #{generador_forward.6} parent=43 // pred_check
          %p263 = pneg %p262
        $region46: #{generador_forward.6} parent=43 // pred_check_branch
          %265 = sbr.rel (%p263) target = $region48
        $region47: #{generador_forward.6} parent=43 // pred_region
          %266 = vst [vmem:[#allocation3] sm:$0x1] 0.0
          %267 = vst [vmem:[#allocation4] sm:$0x1] 0.0
        $region48: #{generador_forward.6} parent=43 // pred_fallthru
          _
        %v268 = vld [vmem:[%s247] sm:$0xff]
        %v269 = vld [vmem:[%s247 + $0x8] sm:$0xff]
        %v270 = vld [vmem:[%s247 + $0x10] sm:$0xff]
        %v271 = vld [vmem:[%s247 + $0x18] sm:$0xff]
        %v272 = vld [vmem:[%s247 + $0x20] sm:$0xff]
        %v273 = vld [vmem:[%s247 + $0x28] sm:$0xff]
        %v274 = vld [vmem:[%s247 + $0x30] sm:$0xff]
        %v275 = vld [vmem:[%s247 + $0x38] sm:$0xff]
        %v276 = vld [vmem:[%s247 + $0x40] sm:$0xff]
        %v277 = vld [vmem:[%s247 + $0x48] sm:$0xff]
        %v278 = vld [vmem:[%s247 + $0x50] sm:$0xff]
        %v279 = vld [vmem:[%s247 + $0x58] sm:$0xff]
        %v280 = vld [vmem:[%s247 + $0x60] sm:$0xff]
        %v281 = vld [vmem:[%s247 + $0x68] sm:$0xff]
        %v282 = vld [vmem:[%s247 + $0x70] sm:$0xff]
        %v283 = vld [vmem:[%s247 + $0x78] sm:$0xff]
        %v284 = vld [vmem:[%s247 + $0x80] sm:$0xff]
        %v285 = vld [vmem:[%s247 + $0x88] sm:$0xff]
        %v286 = vld [vmem:[%s247 + $0x90] sm:$0xff]
        %v287 = vld [vmem:[%s247 + $0x98] sm:$0xff]
        %v288 = vld [vmem:[%s247 + $0xa0] sm:$0xff]
        %v289 = vld [vmem:[%s247 + $0xa8] sm:$0xff]
        %v290 = vld [vmem:[%s247 + $0xb0] sm:$0xff]
        %v291 = vld [vmem:[%s247 + $0xb8] sm:$0xff]
        %v292 = vld [vmem:[%s247 + $0xc0] sm:$0xff]
        %v293 = vld [vmem:[%s247 + $0xc8] sm:$0xff]
        %v294 = vld [vmem:[%s247 + $0xd0] sm:$0xff]
        %v295 = vld [vmem:[%s247 + $0xd8] sm:$0xff]
        %v296 = vld [vmem:[%s247 + $0xe0] sm:$0xff]
        %v297 = vld [vmem:[%s247 + $0xe8] sm:$0xff]
        %v298 = vld [vmem:[%s247 + $0xf0] sm:$0xff]
        %v299 = vld [vmem:[%s247 + $0xf8] sm:$0xff]
        %v300 = vld [vmem:[%s247 + $0x100] sm:$0xff]
        %v301 = vld [vmem:[%s247 + $0x108] sm:$0xff]
        %v302 = vld [vmem:[%s247 + $0x110] sm:$0xff]
        %v303 = vld [vmem:[%s247 + $0x118] sm:$0xff]
        %v304 = vld [vmem:[%s1] sm:$0xf]
        %v305 = vld [vmem:[%s1 + $0x4] sm:$0xf]
        %v306 = vld [vmem:[%s1 + $0x8] sm:$0xf]
        %v307 = vld [vmem:[%s1 + $0xc] sm:$0xf]
        %v308 = vld [vmem:[%s1 + $0x10] sm:$0xf]
        %v309 = vld [vmem:[%s1 + $0x14] sm:$0xf]
        %v310 = vld [vmem:[%s1 + $0x18] sm:$0xf]
        %v311 = vld [vmem:[%s1 + $0x1c] sm:$0xf]
        %v312 = vld [vmem:[%s1 + $0x20] sm:$0xf]
        %v313 = vld [vmem:[%s1 + $0x24] sm:$0xf]
        %v314 = vld [vmem:[%s1 + $0x28] sm:$0xf]
        %v315 = vld [vmem:[%s1 + $0x2c] sm:$0xf]
        %v316 = vld [vmem:[%s1 + $0x30] sm:$0xf]
        %v317 = vld [vmem:[%s1 + $0x34] sm:$0xf]
        %v318 = vld [vmem:[%s1 + $0x38] sm:$0xf]
        %v319 = vld [vmem:[%s1 + $0x3c] sm:$0xf]
        %v320 = vld [vmem:[%s1 + $0x40] sm:$0xf]
        %v321 = vld [vmem:[%s1 + $0x44] sm:$0xf]
        %v322 = vld [vmem:[%s1 + $0x48] sm:$0xf]
        %v323 = vld [vmem:[%s1 + $0x4c] sm:$0xf]
        %v324 = vld [vmem:[%s1 + $0x50] sm:$0xf]
        %v325 = vld [vmem:[%s1 + $0x54] sm:$0xf]
        %v326 = vld [vmem:[%s1 + $0x58] sm:$0xf]
        %v327 = vld [vmem:[%s1 + $0x5c] sm:$0xf]
        %v328 = vld [vmem:[%s1 + $0x60] sm:$0xf]
        %v329 = vld [vmem:[%s1 + $0x64] sm:$0xf]
        %v330 = vld [vmem:[%s1 + $0x68] sm:$0xf]
        %v331 = vld [vmem:[%s1 + $0x6c] sm:$0xf]
        %v332 = vld [vmem:[%s1 + $0x70] sm:$0xf]
        %v333 = vld [vmem:[%s1 + $0x74] sm:$0xf]
        %v334 = vld [vmem:[%s1 + $0x78] sm:$0xf]
        %v335 = vld [vmem:[%s1 + $0x7c] sm:$0xf]
        %v336 = vld [vmem:[%s1 + $0x80] sm:$0xf]
        %v337 = vld [vmem:[%s1 + $0x84] sm:$0xf]
        %v338 = vld [vmem:[%s1 + $0x88] sm:$0xf]
        %v339 = vld [vmem:[%s1 + $0x8c] sm:$0xf]
        %v340 = vld [vmem:[%s1 + $0x90] sm:$0xf]
        %v341 = vld [vmem:[%s1 + $0x94] sm:$0xf]
        %v342 = vld [vmem:[%s1 + $0x98] sm:$0xf]
        %v343 = vld [vmem:[%s1 + $0x9c] sm:$0xf]
        %v344 = vld [vmem:[%s1 + $0xa0] sm:$0xf]
        %v345 = vld [vmem:[%s1 + $0xa4] sm:$0xf]
        %v346 = vld [vmem:[%s1 + $0xa8] sm:$0xf]
        %v347 = vld [vmem:[%s1 + $0xac] sm:$0xf]
        %v348 = vld [vmem:[%s1 + $0xb0] sm:$0xf]
        %v349 = vld [vmem:[%s1 + $0xb4] sm:$0xf]
        %v350 = vld [vmem:[%s1 + $0xb8] sm:$0xf]
        %v351 = vld [vmem:[%s1 + $0xbc] sm:$0xf]
        %v352 = vld [vmem:[%s1 + $0xc0] sm:$0xf]
        %v353 = vld [vmem:[%s1 + $0xc4] sm:$0xf]
        %v354 = vld [vmem:[%s1 + $0xc8] sm:$0xf]
        %v355 = vld [vmem:[%s1 + $0xcc] sm:$0xf]
        %v356 = vld [vmem:[%s1 + $0xd0] sm:$0xf]
        %v357 = vld [vmem:[%s1 + $0xd4] sm:$0xf]
        %v358 = vld [vmem:[%s1 + $0xd8] sm:$0xf]
        %v359 = vld [vmem:[%s1 + $0xdc] sm:$0xf]
        %v360 = vld [vmem:[%s1 + $0xe0] sm:$0xf]
        %v361 = vld [vmem:[%s1 + $0xe4] sm:$0xf]
        %v362 = vld [vmem:[%s1 + $0xe8] sm:$0xf]
        %v363 = vld [vmem:[%s1 + $0xec] sm:$0xf]
        %v364 = vld [vmem:[%s1 + $0xf0] sm:$0xf]
        %v365 = vld [vmem:[%s1 + $0xf4] sm:$0xf]
        %v366 = vld [vmem:[%s1 + $0xf8] sm:$0xf]
        %v367 = vld [vmem:[%s1 + $0xfc] sm:$0xf]
        %v368 = vld [vmem:[%s1 + $0x100] sm:$0xf]
        %v369 = vld [vmem:[%s1 + $0x104] sm:$0xf]
        %v370 = vld [vmem:[%s1 + $0x108] sm:$0xf]
        %v371 = vld [vmem:[%s1 + $0x10c] sm:$0xf]
        %v372 = vld [vmem:[%s1 + $0x110] sm:$0xf]
        %v373 = vld [vmem:[%s1 + $0x114] sm:$0xf]
        %v374 = vld [vmem:[%s1 + $0x118] sm:$0xf]
        %v375 = vld [vmem:[%s1 + $0x11c] sm:$0xf]
        %v376 = vld [vmem:[%s1 + $0x120] sm:$0xf]
        %v377 = vld [vmem:[%s1 + $0x124] sm:$0xf]
        %v378 = vld [vmem:[%s1 + $0x128] sm:$0xf]
        %v379 = vld [vmem:[%s1 + $0x12c] sm:$0xf]
        %v380 = vld [vmem:[%s1 + $0x130] sm:$0xf]
        %v381 = vld [vmem:[%s1 + $0x134] sm:$0xf]
        %v382 = vld [vmem:[%s1 + $0x138] sm:$0xf]
        %v383 = vld [vmem:[%s1 + $0x13c] sm:$0xf]
        %v384 = vld [vmem:[%s1 + $0x140] sm:$0xf]
        %v385 = vld [vmem:[%s1 + $0x144] sm:$0xf]
        %v386 = vld [vmem:[%s1 + $0x148] sm:$0xf]
        %v387 = vld [vmem:[%s1 + $0x14c] sm:$0xf]
        %v388 = vld [vmem:[%s1 + $0x150] sm:$0xf]
        %v389 = vld [vmem:[%s1 + $0x154] sm:$0xf]
        %v390 = vld [vmem:[%s1 + $0x158] sm:$0xf]
        %v391 = vld [vmem:[%s1 + $0x15c] sm:$0xf]
        %v392 = vld [vmem:[%s1 + $0x160] sm:$0xf]
        %v393 = vld [vmem:[%s1 + $0x164] sm:$0xf]
        %v394 = vld [vmem:[%s1 + $0x168] sm:$0xf]
        %v395 = vld [vmem:[%s1 + $0x16c] sm:$0xf]
        %v396 = vld [vmem:[%s1 + $0x170] sm:$0xf]
        %v397 = vld [vmem:[%s1 + $0x174] sm:$0xf]
        %v398 = vld [vmem:[%s1 + $0x178] sm:$0xf]
        %v399 = vld [vmem:[%s1 + $0x17c] sm:$0xf]
        %v400 = vld [vmem:[%s1 + $0x180] sm:$0xf]
        %v401 = vld [vmem:[%s1 + $0x184] sm:$0xf]
        %v402 = vld [vmem:[%s1 + $0x188] sm:$0xf]
        %v403 = vld [vmem:[%s1 + $0x18c] sm:$0xf]
        %v404 = vld [vmem:[%s1 + $0x190] sm:$0xf]
        %v405 = vld [vmem:[%s1 + $0x194] sm:$0xf]
        %v406 = vld [vmem:[%s1 + $0x198] sm:$0xf]
        %v407 = vld [vmem:[%s1 + $0x19c] sm:$0xf]
        %v408 = vld [vmem:[%s1 + $0x1a0] sm:$0xf]
        %v409 = vld [vmem:[%s1 + $0x1a4] sm:$0xf]
        %v410 = vld [vmem:[%s1 + $0x1a8] sm:$0xf]
        %v411 = vld [vmem:[%s1 + $0x1ac] sm:$0xf]
        %v412 = vld [vmem:[%s1 + $0x1b0] sm:$0xf]
        %v413 = vld [vmem:[%s1 + $0x1b4] sm:$0xf]
        %v414 = vld [vmem:[%s1 + $0x1b8] sm:$0xf]
        %v415 = vld [vmem:[%s1 + $0x1bc] sm:$0xf]
        %v416 = vld [vmem:[%s1 + $0x1c0] sm:$0xf]
        %v417 = vld [vmem:[%s1 + $0x1c4] sm:$0xf]
        %v418 = vld [vmem:[%s1 + $0x1c8] sm:$0xf]
        %v419 = vld [vmem:[%s1 + $0x1cc] sm:$0xf]
        %v420 = vld [vmem:[%s1 + $0x1d0] sm:$0xf]
        %v421 = vld [vmem:[%s1 + $0x1d4] sm:$0xf]
        %v422 = vld [vmem:[%s1 + $0x1d8] sm:$0xf]
        %v423 = vld [vmem:[%s1 + $0x1dc] sm:$0xf]
        %v424 = vld [vmem:[%s1 + $0x1e0] sm:$0xf]
        %v425 = vld [vmem:[%s1 + $0x1e4] sm:$0xf]
        %v426 = vld [vmem:[%s1 + $0x1e8] sm:$0xf]
        %v427 = vld [vmem:[%s1 + $0x1ec] sm:$0xf]
        %v428 = vld [vmem:[%s1 + $0x1f0] sm:$0xf]
        %v429 = vld [vmem:[%s1 + $0x1f4] sm:$0xf]
        %v430 = vld [vmem:[%s1 + $0x1f8] sm:$0xf]
        %v431 = vld [vmem:[%s1 + $0x1fc] sm:$0xf]
        %v432 = vld [vmem:[%s2] sm:$0x1]
        %v434 = vlaneseq
        %v435 = vshrl.u32 %v434, 7
        %v436 = vsub.s32 0, %v435
        %v437 = vrot.slane %v432, %v436
        %v475 = vunpack.c.l.b16 %v268
        %v476 = vunpack.c.h.b16 %v268
        %v477 = vunpack.c.l.b16 %v269
        %v478 = vunpack.c.h.b16 %v269
        %v479 = vunpack.c.l.b16 %v270
        %v480 = vunpack.c.h.b16 %v270
        %v481 = vunpack.c.l.b16 %v271
        %v482 = vunpack.c.h.b16 %v271
        %v483 = vunpack.c.l.b16 %v272
        %v484 = vunpack.c.h.b16 %v272
        %v485 = vunpack.c.l.b16 %v273
        %v486 = vunpack.c.h.b16 %v273
        %v487 = vunpack.c.l.b16 %v274
        %v488 = vunpack.c.h.b16 %v274
        %v489 = vunpack.c.l.b16 %v275
        %v490 = vunpack.c.h.b16 %v275
        %v491 = vunpack.c.l.b16 %v276
        %v492 = vunpack.c.h.b16 %v276
        %v493 = vunpack.c.l.b16 %v277
        %v494 = vunpack.c.h.b16 %v277
        %v495 = vunpack.c.l.b16 %v278
        %v496 = vunpack.c.h.b16 %v278
        %v497 = vunpack.c.l.b16 %v279
        %v498 = vunpack.c.h.b16 %v279
        %v499 = vunpack.c.l.b16 %v280
        %v500 = vunpack.c.h.b16 %v280
        %v501 = vunpack.c.l.b16 %v281
        %v502 = vunpack.c.h.b16 %v281
        %v503 = vunpack.c.l.b16 %v282
        %v504 = vunpack.c.h.b16 %v282
        %v505 = vunpack.c.l.b16 %v283
        %v506 = vunpack.c.h.b16 %v283
        %v507 = vunpack.c.l.b16 %v284
        %v508 = vunpack.c.h.b16 %v284
        %v509 = vunpack.c.l.b16 %v285
        %v510 = vunpack.c.h.b16 %v285
        %v511 = vunpack.c.l.b16 %v286
        %v512 = vunpack.c.h.b16 %v286
        %v513 = vunpack.c.l.b16 %v287
        %v514 = vunpack.c.h.b16 %v287
        %v515 = vunpack.c.l.b16 %v288
        %v516 = vunpack.c.h.b16 %v288
        %v517 = vunpack.c.l.b16 %v289
        %v518 = vunpack.c.h.b16 %v289
        %v519 = vunpack.c.l.b16 %v290
        %v520 = vunpack.c.h.b16 %v290
        %v521 = vunpack.c.l.b16 %v291
        %v522 = vunpack.c.h.b16 %v291
        %v523 = vunpack.c.l.b16 %v292
        %v524 = vunpack.c.h.b16 %v292
        %v525 = vunpack.c.l.b16 %v293
        %v526 = vunpack.c.h.b16 %v293
        %v527 = vunpack.c.l.b16 %v294
        %v528 = vunpack.c.h.b16 %v294
        %v529 = vunpack.c.l.b16 %v295
        %v530 = vunpack.c.h.b16 %v295
        %v531 = vunpack.c.l.b16 %v296
        %v532 = vunpack.c.h.b16 %v296
        %v533 = vunpack.c.l.b16 %v297
        %v534 = vunpack.c.h.b16 %v297
        %v535 = vunpack.c.l.b16 %v298
        %v536 = vunpack.c.h.b16 %v298
        %v537 = vunpack.c.l.b16 %v299
        %v538 = vunpack.c.h.b16 %v299
        %v539 = vunpack.c.l.b16 %v300
        %v540 = vunpack.c.h.b16 %v300
        %v541 = vunpack.c.l.b16 %v301
        %v542 = vunpack.c.h.b16 %v301
        %v543 = vunpack.c.l.b16 %v302
        %v544 = vunpack.c.h.b16 %v302
        %v545 = vunpack.c.l.b16 %v303
        %v546 = vunpack.c.h.b16 %v303
        %v547 = vpack.c.b16 %v483, %v475
        %v548 = vpack.c.b16 %v484, %v476
        %v549 = vpack.c.b16 %v485, %v477
        %v550 = vpack.c.b16 %v486, %v478
        %v551 = vpack.c.b16 %v487, %v479
        %v552 = vpack.c.b16 %v488, %v480
        %v553 = vpack.c.b16 %v489, %v481
        %v554 = vpack.c.b16 %v490, %v482
        %v555 = vpack.c.b16 %v499, %v491
        %v556 = vpack.c.b16 %v500, %v492
        %v557 = vpack.c.b16 %v501, %v493
        %v558 = vpack.c.b16 %v502, %v494
        %v559 = vpack.c.b16 %v503, %v495
        %v560 = vpack.c.b16 %v504, %v496
        %v561 = vpack.c.b16 %v505, %v497
        %v562 = vpack.c.b16 %v506, %v498
        %v563 = vpack.c.b16 %v515, %v507
        %v564 = vpack.c.b16 %v516, %v508
        %v565 = vpack.c.b16 %v517, %v509
        %v566 = vpack.c.b16 %v518, %v510
        %v567 = vpack.c.b16 %v519, %v511
        %v568 = vpack.c.b16 %v520, %v512
        %v569 = vpack.c.b16 %v521, %v513
        %v570 = vpack.c.b16 %v522, %v514
        %v571 = vpack.c.b16 %v531, %v523
        %v572 = vpack.c.b16 %v532, %v524
        %v573 = vpack.c.b16 %v533, %v525
        %v574 = vpack.c.b16 %v534, %v526
        %v575 = vpack.c.b16 %v535, %v527
        %v576 = vpack.c.b16 %v536, %v528
        %v577 = vpack.c.b16 %v537, %v529
        %v578 = vpack.c.b16 %v538, %v530
        %v579 = vpack.c.b16 %v539, %v539
        %v580 = vpack.c.b16 %v540, %v540
        %v581 = vpack.c.b16 %v541, %v541
        %v582 = vpack.c.b16 %v542, %v542
        %v583 = vpack.c.b16 %v543, %v543
        %v584 = vpack.c.b16 %v544, %v544
        %v585 = vpack.c.b16 %v545, %v545
        %v586 = vpack.c.b16 %v546, %v546
        %v755 = vunpack.c.l.b16 %v304
        %v756 = vunpack.c.l.b16 %v305
        %v757 = vunpack.c.l.b16 %v306
        %v758 = vunpack.c.l.b16 %v307
        %v759 = vunpack.c.l.b16 %v308
        %v760 = vunpack.c.l.b16 %v309
        %v761 = vunpack.c.l.b16 %v310
        %v762 = vunpack.c.l.b16 %v311
        %v763 = vunpack.c.l.b16 %v312
        %v764 = vunpack.c.l.b16 %v313
        %v765 = vunpack.c.l.b16 %v314
        %v766 = vunpack.c.l.b16 %v315
        %v767 = vunpack.c.l.b16 %v316
        %v768 = vunpack.c.l.b16 %v317
        %v769 = vunpack.c.l.b16 %v318
        %v770 = vunpack.c.l.b16 %v319
        %v771 = vunpack.c.l.b16 %v320
        %v772 = vunpack.c.l.b16 %v321
        %v773 = vunpack.c.l.b16 %v322
        %v774 = vunpack.c.l.b16 %v323
        %v775 = vunpack.c.l.b16 %v324
        %v776 = vunpack.c.l.b16 %v325
        %v777 = vunpack.c.l.b16 %v326
        %v778 = vunpack.c.l.b16 %v327
        %v779 = vunpack.c.l.b16 %v328
        %v780 = vunpack.c.l.b16 %v329
        %v781 = vunpack.c.l.b16 %v330
        %v782 = vunpack.c.l.b16 %v331
        %v783 = vunpack.c.l.b16 %v332
        %v784 = vunpack.c.l.b16 %v333
        %v785 = vunpack.c.l.b16 %v334
        %v786 = vunpack.c.l.b16 %v335
        %v787 = vunpack.c.l.b16 %v336
        %v788 = vunpack.c.l.b16 %v337
        %v789 = vunpack.c.l.b16 %v338
        %v790 = vunpack.c.l.b16 %v339
        %v791 = vunpack.c.l.b16 %v340
        %v792 = vunpack.c.l.b16 %v341
        %v793 = vunpack.c.l.b16 %v342
        %v794 = vunpack.c.l.b16 %v343
        %v795 = vunpack.c.l.b16 %v344
        %v796 = vunpack.c.l.b16 %v345
        %v797 = vunpack.c.l.b16 %v346
        %v798 = vunpack.c.l.b16 %v347
        %v799 = vunpack.c.l.b16 %v348
        %v800 = vunpack.c.l.b16 %v349
        %v801 = vunpack.c.l.b16 %v350
        %v802 = vunpack.c.l.b16 %v351
        %v803 = vunpack.c.l.b16 %v352
        %v804 = vunpack.c.l.b16 %v353
        %v805 = vunpack.c.l.b16 %v354
        %v806 = vunpack.c.l.b16 %v355
        %v807 = vunpack.c.l.b16 %v356
        %v808 = vunpack.c.l.b16 %v357
        %v809 = vunpack.c.l.b16 %v358
        %v810 = vunpack.c.l.b16 %v359
        %v811 = vunpack.c.l.b16 %v360
        %v812 = vunpack.c.l.b16 %v361
        %v813 = vunpack.c.l.b16 %v362
        %v814 = vunpack.c.l.b16 %v363
        %v815 = vunpack.c.l.b16 %v364
        %v816 = vunpack.c.l.b16 %v365
        %v817 = vunpack.c.l.b16 %v366
        %v818 = vunpack.c.l.b16 %v367
        %v819 = vunpack.c.l.b16 %v368
        %v820 = vunpack.c.l.b16 %v369
        %v821 = vunpack.c.l.b16 %v370
        %v822 = vunpack.c.l.b16 %v371
        %v823 = vunpack.c.l.b16 %v372
        %v824 = vunpack.c.l.b16 %v373
        %v825 = vunpack.c.l.b16 %v374
        %v826 = vunpack.c.l.b16 %v375
        %v827 = vunpack.c.l.b16 %v376
        %v828 = vunpack.c.l.b16 %v377
        %v829 = vunpack.c.l.b16 %v378
        %v830 = vunpack.c.l.b16 %v379
        %v831 = vunpack.c.l.b16 %v380
        %v832 = vunpack.c.l.b16 %v381
        %v833 = vunpack.c.l.b16 %v382
        %v834 = vunpack.c.l.b16 %v383
        %v835 = vunpack.c.l.b16 %v384
        %v836 = vunpack.c.l.b16 %v385
        %v837 = vunpack.c.l.b16 %v386
        %v838 = vunpack.c.l.b16 %v387
        %v839 = vunpack.c.l.b16 %v388
        %v840 = vunpack.c.l.b16 %v389
        %v841 = vunpack.c.l.b16 %v390
        %v842 = vunpack.c.l.b16 %v391
        %v843 = vunpack.c.l.b16 %v392
        %v844 = vunpack.c.l.b16 %v393
        %v845 = vunpack.c.l.b16 %v394
        %v846 = vunpack.c.l.b16 %v395
        %v847 = vunpack.c.l.b16 %v396
        %v848 = vunpack.c.l.b16 %v397
        %v849 = vunpack.c.l.b16 %v398
        %v850 = vunpack.c.l.b16 %v399
        %v851 = vunpack.c.l.b16 %v400
        %v852 = vunpack.c.l.b16 %v401
        %v853 = vunpack.c.l.b16 %v402
        %v854 = vunpack.c.l.b16 %v403
        %v855 = vunpack.c.l.b16 %v404
        %v856 = vunpack.c.l.b16 %v405
        %v857 = vunpack.c.l.b16 %v406
        %v858 = vunpack.c.l.b16 %v407
        %v859 = vunpack.c.l.b16 %v408
        %v860 = vunpack.c.l.b16 %v409
        %v861 = vunpack.c.l.b16 %v410
        %v862 = vunpack.c.l.b16 %v411
        %v863 = vunpack.c.l.b16 %v412
        %v864 = vunpack.c.l.b16 %v413
        %v865 = vunpack.c.l.b16 %v414
        %v866 = vunpack.c.l.b16 %v415
        %v867 = vunpack.c.l.b16 %v416
        %v868 = vunpack.c.l.b16 %v417
        %v869 = vunpack.c.l.b16 %v418
        %v870 = vunpack.c.l.b16 %v419
        %v871 = vunpack.c.l.b16 %v420
        %v872 = vunpack.c.l.b16 %v421
        %v873 = vunpack.c.l.b16 %v422
        %v874 = vunpack.c.l.b16 %v423
        %v875 = vunpack.c.l.b16 %v424
        %v876 = vunpack.c.l.b16 %v425
        %v877 = vunpack.c.l.b16 %v426
        %v878 = vunpack.c.l.b16 %v427
        %v879 = vunpack.c.l.b16 %v428
        %v880 = vunpack.c.l.b16 %v429
        %v881 = vunpack.c.l.b16 %v430
        %v882 = vunpack.c.l.b16 %v431
        %v883 = vpack.c.b16 %v756, %v755
        %v884 = vpack.c.b16 %v758, %v757
        %v885 = vpack.c.b16 %v760, %v759
        %v886 = vpack.c.b16 %v762, %v761
        %v887 = vpack.c.b16 %v764, %v763
        %v888 = vpack.c.b16 %v766, %v765
        %v889 = vpack.c.b16 %v768, %v767
        %v890 = vpack.c.b16 %v770, %v769
        %v891 = vpack.c.b16 %v772, %v771
        %v892 = vpack.c.b16 %v774, %v773
        %v893 = vpack.c.b16 %v776, %v775
        %v894 = vpack.c.b16 %v778, %v777
        %v895 = vpack.c.b16 %v780, %v779
        %v896 = vpack.c.b16 %v782, %v781
        %v897 = vpack.c.b16 %v784, %v783
        %v898 = vpack.c.b16 %v786, %v785
        %v899 = vpack.c.b16 %v788, %v787
        %v900 = vpack.c.b16 %v790, %v789
        %v901 = vpack.c.b16 %v792, %v791
        %v902 = vpack.c.b16 %v794, %v793
        %v903 = vpack.c.b16 %v796, %v795
        %v904 = vpack.c.b16 %v798, %v797
        %v905 = vpack.c.b16 %v800, %v799
        %v906 = vpack.c.b16 %v802, %v801
        %v907 = vpack.c.b16 %v804, %v803
        %v908 = vpack.c.b16 %v806, %v805
        %v909 = vpack.c.b16 %v808, %v807
        %v910 = vpack.c.b16 %v810, %v809
        %v911 = vpack.c.b16 %v812, %v811
        %v912 = vpack.c.b16 %v814, %v813
        %v913 = vpack.c.b16 %v816, %v815
        %v914 = vpack.c.b16 %v818, %v817
        %v915 = vpack.c.b16 %v820, %v819
        %v916 = vpack.c.b16 %v822, %v821
        %v917 = vpack.c.b16 %v824, %v823
        %v918 = vpack.c.b16 %v826, %v825
        %v919 = vpack.c.b16 %v828, %v827
        %v920 = vpack.c.b16 %v830, %v829
        %v921 = vpack.c.b16 %v832, %v831
        %v922 = vpack.c.b16 %v834, %v833
        %v923 = vpack.c.b16 %v836, %v835
        %v924 = vpack.c.b16 %v838, %v837
        %v925 = vpack.c.b16 %v840, %v839
        %v926 = vpack.c.b16 %v842, %v841
        %v927 = vpack.c.b16 %v844, %v843
        %v928 = vpack.c.b16 %v846, %v845
        %v929 = vpack.c.b16 %v848, %v847
        %v930 = vpack.c.b16 %v850, %v849
        %v931 = vpack.c.b16 %v852, %v851
        %v932 = vpack.c.b16 %v854, %v853
        %v933 = vpack.c.b16 %v856, %v855
        %v934 = vpack.c.b16 %v858, %v857
        %v935 = vpack.c.b16 %v860, %v859
        %v936 = vpack.c.b16 %v862, %v861
        %v937 = vpack.c.b16 %v864, %v863
        %v938 = vpack.c.b16 %v866, %v865
        %v939 = vpack.c.b16 %v868, %v867
        %v940 = vpack.c.b16 %v870, %v869
        %v941 = vpack.c.b16 %v872, %v871
        %v942 = vpack.c.b16 %v874, %v873
        %v943 = vpack.c.b16 %v876, %v875
        %v944 = vpack.c.b16 %v878, %v877
        %v945 = vpack.c.b16 %v880, %v879
        %v946 = vpack.c.b16 %v882, %v881
        %1011 = vmatprep.subr.bf16.mxu0 0
        %1012 = vmatpush1.bf16.msra.mxu0 %v883
        %1013 = vmatprep.subr.bf16.mxu0 0
        %1014 = vmatpush1.bf16.msra.mxu0 %v884
        %1015 = vmatprep.subr.bf16.mxu0 0
        %1016 = vmatpush1.bf16.msra.mxu0 %v885
        %1017 = vmatprep.subr.bf16.mxu0 0
        %1018 = vmatpush1.bf16.msra.mxu0 %v886
        %1019 = vmatprep.subr.bf16.mxu0 0
        %1020 = vmatpush1.bf16.msra.mxu0 %v887
        %1021 = vmatprep.subr.bf16.mxu0 0
        %1022 = vmatpush1.bf16.msra.mxu0 %v888
        %1023 = vmatprep.subr.bf16.mxu0 0
        %1024 = vmatpush1.bf16.msra.mxu0 %v889
        %1025 = vmatprep.subr.bf16.mxu0 0
        %1026 = vmatpush1.bf16.msra.mxu0 %v890
        %1027 = vmatprep.subr.bf16.mxu0 0
        %1028 = vmatpush1.bf16.msra.mxu0 %v891
        %1029 = vmatprep.subr.bf16.mxu0 0
        %1030 = vmatpush1.bf16.msra.mxu0 %v892
        %1031 = vmatprep.subr.bf16.mxu0 0
        %1032 = vmatpush1.bf16.msra.mxu0 %v893
        %1033 = vmatprep.subr.bf16.mxu0 0
        %1034 = vmatpush1.bf16.msra.mxu0 %v894
        %1035 = vmatprep.subr.bf16.mxu0 0
        %1036 = vmatpush1.bf16.msra.mxu0 %v895
        %1037 = vmatprep.subr.bf16.mxu0 0
        %1038 = vmatpush1.bf16.msra.mxu0 %v896
        %1039 = vmatprep.subr.bf16.mxu0 0
        %1040 = vmatpush1.bf16.msra.mxu0 %v897
        %1041 = vmatprep.subr.bf16.mxu0 0
        %1042 = vmatpush1.bf16.msra.mxu0 %v898
        %1043 = vmatprep.mubr.bf16.mxu0 %v548
        %1044 = vmatmul.mubr.bf16.gmra.mrb[0].mxu0 %v547
        %v1045 = vpop.f32.mrb[0].mxu0
        %v1046 = vadd.f32 %v437, %v1045
        %v1047 = vpop.f32.mrb[0].mxu0
        %v1048 = vpop.f32.mrb[0].mxu0
        %v1049 = vadd.f32 %v437, %v1048
        %v1050 = vpop.f32.mrb[0].mxu0
        %1051 = vmatprep.mubr.bf16.mxu0 %v556
        %1052 = vmatmul.mubr.bf16.gmra.mrb[0].mxu0 %v555
        %v1053 = vpop.f32.mrb[0].mxu0
        %v1054 = vadd.f32 %v437, %v1053
        %v1055 = vpop.f32.mrb[0].mxu0
        %v1056 = vpop.f32.mrb[0].mxu0
        %v1057 = vadd.f32 %v437, %v1056
        %v1058 = vpop.f32.mrb[0].mxu0
        %1059 = vmatprep.mubr.bf16.mxu0 %v564
        %1060 = vmatmul.mubr.bf16.gmra.mrb[0].mxu0 %v563
        %v1061 = vpop.f32.mrb[0].mxu0
        %v1062 = vadd.f32 %v437, %v1061
        %v1063 = vpop.f32.mrb[0].mxu0
        %v1064 = vpop.f32.mrb[0].mxu0
        %v1065 = vadd.f32 %v437, %v1064
        %v1066 = vpop.f32.mrb[0].mxu0
        %1067 = vmatprep.mubr.bf16.mxu0 %v572
        %1068 = vmatmul.mubr.bf16.gmra.mrb[0].mxu0 %v571
        %v1069 = vpop.f32.mrb[0].mxu0
        %v1070 = vadd.f32 %v437, %v1069
        %v1071 = vpop.f32.mrb[0].mxu0
        %v1072 = vpop.f32.mrb[0].mxu0
        %v1073 = vadd.f32 %v437, %v1072
        %v1074 = vpop.f32.mrb[0].mxu0
        %1075 = vmatprep.mubr.bf16.mxu0 %v580
        %1076 = vmatmul.mubr.bf16.gmra.mrb[0].mxu0 %v579
        %v1077 = vpop.f32.mrb[0].mxu0
        %v1078 = vadd.f32 %v437, %v1077
        %v1079 = vpop.f32.mrb[0].mxu0
        %v1080 = vpop.f32.mrb[0].mxu0
        %v1081 = vpop.f32.mrb[0].mxu0
        %1082 = vdwg.mxu0
        %1083 = vmatprep.subr.bf16.mxu0 0
        %1084 = vmatpush1.bf16.msra.mxu0 %v899
        %1085 = vmatprep.subr.bf16.mxu0 0
        %1086 = vmatpush1.bf16.msra.mxu0 %v900
        %1087 = vmatprep.subr.bf16.mxu0 0
        %1088 = vmatpush1.bf16.msra.mxu0 %v901
        %1089 = vmatprep.subr.bf16.mxu0 0
        %1090 = vmatpush1.bf16.msra.mxu0 %v902
        %1091 = vmatprep.subr.bf16.mxu0 0
        %1092 = vmatpush1.bf16.msra.mxu0 %v903
        %1093 = vmatprep.subr.bf16.mxu0 0
        %1094 = vmatpush1.bf16.msra.mxu0 %v904
        %1095 = vmatprep.subr.bf16.mxu0 0
        %1096 = vmatpush1.bf16.msra.mxu0 %v905
        %1097 = vmatprep.subr.bf16.mxu0 0
        %1098 = vmatpush1.bf16.msra.mxu0 %v906
        %1099 = vmatprep.subr.bf16.mxu0 0
        %1100 = vmatpush1.bf16.msra.mxu0 %v907
        %1101 = vmatprep.subr.bf16.mxu0 0
        %1102 = vmatpush1.bf16.msra.mxu0 %v908
        %1103 = vmatprep.subr.bf16.mxu0 0
        %1104 = vmatpush1.bf16.msra.mxu0 %v909
        %1105 = vmatprep.subr.bf16.mxu0 0
        %1106 = vmatpush1.bf16.msra.mxu0 %v910
        %1107 = vmatprep.subr.bf16.mxu0 0
        %1108 = vmatpush1.bf16.msra.mxu0 %v911
        %1109 = vmatprep.subr.bf16.mxu0 0
        %1110 = vmatpush1.bf16.msra.mxu0 %v912
        %1111 = vmatprep.subr.bf16.mxu0 0
        %1112 = vmatpush1.bf16.msra.mxu0 %v913
        %1113 = vmatprep.subr.bf16.mxu0 0
        %1114 = vmatpush1.bf16.msra.mxu0 %v914
        %1115 = vmatprep.mubr.bf16.mxu0 %v550
        %1116 = vmatmul.mubr.bf16.gmra.mrb[0].mxu0 %v549
        %v1117 = vpop.f32.mrb[0].mxu0
        %v1118 = vadd.f32 %v1046, %v1117
        %v1119 = vpop.f32.mrb[0].mxu0
        %v1120 = vpop.f32.mrb[0].mxu0
        %v1121 = vadd.f32 %v1049, %v1120
        %v1122 = vpop.f32.mrb[0].mxu0
        %1123 = vmatprep.mubr.bf16.mxu0 %v558
        %1124 = vmatmul.mubr.bf16.gmra.mrb[0].mxu0 %v557
        %v1125 = vpop.f32.mrb[0].mxu0
        %v1126 = vadd.f32 %v1054, %v1125
        %v1127 = vpop.f32.mrb[0].mxu0
        %v1128 = vpop.f32.mrb[0].mxu0
        %v1129 = vadd.f32 %v1057, %v1128
        %v1130 = vpop.f32.mrb[0].mxu0
        %1131 = vmatprep.mubr.bf16.mxu0 %v566
        %1132 = vmatmul.mubr.bf16.gmra.mrb[0].mxu0 %v565
        %v1133 = vpop.f32.mrb[0].mxu0
        %v1134 = vadd.f32 %v1062, %v1133
        %v1135 = vpop.f32.mrb[0].mxu0
        %v1136 = vpop.f32.mrb[0].mxu0
        %v1137 = vadd.f32 %v1065, %v1136
        %v1138 = vpop.f32.mrb[0].mxu0
        %1139 = vmatprep.mubr.bf16.mxu0 %v574
        %1140 = vmatmul.mubr.bf16.gmra.mrb[0].mxu0 %v573
        %v1141 = vpop.f32.mrb[0].mxu0
        %v1142 = vadd.f32 %v1070, %v1141
        %v1143 = vpop.f32.mrb[0].mxu0
        %v1144 = vpop.f32.mrb[0].mxu0
        %v1145 = vadd.f32 %v1073, %v1144
        %v1146 = vpop.f32.mrb[0].mxu0
        %1147 = vmatprep.mubr.bf16.mxu0 %v582
        %1148 = vmatmul.mubr.bf16.gmra.mrb[0].mxu0 %v581
        %v1149 = vpop.f32.mrb[0].mxu0
        %v1150 = vadd.f32 %v1078, %v1149
        %v1151 = vpop.f32.mrb[0].mxu0
        %v1152 = vpop.f32.mrb[0].mxu0
        %v1153 = vpop.f32.mrb[0].mxu0
        %1154 = vdwg.mxu0
        %1155 = vmatprep.subr.bf16.mxu0 0
        %1156 = vmatpush1.bf16.msra.mxu0 %v915
        %1157 = vmatprep.subr.bf16.mxu0 0
        %1158 = vmatpush1.bf16.msra.mxu0 %v916
        %1159 = vmatprep.subr.bf16.mxu0 0
        %1160 = vmatpush1.bf16.msra.mxu0 %v917
        %1161 = vmatprep.subr.bf16.mxu0 0
        %1162 = vmatpush1.bf16.msra.mxu0 %v918
        %1163 = vmatprep.subr.bf16.mxu0 0
        %1164 = vmatpush1.bf16.msra.mxu0 %v919
        %1165 = vmatprep.subr.bf16.mxu0 0
        %1166 = vmatpush1.bf16.msra.mxu0 %v920
        %1167 = vmatprep.subr.bf16.mxu0 0
        %1168 = vmatpush1.bf16.msra.mxu0 %v921
        %1169 = vmatprep.subr.bf16.mxu0 0
        %1170 = vmatpush1.bf16.msra.mxu0 %v922
        %1171 = vmatprep.subr.bf16.mxu0 0
        %1172 = vmatpush1.bf16.msra.mxu0 %v923
        %1173 = vmatprep.subr.bf16.mxu0 0
        %1174 = vmatpush1.bf16.msra.mxu0 %v924
        %1175 = vmatprep.subr.bf16.mxu0 0
        %1176 = vmatpush1.bf16.msra.mxu0 %v925
        %1177 = vmatprep.subr.bf16.mxu0 0
        %1178 = vmatpush1.bf16.msra.mxu0 %v926
        %1179 = vmatprep.subr.bf16.mxu0 0
        %1180 = vmatpush1.bf16.msra.mxu0 %v927
        %1181 = vmatprep.subr.bf16.mxu0 0
        %1182 = vmatpush1.bf16.msra.mxu0 %v928
        %1183 = vmatprep.subr.bf16.mxu0 0
        %1184 = vmatpush1.bf16.msra.mxu0 %v929
        %1185 = vmatprep.subr.bf16.mxu0 0
        %1186 = vmatpush1.bf16.msra.mxu0 %v930
        %1187 = vmatprep.mubr.bf16.mxu0 %v552
        %1188 = vmatmul.mubr.bf16.gmra.mrb[0].mxu0 %v551
        %v1189 = vpop.f32.mrb[0].mxu0
        %v1190 = vadd.f32 %v1118, %v1189
        %v1191 = vpop.f32.mrb[0].mxu0
        %v1192 = vpop.f32.mrb[0].mxu0
        %v1193 = vadd.f32 %v1121, %v1192
        %v1194 = vpop.f32.mrb[0].mxu0
        %1195 = vmatprep.mubr.bf16.mxu0 %v560
        %1196 = vmatmul.mubr.bf16.gmra.mrb[0].mxu0 %v559
        %v1197 = vpop.f32.mrb[0].mxu0
        %v1198 = vadd.f32 %v1126, %v1197
        %v1199 = vpop.f32.mrb[0].mxu0
        %v1200 = vpop.f32.mrb[0].mxu0
        %v1201 = vadd.f32 %v1129, %v1200
        %v1202 = vpop.f32.mrb[0].mxu0
        %1203 = vmatprep.mubr.bf16.mxu0 %v568
        %1204 = vmatmul.mubr.bf16.gmra.mrb[0].mxu0 %v567
        %v1205 = vpop.f32.mrb[0].mxu0
        %v1206 = vadd.f32 %v1134, %v1205
        %v1207 = vpop.f32.mrb[0].mxu0
        %v1208 = vpop.f32.mrb[0].mxu0
        %v1209 = vadd.f32 %v1137, %v1208
        %v1210 = vpop.f32.mrb[0].mxu0
        %1211 = vmatprep.mubr.bf16.mxu0 %v576
        %1212 = vmatmul.mubr.bf16.gmra.mrb[0].mxu0 %v575
        %v1213 = vpop.f32.mrb[0].mxu0
        %v1214 = vadd.f32 %v1142, %v1213
        %v1215 = vpop.f32.mrb[0].mxu0
        %v1216 = vpop.f32.mrb[0].mxu0
        %v1217 = vadd.f32 %v1145, %v1216
        %v1218 = vpop.f32.mrb[0].mxu0
        %1219 = vmatprep.mubr.bf16.mxu0 %v584
        %1220 = vmatmul.mubr.bf16.gmra.mrb[0].mxu0 %v583
        %v1221 = vpop.f32.mrb[0].mxu0
        %v1222 = vadd.f32 %v1150, %v1221
        %v1223 = vpop.f32.mrb[0].mxu0
        %v1224 = vpop.f32.mrb[0].mxu0
        %v1225 = vpop.f32.mrb[0].mxu0
        %1226 = vdwg.mxu0
        %1227 = vmatprep.subr.bf16.mxu0 0
        %1228 = vmatpush1.bf16.msra.mxu0 %v931
        %1229 = vmatprep.subr.bf16.mxu0 0
        %1230 = vmatpush1.bf16.msra.mxu0 %v932
        %1231 = vmatprep.subr.bf16.mxu0 0
        %1232 = vmatpush1.bf16.msra.mxu0 %v933
        %1233 = vmatprep.subr.bf16.mxu0 0
        %1234 = vmatpush1.bf16.msra.mxu0 %v934
        %1235 = vmatprep.subr.bf16.mxu0 0
        %1236 = vmatpush1.bf16.msra.mxu0 %v935
        %1237 = vmatprep.subr.bf16.mxu0 0
        %1238 = vmatpush1.bf16.msra.mxu0 %v936
        %1239 = vmatprep.subr.bf16.mxu0 0
        %1240 = vmatpush1.bf16.msra.mxu0 %v937
        %1241 = vmatprep.subr.bf16.mxu0 0
        %1242 = vmatpush1.bf16.msra.mxu0 %v938
        %1243 = vmatprep.subr.bf16.mxu0 0
        %1244 = vmatpush1.bf16.msra.mxu0 %v939
        %1245 = vmatprep.subr.bf16.mxu0 0
        %1246 = vmatpush1.bf16.msra.mxu0 %v940
        %1247 = vmatprep.subr.bf16.mxu0 0
        %1248 = vmatpush1.bf16.msra.mxu0 %v941
        %1249 = vmatprep.subr.bf16.mxu0 0
        %1250 = vmatpush1.bf16.msra.mxu0 %v942
        %1251 = vmatprep.subr.bf16.mxu0 0
        %1252 = vmatpush1.bf16.msra.mxu0 %v943
        %1253 = vmatprep.subr.bf16.mxu0 0
        %1254 = vmatpush1.bf16.msra.mxu0 %v944
        %1255 = vmatprep.subr.bf16.mxu0 0
        %1256 = vmatpush1.bf16.msra.mxu0 %v945
        %1257 = vmatprep.subr.bf16.mxu0 0
        %1258 = vmatpush1.bf16.msra.mxu0 %v946
        %1259 = vmatprep.mubr.bf16.mxu0 %v554
        %1260 = vmatmul.mubr.bf16.gmra.mrb[0].mxu0 %v553
        %v1261 = vpop.f32.mrb[0].mxu0
        %v1262 = vadd.f32 %v1190, %v1261
        %v1263 = vpop.f32.mrb[0].mxu0
        %v1264 = vpop.f32.mrb[0].mxu0
        %v1265 = vadd.f32 %v1193, %v1264
        %v1266 = vpop.f32.mrb[0].mxu0
        %1267 = vmatprep.mubr.bf16.mxu0 %v562
        %1268 = vmatmul.mubr.bf16.gmra.mrb[0].mxu0 %v561
        %v1269 = vpop.f32.mrb[0].mxu0
        %v1270 = vadd.f32 %v1198, %v1269
        %v1271 = vpop.f32.mrb[0].mxu0
        %v1272 = vpop.f32.mrb[0].mxu0
        %v1273 = vadd.f32 %v1201, %v1272
        %v1274 = vpop.f32.mrb[0].mxu0
        %1275 = vmatprep.mubr.bf16.mxu0 %v570
        %1276 = vmatmul.mubr.bf16.gmra.mrb[0].mxu0 %v569
        %v1277 = vpop.f32.mrb[0].mxu0
        %v1278 = vadd.f32 %v1206, %v1277
        %v1279 = vpop.f32.mrb[0].mxu0
        %v1280 = vpop.f32.mrb[0].mxu0
        %v1281 = vadd.f32 %v1209, %v1280
        %v1282 = vpop.f32.mrb[0].mxu0
        %1283 = vmatprep.mubr.bf16.mxu0 %v578
        %1284 = vmatmul.mubr.bf16.gmra.mrb[0].mxu0 %v577
        %v1285 = vpop.f32.mrb[0].mxu0
        %v1286 = vadd.f32 %v1214, %v1285
        %v1287 = vpop.f32.mrb[0].mxu0
        %v1288 = vpop.f32.mrb[0].mxu0
        %v1289 = vadd.f32 %v1217, %v1288
        %v1290 = vpop.f32.mrb[0].mxu0
        %1291 = vmatprep.mubr.bf16.mxu0 %v586
        %1292 = vmatmul.mubr.bf16.gmra.mrb[0].mxu0 %v585
        %v1293 = vpop.f32.mrb[0].mxu0
        %v1294 = vadd.f32 %v1222, %v1293
        %v1295 = vpop.f32.mrb[0].mxu0
        %v1296 = vpop.f32.mrb[0].mxu0
        %v1297 = vpop.f32.mrb[0].mxu0
        %1298 = vdwg.mxu0
        %s1299 = smul.u32 %s21, 72
        %s1300 = scalar_lea.vmem [#allocation2], %s1299
        %1301 = vst [vmem:[%s1300] sm:$0xff] %v1262
        %1302 = vst [vmem:[%s1300 + $0x8] sm:$0xff] %v1265
        %1303 = vst [vmem:[%s1300 + $0x10] sm:$0xff] %v1270
        %1304 = vst [vmem:[%s1300 + $0x18] sm:$0xff] %v1273
        %1305 = vst [vmem:[%s1300 + $0x20] sm:$0xff] %v1278
        %1306 = vst [vmem:[%s1300 + $0x28] sm:$0xff] %v1281
        %1307 = vst [vmem:[%s1300 + $0x30] sm:$0xff] %v1286
        %1308 = vst [vmem:[%s1300 + $0x38] sm:$0xff] %v1289
        %1309 = vst [vmem:[%s1300 + $0x40] sm:$0xff] %v1294
        %v1310 = vlaneseq
        %v1311 = vshrl.u32 %v1310, 7
        %v1312 = vadd.s32 %v1311, 8
        %v1313 = vadd.s32 %v1311, 16
        %v1314 = vadd.s32 %v1311, 24
        %v1315 = vadd.s32 %v1311, 32
        %v1316 = vadd.s32 %v1311, 40
        %v1317 = vadd.s32 %v1311, 48
        %v1318 = vadd.s32 %v1311, 56
        %v1319 = vadd.s32 %v1311, 64
        %v1320 = vstv %s1299
        %v1321 = vadd.s32 %v1320, %v1311
        %v1322 = vadd.s32 %v1320, %v1312
        %v1323 = vadd.s32 %v1320, %v1313
        %v1324 = vadd.s32 %v1320, %v1314
        %v1325 = vadd.s32 %v1320, %v1315
        %v1326 = vadd.s32 %v1320, %v1316
        %v1327 = vadd.s32 %v1320, %v1317
        %v1328 = vadd.s32 %v1320, %v1318
        %v1329 = vadd.s32 %v1320, %v1319
        %vm1330 = vcmp.lt.s32.totalorder %v1321, 72
        %vm1331 = vcmp.lt.s32.totalorder %v1322, 72
        %vm1332 = vcmp.lt.s32.totalorder %v1323, 72
        %vm1333 = vcmp.lt.s32.totalorder %v1324, 72
        %vm1334 = vcmp.lt.s32.totalorder %v1325, 72
        %vm1335 = vcmp.lt.s32.totalorder %v1326, 72
        %vm1336 = vcmp.lt.s32.totalorder %v1327, 72
        %vm1337 = vcmp.lt.s32.totalorder %v1328, 72
        %vm1338 = vcmp.lt.s32.totalorder %v1329, 72
        %v1339 = vsel %vm1330, 1, 0
        %v1340 = vsel %vm1331, 1, 0
        %v1341 = vsel %vm1332, 1, 0
        %v1342 = vsel %vm1333, 1, 0
        %v1343 = vsel %vm1334, 1, 0
        %v1344 = vsel %vm1335, 1, 0
        %v1345 = vsel %vm1336, 1, 0
        %v1346 = vsel %vm1337, 1, 0
        %v1347 = vsel %vm1338, 1, 0
        %v1348 = vcvt.s32.f32 %v1339
        %v1349 = vcvt.s32.f32 %v1340
        %v1350 = vcvt.s32.f32 %v1341
        %v1351 = vcvt.s32.f32 %v1342
        %v1352 = vcvt.s32.f32 %v1343
        %v1353 = vcvt.s32.f32 %v1344
        %v1354 = vcvt.s32.f32 %v1345
        %v1355 = vcvt.s32.f32 %v1346
        %v1356 = vcvt.s32.f32 %v1347
        %v1357 = vmul.f32 %v1262, %v1348
        %v1358 = vmul.f32 %v1265, %v1349
        %v1359 = vmul.f32 %v1270, %v1350
        %v1360 = vmul.f32 %v1273, %v1351
        %v1361 = vmul.f32 %v1278, %v1352
        %v1362 = vmul.f32 %v1281, %v1353
        %v1363 = vmul.f32 %v1286, %v1354
        %v1364 = vmul.f32 %v1289, %v1355
        %v1365 = vmul.f32 %v1294, %v1356
        %v1366 = vld [vmem:[#allocation3] sm:$0x1]
        %v1367 = vadd.f32 %v1357, %v1358
        %v1368 = vadd.f32 %v1367, %v1359
        %v1369 = vadd.f32 %v1368, %v1360
        %v1370 = vadd.f32 %v1369, %v1361
        %v1371 = vadd.f32 %v1370, %v1362
        %v1372 = vadd.f32 %v1371, %v1363
        %v1373 = vadd.f32 %v1372, %v1364
        %v1374 = vadd.f32 %v1373, %v1365
        %v1375 = vrot.slane %v1374, 4
        %v1376 = vadd.f32 %v1374, %v1375
        %v1377 = vrot.slane %v1376, 2
        %v1378 = vadd.f32 %v1376, %v1377
        %v1379 = vrot.slane %v1378, 1
        %v1380 = vadd.f32 %v1378, %v1379
        %v1381 = vadd.f32 %v1366, %v1380
        %1382 = vst [vmem:[#allocation3] sm:$0x1] %v1381
        %v1383 = vld [vmem:[#allocation4] sm:$0x1]
        %v1384 = vmul.f32 %v1357, %v1357
        %v1385 = vmul.f32 %v1358, %v1358
        %v1386 = vmul.f32 %v1359, %v1359
        %v1387 = vmul.f32 %v1360, %v1360
        %v1388 = vmul.f32 %v1361, %v1361
        %v1389 = vmul.f32 %v1362, %v1362
        %v1390 = vmul.f32 %v1363, %v1363
        %v1391 = vmul.f32 %v1364, %v1364
        %v1392 = vmul.f32 %v1365, %v1365
        %v1393 = vadd.f32 %v1384, %v1385
        %v1394 = vadd.f32 %v1393, %v1386
        %v1395 = vadd.f32 %v1394, %v1387
        %v1396 = vadd.f32 %v1395, %v1388
        %v1397 = vadd.f32 %v1396, %v1389
        %v1398 = vadd.f32 %v1397, %v1390
        %v1399 = vadd.f32 %v1398, %v1391
        %v1400 = vadd.f32 %v1399, %v1392
        %v1401 = vrot.slane %v1400, 4
        %v1402 = vadd.f32 %v1400, %v1401
        %v1403 = vrot.slane %v1402, 2
        %v1404 = vadd.f32 %v1402, %v1403
        %v1405 = vrot.slane %v1404, 1
        %v1406 = vadd.f32 %v1404, %v1405
        %v1407 = vadd.f32 %v1383, %v1406
        %1408 = vst [vmem:[#allocation4] sm:$0x1] %v1407
      $region44: #{generador_forward.6} parent=39 // pred_fallthru
        _
      %p1409 = scmp.eq.s32.totalorder %s20, 1
      // Predicated region
      $region49: #{generador_forward.6} parent=39 // pred_check
        %p1410 = pneg %p1409
      $region50: #{generador_forward.6} parent=39 // pred_check_branch
        %1412 = sbr.rel (%p1410) target = $region52
      $region51: #{generador_forward.6} parent=39 // pred_region
        %v1413 = vld [vmem:[#allocation3] sm:$0x1]
        %v1414 = vmul.f32 %v1413, 0.013888889
        %v1415 = vld [vmem:[#allocation4] sm:$0x1]
        %v1416 = vmul.f32 %v1415, 0.013888889
        %v1417 = vmul.f32 %v1414, %v1414
        %v1418 = vsub.f32 %v1416, %v1417
        %v1419 = vmax.f32 %v1418, 0.0
        %v1420 = vld [vmem:[%s3] sm:$0x1]
        %v1421 = vadd.f32 %v1419, 1e-05
        %v1422 = vrsqrt.pop %v1421
        %v1423 = vmul.f32 %v1420, %v1422
        %v1424 = vld [vmem:[%s4] sm:$0x1]
        %v1425 = vmul.f32 %v1414, %v1423
        %v1426 = vsub.f32 %v1424, %v1425
        %s1427 = smul.u32 %s21, 72
        %s1428 = scalar_lea.vmem [#allocation2], %s1427
        %v1429 = vld [vmem:[%s1428] sm:$0xff]
        %v1430 = vld [vmem:[%s1428 + $0x8] sm:$0xff]
        %v1431 = vld [vmem:[%s1428 + $0x10] sm:$0xff]
        %v1432 = vld [vmem:[%s1428 + $0x18] sm:$0xff]
        %v1433 = vld [vmem:[%s1428 + $0x20] sm:$0xff]
        %v1434 = vld [vmem:[%s1428 + $0x28] sm:$0xff]
        %v1435 = vld [vmem:[%s1428 + $0x30] sm:$0xff]
        %v1436 = vld [vmem:[%s1428 + $0x38] sm:$0xff]
        %v1437 = vld [vmem:[%s1428 + $0x40] sm:$0xff]
        %v1439 = vlaneseq
        %v1440 = vshrl.u32 %v1439, 7
        %v1441 = vsub.s32 0, %v1440
        %v1442 = vrot.slane %v1423, %v1441
        %v1444 = vmul.f32 %v1429, %v1442
        %v1445 = vmul.f32 %v1430, %v1442
        %v1446 = vmul.f32 %v1431, %v1442
        %v1447 = vmul.f32 %v1432, %v1442
        %v1448 = vmul.f32 %v1433, %v1442
        %v1449 = vmul.f32 %v1434, %v1442
        %v1450 = vmul.f32 %v1435, %v1442
        %v1451 = vmul.f32 %v1436, %v1442
        %v1452 = vmul.f32 %v1437, %v1442
        %v1454 = vlaneseq
        %v1455 = vshrl.u32 %v1454, 7
        %v1456 = vsub.s32 0, %v1455
        %v1457 = vrot.slane %v1426, %v1456
        %v1459 = vadd.f32 %v1444, %v1457
        %v1460 = vadd.f32 %v1445, %v1457
        %v1461 = vadd.f32 %v1446, %v1457
        %v1462 = vadd.f32 %v1447, %v1457
        %v1463 = vadd.f32 %v1448, %v1457
        %v1464 = vadd.f32 %v1449, %v1457
        %v1465 = vadd.f32 %v1450, %v1457
        %v1466 = vadd.f32 %v1451, %v1457
        %v1467 = vadd.f32 %v1452, %v1457
        %vm1468 = vcmp.ge.f32.partialorder %v1459, 0.0
        %vm1469 = vcmp.ge.f32.partialorder %v1460, 0.0
        %vm1470 = vcmp.ge.f32.partialorder %v1461, 0.0
        %vm1471 = vcmp.ge.f32.partialorder %v1462, 0.0
        %vm1472 = vcmp.ge.f32.partialorder %v1463, 0.0
        %vm1473 = vcmp.ge.f32.partialorder %v1464, 0.0
        %vm1474 = vcmp.ge.f32.partialorder %v1465, 0.0
        %vm1475 = vcmp.ge.f32.partialorder %v1466, 0.0
        %vm1476 = vcmp.ge.f32.partialorder %v1467, 0.0
        %v1477 = vmul.f32 %v1459, 0.2
        %v1478 = vmul.f32 %v1460, 0.2
        %v1479 = vmul.f32 %v1461, 0.2
        %v1480 = vmul.f32 %v1462, 0.2
        %v1481 = vmul.f32 %v1463, 0.2
        %v1482 = vmul.f32 %v1464, 0.2
        %v1483 = vmul.f32 %v1465, 0.2
        %v1484 = vmul.f32 %v1466, 0.2
        %v1485 = vmul.f32 %v1467, 0.2
        %v1486 = vsel %vm1468, %v1459, %v1477
        %v1487 = vsel %vm1469, %v1460, %v1478
        %v1488 = vsel %vm1470, %v1461, %v1479
        %v1489 = vsel %vm1471, %v1462, %v1480
        %v1490 = vsel %vm1472, %v1463, %v1481
        %v1491 = vsel %vm1473, %v1464, %v1482
        %v1492 = vsel %vm1474, %v1465, %v1483
        %v1493 = vsel %vm1475, %v1466, %v1484
        %v1494 = vsel %vm1476, %v1467, %v1485
        %v1495 = vpack.c.bf16 %v1487, %v1486
        %v1496 = vpack.c.bf16 %v1489, %v1488
        %v1497 = vpack.c.bf16 %v1491, %v1490
        %v1498 = vpack.c.bf16 %v1493, %v1492
        %v1499 = vpack.c.bf16 %v1494, %v1494
        %v1505 = vunpack.c.l.b16 %v1495
        %v1506 = vunpack.c.h.b16 %v1495
        %v1507 = vunpack.c.l.b16 %v1496
        %v1508 = vunpack.c.h.b16 %v1496
        %v1509 = vunpack.c.l.b16 %v1497
        %v1510 = vunpack.c.h.b16 %v1497
        %v1511 = vunpack.c.l.b16 %v1498
        %v1512 = vunpack.c.h.b16 %v1498
        %v1513 = vunpack.c.l.b16 %v1499
        %v1514 = vpack.c.b16 %v1505, %v1505
        %v1515 = vpack.c.b16 %v1506, %v1506
        %v1516 = vpack.c.b16 %v1507, %v1507
        %v1517 = vpack.c.b16 %v1508, %v1508
        %v1518 = vpack.c.b16 %v1509, %v1509
        %v1519 = vpack.c.b16 %v1510, %v1510
        %v1520 = vpack.c.b16 %v1511, %v1511
        %v1521 = vpack.c.b16 %v1512, %v1512
        %v1522 = vpack.c.b16 %v1513, %v1513
        %1532 = vst [vmem:[%s255] sm:$0xf] %v1514
        %1533 = vst [vmem:[%s255 + $0x4] sm:$0xf] %v1515
        %1534 = vst [vmem:[%s255 + $0x8] sm:$0xf] %v1516
        %1535 = vst [vmem:[%s255 + $0xc] sm:$0xf] %v1517
        %1536 = vst [vmem:[%s255 + $0x10] sm:$0xf] %v1518
        %1537 = vst [vmem:[%s255 + $0x14] sm:$0xf] %v1519
        %1538 = vst [vmem:[%s255 + $0x18] sm:$0xf] %v1520
        %1539 = vst [vmem:[%s255 + $0x1c] sm:$0xf] %v1521
        %1540 = vst [vmem:[%s255 + $0x20] sm:$0xf] %v1522
      $region52: #{generador_forward.6} parent=39 // pred_fallthru
        _
      %s1541 = smul.u32 9, %s21
      %p1542 = scmp.lt.s32.totalorder %s1541, 8
      %s1543 = scalar_select %p1542, %s1541, 8
      %s1544 = smul.addr %s1543, 4
      %s1545 = scalar_lea.vmem %s5, %s1544
      // Predicated region
      $region53: #{generador_forward.6} parent=39 // pred_check
        %p1546 = pneg %p160
      $region54: #{generador_forward.6} parent=39 // pred_check_branch
        %1548 = sbr.rel (%p1546) target = $region56
      $region55: #{generador_forward.6} parent=39 // pred_region
        %s1549 = smul.u32 9, %s21
      $region56: #{generador_forward.6} parent=39 // pred_fallthru
        _
      // Predicated region
      $region57: #{generador_forward.6} parent=39 // pred_check
        %p1550 = pneg %p160
      $region58: #{generador_forward.6} parent=39 // pred_check_branch
        %1552 = sbr.rel (%p1550) target = $region60
      $region59: #{generador_forward.6} parent=39 // pred_region
        %s1553 = smul.u32 9, %s21
        %p1554 = scmp.lt.s32.totalorder %s1553, 8
        %s1555 = scalar_select %p1554, %s1553, 8
        %s1556 = smul.addr %s1555, 4
        %s1557 = scalar_lea.vmem %s5, %s1556
      $region60: #{generador_forward.6} parent=39 // pred_fallthru
        _
    $region40: #{generador_forward.6} parent=5 // pred_fallthru
      _
    %p1558 = scmp.le.s32.totalorder 2, %s11
    // Predicated region
    $region61: #{generador_forward.6} parent=5 // pred_check
      %p1559 = pneg %p1558
    $region62: #{generador_forward.6} parent=5 // pred_check_branch
      %1561 = sbr.rel (%p1559) target = $region64
    $region63: #{generador_forward.6} parent=5 // pred_region
      %s1562 = ssub.s32 %s11, 2
    $region64: #{generador_forward.6} parent=5 // pred_fallthru
      _
  $region6: #{generador_forward.6} parent=0 // loop_footer
    %s15 = sadd.s32 1, %s11
  $region7: #{generador_forward.6} parent=0 // loop_footer_branch
    %10 = sbr.rel target = $region3
  $region8: #{generador_forward.6} parent=0 // loop_exit
    _

// kernel: generador_forward.7
$region0: #{generador_forward.7}
  #allocation0 [shape = 'u32[]', space=smem, size = 0x4, offset = 0x4, fixed_abs, tag = 'smem constant byte address 0x4 - core index']
  #allocation1 [shape = 'u32[144,128]{1,0:T(1,128)}', space=vmem, size = 0x12000, scoped, tag = 'internal scratch']
  #allocation2 [shape = 'f32[1,344,128]{2,1,0:T(8,128)}', space=vmem, size = 0x2b000, scoped, tag = 'scratch operand']
  #allocation3 [shape = 'f32[1,128]{1,0:T(1,128)}', space=vmem, size = 0x200, scoped, tag = 'scratch operand']
  #allocation4 [shape = 'f32[1,128]{1,0:T(1,128)}', space=vmem, size = 0x200, scoped, tag = 'scratch operand']
  %s0 = inlined_call_operand.vmem [shape: bf16[344,384], index: 0, kind: input, shape index: {}]
  %s1 = inlined_call_operand.vmem [shape: bf16[384,128], index: 1, kind: input, shape index: {}]
  %s2 = inlined_call_operand.vmem [shape: f32[1,128], index: 2, kind: input, shape index: {}]
  %s3 = inlined_call_operand.vmem [shape: f32[1,128], index: 3, kind: input, shape index: {}]
  %s4 = inlined_call_operand.vmem [shape: f32[1,128], index: 4, kind: input, shape index: {}]
  %s5 = inlined_call_operand.vmem [shape: bf16[344,128], index: 5, kind: output, shape index: {}]
  %s6 = sld [smem:[#allocation0]]
  $region65: #{generador_forward.7} parent=0
    _
  %s8 = ssub.s32 1, %s6
  %s9 = scalar_select 0, %s8, %s6
  loop: start=0, step=1, limit=4
  $region2: #{generador_forward.7} parent=0 // loop_pre_header
    _
  $region3: #{generador_forward.7} parent=0 // loop_header
    %s11 = sphi 0, %s15
    %p12 = scmp.ge.s32.totalorder %s11, 4
    %s18 = sphi 0, %s30
    %s19 = sphi 0, %s26
    %s20 = sphi 0, %s18
    %s21 = sphi 0, %s19
    %s22 = sphi 0, %s20
    %s23 = sphi 0, %s21
    %s37 = sphi 0, %s39
    %s40 = sphi 0, %s37
    %s41 = sphi 0, %s40
    %s57 = sphi 0, %s41
    %s61 = sphi 0, %s61
    %s63 = sphi 0, %s61
    %s64 = sphi 0, %s63
    %s78 = sphi 0, %s64
    %s82 = sphi 0, %s82
    %s84 = sphi 0, %s82
    %s85 = sphi 0, %s84
    %s99 = sphi 0, %s85
    %s103 = sphi 0, %s103
    %s105 = sphi 0, %s103
    %s106 = sphi 0, %s105
    %s120 = sphi 0, %s106
    %s124 = sphi 0, %s124
    %s126 = sphi 0, %s124
    %s127 = sphi 0, %s126
    %s141 = sphi 0, %s127
    %s147 = sphi 0, %s149
    %s150 = sphi 0, %s147
    %s151 = sphi 0, %s150
    %s167 = sphi 0, %s151
  $region4: #{generador_forward.7} parent=0 // loop_header_branch
    %14 = sbr.rel (%p12) target = $region8
  $region5: #{generador_forward.7} parent=0 // loop_body
    %s16 = ssub.s32 %s11, 1
    %s17 = ssub.s32 %s11, 2
    %s24 = sadd.s32 1, %s19
    %p25 = scmp.ge.s32.totalorder %s24, 1
    %s26 = scalar_select %p25, 0, %s24
    %s27 = sadd.s32 1, %s18
    %s28 = scalar_select %p25, %s27, %s18
    %p29 = scmp.ge.s32.totalorder %s28, 2
    %s30 = scalar_select %p29, 0, %s28
    %s31 = ssub.s32 1, %s18
    %s32 = smul.u32 %s31, %s19
    %s33 = ssub.s32 1, %s30
    %s34 = smul.u32 %s33, %s26
    %s35 = ssub.s32 %s32, %s34
    %p36 = scmp.eq.s32.totalorder %s35, 0
    %s38 = sadd.s32 %s37, 1
    %s39 = scalar_select %p36, %s37, %s38
    %p42 = pneg %p36
    %p43 = scmp.eq.s32.totalorder %s11, 1
    %p44 = por %p42, %p43
    %p45 = scmp.ne.s32.totalorder %s37, %s40
    %p46 = scmp.eq.s32.totalorder %s11, 0
    %p47 = por %p45, %p46
    %p48 = scmp.ne.s32.totalorder %s37, %s40
    %p49 = scmp.eq.s32.totalorder %s16, 1
    %p50 = por %p48, %p49
    %p51 = scmp.ne.s32.totalorder %s40, %s41
    %p52 = scmp.eq.s32.totalorder %s16, 0
    %p53 = por %p51, %p52
    %p54 = scmp.ne.s32.totalorder %s40, %s41
    %p55 = scmp.eq.s32.totalorder %s17, 1
    %p56 = por %p54, %p55
    %p58 = scmp.ne.s32.totalorder %s41, %s57
    %p59 = scmp.eq.s32.totalorder %s17, 0
    %p60 = por %p58, %p59
    %s62 = sadd.s32 %s61, 1
    %p65 = scmp.eq.s32.totalorder %s11, 1
    %p66 = scmp.ne.s32.totalorder %s61, %s63
    %p67 = scmp.eq.s32.totalorder %s11, 0
    %p68 = por %p66, %p67
    %p69 = scmp.ne.s32.totalorder %s61, %s63
    %p70 = scmp.eq.s32.totalorder %s16, 1
    %p71 = por %p69, %p70
    %p72 = scmp.ne.s32.totalorder %s63, %s64
    %p73 = scmp.eq.s32.totalorder %s16, 0
    %p74 = por %p72, %p73
    %p75 = scmp.ne.s32.totalorder %s63, %s64
    %p76 = scmp.eq.s32.totalorder %s17, 1
    %p77 = por %p75, %p76
    %p79 = scmp.ne.s32.totalorder %s64, %s78
    %p80 = scmp.eq.s32.totalorder %s17, 0
    %p81 = por %p79, %p80
    %s83 = sadd.s32 %s82, 1
    %p86 = scmp.eq.s32.totalorder %s11, 1
    %p87 = scmp.ne.s32.totalorder %s82, %s84
    %p88 = scmp.eq.s32.totalorder %s11, 0
    %p89 = por %p87, %p88
    %p90 = scmp.ne.s32.totalorder %s82, %s84
    %p91 = scmp.eq.s32.totalorder %s16, 1
    %p92 = por %p90, %p91
    %p93 = scmp.ne.s32.totalorder %s84, %s85
    %p94 = scmp.eq.s32.totalorder %s16, 0
    %p95 = por %p93, %p94
    %p96 = scmp.ne.s32.totalorder %s84, %s85
    %p97 = scmp.eq.s32.totalorder %s17, 1
    %p98 = por %p96, %p97
    %p100 = scmp.ne.s32.totalorder %s85, %s99
    %p101 = scmp.eq.s32.totalorder %s17, 0
    %p102 = por %p100, %p101
    %s104 = sadd.s32 %s103, 1
    %p107 = scmp.eq.s32.totalorder %s11, 1
    %p108 = scmp.ne.s32.totalorder %s103, %s105
    %p109 = scmp.eq.s32.totalorder %s11, 0
    %p110 = por %p108, %p109
    %p111 = scmp.ne.s32.totalorder %s103, %s105
    %p112 = scmp.eq.s32.totalorder %s16, 1
    %p113 = por %p111, %p112
    %p114 = scmp.ne.s32.totalorder %s105, %s106
    %p115 = scmp.eq.s32.totalorder %s16, 0
    %p116 = por %p114, %p115
    %p117 = scmp.ne.s32.totalorder %s105, %s106
    %p118 = scmp.eq.s32.totalorder %s17, 1
    %p119 = por %p117, %p118
    %p121 = scmp.ne.s32.totalorder %s106, %s120
    %p122 = scmp.eq.s32.totalorder %s17, 0
    %p123 = por %p121, %p122
    %s125 = sadd.s32 %s124, 1
    %p128 = scmp.eq.s32.totalorder %s11, 1
    %p129 = scmp.ne.s32.totalorder %s124, %s126
    %p130 = scmp.eq.s32.totalorder %s11, 0
    %p131 = por %p129, %p130
    %p132 = scmp.ne.s32.totalorder %s124, %s126
    %p133 = scmp.eq.s32.totalorder %s16, 1
    %p134 = por %p132, %p133
    %p135 = scmp.ne.s32.totalorder %s126, %s127
    %p136 = scmp.eq.s32.totalorder %s16, 0
    %p137 = por %p135, %p136
    %p138 = scmp.ne.s32.totalorder %s126, %s127
    %p139 = scmp.eq.s32.totalorder %s17, 1
    %p140 = por %p138, %p139
    %p142 = scmp.ne.s32.totalorder %s127, %s141
    %p143 = scmp.eq.s32.totalorder %s17, 0
    %p144 = por %p142, %p143
    %s145 = ssub.s32 %s19, %s26
    %p146 = scmp.eq.s32.totalorder %s145, 0
    %s148 = sadd.s32 %s147, 1
    %s149 = scalar_select %p146, %s147, %s148
    %p152 = pneg %p146
    %p153 = scmp.eq.s32.totalorder %s11, 1
    %p154 = por %p152, %p153
    %p155 = scmp.ne.s32.totalorder %s147, %s150
    %p156 = scmp.eq.s32.totalorder %s11, 0
    %p157 = por %p155, %p156
    %p158 = scmp.ne.s32.totalorder %s147, %s150
    %p159 = scmp.eq.s32.totalorder %s16, 1
    %p160 = por %p158, %p159
    %p161 = scmp.ne.s32.totalorder %s150, %s151
    %p162 = scmp.eq.s32.totalorder %s16, 0
    %p163 = por %p161, %p162
    %p164 = scmp.ne.s32.totalorder %s150, %s151
    %p165 = scmp.eq.s32.totalorder %s17, 1
    %p166 = por %p164, %p165
    %p168 = scmp.ne.s32.totalorder %s151, %s167
    %p169 = scmp.eq.s32.totalorder %s17, 0
    %p170 = por %p168, %p169
    %p171 = scmp.le.s32.totalorder 1, %s11
    %p172 = scmp.lt.s32.totalorder %s11, 3
    %p173 = pnand %p171, %p172
    %p174 = pneg %p173
    // Predicated region
    $region9: #{generador_forward.7} parent=5 // pred_check
      _
    $region10: #{generador_forward.7} parent=5 // pred_check_branch
      %176 = sbr.rel (%p173) target = $region12
    $region11: #{generador_forward.7} parent=5 // pred_region
      %s177 = ssub.s32 %s11, 1
      // Predicated region
      $region13: #{generador_forward.7} parent=11 // pred_check
        %p178 = pneg %p74
      $region14: #{generador_forward.7} parent=11 // pred_check_branch
        %180 = sbr.rel (%p178) target = $region16
      $region15: #{generador_forward.7} parent=11 // pred_region
        _
      $region16: #{generador_forward.7} parent=11 // pred_fallthru
        _
      // Predicated region
      $region17: #{generador_forward.7} parent=11 // pred_check
        %p181 = pneg %p95
      $region18: #{generador_forward.7} parent=11 // pred_check_branch
        %183 = sbr.rel (%p181) target = $region20
      $region19: #{generador_forward.7} parent=11 // pred_region
        _
      $region20: #{generador_forward.7} parent=11 // pred_fallthru
        _
      // Predicated region
      $region21: #{generador_forward.7} parent=11 // pred_check
        %p184 = pneg %p116
      $region22: #{generador_forward.7} parent=11 // pred_check_branch
        %186 = sbr.rel (%p184) target = $region24
      $region23: #{generador_forward.7} parent=11 // pred_region
        _
      $region24: #{generador_forward.7} parent=11 // pred_fallthru
        _
      // Predicated region
      $region25: #{generador_forward.7} parent=11 // pred_check
        %p187 = pneg %p137
      $region26: #{generador_forward.7} parent=11 // pred_check_branch
        %189 = sbr.rel (%p187) target = $region28
      $region27: #{generador_forward.7} parent=11 // pred_region
        _
      $region28: #{generador_forward.7} parent=11 // pred_fallthru
        _
    $region12: #{generador_forward.7} parent=5 // pred_fallthru
      _
    %p190 = scmp.lt.s32.totalorder %s11, 2
    // Predicated region
    $region29: #{generador_forward.7} parent=5 // pred_check
      %p191 = pneg %p190
    $region30: #{generador_forward.7} parent=5 // pred_check_branch
      %193 = sbr.rel (%p191) target = $region32
    $region31: #{generador_forward.7} parent=5 // pred_region
      // Predicated region
      $region33: #{generador_forward.7} parent=31 // pred_check
        %p194 = pneg %p47
      $region34: #{generador_forward.7} parent=31 // pred_check_branch
        %196 = sbr.rel (%p194) target = $region36
      $region35: #{generador_forward.7} parent=31 // pred_region
        %s197 = ssub.s32 1, %s18
        %s198 = smul.u32 %s197, %s19
        %s199 = smul.u32 43, %s198
        %p200 = scmp.lt.s32.totalorder %s199, 42
        %s201 = scalar_select %p200, %s199, 42
        %s202 = smul.addr %s201, 3
        %s203 = smul.addr %s202, 4
        %s204 = scalar_lea.vmem %s0, %s203
        %s205 = ssub.s32 1, %s18
        %s206 = smul.u32 %s205, %s19
        %s207 = smul.u32 43, %s206
      $region36: #{generador_forward.7} parent=31 // pred_fallthru
        _
    $region32: #{generador_forward.7} parent=5 // pred_fallthru
      _
    %p208 = scmp.le.s32.totalorder 1, %s11
    %p209 = scmp.lt.s32.totalorder %s11, 3
    %p210 = pnand %p208, %p209
    %p211 = pneg %p210
    // Predicated region
    $region37: #{generador_forward.7} parent=5 // pred_check
      _
    $region38: #{generador_forward.7} parent=5 // pred_check_branch
      %213 = sbr.rel (%p210) target = $region40
    $region39: #{generador_forward.7} parent=5 // pred_region
      %s214 = ssub.s32 %s11, 1
      %s215 = ssub.s32 1, %s20
      %s216 = smul.u32 %s215, %s21
      %s217 = smul.u32 43, %s216
      %p218 = scmp.lt.s32.totalorder %s217, 42
      %s219 = scalar_select %p218, %s217, 42
      %s220 = smul.addr %s219, 3
      %s221 = smul.addr %s220, 4
      %s222 = scalar_lea.vmem %s0, %s221
      %p223 = pneg %p53
      %p224 = pneg %p50
      %p225 = pneg %p74
      %p226 = pneg %p71
      %p227 = pneg %p95
      %p228 = pneg %p92
      %p229 = pneg %p116
      %p230 = pneg %p113
      %p231 = pneg %p137
      %p232 = pneg %p134
      %p233 = pneg %p163
      %p234 = pneg %p160
      %s235 = smul.u32 43, %s21
      %p236 = scmp.lt.s32.totalorder %s235, 42
      %s237 = scalar_select %p236, %s235, 42
      %s238 = smul.addr %s237, 4
      %s239 = scalar_lea.vmem %s5, %s238
      %s240 = ssub.s32 1, %s20
      %s241 = smul.u32 %s240, %s21
      %s242 = smul.u32 43, %s241
      %p243 = scmp.lt.s32.totalorder %s242, 42
      %s244 = scalar_select %p243, %s242, 42
      %s245 = smul.addr %s244, 3
      %s246 = smul.addr %s245, 4
      %s247 = scalar_lea.vmem %s0, %s246
      %s248 = ssub.s32 1, %s20
      %s249 = smul.u32 %s248, %s21
      %s250 = smul.u32 43, %s249
      %s251 = smul.u32 43, %s21
      %p252 = scmp.lt.s32.totalorder %s251, 42
      %s253 = scalar_select %p252, %s251, 42
      %s254 = smul.addr %s253, 4
      %s255 = scalar_lea.vmem %s5, %s254
      %s256 = smul.u32 43, %s21
      %p258 = scmp.eq.s32.totalorder %s20, 0
      // Predicated region
      $region41: #{generador_forward.7} parent=39 // pred_check
        %p259 = pneg %p258
      $region42: #{generador_forward.7} parent=39 // pred_check_branch
        %261 = sbr.rel (%p259) target = $region44
      $region43: #{generador_forward.7} parent=39 // pred_region
        %p262 = scmp.eq.s32.totalorder %s21, 0
        // Predicated region
        $region45: #{generador_forward.7} parent=43 // pred_check
          %p263 = pneg %p262
        $region46: #{generador_forward.7} parent=43 // pred_check_branch
          %265 = sbr.rel (%p263) target = $region48
        $region47: #{generador_forward.7} parent=43 // pred_region
          %266 = vst [vmem:[#allocation3] sm:$0x1] 0.0
          %267 = vst [vmem:[#allocation4] sm:$0x1] 0.0
        $region48: #{generador_forward.7} parent=43 // pred_fallthru
          _
        %v268 = vld [vmem:[%s247] sm:$0xff]
        %v269 = vld [vmem:[%s247 + $0x8] sm:$0xf]
        %v270 = vld [vmem:[%s247 + $0xc] sm:$0xff]
        %v271 = vld [vmem:[%s247 + $0x14] sm:$0xf]
        %v272 = vld [vmem:[%s247 + $0x18] sm:$0xff]
        %v273 = vld [vmem:[%s247 + $0x20] sm:$0xf]
        %v274 = vld [vmem:[%s247 + $0x24] sm:$0xff]
        %v275 = vld [vmem:[%s247 + $0x2c] sm:$0xf]
        %v276 = vld [vmem:[%s247 + $0x30] sm:$0xff]
        %v277 = vld [vmem:[%s247 + $0x38] sm:$0xf]
        %v278 = vld [vmem:[%s247 + $0x3c] sm:$0xff]
        %v279 = vld [vmem:[%s247 + $0x44] sm:$0xf]
        %v280 = vld [vmem:[%s247 + $0x48] sm:$0xff]
        %v281 = vld [vmem:[%s247 + $0x50] sm:$0xf]
        %v282 = vld [vmem:[%s247 + $0x54] sm:$0xff]
        %v283 = vld [vmem:[%s247 + $0x5c] sm:$0xf]
        %v284 = vld [vmem:[%s247 + $0x60] sm:$0xff]
        %v285 = vld [vmem:[%s247 + $0x68] sm:$0xf]
        %v286 = vld [vmem:[%s247 + $0x6c] sm:$0xff]
        %v287 = vld [vmem:[%s247 + $0x74] sm:$0xf]
        %v288 = vld [vmem:[%s247 + $0x78] sm:$0xff]
        %v289 = vld [vmem:[%s247 + $0x80] sm:$0xf]
        %v290 = vld [vmem:[%s247 + $0x84] sm:$0xff]
        %v291 = vld [vmem:[%s247 + $0x8c] sm:$0xf]
        %v292 = vld [vmem:[%s247 + $0x90] sm:$0xff]
        %v293 = vld [vmem:[%s247 + $0x98] sm:$0xf]
        %v294 = vld [vmem:[%s247 + $0x9c] sm:$0xff]
        %v295 = vld [vmem:[%s247 + $0xa4] sm:$0xf]
        %v296 = vld [vmem:[%s247 + $0xa8] sm:$0xff]
        %v297 = vld [vmem:[%s247 + $0xb0] sm:$0xf]
        %v298 = vld [vmem:[%s247 + $0xb4] sm:$0xff]
        %v299 = vld [vmem:[%s247 + $0xbc] sm:$0xf]
        %v300 = vld [vmem:[%s247 + $0xc0] sm:$0xff]
        %v301 = vld [vmem:[%s247 + $0xc8] sm:$0xf]
        %v302 = vld [vmem:[%s247 + $0xcc] sm:$0xff]
        %v303 = vld [vmem:[%s247 + $0xd4] sm:$0xf]
        %v304 = vld [vmem:[%s247 + $0xd8] sm:$0xff]
        %v305 = vld [vmem:[%s247 + $0xe0] sm:$0xf]
        %v306 = vld [vmem:[%s247 + $0xe4] sm:$0xff]
        %v307 = vld [vmem:[%s247 + $0xec] sm:$0xf]
        %v308 = vld [vmem:[%s247 + $0xf0] sm:$0xff]
        %v309 = vld [vmem:[%s247 + $0xf8] sm:$0xf]
        %v310 = vld [vmem:[%s247 + $0xfc] sm:$0xff]
        %v311 = vld [vmem:[%s247 + $0x104] sm:$0xf]
        %v312 = vld [vmem:[%s247 + $0x108] sm:$0xff]
        %v313 = vld [vmem:[%s247 + $0x110] sm:$0xf]
        %v314 = vld [vmem:[%s247 + $0x114] sm:$0xff]
        %v315 = vld [vmem:[%s247 + $0x11c] sm:$0xf]
        %v316 = vld [vmem:[%s247 + $0x120] sm:$0xff]
        %v317 = vld [vmem:[%s247 + $0x128] sm:$0xf]
        %v318 = vld [vmem:[%s247 + $0x12c] sm:$0xff]
        %v319 = vld [vmem:[%s247 + $0x134] sm:$0xf]
        %v320 = vld [vmem:[%s247 + $0x138] sm:$0xff]
        %v321 = vld [vmem:[%s247 + $0x140] sm:$0xf]
        %v322 = vld [vmem:[%s247 + $0x144] sm:$0xff]
        %v323 = vld [vmem:[%s247 + $0x14c] sm:$0xf]
        %v324 = vld [vmem:[%s247 + $0x150] sm:$0xff]
        %v325 = vld [vmem:[%s247 + $0x158] sm:$0xf]
        %v326 = vld [vmem:[%s247 + $0x15c] sm:$0xff]
        %v327 = vld [vmem:[%s247 + $0x164] sm:$0xf]
        %v328 = vld [vmem:[%s247 + $0x168] sm:$0xff]
        %v329 = vld [vmem:[%s247 + $0x170] sm:$0xf]
        %v330 = vld [vmem:[%s247 + $0x174] sm:$0xff]
        %v331 = vld [vmem:[%s247 + $0x17c] sm:$0xf]
        %v332 = vld [vmem:[%s247 + $0x180] sm:$0xff]
        %v333 = vld [vmem:[%s247 + $0x188] sm:$0xf]
        %v334 = vld [vmem:[%s247 + $0x18c] sm:$0xff]
        %v335 = vld [vmem:[%s247 + $0x194] sm:$0xf]
        %v336 = vld [vmem:[%s247 + $0x198] sm:$0xff]
        %v337 = vld [vmem:[%s247 + $0x1a0] sm:$0xf]
        %v338 = vld [vmem:[%s247 + $0x1a4] sm:$0xff]
        %v339 = vld [vmem:[%s247 + $0x1ac] sm:$0xf]
        %v340 = vld [vmem:[%s247 + $0x1b0] sm:$0xff]
        %v341 = vld [vmem:[%s247 + $0x1b8] sm:$0xf]
        %v342 = vld [vmem:[%s247 + $0x1bc] sm:$0xff]
        %v343 = vld [vmem:[%s247 + $0x1c4] sm:$0xf]
        %v344 = vld [vmem:[%s247 + $0x1c8] sm:$0xff]
        %v345 = vld [vmem:[%s247 + $0x1d0] sm:$0xf]
        %v346 = vld [vmem:[%s247 + $0x1d4] sm:$0xff]
        %v347 = vld [vmem:[%s247 + $0x1dc] sm:$0xf]
        %v348 = vld [vmem:[%s247 + $0x1e0] sm:$0xff]
        %v349 = vld [vmem:[%s247 + $0x1e8] sm:$0xf]
        %v350 = vld [vmem:[%s247 + $0x1ec] sm:$0xff]
        %v351 = vld [vmem:[%s247 + $0x1f4] sm:$0xf]
        %v352 = vld [vmem:[%s247 + $0x1f8] sm:$0xff]
        %v353 = vld [vmem:[%s247 + $0x200] sm:$0xf]
        %v354 = vld [vmem:[%s1] sm:$0xf]
        %v355 = vld [vmem:[%s1 + $0x4] sm:$0xf]
        %v356 = vld [vmem:[%s1 + $0x8] sm:$0xf]
        %v357 = vld [vmem:[%s1 + $0xc] sm:$0xf]
        %v358 = vld [vmem:[%s1 + $0x10] sm:$0xf]
        %v359 = vld [vmem:[%s1 + $0x14] sm:$0xf]
        %v360 = vld [vmem:[%s1 + $0x18] sm:$0xf]
        %v361 = vld [vmem:[%s1 + $0x1c] sm:$0xf]
        %v362 = vld [vmem:[%s1 + $0x20] sm:$0xf]
        %v363 = vld [vmem:[%s1 + $0x24] sm:$0xf]
        %v364 = vld [vmem:[%s1 + $0x28] sm:$0xf]
        %v365 = vld [vmem:[%s1 + $0x2c] sm:$0xf]
        %v366 = vld [vmem:[%s1 + $0x30] sm:$0xf]
        %v367 = vld [vmem:[%s1 + $0x34] sm:$0xf]
        %v368 = vld [vmem:[%s1 + $0x38] sm:$0xf]
        %v369 = vld [vmem:[%s1 + $0x3c] sm:$0xf]
        %v370 = vld [vmem:[%s1 + $0x40] sm:$0xf]
        %v371 = vld [vmem:[%s1 + $0x44] sm:$0xf]
        %v372 = vld [vmem:[%s1 + $0x48] sm:$0xf]
        %v373 = vld [vmem:[%s1 + $0x4c] sm:$0xf]
        %v374 = vld [vmem:[%s1 + $0x50] sm:$0xf]
        %v375 = vld [vmem:[%s1 + $0x54] sm:$0xf]
        %v376 = vld [vmem:[%s1 + $0x58] sm:$0xf]
        %v377 = vld [vmem:[%s1 + $0x5c] sm:$0xf]
        %v378 = vld [vmem:[%s1 + $0x60] sm:$0xf]
        %v379 = vld [vmem:[%s1 + $0x64] sm:$0xf]
        %v380 = vld [vmem:[%s1 + $0x68] sm:$0xf]
        %v381 = vld [vmem:[%s1 + $0x6c] sm:$0xf]
        %v382 = vld [vmem:[%s1 + $0x70] sm:$0xf]
        %v383 = vld [vmem:[%s1 + $0x74] sm:$0xf]
        %v384 = vld [vmem:[%s1 + $0x78] sm:$0xf]
        %v385 = vld [vmem:[%s1 + $0x7c] sm:$0xf]
        %v386 = vld [vmem:[%s1 + $0x80] sm:$0xf]
        %v387 = vld [vmem:[%s1 + $0x84] sm:$0xf]
        %v388 = vld [vmem:[%s1 + $0x88] sm:$0xf]
        %v389 = vld [vmem:[%s1 + $0x8c] sm:$0xf]
        %v390 = vld [vmem:[%s1 + $0x90] sm:$0xf]
        %v391 = vld [vmem:[%s1 + $0x94] sm:$0xf]
        %v392 = vld [vmem:[%s1 + $0x98] sm:$0xf]
        %v393 = vld [vmem:[%s1 + $0x9c] sm:$0xf]
        %v394 = vld [vmem:[%s1 + $0xa0] sm:$0xf]
        %v395 = vld [vmem:[%s1 + $0xa4] sm:$0xf]
        %v396 = vld [vmem:[%s1 + $0xa8] sm:$0xf]
        %v397 = vld [vmem:[%s1 + $0xac] sm:$0xf]
        %v398 = vld [vmem:[%s1 + $0xb0] sm:$0xf]
        %v399 = vld [vmem:[%s1 + $0xb4] sm:$0xf]
        %v400 = vld [vmem:[%s1 + $0xb8] sm:$0xf]
        %v401 = vld [vmem:[%s1 + $0xbc] sm:$0xf]
        %v402 = vld [vmem:[%s2] sm:$0x1]
        %v404 = vlaneseq
        %v405 = vshrl.u32 %v404, 7
        %v406 = vsub.s32 0, %v405
        %v407 = vrot.slane %v402, %v406
        %v495 = vunpack.c.l.b16 %v268
        %v496 = vunpack.c.h.b16 %v268
        %v497 = vunpack.c.l.b16 %v269
        %v498 = vunpack.c.l.b16 %v270
        %v499 = vunpack.c.h.b16 %v270
        %v500 = vunpack.c.l.b16 %v271
        %v501 = vunpack.c.l.b16 %v272
        %v502 = vunpack.c.h.b16 %v272
        %v503 = vunpack.c.l.b16 %v273
        %v504 = vunpack.c.l.b16 %v274
        %v505 = vunpack.c.h.b16 %v274
        %v506 = vunpack.c.l.b16 %v275
        %v507 = vunpack.c.l.b16 %v276
        %v508 = vunpack.c.h.b16 %v276
        %v509 = vunpack.c.l.b16 %v277
        %v510 = vunpack.c.l.b16 %v278
        %v511 = vunpack.c.h.b16 %v278
        %v512 = vunpack.c.l.b16 %v279
        %v513 = vunpack.c.l.b16 %v280
        %v514 = vunpack.c.h.b16 %v280
        %v515 = vunpack.c.l.b16 %v281
        %v516 = vunpack.c.l.b16 %v282
        %v517 = vunpack.c.h.b16 %v282
        %v518 = vunpack.c.l.b16 %v283
        %v519 = vunpack.c.l.b16 %v284
        %v520 = vunpack.c.h.b16 %v284
        %v521 = vunpack.c.l.b16 %v285
        %v522 = vunpack.c.l.b16 %v286
        %v523 = vunpack.c.h.b16 %v286
        %v524 = vunpack.c.l.b16 %v287
        %v525 = vunpack.c.l.b16 %v288
        %v526 = vunpack.c.h.b16 %v288
        %v527 = vunpack.c.l.b16 %v289
        %v528 = vunpack.c.l.b16 %v290
        %v529 = vunpack.c.h.b16 %v290
        %v530 = vunpack.c.l.b16 %v291
        %v531 = vunpack.c.l.b16 %v292
        %v532 = vunpack.c.h.b16 %v292
        %v533 = vunpack.c.l.b16 %v293
        %v534 = vunpack.c.l.b16 %v294
        %v535 = vunpack.c.h.b16 %v294
        %v536 = vunpack.c.l.b16 %v295
        %v537 = vunpack.c.l.b16 %v296
        %v538 = vunpack.c.h.b16 %v296
        %v539 = vunpack.c.l.b16 %v297
        %v540 = vunpack.c.l.b16 %v298
        %v541 = vunpack.c.h.b16 %v298
        %v542 = vunpack.c.l.b16 %v299
        %v543 = vunpack.c.l.b16 %v300
        %v544 = vunpack.c.h.b16 %v300
        %v545 = vunpack.c.l.b16 %v301
        %v546 = vunpack.c.l.b16 %v302
        %v547 = vunpack.c.h.b16 %v302
        %v548 = vunpack.c.l.b16 %v303
        %v549 = vunpack.c.l.b16 %v304
        %v550 = vunpack.c.h.b16 %v304
        %v551 = vunpack.c.l.b16 %v305
        %v552 = vunpack.c.l.b16 %v306
        %v553 = vunpack.c.h.b16 %v306
        %v554 = vunpack.c.l.b16 %v307
        %v555 = vunpack.c.l.b16 %v308
        %v556 = vunpack.c.h.b16 %v308
        %v557 = vunpack.c.l.b16 %v309
        %v558 = vunpack.c.l.b16 %v310
        %v559 = vunpack.c.h.b16 %v310
        %v560 = vunpack.c.l.b16 %v311
        %v561 = vunpack.c.l.b16 %v312
        %v562 = vunpack.c.h.b16 %v312
        %v563 = vunpack.c.l.b16 %v313
        %v564 = vunpack.c.l.b16 %v314
        %v565 = vunpack.c.h.b16 %v314
        %v566 = vunpack.c.l.b16 %v315
        %v567 = vunpack.c.l.b16 %v316
        %v568 = vunpack.c.h.b16 %v316
        %v569 = vunpack.c.l.b16 %v317
        %v570 = vunpack.c.l.b16 %v318
        %v571 = vunpack.c.h.b16 %v318
        %v572 = vunpack.c.l.b16 %v319
        %v573 = vunpack.c.l.b16 %v320
        %v574 = vunpack.c.h.b16 %v320
        %v575 = vunpack.c.l.b16 %v321
        %v576 = vunpack.c.l.b16 %v322
        %v577 = vunpack.c.h.b16 %v322
        %v578 = vunpack.c.l.b16 %v323
        %v579 = vunpack.c.l.b16 %v324
        %v580 = vunpack.c.h.b16 %v324
        %v581 = vunpack.c.l.b16 %v325
        %v582 = vunpack.c.l.b16 %v326
        %v583 = vunpack.c.h.b16 %v326
        %v584 = vunpack.c.l.b16 %v327
        %v585 = vunpack.c.l.b16 %v328
        %v586 = vunpack.c.h.b16 %v328
        %v587 = vunpack.c.l.b16 %v329
        %v588 = vunpack.c.l.b16 %v330
        %v589 = vunpack.c.h.b16 %v330
        %v590 = vunpack.c.l.b16 %v331
        %v591 = vunpack.c.l.b16 %v332
        %v592 = vunpack.c.h.b16 %v332
        %v593 = vunpack.c.l.b16 %v333
        %v594 = vunpack.c.l.b16 %v334
        %v595 = vunpack.c.h.b16 %v334
        %v596 = vunpack.c.l.b16 %v335
        %v597 = vunpack.c.l.b16 %v336
        %v598 = vunpack.c.h.b16 %v336
        %v599 = vunpack.c.l.b16 %v337
        %v600 = vunpack.c.l.b16 %v338
        %v601 = vunpack.c.h.b16 %v338
        %v602 = vunpack.c.l.b16 %v339
        %v603 = vunpack.c.l.b16 %v340
        %v604 = vunpack.c.h.b16 %v340
        %v605 = vunpack.c.l.b16 %v341
        %v606 = vunpack.c.l.b16 %v342
        %v607 = vunpack.c.h.b16 %v342
        %v608 = vunpack.c.l.b16 %v343
        %v609 = vunpack.c.l.b16 %v344
        %v610 = vunpack.c.h.b16 %v344
        %v611 = vunpack.c.l.b16 %v345
        %v612 = vunpack.c.l.b16 %v346
        %v613 = vunpack.c.h.b16 %v346
        %v614 = vunpack.c.l.b16 %v347
        %v615 = vunpack.c.l.b16 %v348
        %v616 = vunpack.c.h.b16 %v348
        %v617 = vunpack.c.l.b16 %v349
        %v618 = vunpack.c.l.b16 %v350
        %v619 = vunpack.c.h.b16 %v350
        %v620 = vunpack.c.l.b16 %v351
        %v621 = vunpack.c.l.b16 %v352
        %v622 = vunpack.c.h.b16 %v352
        %v623 = vunpack.c.l.b16 %v353
        %v624 = vpack.c.b16 %v498, %v495
        %v625 = vpack.c.b16 %v499, %v496
        %v626 = vpack.c.b16 %v500, %v497
        %v627 = vpack.c.b16 %v504, %v501
        %v628 = vpack.c.b16 %v505, %v502
        %v629 = vpack.c.b16 %v506, %v503
        %v630 = vpack.c.b16 %v510, %v507
        %v631 = vpack.c.b16 %v511, %v508
        %v632 = vpack.c.b16 %v512, %v509
        %v633 = vpack.c.b16 %v516, %v513
        %v634 = vpack.c.b16 %v517, %v514
        %v635 = vpack.c.b16 %v518, %v515
        %v636 = vpack.c.b16 %v522, %v519
        %v637 = vpack.c.b16 %v523, %v520
        %v638 = vpack.c.b16 %v524, %v521
        %v639 = vpack.c.b16 %v528, %v525
        %v640 = vpack.c.b16 %v529, %v526
        %v641 = vpack.c.b16 %v530, %v527
        %v642 = vpack.c.b16 %v534, %v531
        %v643 = vpack.c.b16 %v535, %v532
        %v644 = vpack.c.b16 %v536, %v533
        %v645 = vpack.c.b16 %v540, %v537
        %v646 = vpack.c.b16 %v541, %v538
        %v647 = vpack.c.b16 %v542, %v539
        %v648 = vpack.c.b16 %v546, %v543
        %v649 = vpack.c.b16 %v547, %v544
        %v650 = vpack.c.b16 %v548, %v545
        %v651 = vpack.c.b16 %v552, %v549
        %v652 = vpack.c.b16 %v553, %v550
        %v653 = vpack.c.b16 %v554, %v551
        %v654 = vpack.c.b16 %v558, %v555
        %v655 = vpack.c.b16 %v559, %v556
        %v656 = vpack.c.b16 %v560, %v557
        %v657 = vpack.c.b16 %v564, %v561
        %v658 = vpack.c.b16 %v565, %v562
        %v659 = vpack.c.b16 %v566, %v563
        %v660 = vpack.c.b16 %v570, %v567
        %v661 = vpack.c.b16 %v571, %v568
        %v662 = vpack.c.b16 %v572, %v569
        %v663 = vpack.c.b16 %v576, %v573
        %v664 = vpack.c.b16 %v577, %v574
        %v665 = vpack.c.b16 %v578, %v575
        %v666 = vpack.c.b16 %v582, %v579
        %v667 = vpack.c.b16 %v583, %v580
        %v668 = vpack.c.b16 %v584, %v581
        %v669 = vpack.c.b16 %v588, %v585
        %v670 = vpack.c.b16 %v589, %v586
        %v671 = vpack.c.b16 %v590, %v587
        %v672 = vpack.c.b16 %v594, %v591
        %v673 = vpack.c.b16 %v595, %v592
        %v674 = vpack.c.b16 %v596, %v593
        %v675 = vpack.c.b16 %v600, %v597
        %v676 = vpack.c.b16 %v601, %v598
        %v677 = vpack.c.b16 %v602, %v599
        %v678 = vpack.c.b16 %v606, %v603
        %v679 = vpack.c.b16 %v607, %v604
        %v680 = vpack.c.b16 %v608, %v605
        %v681 = vpack.c.b16 %v612, %v609
        %v682 = vpack.c.b16 %v613, %v610
        %v683 = vpack.c.b16 %v614, %v611
        %v684 = vpack.c.b16 %v618, %v615
        %v685 = vpack.c.b16 %v619, %v616
        %v686 = vpack.c.b16 %v620, %v617
        %v687 = vpack.c.b16 %v621, %v621
        %v688 = vpack.c.b16 %v622, %v622
        %v689 = vpack.c.b16 %v623, %v623
        %v804 = vunpack.c.l.b16 %v354
        %v805 = vunpack.c.l.b16 %v355
        %v806 = vunpack.c.l.b16 %v356
        %v807 = vunpack.c.l.b16 %v357
        %v808 = vunpack.c.l.b16 %v358
        %v809 = vunpack.c.l.b16 %v359
        %v810 = vunpack.c.l.b16 %v360
        %v811 = vunpack.c.l.b16 %v361
        %v812 = vunpack.c.l.b16 %v362
        %v813 = vunpack.c.l.b16 %v363
        %v814 = vunpack.c.l.b16 %v364
        %v815 = vunpack.c.l.b16 %v365
        %v816 = vunpack.c.l.b16 %v366
        %v817 = vunpack.c.l.b16 %v367
        %v818 = vunpack.c.l.b16 %v368
        %v819 = vunpack.c.l.b16 %v369
        %v820 = vunpack.c.l.b16 %v370
        %v821 = vunpack.c.l.b16 %v371
        %v822 = vunpack.c.l.b16 %v372
        %v823 = vunpack.c.l.b16 %v373
        %v824 = vunpack.c.l.b16 %v374
        %v825 = vunpack.c.l.b16 %v375
        %v826 = vunpack.c.l.b16 %v376
        %v827 = vunpack.c.l.b16 %v377
        %v828 = vunpack.c.l.b16 %v378
        %v829 = vunpack.c.l.b16 %v379
        %v830 = vunpack.c.l.b16 %v380
        %v831 = vunpack.c.l.b16 %v381
        %v832 = vunpack.c.l.b16 %v382
        %v833 = vunpack.c.l.b16 %v383
        %v834 = vunpack.c.l.b16 %v384
        %v835 = vunpack.c.l.b16 %v385
        %v836 = vunpack.c.l.b16 %v386
        %v837 = vunpack.c.l.b16 %v387
        %v838 = vunpack.c.l.b16 %v388
        %v839 = vunpack.c.l.b16 %v389
        %v840 = vunpack.c.l.b16 %v390
        %v841 = vunpack.c.l.b16 %v391
        %v842 = vunpack.c.l.b16 %v392
        %v843 = vunpack.c.l.b16 %v393
        %v844 = vunpack.c.l.b16 %v394
        %v845 = vunpack.c.l.b16 %v395
        %v846 = vunpack.c.l.b16 %v396
        %v847 = vunpack.c.l.b16 %v397
        %v848 = vunpack.c.l.b16 %v398
        %v849 = vunpack.c.l.b16 %v399
        %v850 = vunpack.c.l.b16 %v400
        %v851 = vunpack.c.l.b16 %v401
        %v852 = vpack.c.b16 %v805, %v804
        %v853 = vpack.c.b16 %v807, %v806
        %v854 = vpack.c.b16 %v809, %v808
        %v855 = vpack.c.b16 %v811, %v810
        %v856 = vpack.c.b16 %v813, %v812
        %v857 = vpack.c.b16 %v815, %v814
        %v858 = vpack.c.b16 %v817, %v816
        %v859 = vpack.c.b16 %v819, %v818
        %v860 = vpack.c.b16 %v821, %v820
        %v861 = vpack.c.b16 %v823, %v822
        %v862 = vpack.c.b16 %v825, %v824
        %v863 = vpack.c.b16 %v827, %v826
        %v864 = vpack.c.b16 %v829, %v828
        %v865 = vpack.c.b16 %v831, %v830
        %v866 = vpack.c.b16 %v833, %v832
        %v867 = vpack.c.b16 %v835, %v834
        %v868 = vpack.c.b16 %v837, %v836
        %v869 = vpack.c.b16 %v839, %v838
        %v870 = vpack.c.b16 %v841, %v840
        %v871 = vpack.c.b16 %v843, %v842
        %v872 = vpack.c.b16 %v845, %v844
        %v873 = vpack.c.b16 %v847, %v846
        %v874 = vpack.c.b16 %v849, %v848
        %v875 = vpack.c.b16 %v851, %v850
        %900 = vmatprep.subr.bf16.mxu0 0
        %901 = vmatpush1.bf16.msra.mxu0 %v852
        %902 = vmatprep.subr.bf16.mxu0 0
        %903 = vmatpush1.bf16.msra.mxu0 %v853
        %904 = vmatprep.subr.bf16.mxu0 0
        %905 = vmatpush1.bf16.msra.mxu0 %v854
        %906 = vmatprep.subr.bf16.mxu0 0
        %907 = vmatpush1.bf16.msra.mxu0 %v855
        %908 = vmatprep.subr.bf16.mxu0 0
        %909 = vmatpush1.bf16.msra.mxu0 %v856
        %910 = vmatprep.subr.bf16.mxu0 0
        %911 = vmatpush1.bf16.msra.mxu0 %v857
        %912 = vmatprep.subr.bf16.mxu0 0
        %913 = vmatpush1.bf16.msra.mxu0 %v858
        %914 = vmatprep.subr.bf16.mxu0 0
        %915 = vmatpush1.bf16.msra.mxu0 %v859
        %916 = vmatprep.subr.bf16.mxu0 0
        %917 = vmatpush1.bf16.msra.mxu0 %v860
        %918 = vmatprep.subr.bf16.mxu0 0
        %919 = vmatpush1.bf16.msra.mxu0 %v861
        %920 = vmatprep.subr.bf16.mxu0 0
        %921 = vmatpush1.bf16.msra.mxu0 %v862
        %922 = vmatprep.subr.bf16.mxu0 0
        %923 = vmatpush1.bf16.msra.mxu0 %v863
        %924 = vmatprep.subr.bf16.mxu0 0
        %925 = vmatpush1.bf16.msra.mxu0 %v864
        %926 = vmatprep.subr.bf16.mxu0 0
        %927 = vmatpush1.bf16.msra.mxu0 %v865
        %928 = vmatprep.subr.bf16.mxu0 0
        %929 = vmatpush1.bf16.msra.mxu0 %v866
        %930 = vmatprep.subr.bf16.mxu0 0
        %931 = vmatpush1.bf16.msra.mxu0 %v867
        %932 = vmatprep.mubr.bf16.mxu0 %v625
        %933 = vmatmul.mubr.bf16.gmra.mrb[0].mxu0 %v624
        %v934 = vpop.f32.mrb[0].mxu0
        %v935 = vadd.f32 %v407, %v934
        %v936 = vpop.f32.mrb[0].mxu0
        %v937 = vpop.f32.mrb[0].mxu0
        %v938 = vadd.f32 %v407, %v937
        %v939 = vpop.f32.mrb[0].mxu0
        %940 = vmatprep.mubr.bf16.mxu0 %v628
        %941 = vmatmul.mubr.bf16.gmra.mrb[0].mxu0 %v627
        %v942 = vpop.f32.mrb[0].mxu0
        %v943 = vadd.f32 %v407, %v942
        %v944 = vpop.f32.mrb[0].mxu0
        %v945 = vpop.f32.mrb[0].mxu0
        %v946 = vadd.f32 %v407, %v945
        %v947 = vpop.f32.mrb[0].mxu0
        %948 = vmatprep.mubr.bf16.mxu0 %v631
        %949 = vmatmul.mubr.bf16.gmra.mrb[0].mxu0 %v630
        %v950 = vpop.f32.mrb[0].mxu0
        %v951 = vadd.f32 %v407, %v950
        %v952 = vpop.f32.mrb[0].mxu0
        %v953 = vpop.f32.mrb[0].mxu0
        %v954 = vadd.f32 %v407, %v953
        %v955 = vpop.f32.mrb[0].mxu0
        %956 = vmatprep.mubr.bf16.mxu0 %v634
        %957 = vmatmul.mubr.bf16.gmra.mrb[0].mxu0 %v633
        %v958 = vpop.f32.mrb[0].mxu0
        %v959 = vadd.f32 %v407, %v958
        %v960 = vpop.f32.mrb[0].mxu0
        %v961 = vpop.f32.mrb[0].mxu0
        %v962 = vadd.f32 %v407, %v961
        %v963 = vpop.f32.mrb[0].mxu0
        %964 = vmatprep.mubr.bf16.mxu0 %v637
        %965 = vmatmul.mubr.bf16.gmra.mrb[0].mxu0 %v636
        %v966 = vpop.f32.mrb[0].mxu0
        %v967 = vadd.f32 %v407, %v966
        %v968 = vpop.f32.mrb[0].mxu0
        %v969 = vpop.f32.mrb[0].mxu0
        %v970 = vadd.f32 %v407, %v969
        %v971 = vpop.f32.mrb[0].mxu0
        %972 = vmatprep.mubr.bf16.mxu0 %v640
        %973 = vmatmul.mubr.bf16.gmra.mrb[0].mxu0 %v639
        %v974 = vpop.f32.mrb[0].mxu0
        %v975 = vadd.f32 %v407, %v974
        %v976 = vpop.f32.mrb[0].mxu0
        %v977 = vpop.f32.mrb[0].mxu0
        %v978 = vadd.f32 %v407, %v977
        %v979 = vpop.f32.mrb[0].mxu0
        %980 = vmatprep.mubr.bf16.mxu0 %v643
        %981 = vmatmul.mubr.bf16.gmra.mrb[0].mxu0 %v642
        %v982 = vpop.f32.mrb[0].mxu0
        %v983 = vadd.f32 %v407, %v982
        %v984 = vpop.f32.mrb[0].mxu0
        %v985 = vpop.f32.mrb[0].mxu0
        %v986 = vadd.f32 %v407, %v985
        %v987 = vpop.f32.mrb[0].mxu0
        %988 = vmatprep.mubr.bf16.mxu0 %v646
        %989 = vmatmul.mubr.bf16.gmra.mrb[0].mxu0 %v645
        %v990 = vpop.f32.mrb[0].mxu0
        %v991 = vadd.f32 %v407, %v990
        %v992 = vpop.f32.mrb[0].mxu0
        %v993 = vpop.f32.mrb[0].mxu0
        %v994 = vadd.f32 %v407, %v993
        %v995 = vpop.f32.mrb[0].mxu0
        %996 = vmatprep.mubr.bf16.mxu0 %v649
        %997 = vmatmul.mubr.bf16.gmra.mrb[0].mxu0 %v648
        %v998 = vpop.f32.mrb[0].mxu0
        %v999 = vadd.f32 %v407, %v998
        %v1000 = vpop.f32.mrb[0].mxu0
        %v1001 = vpop.f32.mrb[0].mxu0
        %v1002 = vadd.f32 %v407, %v1001
        %v1003 = vpop.f32.mrb[0].mxu0
        %1004 = vmatprep.mubr.bf16.mxu0 %v652
        %1005 = vmatmul.mubr.bf16.gmra.mrb[0].mxu0 %v651
        %v1006 = vpop.f32.mrb[0].mxu0
        %v1007 = vadd.f32 %v407, %v1006
        %v1008 = vpop.f32.mrb[0].mxu0
        %v1009 = vpop.f32.mrb[0].mxu0
        %v1010 = vadd.f32 %v407, %v1009
        %v1011 = vpop.f32.mrb[0].mxu0
        %1012 = vmatprep.mubr.bf16.mxu0 %v655
        %1013 = vmatmul.mubr.bf16.gmra.mrb[0].mxu0 %v654
        %v1014 = vpop.f32.mrb[0].mxu0
        %v1015 = vadd.f32 %v407, %v1014
        %v1016 = vpop.f32.mrb[0].mxu0
        %v1017 = vpop.f32.mrb[0].mxu0
        %v1018 = vadd.f32 %v407, %v1017
        %v1019 = vpop.f32.mrb[0].mxu0
        %1020 = vmatprep.mubr.bf16.mxu0 %v658
        %1021 = vmatmul.mubr.bf16.gmra.mrb[0].mxu0 %v657
        %v1022 = vpop.f32.mrb[0].mxu0
        %v1023 = vadd.f32 %v407, %v1022
        %v1024 = vpop.f32.mrb[0].mxu0
        %v1025 = vpop.f32.mrb[0].mxu0
        %v1026 = vadd.f32 %v407, %v1025
        %v1027 = vpop.f32.mrb[0].mxu0
        %1028 = vmatprep.mubr.bf16.mxu0 %v661
        %1029 = vmatmul.mubr.bf16.gmra.mrb[0].mxu0 %v660
        %v1030 = vpop.f32.mrb[0].mxu0
        %v1031 = vadd.f32 %v407, %v1030
        %v1032 = vpop.f32.mrb[0].mxu0
        %v1033 = vpop.f32.mrb[0].mxu0
        %v1034 = vadd.f32 %v407, %v1033
        %v1035 = vpop.f32.mrb[0].mxu0
        %1036 = vmatprep.mubr.bf16.mxu0 %v664
        %1037 = vmatmul.mubr.bf16.gmra.mrb[0].mxu0 %v663
        %v1038 = vpop.f32.mrb[0].mxu0
        %v1039 = vadd.f32 %v407, %v1038
        %v1040 = vpop.f32.mrb[0].mxu0
        %v1041 = vpop.f32.mrb[0].mxu0
        %v1042 = vadd.f32 %v407, %v1041
        %v1043 = vpop.f32.mrb[0].mxu0
        %1044 = vmatprep.mubr.bf16.mxu0 %v667
        %1045 = vmatmul.mubr.bf16.gmra.mrb[0].mxu0 %v666
        %v1046 = vpop.f32.mrb[0].mxu0
        %v1047 = vadd.f32 %v407, %v1046
        %v1048 = vpop.f32.mrb[0].mxu0
        %v1049 = vpop.f32.mrb[0].mxu0
        %v1050 = vadd.f32 %v407, %v1049
        %v1051 = vpop.f32.mrb[0].mxu0
        %1052 = vmatprep.mubr.bf16.mxu0 %v670
        %1053 = vmatmul.mubr.bf16.gmra.mrb[0].mxu0 %v669
        %v1054 = vpop.f32.mrb[0].mxu0
        %v1055 = vadd.f32 %v407, %v1054
        %v1056 = vpop.f32.mrb[0].mxu0
        %v1057 = vpop.f32.mrb[0].mxu0
        %v1058 = vadd.f32 %v407, %v1057
        %v1059 = vpop.f32.mrb[0].mxu0
        %1060 = vmatprep.mubr.bf16.mxu0 %v673
        %1061 = vmatmul.mubr.bf16.gmra.mrb[0].mxu0 %v672
        %v1062 = vpop.f32.mrb[0].mxu0
        %v1063 = vadd.f32 %v407, %v1062
        %v1064 = vpop.f32.mrb[0].mxu0
        %v1065 = vpop.f32.mrb[0].mxu0
        %v1066 = vadd.f32 %v407, %v1065
        %v1067 = vpop.f32.mrb[0].mxu0
        %1068 = vmatprep.mubr.bf16.mxu0 %v676
        %1069 = vmatmul.mubr.bf16.gmra.mrb[0].mxu0 %v675
        %v1070 = vpop.f32.mrb[0].mxu0
        %v1071 = vadd.f32 %v407, %v1070
        %v1072 = vpop.f32.mrb[0].mxu0
        %v1073 = vpop.f32.mrb[0].mxu0
        %v1074 = vadd.f32 %v407, %v1073
        %v1075 = vpop.f32.mrb[0].mxu0
        %1076 = vmatprep.mubr.bf16.mxu0 %v679
        %1077 = vmatmul.mubr.bf16.gmra.mrb[0].mxu0 %v678
        %v1078 = vpop.f32.mrb[0].mxu0
        %v1079 = vadd.f32 %v407, %v1078
        %v1080 = vpop.f32.mrb[0].mxu0
        %v1081 = vpop.f32.mrb[0].mxu0
        %v1082 = vadd.f32 %v407, %v1081
        %v1083 = vpop.f32.mrb[0].mxu0
        %1084 = vmatprep.mubr.bf16.mxu0 %v682
        %1085 = vmatmul.mubr.bf16.gmra.mrb[0].mxu0 %v681
        %v1086 = vpop.f32.mrb[0].mxu0
        %v1087 = vadd.f32 %v407, %v1086
        %v1088 = vpop.f32.mrb[0].mxu0
        %v1089 = vpop.f32.mrb[0].mxu0
        %v1090 = vadd.f32 %v407, %v1089
        %v1091 = vpop.f32.mrb[0].mxu0
        %1092 = vmatprep.mubr.bf16.mxu0 %v685
        %1093 = vmatmul.mubr.bf16.gmra.mrb[0].mxu0 %v684
        %v1094 = vpop.f32.mrb[0].mxu0
        %v1095 = vadd.f32 %v407, %v1094
        %v1096 = vpop.f32.mrb[0].mxu0
        %v1097 = vpop.f32.mrb[0].mxu0
        %v1098 = vadd.f32 %v407, %v1097
        %v1099 = vpop.f32.mrb[0].mxu0
        %1100 = vmatprep.mubr.bf16.mxu0 %v688
        %1101 = vmatmul.mubr.bf16.gmra.mrb[0].mxu0 %v687
        %v1102 = vpop.f32.mrb[0].mxu0
        %v1103 = vadd.f32 %v407, %v1102
        %v1104 = vpop.f32.mrb[0].mxu0
        %v1105 = vpop.f32.mrb[0].mxu0
        %v1106 = vpop.f32.mrb[0].mxu0
        %1107 = vdwg.mxu0
        %1108 = vmatprep.subr.bf16.mxu0 0
        %1109 = vmatpush1.bf16.msra.mxu0 %v868
        %1110 = vmatprep.subr.bf16.mxu0 0
        %1111 = vmatpush1.bf16.msra.mxu0 %v869
        %1112 = vmatprep.subr.bf16.mxu0 0
        %1113 = vmatpush1.bf16.msra.mxu0 %v870
        %1114 = vmatprep.subr.bf16.mxu0 0
        %1115 = vmatpush1.bf16.msra.mxu0 %v871
        %1116 = vmatprep.subr.bf16.mxu0 0
        %1117 = vmatpush1.bf16.msra.mxu0 %v872
        %1118 = vmatprep.subr.bf16.mxu0 0
        %1119 = vmatpush1.bf16.msra.mxu0 %v873
        %1120 = vmatprep.subr.bf16.mxu0 0
        %1121 = vmatpush1.bf16.msra.mxu0 %v874
        %1122 = vmatprep.subr.bf16.mxu0 0
        %1123 = vmatpush1.bf16.msra.mxu0 %v875
        %1124 = vmatprep.subr.bf16.mxu0 0
        %1125 = vmatpush1.bf16.msra.mxu0 0
        %1126 = vmatprep.subr.bf16.mxu0 0
        %1127 = vmatpush1.bf16.msra.mxu0 0
        %1128 = vmatprep.subr.bf16.mxu0 0
        %1129 = vmatpush1.bf16.msra.mxu0 0
        %1130 = vmatprep.subr.bf16.mxu0 0
        %1131 = vmatpush1.bf16.msra.mxu0 0
        %1132 = vmatprep.subr.bf16.mxu0 0
        %1133 = vmatpush1.bf16.msra.mxu0 0
        %1134 = vmatprep.subr.bf16.mxu0 0
        %1135 = vmatpush1.bf16.msra.mxu0 0
        %1136 = vmatprep.subr.bf16.mxu0 0
        %1137 = vmatpush1.bf16.msra.mxu0 0
        %1138 = vmatprep.subr.bf16.mxu0 0
        %1139 = vmatpush1.bf16.msra.mxu0 0
        %1140 = vmatprep.mubr.bf16.mxu0 0
        %1141 = vmatmul.mubr.bf16.gmra.mrb[0].mxu0 %v626
        %v1142 = vpop.f32.mrb[0].mxu0
        %v1143 = vadd.f32 %v935, %v1142
        %v1144 = vpop.f32.mrb[0].mxu0
        %v1145 = vpop.f32.mrb[0].mxu0
        %v1146 = vadd.f32 %v938, %v1145
        %v1147 = vpop.f32.mrb[0].mxu0
        %1148 = vmatprep.mubr.bf16.mxu0 0
        %1149 = vmatmul.mubr.bf16.gmra.mrb[0].mxu0 %v629
        %v1150 = vpop.f32.mrb[0].mxu0
        %v1151 = vadd.f32 %v943, %v1150
        %v1152 = vpop.f32.mrb[0].mxu0
        %v1153 = vpop.f32.mrb[0].mxu0
        %v1154 = vadd.f32 %v946, %v1153
        %v1155 = vpop.f32.mrb[0].mxu0
        %1156 = vmatprep.mubr.bf16.mxu0 0
        %1157 = vmatmul.mubr.bf16.gmra.mrb[0].mxu0 %v632
        %v1158 = vpop.f32.mrb[0].mxu0
        %v1159 = vadd.f32 %v951, %v1158
        %v1160 = vpop.f32.mrb[0].mxu0
        %v1161 = vpop.f32.mrb[0].mxu0
        %v1162 = vadd.f32 %v954, %v1161
        %v1163 = vpop.f32.mrb[0].mxu0
        %1164 = vmatprep.mubr.bf16.mxu0 0
        %1165 = vmatmul.mubr.bf16.gmra.mrb[0].mxu0 %v635
        %v1166 = vpop.f32.mrb[0].mxu0
        %v1167 = vadd.f32 %v959, %v1166
        %v1168 = vpop.f32.mrb[0].mxu0
        %v1169 = vpop.f32.mrb[0].mxu0
        %v1170 = vadd.f32 %v962, %v1169
        %v1171 = vpop.f32.mrb[0].mxu0
        %1172 = vmatprep.mubr.bf16.mxu0 0
        %1173 = vmatmul.mubr.bf16.gmra.mrb[0].mxu0 %v638
        %v1174 = vpop.f32.mrb[0].mxu0
        %v1175 = vadd.f32 %v967, %v1174
        %v1176 = vpop.f32.mrb[0].mxu0
        %v1177 = vpop.f32.mrb[0].mxu0
        %v1178 = vadd.f32 %v970, %v1177
        %v1179 = vpop.f32.mrb[0].mxu0
        %1180 = vmatprep.mubr.bf16.mxu0 0
        %1181 = vmatmul.mubr.bf16.gmra.mrb[0].mxu0 %v641
        %v1182 = vpop.f32.mrb[0].mxu0
        %v1183 = vadd.f32 %v975, %v1182
        %v1184 = vpop.f32.mrb[0].mxu0
        %v1185 = vpop.f32.mrb[0].mxu0
        %v1186 = vadd.f32 %v978, %v1185
        %v1187 = vpop.f32.mrb[0].mxu0
        %1188 = vmatprep.mubr.bf16.mxu0 0
        %1189 = vmatmul.mubr.bf16.gmra.mrb[0].mxu0 %v644
        %v1190 = vpop.f32.mrb[0].mxu0
        %v1191 = vadd.f32 %v983, %v1190
        %v1192 = vpop.f32.mrb[0].mxu0
        %v1193 = vpop.f32.mrb[0].mxu0
        %v1194 = vadd.f32 %v986, %v1193
        %v1195 = vpop.f32.mrb[0].mxu0
        %1196 = vmatprep.mubr.bf16.mxu0 0
        %1197 = vmatmul.mubr.bf16.gmra.mrb[0].mxu0 %v647
        %v1198 = vpop.f32.mrb[0].mxu0
        %v1199 = vadd.f32 %v991, %v1198
        %v1200 = vpop.f32.mrb[0].mxu0
        %v1201 = vpop.f32.mrb[0].mxu0
        %v1202 = vadd.f32 %v994, %v1201
        %v1203 = vpop.f32.mrb[0].mxu0
        %1204 = vmatprep.mubr.bf16.mxu0 0
        %1205 = vmatmul.mubr.bf16.gmra.mrb[0].mxu0 %v650
        %v1206 = vpop.f32.mrb[0].mxu0
        %v1207 = vadd.f32 %v999, %v1206
        %v1208 = vpop.f32.mrb[0].mxu0
        %v1209 = vpop.f32.mrb[0].mxu0
        %v1210 = vadd.f32 %v1002, %v1209
        %v1211 = vpop.f32.mrb[0].mxu0
        %1212 = vmatprep.mubr.bf16.mxu0 0
        %1213 = vmatmul.mubr.bf16.gmra.mrb[0].mxu0 %v653
        %v1214 = vpop.f32.mrb[0].mxu0
        %v1215 = vadd.f32 %v1007, %v1214
        %v1216 = vpop.f32.mrb[0].mxu0
        %v1217 = vpop.f32.mrb[0].mxu0
        %v1218 = vadd.f32 %v1010, %v1217
        %v1219 = vpop.f32.mrb[0].mxu0
        %1220 = vmatprep.mubr.bf16.mxu0 0
        %1221 = vmatmul.mubr.bf16.gmra.mrb[0].mxu0 %v656
        %v1222 = vpop.f32.mrb[0].mxu0
        %v1223 = vadd.f32 %v1015, %v1222
        %v1224 = vpop.f32.mrb[0].mxu0
        %v1225 = vpop.f32.mrb[0].mxu0
        %v1226 = vadd.f32 %v1018, %v1225
        %v1227 = vpop.f32.mrb[0].mxu0
        %1228 = vmatprep.mubr.bf16.mxu0 0
        %1229 = vmatmul.mubr.bf16.gmra.mrb[0].mxu0 %v659
        %v1230 = vpop.f32.mrb[0].mxu0
        %v1231 = vadd.f32 %v1023, %v1230
        %v1232 = vpop.f32.mrb[0].mxu0
        %v1233 = vpop.f32.mrb[0].mxu0
        %v1234 = vadd.f32 %v1026, %v1233
        %v1235 = vpop.f32.mrb[0].mxu0
        %1236 = vmatprep.mubr.bf16.mxu0 0
        %1237 = vmatmul.mubr.bf16.gmra.mrb[0].mxu0 %v662
        %v1238 = vpop.f32.mrb[0].mxu0
        %v1239 = vadd.f32 %v1031, %v1238
        %v1240 = vpop.f32.mrb[0].mxu0
        %v1241 = vpop.f32.mrb[0].mxu0
        %v1242 = vadd.f32 %v1034, %v1241
        %v1243 = vpop.f32.mrb[0].mxu0
        %1244 = vmatprep.mubr.bf16.mxu0 0
        %1245 = vmatmul.mubr.bf16.gmra.mrb[0].mxu0 %v665
        %v1246 = vpop.f32.mrb[0].mxu0
        %v1247 = vadd.f32 %v1039, %v1246
        %v1248 = vpop.f32.mrb[0].mxu0
        %v1249 = vpop.f32.mrb[0].mxu0
        %v1250 = vadd.f32 %v1042, %v1249
        %v1251 = vpop.f32.mrb[0].mxu0
        %1252 = vmatprep.mubr.bf16.mxu0 0
        %1253 = vmatmul.mubr.bf16.gmra.mrb[0].mxu0 %v668
        %v1254 = vpop.f32.mrb[0].mxu0
        %v1255 = vadd.f32 %v1047, %v1254
        %v1256 = vpop.f32.mrb[0].mxu0
        %v1257 = vpop.f32.mrb[0].mxu0
        %v1258 = vadd.f32 %v1050, %v1257
        %v1259 = vpop.f32.mrb[0].mxu0
        %1260 = vmatprep.mubr.bf16.mxu0 0
        %1261 = vmatmul.mubr.bf16.gmra.mrb[0].mxu0 %v671
        %v1262 = vpop.f32.mrb[0].mxu0
        %v1263 = vadd.f32 %v1055, %v1262
        %v1264 = vpop.f32.mrb[0].mxu0
        %v1265 = vpop.f32.mrb[0].mxu0
        %v1266 = vadd.f32 %v1058, %v1265
        %v1267 = vpop.f32.mrb[0].mxu0
        %1268 = vmatprep.mubr.bf16.mxu0 0
        %1269 = vmatmul.mubr.bf16.gmra.mrb[0].mxu0 %v674
        %v1270 = vpop.f32.mrb[0].mxu0
        %v1271 = vadd.f32 %v1063, %v1270
        %v1272 = vpop.f32.mrb[0].mxu0
        %v1273 = vpop.f32.mrb[0].mxu0
        %v1274 = vadd.f32 %v1066, %v1273
        %v1275 = vpop.f32.mrb[0].mxu0
        %1276 = vmatprep.mubr.bf16.mxu0 0
        %1277 = vmatmul.mubr.bf16.gmra.mrb[0].mxu0 %v677
        %v1278 = vpop.f32.mrb[0].mxu0
        %v1279 = vadd.f32 %v1071, %v1278
        %v1280 = vpop.f32.mrb[0].mxu0
        %v1281 = vpop.f32.mrb[0].mxu0
        %v1282 = vadd.f32 %v1074, %v1281
        %v1283 = vpop.f32.mrb[0].mxu0
        %1284 = vmatprep.mubr.bf16.mxu0 0
        %1285 = vmatmul.mubr.bf16.gmra.mrb[0].mxu0 %v680
        %v1286 = vpop.f32.mrb[0].mxu0
        %v1287 = vadd.f32 %v1079, %v1286
        %v1288 = vpop.f32.mrb[0].mxu0
        %v1289 = vpop.f32.mrb[0].mxu0
        %v1290 = vadd.f32 %v1082, %v1289
        %v1291 = vpop.f32.mrb[0].mxu0
        %1292 = vmatprep.mubr.bf16.mxu0 0
        %1293 = vmatmul.mubr.bf16.gmra.mrb[0].mxu0 %v683
        %v1294 = vpop.f32.mrb[0].mxu0
        %v1295 = vadd.f32 %v1087, %v1294
        %v1296 = vpop.f32.mrb[0].mxu0
        %v1297 = vpop.f32.mrb[0].mxu0
        %v1298 = vadd.f32 %v1090, %v1297
        %v1299 = vpop.f32.mrb[0].mxu0
        %1300 = vmatprep.mubr.bf16.mxu0 0
        %1301 = vmatmul.mubr.bf16.gmra.mrb[0].mxu0 %v686
        %v1302 = vpop.f32.mrb[0].mxu0
        %v1303 = vadd.f32 %v1095, %v1302
        %v1304 = vpop.f32.mrb[0].mxu0
        %v1305 = vpop.f32.mrb[0].mxu0
        %v1306 = vadd.f32 %v1098, %v1305
        %v1307 = vpop.f32.mrb[0].mxu0
        %1308 = vmatprep.mubr.bf16.mxu0 0
        %1309 = vmatmul.mubr.bf16.gmra.mrb[0].mxu0 %v689
        %v1310 = vpop.f32.mrb[0].mxu0
        %v1311 = vadd.f32 %v1103, %v1310
        %v1312 = vpop.f32.mrb[0].mxu0
        %v1313 = vpop.f32.mrb[0].mxu0
        %v1314 = vpop.f32.mrb[0].mxu0
        %1315 = vdwg.mxu0
        %s1316 = smul.u32 %s21, 344
        %s1317 = scalar_lea.vmem [#allocation2], %s1316
        %1318 = vst [vmem:[%s1317] sm:$0xff] %v1143
        %1319 = vst [vmem:[%s1317 + $0x8] sm:$0xff] %v1146
        %1320 = vst [vmem:[%s1317 + $0x10] sm:$0xff] %v1151
        %1321 = vst [vmem:[%s1317 + $0x18] sm:$0xff] %v1154
        %1322 = vst [vmem:[%s1317 + $0x20] sm:$0xff] %v1159
        %1323 = vst [vmem:[%s1317 + $0x28] sm:$0xff] %v1162
        %1324 = vst [vmem:[%s1317 + $0x30] sm:$0xff] %v1167
        %1325 = vst [vmem:[%s1317 + $0x38] sm:$0xff] %v1170
        %1326 = vst [vmem:[%s1317 + $0x40] sm:$0xff] %v1175
        %1327 = vst [vmem:[%s1317 + $0x48] sm:$0xff] %v1178
        %1328 = vst [vmem:[%s1317 + $0x50] sm:$0xff] %v1183
        %1329 = vst [vmem:[%s1317 + $0x58] sm:$0xff] %v1186
        %1330 = vst [vmem:[%s1317 + $0x60] sm:$0xff] %v1191
        %1331 = vst [vmem:[%s1317 + $0x68] sm:$0xff] %v1194
        %1332 = vst [vmem:[%s1317 + $0x70] sm:$0xff] %v1199
        %1333 = vst [vmem:[%s1317 + $0x78] sm:$0xff] %v1202
        %1334 = vst [vmem:[%s1317 + $0x80] sm:$0xff] %v1207
        %1335 = vst [vmem:[%s1317 + $0x88] sm:$0xff] %v1210
        %1336 = vst [vmem:[%s1317 + $0x90] sm:$0xff] %v1215
        %1337 = vst [vmem:[%s1317 + $0x98] sm:$0xff] %v1218
        %1338 = vst [vmem:[%s1317 + $0xa0] sm:$0xff] %v1223
        %1339 = vst [vmem:[%s1317 + $0xa8] sm:$0xff] %v1226
        %1340 = vst [vmem:[%s1317 + $0xb0] sm:$0xff] %v1231
        %1341 = vst [vmem:[%s1317 + $0xb8] sm:$0xff] %v1234
        %1342 = vst [vmem:[%s1317 + $0xc0] sm:$0xff] %v1239
        %1343 = vst [vmem:[%s1317 + $0xc8] sm:$0xff] %v1242
        %1344 = vst [vmem:[%s1317 + $0xd0] sm:$0xff] %v1247
        %1345 = vst [vmem:[%s1317 + $0xd8] sm:$0xff] %v1250
        %1346 = vst [vmem:[%s1317 + $0xe0] sm:$0xff] %v1255
        %1347 = vst [vmem:[%s1317 + $0xe8] sm:$0xff] %v1258
        %1348 = vst [vmem:[%s1317 + $0xf0] sm:$0xff] %v1263
        %1349 = vst [vmem:[%s1317 + $0xf8] sm:$0xff] %v1266
        %1350 = vst [vmem:[%s1317 + $0x100] sm:$0xff] %v1271
        %1351 = vst [vmem:[%s1317 + $0x108] sm:$0xff] %v1274
        %1352 = vst [vmem:[%s1317 + $0x110] sm:$0xff] %v1279
        %1353 = vst [vmem:[%s1317 + $0x118] sm:$0xff] %v1282
        %1354 = vst [vmem:[%s1317 + $0x120] sm:$0xff] %v1287
        %1355 = vst [vmem:[%s1317 + $0x128] sm:$0xff] %v1290
        %1356 = vst [vmem:[%s1317 + $0x130] sm:$0xff] %v1295
        %1357 = vst [vmem:[%s1317 + $0x138] sm:$0xff] %v1298
        %1358 = vst [vmem:[%s1317 + $0x140] sm:$0xff] %v1303
        %1359 = vst [vmem:[%s1317 + $0x148] sm:$0xff] %v1306
        %1360 = vst [vmem:[%s1317 + $0x150] sm:$0xff] %v1311
        %v1361 = vlaneseq
        %v1362 = vshrl.u32 %v1361, 7
        %v1363 = vadd.s32 %v1362, 8
        %v1364 = vadd.s32 %v1362, 16
        %v1365 = vadd.s32 %v1362, 24
        %v1366 = vadd.s32 %v1362, 32
        %v1367 = vadd.s32 %v1362, 40
        %v1368 = vadd.s32 %v1362, 48
        %v1369 = vadd.s32 %v1362, 56
        %v1370 = vadd.s32 %v1362, 64
        %v1371 = vadd.s32 %v1362, 72
        %v1372 = vadd.s32 %v1362, 80
        %v1373 = vadd.s32 %v1362, 88
        %v1374 = vadd.s32 %v1362, 96
        %v1375 = vadd.s32 %v1362, 104
        %v1376 = vadd.s32 %v1362, 112
        %v1377 = vadd.s32 %v1362, 120
        %v1378 = vadd.s32 %v1362, 128
        %v1379 = vadd.s32 %v1362, 136
        %v1380 = vadd.s32 %v1362, 144
        %v1381 = vadd.s32 %v1362, 152
        %v1382 = vadd.s32 %v1362, 160
        %v1383 = vadd.s32 %v1362, 168
        %v1384 = vadd.s32 %v1362, 176
        %v1385 = vadd.s32 %v1362, 184
        %v1386 = vadd.s32 %v1362, 192
        %v1387 = vadd.s32 %v1362, 200
        %v1388 = vadd.s32 %v1362, 208
        %v1389 = vadd.s32 %v1362, 216
        %v1390 = vadd.s32 %v1362, 224
        %v1391 = vadd.s32 %v1362, 232
        %v1392 = vadd.s32 %v1362, 240
        %v1393 = vadd.s32 %v1362, 248
        %v1394 = vadd.s32 %v1362, 256
        %v1395 = vadd.s32 %v1362, 264
        %v1396 = vadd.s32 %v1362, 272
        %v1397 = vadd.s32 %v1362, 280
        %v1398 = vadd.s32 %v1362, 288
        %v1399 = vadd.s32 %v1362, 296
        %v1400 = vadd.s32 %v1362, 304
        %v1401 = vadd.s32 %v1362, 312
        %v1402 = vadd.s32 %v1362, 320
        %v1403 = vadd.s32 %v1362, 328
        %v1404 = vadd.s32 %v1362, 336
        %v1405 = vstv %s1316
        %v1406 = vadd.s32 %v1405, %v1362
        %v1407 = vadd.s32 %v1405, %v1363
        %v1408 = vadd.s32 %v1405, %v1364
        %v1409 = vadd.s32 %v1405, %v1365
        %v1410 = vadd.s32 %v1405, %v1366
        %v1411 = vadd.s32 %v1405, %v1367
        %v1412 = vadd.s32 %v1405, %v1368
        %v1413 = vadd.s32 %v1405, %v1369
        %v1414 = vadd.s32 %v1405, %v1370
        %v1415 = vadd.s32 %v1405, %v1371
        %v1416 = vadd.s32 %v1405, %v1372
        %v1417 = vadd.s32 %v1405, %v1373
        %v1418 = vadd.s32 %v1405, %v1374
        %v1419 = vadd.s32 %v1405, %v1375
        %v1420 = vadd.s32 %v1405, %v1376
        %v1421 = vadd.s32 %v1405, %v1377
        %v1422 = vadd.s32 %v1405, %v1378
        %v1423 = vadd.s32 %v1405, %v1379
        %v1424 = vadd.s32 %v1405, %v1380
        %v1425 = vadd.s32 %v1405, %v1381
        %v1426 = vadd.s32 %v1405, %v1382
        %v1427 = vadd.s32 %v1405, %v1383
        %v1428 = vadd.s32 %v1405, %v1384
        %v1429 = vadd.s32 %v1405, %v1385
        %v1430 = vadd.s32 %v1405, %v1386
        %v1431 = vadd.s32 %v1405, %v1387
        %v1432 = vadd.s32 %v1405, %v1388
        %v1433 = vadd.s32 %v1405, %v1389
        %v1434 = vadd.s32 %v1405, %v1390
        %v1435 = vadd.s32 %v1405, %v1391
        %v1436 = vadd.s32 %v1405, %v1392
        %v1437 = vadd.s32 %v1405, %v1393
        %v1438 = vadd.s32 %v1405, %v1394
        %v1439 = vadd.s32 %v1405, %v1395
        %v1440 = vadd.s32 %v1405, %v1396
        %v1441 = vadd.s32 %v1405, %v1397
        %v1442 = vadd.s32 %v1405, %v1398
        %v1443 = vadd.s32 %v1405, %v1399
        %v1444 = vadd.s32 %v1405, %v1400
        %v1445 = vadd.s32 %v1405, %v1401
        %v1446 = vadd.s32 %v1405, %v1402
        %v1447 = vadd.s32 %v1405, %v1403
        %v1448 = vadd.s32 %v1405, %v1404
        %vm1449 = vcmp.lt.s32.totalorder %v1406, 338
        %vm1450 = vcmp.lt.s32.totalorder %v1407, 338
        %vm1451 = vcmp.lt.s32.totalorder %v1408, 338
        %vm1452 = vcmp.lt.s32.totalorder %v1409, 338
        %vm1453 = vcmp.lt.s32.totalorder %v1410, 338
        %vm1454 = vcmp.lt.s32.totalorder %v1411, 338
        %vm1455 = vcmp.lt.s32.totalorder %v1412, 338
        %vm1456 = vcmp.lt.s32.totalorder %v1413, 338
        %vm1457 = vcmp.lt.s32.totalorder %v1414, 338
        %vm1458 = vcmp.lt.s32.totalorder %v1415, 338
        %vm1459 = vcmp.lt.s32.totalorder %v1416, 338
        %vm1460 = vcmp.lt.s32.totalorder %v1417, 338
        %vm1461 = vcmp.lt.s32.totalorder %v1418, 338
        %vm1462 = vcmp.lt.s32.totalorder %v1419, 338
        %vm1463 = vcmp.lt.s32.totalorder %v1420, 338
        %vm1464 = vcmp.lt.s32.totalorder %v1421, 338
        %vm1465 = vcmp.lt.s32.totalorder %v1422, 338
        %vm1466 = vcmp.lt.s32.totalorder %v1423, 338
        %vm1467 = vcmp.lt.s32.totalorder %v1424, 338
        %vm1468 = vcmp.lt.s32.totalorder %v1425, 338
        %vm1469 = vcmp.lt.s32.totalorder %v1426, 338
        %vm1470 = vcmp.lt.s32.totalorder %v1427, 338
        %vm1471 = vcmp.lt.s32.totalorder %v1428, 338
        %vm1472 = vcmp.lt.s32.totalorder %v1429, 338
        %vm1473 = vcmp.lt.s32.totalorder %v1430, 338
        %vm1474 = vcmp.lt.s32.totalorder %v1431, 338
        %vm1475 = vcmp.lt.s32.totalorder %v1432, 338
        %vm1476 = vcmp.lt.s32.totalorder %v1433, 338
        %vm1477 = vcmp.lt.s32.totalorder %v1434, 338
        %vm1478 = vcmp.lt.s32.totalorder %v1435, 338
        %vm1479 = vcmp.lt.s32.totalorder %v1436, 338
        %vm1480 = vcmp.lt.s32.totalorder %v1437, 338
        %vm1481 = vcmp.lt.s32.totalorder %v1438, 338
        %vm1482 = vcmp.lt.s32.totalorder %v1439, 338
        %vm1483 = vcmp.lt.s32.totalorder %v1440, 338
        %vm1484 = vcmp.lt.s32.totalorder %v1441, 338
        %vm1485 = vcmp.lt.s32.totalorder %v1442, 338
        %vm1486 = vcmp.lt.s32.totalorder %v1443, 338
        %vm1487 = vcmp.lt.s32.totalorder %v1444, 338
        %vm1488 = vcmp.lt.s32.totalorder %v1445, 338
        %vm1489 = vcmp.lt.s32.totalorder %v1446, 338
        %vm1490 = vcmp.lt.s32.totalorder %v1447, 338
        %vm1491 = vcmp.lt.s32.totalorder %v1448, 338
        %v1492 = vsel %vm1449, 1, 0
        %v1493 = vsel %vm1450, 1, 0
        %v1494 = vsel %vm1451, 1, 0
        %v1495 = vsel %vm1452, 1, 0
        %v1496 = vsel %vm1453, 1, 0
        %v1497 = vsel %vm1454, 1, 0
        %v1498 = vsel %vm1455, 1, 0
        %v1499 = vsel %vm1456, 1, 0
        %v1500 = vsel %vm1457, 1, 0
        %v1501 = vsel %vm1458, 1, 0
        %v1502 = vsel %vm1459, 1, 0
        %v1503 = vsel %vm1460, 1, 0
        %v1504 = vsel %vm1461, 1, 0
        %v1505 = vsel %vm1462, 1, 0
        %v1506 = vsel %vm1463, 1, 0
        %v1507 = vsel %vm1464, 1, 0
        %v1508 = vsel %vm1465, 1, 0
        %v1509 = vsel %vm1466, 1, 0
        %v1510 = vsel %vm1467, 1, 0
        %v1511 = vsel %vm1468, 1, 0
        %v1512 = vsel %vm1469, 1, 0
        %v1513 = vsel %vm1470, 1, 0
        %v1514 = vsel %vm1471, 1, 0
        %v1515 = vsel %vm1472, 1, 0
        %v1516 = vsel %vm1473, 1, 0
        %v1517 = vsel %vm1474, 1, 0
        %v1518 = vsel %vm1475, 1, 0
        %v1519 = vsel %vm1476, 1, 0
        %v1520 = vsel %vm1477, 1, 0
        %v1521 = vsel %vm1478, 1, 0
        %v1522 = vsel %vm1479, 1, 0
        %v1523 = vsel %vm1480, 1, 0
        %v1524 = vsel %vm1481, 1, 0
        %v1525 = vsel %vm1482, 1, 0
        %v1526 = vsel %vm1483, 1, 0
        %v1527 = vsel %vm1484, 1, 0
        %v1528 = vsel %vm1485, 1, 0
        %v1529 = vsel %vm1486, 1, 0
        %v1530 = vsel %vm1487, 1, 0
        %v1531 = vsel %vm1488, 1, 0
        %v1532 = vsel %vm1489, 1, 0
        %v1533 = vsel %vm1490, 1, 0
        %v1534 = vsel %vm1491, 1, 0
        %v1535 = vcvt.s32.f32 %v1492
        %v1536 = vcvt.s32.f32 %v1493
        %v1537 = vcvt.s32.f32 %v1494
        %v1538 = vcvt.s32.f32 %v1495
        %v1539 = vcvt.s32.f32 %v1496
        %v1540 = vcvt.s32.f32 %v1497
        %v1541 = vcvt.s32.f32 %v1498
        %v1542 = vcvt.s32.f32 %v1499
        %v1543 = vcvt.s32.f32 %v1500
        %v1544 = vcvt.s32.f32 %v1501
        %v1545 = vcvt.s32.f32 %v1502
        %v1546 = vcvt.s32.f32 %v1503
        %v1547 = vcvt.s32.f32 %v1504
        %v1548 = vcvt.s32.f32 %v1505
        %v1549 = vcvt.s32.f32 %v1506
        %v1550 = vcvt.s32.f32 %v1507
        %v1551 = vcvt.s32.f32 %v1508
        %v1552 = vcvt.s32.f32 %v1509
        %v1553 = vcvt.s32.f32 %v1510
        %v1554 = vcvt.s32.f32 %v1511
        %v1555 = vcvt.s32.f32 %v1512
        %v1556 = vcvt.s32.f32 %v1513
        %v1557 = vcvt.s32.f32 %v1514
        %v1558 = vcvt.s32.f32 %v1515
        %v1559 = vcvt.s32.f32 %v1516
        %v1560 = vcvt.s32.f32 %v1517
        %v1561 = vcvt.s32.f32 %v1518
        %v1562 = vcvt.s32.f32 %v1519
        %v1563 = vcvt.s32.f32 %v1520
        %v1564 = vcvt.s32.f32 %v1521
        %v1565 = vcvt.s32.f32 %v1522
        %v1566 = vcvt.s32.f32 %v1523
        %v1567 = vcvt.s32.f32 %v1524
        %v1568 = vcvt.s32.f32 %v1525
        %v1569 = vcvt.s32.f32 %v1526
        %v1570 = vcvt.s32.f32 %v1527
        %v1571 = vcvt.s32.f32 %v1528
        %v1572 = vcvt.s32.f32 %v1529
        %v1573 = vcvt.s32.f32 %v1530
        %v1574 = vcvt.s32.f32 %v1531
        %v1575 = vcvt.s32.f32 %v1532
        %v1576 = vcvt.s32.f32 %v1533
        %v1577 = vcvt.s32.f32 %v1534
        %v1578 = vmul.f32 %v1143, %v1535
        %v1579 = vmul.f32 %v1146, %v1536
        %v1580 = vmul.f32 %v1151, %v1537
        %v1581 = vmul.f32 %v1154, %v1538
        %v1582 = vmul.f32 %v1159, %v1539
        %v1583 = vmul.f32 %v1162, %v1540
        %v1584 = vmul.f32 %v1167, %v1541
        %v1585 = vmul.f32 %v1170, %v1542
        %v1586 = vmul.f32 %v1175, %v1543
        %v1587 = vmul.f32 %v1178, %v1544
        %v1588 = vmul.f32 %v1183, %v1545
        %v1589 = vmul.f32 %v1186, %v1546
        %v1590 = vmul.f32 %v1191, %v1547
        %v1591 = vmul.f32 %v1194, %v1548
        %v1592 = vmul.f32 %v1199, %v1549
        %v1593 = vmul.f32 %v1202, %v1550
        %v1594 = vmul.f32 %v1207, %v1551
        %v1595 = vmul.f32 %v1210, %v1552
        %v1596 = vmul.f32 %v1215, %v1553
        %v1597 = vmul.f32 %v1218, %v1554
        %v1598 = vmul.f32 %v1223, %v1555
        %v1599 = vmul.f32 %v1226, %v1556
        %v1600 = vmul.f32 %v1231, %v1557
        %v1601 = vmul.f32 %v1234, %v1558
        %v1602 = vmul.f32 %v1239, %v1559
        %v1603 = vmul.f32 %v1242, %v1560
        %v1604 = vmul.f32 %v1247, %v1561
        %v1605 = vmul.f32 %v1250, %v1562
        %v1606 = vmul.f32 %v1255, %v1563
        %v1607 = vmul.f32 %v1258, %v1564
        %v1608 = vmul.f32 %v1263, %v1565
        %v1609 = vmul.f32 %v1266, %v1566
        %v1610 = vmul.f32 %v1271, %v1567
        %v1611 = vmul.f32 %v1274, %v1568
        %v1612 = vmul.f32 %v1279, %v1569
        %v1613 = vmul.f32 %v1282, %v1570
        %v1614 = vmul.f32 %v1287, %v1571
        %v1615 = vmul.f32 %v1290, %v1572
        %v1616 = vmul.f32 %v1295, %v1573
        %v1617 = vmul.f32 %v1298, %v1574
        %v1618 = vmul.f32 %v1303, %v1575
        %v1619 = vmul.f32 %v1306, %v1576
        %v1620 = vmul.f32 %v1311, %v1577
        %v1621 = vld [vmem:[#allocation3] sm:$0x1]
        %v1622 = vadd.f32 %v1578, %v1579
        %v1623 = vadd.f32 %v1622, %v1580
        %v1624 = vadd.f32 %v1623, %v1581
        %v1625 = vadd.f32 %v1624, %v1582
        %v1626 = vadd.f32 %v1625, %v1583
        %v1627 = vadd.f32 %v1626, %v1584
        %v1628 = vadd.f32 %v1627, %v1585
        %v1629 = vadd.f32 %v1628, %v1586
        %v1630 = vadd.f32 %v1629, %v1587
        %v1631 = vadd.f32 %v1630, %v1588
        %v1632 = vadd.f32 %v1631, %v1589
        %v1633 = vadd.f32 %v1632, %v1590
        %v1634 = vadd.f32 %v1633, %v1591
        %v1635 = vadd.f32 %v1634, %v1592
        %v1636 = vadd.f32 %v1635, %v1593
        %v1637 = vadd.f32 %v1636, %v1594
        %v1638 = vadd.f32 %v1637, %v1595
        %v1639 = vadd.f32 %v1638, %v1596
        %v1640 = vadd.f32 %v1639, %v1597
        %v1641 = vadd.f32 %v1640, %v1598
        %v1642 = vadd.f32 %v1641, %v1599
        %v1643 = vadd.f32 %v1642, %v1600
        %v1644 = vadd.f32 %v1643, %v1601
        %v1645 = vadd.f32 %v1644, %v1602
        %v1646 = vadd.f32 %v1645, %v1603
        %v1647 = vadd.f32 %v1646, %v1604
        %v1648 = vadd.f32 %v1647, %v1605
        %v1649 = vadd.f32 %v1648, %v1606
        %v1650 = vadd.f32 %v1649, %v1607
        %v1651 = vadd.f32 %v1650, %v1608
        %v1652 = vadd.f32 %v1651, %v1609
        %v1653 = vadd.f32 %v1652, %v1610
        %v1654 = vadd.f32 %v1653, %v1611
        %v1655 = vadd.f32 %v1654, %v1612
        %v1656 = vadd.f32 %v1655, %v1613
        %v1657 = vadd.f32 %v1656, %v1614
        %v1658 = vadd.f32 %v1657, %v1615
        %v1659 = vadd.f32 %v1658, %v1616
        %v1660 = vadd.f32 %v1659, %v1617
        %v1661 = vadd.f32 %v1660, %v1618
        %v1662 = vadd.f32 %v1661, %v1619
        %v1663 = vadd.f32 %v1662, %v1620
        %v1664 = vrot.slane %v1663, 4
        %v1665 = vadd.f32 %v1663, %v1664
        %v1666 = vrot.slane %v1665, 2
        %v1667 = vadd.f32 %v1665, %v1666
        %v1668 = vrot.slane %v1667, 1
        %v1669 = vadd.f32 %v1667, %v1668
        %v1670 = vadd.f32 %v1621, %v1669
        %1671 = vst [vmem:[#allocation3] sm:$0x1] %v1670
        %v1672 = vld [vmem:[#allocation4] sm:$0x1]
        %v1673 = vmul.f32 %v1578, %v1578
        %v1674 = vmul.f32 %v1579, %v1579
        %v1675 = vmul.f32 %v1580, %v1580
        %v1676 = vmul.f32 %v1581, %v1581
        %v1677 = vmul.f32 %v1582, %v1582
        %v1678 = vmul.f32 %v1583, %v1583
        %v1679 = vmul.f32 %v1584, %v1584
        %v1680 = vmul.f32 %v1585, %v1585
        %v1681 = vmul.f32 %v1586, %v1586
        %v1682 = vmul.f32 %v1587, %v1587
        %v1683 = vmul.f32 %v1588, %v1588
        %v1684 = vmul.f32 %v1589, %v1589
        %v1685 = vmul.f32 %v1590, %v1590
        %v1686 = vmul.f32 %v1591, %v1591
        %v1687 = vmul.f32 %v1592, %v1592
        %v1688 = vmul.f32 %v1593, %v1593
        %v1689 = vmul.f32 %v1594, %v1594
        %v1690 = vmul.f32 %v1595, %v1595
        %v1691 = vmul.f32 %v1596, %v1596
        %v1692 = vmul.f32 %v1597, %v1597
        %v1693 = vmul.f32 %v1598, %v1598
        %v1694 = vmul.f32 %v1599, %v1599
        %v1695 = vmul.f32 %v1600, %v1600
        %v1696 = vmul.f32 %v1601, %v1601
        %v1697 = vmul.f32 %v1602, %v1602
        %v1698 = vmul.f32 %v1603, %v1603
        %v1699 = vmul.f32 %v1604, %v1604
        %v1700 = vmul.f32 %v1605, %v1605
        %v1701 = vmul.f32 %v1606, %v1606
        %v1702 = vmul.f32 %v1607, %v1607
        %v1703 = vmul.f32 %v1608, %v1608
        %v1704 = vmul.f32 %v1609, %v1609
        %v1705 = vmul.f32 %v1610, %v1610
        %v1706 = vmul.f32 %v1611, %v1611
        %v1707 = vmul.f32 %v1612, %v1612
        %v1708 = vmul.f32 %v1613, %v1613
        %v1709 = vmul.f32 %v1614, %v1614
        %v1710 = vmul.f32 %v1615, %v1615
        %v1711 = vmul.f32 %v1616, %v1616
        %v1712 = vmul.f32 %v1617, %v1617
        %v1713 = vmul.f32 %v1618, %v1618
        %v1714 = vmul.f32 %v1619, %v1619
        %v1715 = vmul.f32 %v1620, %v1620
        %v1716 = vadd.f32 %v1673, %v1674
        %v1717 = vadd.f32 %v1716, %v1675
        %v1718 = vadd.f32 %v1717, %v1676
        %v1719 = vadd.f32 %v1718, %v1677
        %v1720 = vadd.f32 %v1719, %v1678
        %v1721 = vadd.f32 %v1720, %v1679
        %v1722 = vadd.f32 %v1721, %v1680
        %v1723 = vadd.f32 %v1722, %v1681
        %v1724 = vadd.f32 %v1723, %v1682
        %v1725 = vadd.f32 %v1724, %v1683
        %v1726 = vadd.f32 %v1725, %v1684
        %v1727 = vadd.f32 %v1726, %v1685
        %v1728 = vadd.f32 %v1727, %v1686
        %v1729 = vadd.f32 %v1728, %v1687
        %v1730 = vadd.f32 %v1729, %v1688
        %v1731 = vadd.f32 %v1730, %v1689
        %v1732 = vadd.f32 %v1731, %v1690
        %v1733 = vadd.f32 %v1732, %v1691
        %v1734 = vadd.f32 %v1733, %v1692
        %v1735 = vadd.f32 %v1734, %v1693
        %v1736 = vadd.f32 %v1735, %v1694
        %v1737 = vadd.f32 %v1736, %v1695
        %v1738 = vadd.f32 %v1737, %v1696
        %v1739 = vadd.f32 %v1738, %v1697
        %v1740 = vadd.f32 %v1739, %v1698
        %v1741 = vadd.f32 %v1740, %v1699
        %v1742 = vadd.f32 %v1741, %v1700
        %v1743 = vadd.f32 %v1742, %v1701
        %v1744 = vadd.f32 %v1743, %v1702
        %v1745 = vadd.f32 %v1744, %v1703
        %v1746 = vadd.f32 %v1745, %v1704
        %v1747 = vadd.f32 %v1746, %v1705
        %v1748 = vadd.f32 %v1747, %v1706
        %v1749 = vadd.f32 %v1748, %v1707
        %v1750 = vadd.f32 %v1749, %v1708
        %v1751 = vadd.f32 %v1750, %v1709
        %v1752 = vadd.f32 %v1751, %v1710
        %v1753 = vadd.f32 %v1752, %v1711
        %v1754 = vadd.f32 %v1753, %v1712
        %v1755 = vadd.f32 %v1754, %v1713
        %v1756 = vadd.f32 %v1755, %v1714
        %v1757 = vadd.f32 %v1756, %v1715
        %v1758 = vrot.slane %v1757, 4
        %v1759 = vadd.f32 %v1757, %v1758
        %v1760 = vrot.slane %v1759, 2
        %v1761 = vadd.f32 %v1759, %v1760
        %v1762 = vrot.slane %v1761, 1
        %v1763 = vadd.f32 %v1761, %v1762
        %v1764 = vadd.f32 %v1672, %v1763
        %1765 = vst [vmem:[#allocation4] sm:$0x1] %v1764
      $region44: #{generador_forward.7} parent=39 // pred_fallthru
        _
      %p1766 = scmp.eq.s32.totalorder %s20, 1
      // Predicated region
      $region49: #{generador_forward.7} parent=39 // pred_check
        %p1767 = pneg %p1766
      $region50: #{generador_forward.7} parent=39 // pred_check_branch
        %1769 = sbr.rel (%p1767) target = $region52
      $region51: #{generador_forward.7} parent=39 // pred_region
        %v1770 = vld [vmem:[#allocation3] sm:$0x1]
        %v1771 = vmul.f32 %v1770, 0.00295858
        %v1772 = vld [vmem:[#allocation4] sm:$0x1]
        %v1773 = vmul.f32 %v1772, 0.00295858
        %v1774 = vmul.f32 %v1771, %v1771
        %v1775 = vsub.f32 %v1773, %v1774
        %v1776 = vmax.f32 %v1775, 0.0
        %v1777 = vld [vmem:[%s3] sm:$0x1]
        %v1778 = vadd.f32 %v1776, 1e-05
        %v1779 = vrsqrt.pop %v1778
        %v1780 = vmul.f32 %v1777, %v1779
        %v1781 = vld [vmem:[%s4] sm:$0x1]
        %v1782 = vmul.f32 %v1771, %v1780
        %v1783 = vsub.f32 %v1781, %v1782
        %s1784 = smul.u32 %s21, 344
        %s1785 = scalar_lea.vmem [#allocation2], %s1784
        %v1786 = vld [vmem:[%s1785] sm:$0xff]
        %v1787 = vld [vmem:[%s1785 + $0x8] sm:$0xff]
        %v1788 = vld [vmem:[%s1785 + $0x10] sm:$0xff]
        %v1789 = vld [vmem:[%s1785 + $0x18] sm:$0xff]
        %v1790 = vld [vmem:[%s1785 + $0x20] sm:$0xff]
        %v1791 = vld [vmem:[%s1785 + $0x28] sm:$0xff]
        %v1792 = vld [vmem:[%s1785 + $0x30] sm:$0xff]
        %v1793 = vld [vmem:[%s1785 + $0x38] sm:$0xff]
        %v1794 = vld [vmem:[%s1785 + $0x40] sm:$0xff]
        %v1795 = vld [vmem:[%s1785 + $0x48] sm:$0xff]
        %v1796 = vld [vmem:[%s1785 + $0x50] sm:$0xff]
        %v1797 = vld [vmem:[%s1785 + $0x58] sm:$0xff]
        %v1798 = vld [vmem:[%s1785 + $0x60] sm:$0xff]
        %v1799 = vld [vmem:[%s1785 + $0x68] sm:$0xff]
        %v1800 = vld [vmem:[%s1785 + $0x70] sm:$0xff]
        %v1801 = vld [vmem:[%s1785 + $0x78] sm:$0xff]
        %v1802 = vld [vmem:[%s1785 + $0x80] sm:$0xff]
        %v1803 = vld [vmem:[%s1785 + $0x88] sm:$0xff]
        %v1804 = vld [vmem:[%s1785 + $0x90] sm:$0xff]
        %v1805 = vld [vmem:[%s1785 + $0x98] sm:$0xff]
        %v1806 = vld [vmem:[%s1785 + $0xa0] sm:$0xff]
        %v1807 = vld [vmem:[%s1785 + $0xa8] sm:$0xff]
        %v1808 = vld [vmem:[%s1785 + $0xb0] sm:$0xff]
        %v1809 = vld [vmem:[%s1785 + $0xb8] sm:$0xff]
        %v1810 = vld [vmem:[%s1785 + $0xc0] sm:$0xff]
        %v1811 = vld [vmem:[%s1785 + $0xc8] sm:$0xff]
        %v1812 = vld [vmem:[%s1785 + $0xd0] sm:$0xff]
        %v1813 = vld [vmem:[%s1785 + $0xd8] sm:$0xff]
        %v1814 = vld [vmem:[%s1785 + $0xe0] sm:$0xff]
        %v1815 = vld [vmem:[%s1785 + $0xe8] sm:$0xff]
        %v1816 = vld [vmem:[%s1785 + $0xf0] sm:$0xff]
        %v1817 = vld [vmem:[%s1785 + $0xf8] sm:$0xff]
        %v1818 = vld [vmem:[%s1785 + $0x100] sm:$0xff]
        %v1819 = vld [vmem:[%s1785 + $0x108] sm:$0xff]
        %v1820 = vld [vmem:[%s1785 + $0x110] sm:$0xff]
        %v1821 = vld [vmem:[%s1785 + $0x118] sm:$0xff]
        %v1822 = vld [vmem:[%s1785 + $0x120] sm:$0xff]
        %v1823 = vld [vmem:[%s1785 + $0x128] sm:$0xff]
        %v1824 = vld [vmem:[%s1785 + $0x130] sm:$0xff]
        %v1825 = vld [vmem:[%s1785 + $0x138] sm:$0xff]
        %v1826 = vld [vmem:[%s1785 + $0x140] sm:$0xff]
        %v1827 = vld [vmem:[%s1785 + $0x148] sm:$0xff]
        %v1828 = vld [vmem:[%s1785 + $0x150] sm:$0xff]
        %v1830 = vlaneseq
        %v1831 = vshrl.u32 %v1830, 7
        %v1832 = vsub.s32 0, %v1831
        %v1833 = vrot.slane %v1780, %v1832
        %v1835 = vmul.f32 %v1786, %v1833
        %v1836 = vmul.f32 %v1787, %v1833
        %v1837 = vmul.f32 %v1788, %v1833
        %v1838 = vmul.f32 %v1789, %v1833
        %v1839 = vmul.f32 %v1790, %v1833
        %v1840 = vmul.f32 %v1791, %v1833
        %v1841 = vmul.f32 %v1792, %v1833
        %v1842 = vmul.f32 %v1793, %v1833
        %v1843 = vmul.f32 %v1794, %v1833
        %v1844 = vmul.f32 %v1795, %v1833
        %v1845 = vmul.f32 %v1796, %v1833
        %v1846 = vmul.f32 %v1797, %v1833
        %v1847 = vmul.f32 %v1798, %v1833
        %v1848 = vmul.f32 %v1799, %v1833
        %v1849 = vmul.f32 %v1800, %v1833
        %v1850 = vmul.f32 %v1801, %v1833
        %v1851 = vmul.f32 %v1802, %v1833
        %v1852 = vmul.f32 %v1803, %v1833
        %v1853 = vmul.f32 %v1804, %v1833
        %v1854 = vmul.f32 %v1805, %v1833
        %v1855 = vmul.f32 %v1806, %v1833
        %v1856 = vmul.f32 %v1807, %v1833
        %v1857 = vmul.f32 %v1808, %v1833
        %v1858 = vmul.f32 %v1809, %v1833
        %v1859 = vmul.f32 %v1810, %v1833
        %v1860 = vmul.f32 %v1811, %v1833
        %v1861 = vmul.f32 %v1812, %v1833
        %v1862 = vmul.f32 %v1813, %v1833
        %v1863 = vmul.f32 %v1814, %v1833
        %v1864 = vmul.f32 %v1815, %v1833
        %v1865 = vmul.f32 %v1816, %v1833
        %v1866 = vmul.f32 %v1817, %v1833
        %v1867 = vmul.f32 %v1818, %v1833
        %v1868 = vmul.f32 %v1819, %v1833
        %v1869 = vmul.f32 %v1820, %v1833
        %v1870 = vmul.f32 %v1821, %v1833
        %v1871 = vmul.f32 %v1822, %v1833
        %v1872 = vmul.f32 %v1823, %v1833
        %v1873 = vmul.f32 %v1824, %v1833
        %v1874 = vmul.f32 %v1825, %v1833
        %v1875 = vmul.f32 %v1826, %v1833
        %v1876 = vmul.f32 %v1827, %v1833
        %v1877 = vmul.f32 %v1828, %v1833
        %v1879 = vlaneseq
        %v1880 = vshrl.u32 %v1879, 7
        %v1881 = vsub.s32 0, %v1880
        %v1882 = vrot.slane %v1783, %v1881
        %v1884 = vadd.f32 %v1835, %v1882
        %v1885 = vadd.f32 %v1836, %v1882
        %v1886 = vadd.f32 %v1837, %v1882
        %v1887 = vadd.f32 %v1838, %v1882
        %v1888 = vadd.f32 %v1839, %v1882
        %v1889 = vadd.f32 %v1840, %v1882
        %v1890 = vadd.f32 %v1841, %v1882
        %v1891 = vadd.f32 %v1842, %v1882
        %v1892 = vadd.f32 %v1843, %v1882
        %v1893 = vadd.f32 %v1844, %v1882
        %v1894 = vadd.f32 %v1845, %v1882
        %v1895 = vadd.f32 %v1846, %v1882
        %v1896 = vadd.f32 %v1847, %v1882
        %v1897 = vadd.f32 %v1848, %v1882
        %v1898 = vadd.f32 %v1849, %v1882
        %v1899 = vadd.f32 %v1850, %v1882
        %v1900 = vadd.f32 %v1851, %v1882
        %v1901 = vadd.f32 %v1852, %v1882
        %v1902 = vadd.f32 %v1853, %v1882
        %v1903 = vadd.f32 %v1854, %v1882
        %v1904 = vadd.f32 %v1855, %v1882
        %v1905 = vadd.f32 %v1856, %v1882
        %v1906 = vadd.f32 %v1857, %v1882
        %v1907 = vadd.f32 %v1858, %v1882
        %v1908 = vadd.f32 %v1859, %v1882
        %v1909 = vadd.f32 %v1860, %v1882
        %v1910 = vadd.f32 %v1861, %v1882
        %v1911 = vadd.f32 %v1862, %v1882
        %v1912 = vadd.f32 %v1863, %v1882
        %v1913 = vadd.f32 %v1864, %v1882
        %v1914 = vadd.f32 %v1865, %v1882
        %v1915 = vadd.f32 %v1866, %v1882
        %v1916 = vadd.f32 %v1867, %v1882
        %v1917 = vadd.f32 %v1868, %v1882
        %v1918 = vadd.f32 %v1869, %v1882
        %v1919 = vadd.f32 %v1870, %v1882
        %v1920 = vadd.f32 %v1871, %v1882
        %v1921 = vadd.f32 %v1872, %v1882
        %v1922 = vadd.f32 %v1873, %v1882
        %v1923 = vadd.f32 %v1874, %v1882
        %v1924 = vadd.f32 %v1875, %v1882
        %v1925 = vadd.f32 %v1876, %v1882
        %v1926 = vadd.f32 %v1877, %v1882
        %vm1927 = vcmp.ge.f32.partialorder %v1884, 0.0
        %vm1928 = vcmp.ge.f32.partialorder %v1885, 0.0
        %vm1929 = vcmp.ge.f32.partialorder %v1886, 0.0
        %vm1930 = vcmp.ge.f32.partialorder %v1887, 0.0
        %vm1931 = vcmp.ge.f32.partialorder %v1888, 0.0
        %vm1932 = vcmp.ge.f32.partialorder %v1889, 0.0
        %vm1933 = vcmp.ge.f32.partialorder %v1890, 0.0
        %vm1934 = vcmp.ge.f32.partialorder %v1891, 0.0
        %vm1935 = vcmp.ge.f32.partialorder %v1892, 0.0
        %vm1936 = vcmp.ge.f32.partialorder %v1893, 0.0
        %vm1937 = vcmp.ge.f32.partialorder %v1894, 0.0
        %vm1938 = vcmp.ge.f32.partialorder %v1895, 0.0
        %vm1939 = vcmp.ge.f32.partialorder %v1896, 0.0
        %vm1940 = vcmp.ge.f32.partialorder %v1897, 0.0
        %vm1941 = vcmp.ge.f32.partialorder %v1898, 0.0
        %vm1942 = vcmp.ge.f32.partialorder %v1899, 0.0
        %vm1943 = vcmp.ge.f32.partialorder %v1900, 0.0
        %vm1944 = vcmp.ge.f32.partialorder %v1901, 0.0
        %vm1945 = vcmp.ge.f32.partialorder %v1902, 0.0
        %vm1946 = vcmp.ge.f32.partialorder %v1903, 0.0
        %vm1947 = vcmp.ge.f32.partialorder %v1904, 0.0
        %vm1948 = vcmp.ge.f32.partialorder %v1905, 0.0
        %vm1949 = vcmp.ge.f32.partialorder %v1906, 0.0
        %vm1950 = vcmp.ge.f32.partialorder %v1907, 0.0
        %vm1951 = vcmp.ge.f32.partialorder %v1908, 0.0
        %vm1952 = vcmp.ge.f32.partialorder %v1909, 0.0
        %vm1953 = vcmp.ge.f32.partialorder %v1910, 0.0
        %vm1954 = vcmp.ge.f32.partialorder %v1911, 0.0
        %vm1955 = vcmp.ge.f32.partialorder %v1912, 0.0
        %vm1956 = vcmp.ge.f32.partialorder %v1913, 0.0
        %vm1957 = vcmp.ge.f32.partialorder %v1914, 0.0
        %vm1958 = vcmp.ge.f32.partialorder %v1915, 0.0
        %vm1959 = vcmp.ge.f32.partialorder %v1916, 0.0
        %vm1960 = vcmp.ge.f32.partialorder %v1917, 0.0
        %vm1961 = vcmp.ge.f32.partialorder %v1918, 0.0
        %vm1962 = vcmp.ge.f32.partialorder %v1919, 0.0
        %vm1963 = vcmp.ge.f32.partialorder %v1920, 0.0
        %vm1964 = vcmp.ge.f32.partialorder %v1921, 0.0
        %vm1965 = vcmp.ge.f32.partialorder %v1922, 0.0
        %vm1966 = vcmp.ge.f32.partialorder %v1923, 0.0
        %vm1967 = vcmp.ge.f32.partialorder %v1924, 0.0
        %vm1968 = vcmp.ge.f32.partialorder %v1925, 0.0
        %vm1969 = vcmp.ge.f32.partialorder %v1926, 0.0
        %v1970 = vmul.f32 %v1884, 0.2
        %v1971 = vmul.f32 %v1885, 0.2
        %v1972 = vmul.f32 %v1886, 0.2
        %v1973 = vmul.f32 %v1887, 0.2
        %v1974 = vmul.f32 %v1888, 0.2
        %v1975 = vmul.f32 %v1889, 0.2
        %v1976 = vmul.f32 %v1890, 0.2
        %v1977 = vmul.f32 %v1891, 0.2
        %v1978 = vmul.f32 %v1892, 0.2
        %v1979 = vmul.f32 %v1893, 0.2
        %v1980 = vmul.f32 %v1894, 0.2
        %v1981 = vmul.f32 %v1895, 0.2
        %v1982 = vmul.f32 %v1896, 0.2
        %v1983 = vmul.f32 %v1897, 0.2
        %v1984 = vmul.f32 %v1898, 0.2
        %v1985 = vmul.f32 %v1899, 0.2
        %v1986 = vmul.f32 %v1900, 0.2
        %v1987 = vmul.f32 %v1901, 0.2
        %v1988 = vmul.f32 %v1902, 0.2
        %v1989 = vmul.f32 %v1903, 0.2
        %v1990 = vmul.f32 %v1904, 0.2
        %v1991 = vmul.f32 %v1905, 0.2
        %v1992 = vmul.f32 %v1906, 0.2
        %v1993 = vmul.f32 %v1907, 0.2
        %v1994 = vmul.f32 %v1908, 0.2
        %v1995 = vmul.f32 %v1909, 0.2
        %v1996 = vmul.f32 %v1910, 0.2
        %v1997 = vmul.f32 %v1911, 0.2
        %v1998 = vmul.f32 %v1912, 0.2
        %v1999 = vmul.f32 %v1913, 0.2
        %v2000 = vmul.f32 %v1914, 0.2
        %v2001 = vmul.f32 %v1915, 0.2
        %v2002 = vmul.f32 %v1916, 0.2
        %v2003 = vmul.f32 %v1917, 0.2
        %v2004 = vmul.f32 %v1918, 0.2
        %v2005 = vmul.f32 %v1919, 0.2
        %v2006 = vmul.f32 %v1920, 0.2
        %v2007 = vmul.f32 %v1921, 0.2
        %v2008 = vmul.f32 %v1922, 0.2
        %v2009 = vmul.f32 %v1923, 0.2
        %v2010 = vmul.f32 %v1924, 0.2
        %v2011 = vmul.f32 %v1925, 0.2
        %v2012 = vmul.f32 %v1926, 0.2
        %v2013 = vsel %vm1927, %v1884, %v1970
        %v2014 = vsel %vm1928, %v1885, %v1971
        %v2015 = vsel %vm1929, %v1886, %v1972
        %v2016 = vsel %vm1930, %v1887, %v1973
        %v2017 = vsel %vm1931, %v1888, %v1974
        %v2018 = vsel %vm1932, %v1889, %v1975
        %v2019 = vsel %vm1933, %v1890, %v1976
        %v2020 = vsel %vm1934, %v1891, %v1977
        %v2021 = vsel %vm1935, %v1892, %v1978
        %v2022 = vsel %vm1936, %v1893, %v1979
        %v2023 = vsel %vm1937, %v1894, %v1980
        %v2024 = vsel %vm1938, %v1895, %v1981
        %v2025 = vsel %vm1939, %v1896, %v1982
        %v2026 = vsel %vm1940, %v1897, %v1983
        %v2027 = vsel %vm1941, %v1898, %v1984
        %v2028 = vsel %vm1942, %v1899, %v1985
        %v2029 = vsel %vm1943, %v1900, %v1986
        %v2030 = vsel %vm1944, %v1901, %v1987
        %v2031 = vsel %vm1945, %v1902, %v1988
        %v2032 = vsel %vm1946, %v1903, %v1989
        %v2033 = vsel %vm1947, %v1904, %v1990
        %v2034 = vsel %vm1948, %v1905, %v1991
        %v2035 = vsel %vm1949, %v1906, %v1992
        %v2036 = vsel %vm1950, %v1907, %v1993
        %v2037 = vsel %vm1951, %v1908, %v1994
        %v2038 = vsel %vm1952, %v1909, %v1995
        %v2039 = vsel %vm1953, %v1910, %v1996
        %v2040 = vsel %vm1954, %v1911, %v1997
        %v2041 = vsel %vm1955, %v1912, %v1998
        %v2042 = vsel %vm1956, %v1913, %v1999
        %v2043 = vsel %vm1957, %v1914, %v2000
        %v2044 = vsel %vm1958, %v1915, %v2001
        %v2045 = vsel %vm1959, %v1916, %v2002
        %v2046 = vsel %vm1960, %v1917, %v2003
        %v2047 = vsel %vm1961, %v1918, %v2004
        %v2048 = vsel %vm1962, %v1919, %v2005
        %v2049 = vsel %vm1963, %v1920, %v2006
        %v2050 = vsel %vm1964, %v1921, %v2007
        %v2051 = vsel %vm1965, %v1922, %v2008
        %v2052 = vsel %vm1966, %v1923, %v2009
        %v2053 = vsel %vm1967, %v1924, %v2010
        %v2054 = vsel %vm1968, %v1925, %v2011
        %v2055 = vsel %vm1969, %v1926, %v2012
        %v2056 = vpack.c.bf16 %v2014, %v2013
        %v2057 = vpack.c.bf16 %v2016, %v2015
        %v2058 = vpack.c.bf16 %v2018, %v2017
        %v2059 = vpack.c.bf16 %v2020, %v2019
        %v2060 = vpack.c.bf16 %v2022, %v2021
        %v2061 = vpack.c.bf16 %v2024, %v2023
        %v2062 = vpack.c.bf16 %v2026, %v2025
        %v2063 = vpack.c.bf16 %v2028, %v2027
        %v2064 = vpack.c.bf16 %v2030, %v2029
        %v2065 = vpack.c.bf16 %v2032, %v2031
        %v2066 = vpack.c.bf16 %v2034, %v2033
        %v2067 = vpack.c.bf16 %v2036, %v2035
        %v2068 = vpack.c.bf16 %v2038, %v2037
        %v2069 = vpack.c.bf16 %v2040, %v2039
        %v2070 = vpack.c.bf16 %v2042, %v2041
        %v2071 = vpack.c.bf16 %v2044, %v2043
        %v2072 = vpack.c.bf16 %v2046, %v2045
        %v2073 = vpack.c.bf16 %v2048, %v2047
        %v2074 = vpack.c.bf16 %v2050, %v2049
        %v2075 = vpack.c.bf16 %v2052, %v2051
        %v2076 = vpack.c.bf16 %v2054, %v2053
        %v2077 = vpack.c.bf16 %v2055, %v2055
        %v2100 = vunpack.c.l.b16 %v2056
        %v2101 = vunpack.c.h.b16 %v2056
        %v2102 = vunpack.c.l.b16 %v2057
        %v2103 = vunpack.c.h.b16 %v2057
        %v2104 = vunpack.c.l.b16 %v2058
        %v2105 = vunpack.c.h.b16 %v2058
        %v2106 = vunpack.c.l.b16 %v2059
        %v2107 = vunpack.c.h.b16 %v2059
        %v2108 = vunpack.c.l.b16 %v2060
        %v2109 = vunpack.c.h.b16 %v2060
        %v2110 = vunpack.c.l.b16 %v2061
        %v2111 = vunpack.c.h.b16 %v2061
        %v2112 = vunpack.c.l.b16 %v2062
        %v2113 = vunpack.c.h.b16 %v2062
        %v2114 = vunpack.c.l.b16 %v2063
        %v2115 = vunpack.c.h.b16 %v2063
        %v2116 = vunpack.c.l.b16 %v2064
        %v2117 = vunpack.c.h.b16 %v2064
        %v2118 = vunpack.c.l.b16 %v2065
        %v2119 = vunpack.c.h.b16 %v2065
        %v2120 = vunpack.c.l.b16 %v2066
        %v2121 = vunpack.c.h.b16 %v2066
        %v2122 = vunpack.c.l.b16 %v2067
        %v2123 = vunpack.c.h.b16 %v2067
        %v2124 = vunpack.c.l.b16 %v2068
        %v2125 = vunpack.c.h.b16 %v2068
        %v2126 = vunpack.c.l.b16 %v2069
        %v2127 = vunpack.c.h.b16 %v2069
        %v2128 = vunpack.c.l.b16 %v2070
        %v2129 = vunpack.c.h.b16 %v2070
        %v2130 = vunpack.c.l.b16 %v2071
        %v2131 = vunpack.c.h.b16 %v2071
        %v2132 = vunpack.c.l.b16 %v2072
        %v2133 = vunpack.c.h.b16 %v2072
        %v2134 = vunpack.c.l.b16 %v2073
        %v2135 = vunpack.c.h.b16 %v2073
        %v2136 = vunpack.c.l.b16 %v2074
        %v2137 = vunpack.c.h.b16 %v2074
        %v2138 = vunpack.c.l.b16 %v2075
        %v2139 = vunpack.c.h.b16 %v2075
        %v2140 = vunpack.c.l.b16 %v2076
        %v2141 = vunpack.c.h.b16 %v2076
        %v2142 = vunpack.c.l.b16 %v2077
        %v2143 = vpack.c.b16 %v2100, %v2100
        %v2144 = vpack.c.b16 %v2101, %v2101
        %v2145 = vpack.c.b16 %v2102, %v2102
        %v2146 = vpack.c.b16 %v2103, %v2103
        %v2147 = vpack.c.b16 %v2104, %v2104
        %v2148 = vpack.c.b16 %v2105, %v2105
        %v2149 = vpack.c.b16 %v2106, %v2106
        %v2150 = vpack.c.b16 %v2107, %v2107
        %v2151 = vpack.c.b16 %v2108, %v2108
        %v2152 = vpack.c.b16 %v2109, %v2109
        %v2153 = vpack.c.b16 %v2110, %v2110
        %v2154 = vpack.c.b16 %v2111, %v2111
        %v2155 = vpack.c.b16 %v2112, %v2112
        %v2156 = vpack.c.b16 %v2113, %v2113
        %v2157 = vpack.c.b16 %v2114, %v2114
        %v2158 = vpack.c.b16 %v2115, %v2115
        %v2159 = vpack.c.b16 %v2116, %v2116
        %v2160 = vpack.c.b16 %v2117, %v2117
        %v2161 = vpack.c.b16 %v2118, %v2118
        %v2162 = vpack.c.b16 %v2119, %v2119
        %v2163 = vpack.c.b16 %v2120, %v2120
        %v2164 = vpack.c.b16 %v2121, %v2121
        %v2165 = vpack.c.b16 %v2122, %v2122
        %v2166 = vpack.c.b16 %v2123, %v2123
        %v2167 = vpack.c.b16 %v2124, %v2124
        %v2168 = vpack.c.b16 %v2125, %v2125
        %v2169 = vpack.c.b16 %v2126, %v2126
        %v2170 = vpack.c.b16 %v2127, %v2127
        %v2171 = vpack.c.b16 %v2128, %v2128
        %v2172 = vpack.c.b16 %v2129, %v2129
        %v2173 = vpack.c.b16 %v2130, %v2130
        %v2174 = vpack.c.b16 %v2131, %v2131
        %v2175 = vpack.c.b16 %v2132, %v2132
        %v2176 = vpack.c.b16 %v2133, %v2133
        %v2177 = vpack.c.b16 %v2134, %v2134
        %v2178 = vpack.c.b16 %v2135, %v2135
        %v2179 = vpack.c.b16 %v2136, %v2136
        %v2180 = vpack.c.b16 %v2137, %v2137
        %v2181 = vpack.c.b16 %v2138, %v2138
        %v2182 = vpack.c.b16 %v2139, %v2139
        %v2183 = vpack.c.b16 %v2140, %v2140
        %v2184 = vpack.c.b16 %v2141, %v2141
        %v2185 = vpack.c.b16 %v2142, %v2142
        %2229 = vst [vmem:[%s255] sm:$0xf] %v2143
        %2230 = vst [vmem:[%s255 + $0x4] sm:$0xf] %v2144
        %2231 = vst [vmem:[%s255 + $0x8] sm:$0xf] %v2145
        %2232 = vst [vmem:[%s255 + $0xc] sm:$0xf] %v2146
        %2233 = vst [vmem:[%s255 + $0x10] sm:$0xf] %v2147
        %2234 = vst [vmem:[%s255 + $0x14] sm:$0xf] %v2148
        %2235 = vst [vmem:[%s255 + $0x18] sm:$0xf] %v2149
        %2236 = vst [vmem:[%s255 + $0x1c] sm:$0xf] %v2150
        %2237 = vst [vmem:[%s255 + $0x20] sm:$0xf] %v2151
        %2238 = vst [vmem:[%s255 + $0x24] sm:$0xf] %v2152
        %2239 = vst [vmem:[%s255 + $0x28] sm:$0xf] %v2153
        %2240 = vst [vmem:[%s255 + $0x2c] sm:$0xf] %v2154
        %2241 = vst [vmem:[%s255 + $0x30] sm:$0xf] %v2155
        %2242 = vst [vmem:[%s255 + $0x34] sm:$0xf] %v2156
        %2243 = vst [vmem:[%s255 + $0x38] sm:$0xf] %v2157
        %2244 = vst [vmem:[%s255 + $0x3c] sm:$0xf] %v2158
        %2245 = vst [vmem:[%s255 + $0x40] sm:$0xf] %v2159
        %2246 = vst [vmem:[%s255 + $0x44] sm:$0xf] %v2160
        %2247 = vst [vmem:[%s255 + $0x48] sm:$0xf] %v2161
        %2248 = vst [vmem:[%s255 + $0x4c] sm:$0xf] %v2162
        %2249 = vst [vmem:[%s255 + $0x50] sm:$0xf] %v2163
        %2250 = vst [vmem:[%s255 + $0x54] sm:$0xf] %v2164
        %2251 = vst [vmem:[%s255 + $0x58] sm:$0xf] %v2165
        %2252 = vst [vmem:[%s255 + $0x5c] sm:$0xf] %v2166
        %2253 = vst [vmem:[%s255 + $0x60] sm:$0xf] %v2167
        %2254 = vst [vmem:[%s255 + $0x64] sm:$0xf] %v2168
        %2255 = vst [vmem:[%s255 + $0x68] sm:$0xf] %v2169
        %2256 = vst [vmem:[%s255 + $0x6c] sm:$0xf] %v2170
        %2257 = vst [vmem:[%s255 + $0x70] sm:$0xf] %v2171
        %2258 = vst [vmem:[%s255 + $0x74] sm:$0xf] %v2172
        %2259 = vst [vmem:[%s255 + $0x78] sm:$0xf] %v2173
        %2260 = vst [vmem:[%s255 + $0x7c] sm:$0xf] %v2174
        %2261 = vst [vmem:[%s255 + $0x80] sm:$0xf] %v2175
        %2262 = vst [vmem:[%s255 + $0x84] sm:$0xf] %v2176
        %2263 = vst [vmem:[%s255 + $0x88] sm:$0xf] %v2177
        %2264 = vst [vmem:[%s255 + $0x8c] sm:$0xf] %v2178
        %2265 = vst [vmem:[%s255 + $0x90] sm:$0xf] %v2179
        %2266 = vst [vmem:[%s255 + $0x94] sm:$0xf] %v2180
        %2267 = vst [vmem:[%s255 + $0x98] sm:$0xf] %v2181
        %2268 = vst [vmem:[%s255 + $0x9c] sm:$0xf] %v2182
        %2269 = vst [vmem:[%s255 + $0xa0] sm:$0xf] %v2183
        %2270 = vst [vmem:[%s255 + $0xa4] sm:$0xf] %v2184
        %2271 = vst [vmem:[%s255 + $0xa8] sm:$0xf] %v2185
      $region52: #{generador_forward.7} parent=39 // pred_fallthru
        _
      %s2272 = smul.u32 43, %s21
      %p2273 = scmp.lt.s32.totalorder %s2272, 42
      %s2274 = scalar_select %p2273, %s2272, 42
      %s2275 = smul.addr %s2274, 4
      %s2276 = scalar_lea.vmem %s5, %s2275
      // Predicated region
      $region53: #{generador_forward.7} parent=39 // pred_check
        %p2277 = pneg %p160
      $region54: #{generador_forward.7} parent=39 // pred_check_branch
        %2279 = sbr.rel (%p2277) target = $region56
      $region55: #{generador_forward.7} parent=39 // pred_region
        %s2280 = smul.u32 43, %s21
      $region56: #{generador_forward.7} parent=39 // pred_fallthru
        _
      // Predicated region
      $region57: #{generador_forward.7} parent=39 // pred_check
        %p2281 = pneg %p160
      $region58: #{generador_forward.7} parent=39 // pred_check_branch
        %2283 = sbr.rel (%p2281) target = $region60
      $region59: #{generador_forward.7} parent=39 // pred_region
        %s2284 = smul.u32 43, %s21
        %p2285 = scmp.lt.s32.totalorder %s2284, 42
        %s2286 = scalar_select %p2285, %s2284, 42
        %s2287 = smul.addr %s2286, 4
        %s2288 = scalar_lea.vmem %s5, %s2287
      $region60: #{generador_forward.7} parent=39 // pred_fallthru
        _
    $region40: #{generador_forward.7} parent=5 // pred_fallthru
      _
    %p2289 = scmp.le.s32.totalorder 2, %s11
    // Predicated region
    $region61: #{generador_forward.7} parent=5 // pred_check
      %p2290 = pneg %p2289
    $region62: #{generador_forward.7} parent=5 // pred_check_branch
      %2292 = sbr.rel (%p2290) target = $region64
    $region63: #{generador_forward.7} parent=5 // pred_region
      %s2293 = ssub.s32 %s11, 2
    $region64: #{generador_forward.7} parent=5 // pred_fallthru
      _
  $region6: #{generador_forward.7} parent=0 // loop_footer
    %s15 = sadd.s32 1, %s11
  $region7: #{generador_forward.7} parent=0 // loop_footer_branch
    %10 = sbr.rel target = $region3
  $region8: #{generador_forward.7} parent=0 // loop_exit
    _

// kernel: generador_forward.8
$region0: #{generador_forward.8}
  #allocation0 [shape = 'u32[]', space=smem, size = 0x4, offset = 0x4, fixed_abs, tag = 'smem constant byte address 0x4 - core index']
  #allocation1 [shape = 'u32[144,128]{1,0:T(1,128)}', space=vmem, size = 0x12000, scoped, tag = 'internal scratch']
  #allocation2 [shape = 'f32[3,512,128]{2,1,0:T(8,128)}', space=vmem, size = 0xc0000, scoped, tag = 'scratch operand']
  #allocation3 [shape = 'f32[1,128]{1,0:T(1,128)}', space=vmem, size = 0x200, scoped, tag = 'scratch operand']
  #allocation4 [shape = 'f32[1,128]{1,0:T(1,128)}', space=vmem, size = 0x200, scoped, tag = 'scratch operand']
  %s0 = inlined_call_operand.vmem [shape: bf16[1536,256], index: 0, kind: input, shape index: {}]
  %s1 = inlined_call_operand.vmem [shape: bf16[256,128], index: 1, kind: input, shape index: {}]
  %s2 = inlined_call_operand.vmem [shape: f32[1,128], index: 2, kind: input, shape index: {}]
  %s3 = inlined_call_operand.vmem [shape: f32[1,128], index: 3, kind: input, shape index: {}]
  %s4 = inlined_call_operand.vmem [shape: f32[1,128], index: 4, kind: input, shape index: {}]
  %s5 = inlined_call_operand.vmem [shape: bf16[1536,128], index: 5, kind: output, shape index: {}]
  %s6 = sld [smem:[#allocation0]]
  $region65: #{generador_forward.8} parent=0
    _
  %s8 = ssub.s32 1, %s6
  %s9 = scalar_select 0, %s8, %s6
  loop: start=0, step=1, limit=8
  $region2: #{generador_forward.8} parent=0 // loop_pre_header
    _
  $region3: #{generador_forward.8} parent=0 // loop_header
    %s11 = sphi 0, %s15
    %p12 = scmp.ge.s32.totalorder %s11, 8
    %s18 = sphi 0, %s30
    %s19 = sphi 0, %s26
    %s20 = sphi 0, %s18
    %s21 = sphi 0, %s19
    %s22 = sphi 0, %s20
    %s23 = sphi 0, %s21
    %s37 = sphi 0, %s39
    %s40 = sphi 0, %s37
    %s41 = sphi 0, %s40
    %s57 = sphi 0, %s41
    %s61 = sphi 0, %s61
    %s63 = sphi 0, %s61
    %s64 = sphi 0, %s63
    %s78 = sphi 0, %s64
    %s82 = sphi 0, %s82
    %s84 = sphi 0, %s82
    %s85 = sphi 0, %s84
    %s99 = sphi 0, %s85
    %s103 = sphi 0, %s103
    %s105 = sphi 0, %s103
    %s106 = sphi 0, %s105
    %s120 = sphi 0, %s106
    %s124 = sphi 0, %s124
    %s126 = sphi 0, %s124
    %s127 = sphi 0, %s126
    %s141 = sphi 0, %s127
    %s147 = sphi 0, %s149
    %s150 = sphi 0, %s147
    %s151 = sphi 0, %s150
    %s167 = sphi 0, %s151
  $region4: #{generador_forward.8} parent=0 // loop_header_branch
    %14 = sbr.rel (%p12) target = $region8
  $region5: #{generador_forward.8} parent=0 // loop_body
    %s16 = ssub.s32 %s11, 1
    %s17 = ssub.s32 %s11, 2
    %s24 = sadd.s32 1, %s19
    %p25 = scmp.ge.s32.totalorder %s24, 3
    %s26 = scalar_select %p25, 0, %s24
    %s27 = sadd.s32 1, %s18
    %s28 = scalar_select %p25, %s27, %s18
    %p29 = scmp.ge.s32.totalorder %s28, 2
    %s30 = scalar_select %p29, 0, %s28
    %s31 = ssub.s32 1, %s18
    %s32 = smul.u32 %s31, %s19
    %s33 = ssub.s32 1, %s30
    %s34 = smul.u32 %s33, %s26
    %s35 = ssub.s32 %s32, %s34
    %p36 = scmp.eq.s32.totalorder %s35, 0
    %s38 = sadd.s32 %s37, 1
    %s39 = scalar_select %p36, %s37, %s38
    %p42 = pneg %p36
    %p43 = scmp.eq.s32.totalorder %s11, 5
    %p44 = por %p42, %p43
    %p45 = scmp.ne.s32.totalorder %s37, %s40
    %p46 = scmp.eq.s32.totalorder %s11, 0
    %p47 = por %p45, %p46
    %p48 = scmp.ne.s32.totalorder %s37, %s40
    %p49 = scmp.eq.s32.totalorder %s16, 5
    %p50 = por %p48, %p49
    %p51 = scmp.ne.s32.totalorder %s40, %s41
    %p52 = scmp.eq.s32.totalorder %s16, 0
    %p53 = por %p51, %p52
    %p54 = scmp.ne.s32.totalorder %s40, %s41
    %p55 = scmp.eq.s32.totalorder %s17, 5
    %p56 = por %p54, %p55
    %p58 = scmp.ne.s32.totalorder %s41, %s57
    %p59 = scmp.eq.s32.totalorder %s17, 0
    %p60 = por %p58, %p59
    %s62 = sadd.s32 %s61, 1
    %p65 = scmp.eq.s32.totalorder %s11, 5
    %p66 = scmp.ne.s32.totalorder %s61, %s63
    %p67 = scmp.eq.s32.totalorder %s11, 0
    %p68 = por %p66, %p67
    %p69 = scmp.ne.s32.totalorder %s61, %s63
    %p70 = scmp.eq.s32.totalorder %s16, 5
    %p71 = por %p69, %p70
    %p72 = scmp.ne.s32.totalorder %s63, %s64
    %p73 = scmp.eq.s32.totalorder %s16, 0
    %p74 = por %p72, %p73
    %p75 = scmp.ne.s32.totalorder %s63, %s64
    %p76 = scmp.eq.s32.totalorder %s17, 5
    %p77 = por %p75, %p76
    %p79 = scmp.ne.s32.totalorder %s64, %s78
    %p80 = scmp.eq.s32.totalorder %s17, 0
    %p81 = por %p79, %p80
    %s83 = sadd.s32 %s82, 1
    %p86 = scmp.eq.s32.totalorder %s11, 5
    %p87 = scmp.ne.s32.totalorder %s82, %s84
    %p88 = scmp.eq.s32.totalorder %s11, 0
    %p89 = por %p87, %p88
    %p90 = scmp.ne.s32.totalorder %s82, %s84
    %p91 = scmp.eq.s32.totalorder %s16, 5
    %p92 = por %p90, %p91
    %p93 = scmp.ne.s32.totalorder %s84, %s85
    %p94 = scmp.eq.s32.totalorder %s16, 0
    %p95 = por %p93, %p94
    %p96 = scmp.ne.s32.totalorder %s84, %s85
    %p97 = scmp.eq.s32.totalorder %s17, 5
    %p98 = por %p96, %p97
    %p100 = scmp.ne.s32.totalorder %s85, %s99
    %p101 = scmp.eq.s32.totalorder %s17, 0
    %p102 = por %p100, %p101
    %s104 = sadd.s32 %s103, 1
    %p107 = scmp.eq.s32.totalorder %s11, 5
    %p108 = scmp.ne.s32.totalorder %s103, %s105
    %p109 = scmp.eq.s32.totalorder %s11, 0
    %p110 = por %p108, %p109
    %p111 = scmp.ne.s32.totalorder %s103, %s105
    %p112 = scmp.eq.s32.totalorder %s16, 5
    %p113 = por %p111, %p112
    %p114 = scmp.ne.s32.totalorder %s105, %s106
    %p115 = scmp.eq.s32.totalorder %s16, 0
    %p116 = por %p114, %p115
    %p117 = scmp.ne.s32.totalorder %s105, %s106
    %p118 = scmp.eq.s32.totalorder %s17, 5
    %p119 = por %p117, %p118
    %p121 = scmp.ne.s32.totalorder %s106, %s120
    %p122 = scmp.eq.s32.totalorder %s17, 0
    %p123 = por %p121, %p122
    %s125 = sadd.s32 %s124, 1
    %p128 = scmp.eq.s32.totalorder %s11, 5
    %p129 = scmp.ne.s32.totalorder %s124, %s126
    %p130 = scmp.eq.s32.totalorder %s11, 0
    %p131 = por %p129, %p130
    %p132 = scmp.ne.s32.totalorder %s124, %s126
    %p133 = scmp.eq.s32.totalorder %s16, 5
    %p134 = por %p132, %p133
    %p135 = scmp.ne.s32.totalorder %s126, %s127
    %p136 = scmp.eq.s32.totalorder %s16, 0
    %p137 = por %p135, %p136
    %p138 = scmp.ne.s32.totalorder %s126, %s127
    %p139 = scmp.eq.s32.totalorder %s17, 5
    %p140 = por %p138, %p139
    %p142 = scmp.ne.s32.totalorder %s127, %s141
    %p143 = scmp.eq.s32.totalorder %s17, 0
    %p144 = por %p142, %p143
    %s145 = ssub.s32 %s19, %s26
    %p146 = scmp.eq.s32.totalorder %s145, 0
    %s148 = sadd.s32 %s147, 1
    %s149 = scalar_select %p146, %s147, %s148
    %p152 = pneg %p146
    %p153 = scmp.eq.s32.totalorder %s11, 5
    %p154 = por %p152, %p153
    %p155 = scmp.ne.s32.totalorder %s147, %s150
    %p156 = scmp.eq.s32.totalorder %s11, 0
    %p157 = por %p155, %p156
    %p158 = scmp.ne.s32.totalorder %s147, %s150
    %p159 = scmp.eq.s32.totalorder %s16, 5
    %p160 = por %p158, %p159
    %p161 = scmp.ne.s32.totalorder %s150, %s151
    %p162 = scmp.eq.s32.totalorder %s16, 0
    %p163 = por %p161, %p162
    %p164 = scmp.ne.s32.totalorder %s150, %s151
    %p165 = scmp.eq.s32.totalorder %s17, 5
    %p166 = por %p164, %p165
    %p168 = scmp.ne.s32.totalorder %s151, %s167
    %p169 = scmp.eq.s32.totalorder %s17, 0
    %p170 = por %p168, %p169
    %p171 = scmp.le.s32.totalorder 1, %s11
    %p172 = scmp.lt.s32.totalorder %s11, 7
    %p173 = pnand %p171, %p172
    %p174 = pneg %p173
    // Predicated region
    $region9: #{generador_forward.8} parent=5 // pred_check
      _
    $region10: #{generador_forward.8} parent=5 // pred_check_branch
      %176 = sbr.rel (%p173) target = $region12
    $region11: #{generador_forward.8} parent=5 // pred_region
      %s177 = ssub.s32 %s11, 1
      // Predicated region
      $region13: #{generador_forward.8} parent=11 // pred_check
        %p178 = pneg %p74
      $region14: #{generador_forward.8} parent=11 // pred_check_branch
        %180 = sbr.rel (%p178) target = $region16
      $region15: #{generador_forward.8} parent=11 // pred_region
        _
      $region16: #{generador_forward.8} parent=11 // pred_fallthru
        _
      // Predicated region
      $region17: #{generador_forward.8} parent=11 // pred_check
        %p181 = pneg %p95
      $region18: #{generador_forward.8} parent=11 // pred_check_branch
        %183 = sbr.rel (%p181) target = $region20
      $region19: #{generador_forward.8} parent=11 // pred_region
        _
      $region20: #{generador_forward.8} parent=11 // pred_fallthru
        _
      // Predicated region
      $region21: #{generador_forward.8} parent=11 // pred_check
        %p184 = pneg %p116
      $region22: #{generador_forward.8} parent=11 // pred_check_branch
        %186 = sbr.rel (%p184) target = $region24
      $region23: #{generador_forward.8} parent=11 // pred_region
        _
      $region24: #{generador_forward.8} parent=11 // pred_fallthru
        _
      // Predicated region
      $region25: #{generador_forward.8} parent=11 // pred_check
        %p187 = pneg %p137
      $region26: #{generador_forward.8} parent=11 // pred_check_branch
        %189 = sbr.rel (%p187) target = $region28
      $region27: #{generador_forward.8} parent=11 // pred_region
        _
      $region28: #{generador_forward.8} parent=11 // pred_fallthru
        _
    $region12: #{generador_forward.8} parent=5 // pred_fallthru
      _
    %p190 = scmp.lt.s32.totalorder %s11, 6
    // Predicated region
    $region29: #{generador_forward.8} parent=5 // pred_check
      %p191 = pneg %p190
    $region30: #{generador_forward.8} parent=5 // pred_check_branch
      %193 = sbr.rel (%p191) target = $region32
    $region31: #{generador_forward.8} parent=5 // pred_region
      // Predicated region
      $region33: #{generador_forward.8} parent=31 // pred_check
        %p194 = pneg %p47
      $region34: #{generador_forward.8} parent=31 // pred_check_branch
        %196 = sbr.rel (%p194) target = $region36
      $region35: #{generador_forward.8} parent=31 // pred_region
        %s197 = ssub.s32 1, %s18
        %s198 = smul.u32 %s197, %s19
        %s199 = smul.u32 64, %s198
        %p200 = scmp.lt.s32.totalorder %s199, 191
        %s201 = scalar_select %p200, %s199, 191
        %s202 = smul.addr %s201, 2
        %s203 = smul.addr %s202, 4
        %s204 = scalar_lea.vmem %s0, %s203
        %s205 = ssub.s32 1, %s18
        %s206 = smul.u32 %s205, %s19
        %s207 = smul.u32 64, %s206
      $region36: #{generador_forward.8} parent=31 // pred_fallthru
        _
    $region32: #{generador_forward.8} parent=5 // pred_fallthru
      _
    %p208 = scmp.le.s32.totalorder 1, %s11
    %p209 = scmp.lt.s32.totalorder %s11, 7
    %p210 = pnand %p208, %p209
    %p211 = pneg %p210
    // Predicated region
    $region37: #{generador_forward.8} parent=5 // pred_check
      _
    $region38: #{generador_forward.8} parent=5 // pred_check_branch
      %213 = sbr.rel (%p210) target = $region40
    $region39: #{generador_forward.8} parent=5 // pred_region
      %s214 = ssub.s32 %s11, 1
      %s215 = ssub.s32 1, %s20
      %s216 = smul.u32 %s215, %s21
      %s217 = smul.u32 64, %s216
      %p218 = scmp.lt.s32.totalorder %s217, 191
      %s219 = scalar_select %p218, %s217, 191
      %s220 = smul.addr %s219, 2
      %s221 = smul.addr %s220, 4
      %s222 = scalar_lea.vmem %s0, %s221
      %p223 = pneg %p53
      %p224 = pneg %p50
      %p225 = pneg %p74
      %p226 = pneg %p71
      %p227 = pneg %p95
      %p228 = pneg %p92
      %p229 = pneg %p116
      %p230 = pneg %p113
      %p231 = pneg %p137
      %p232 = pneg %p134
      %p233 = pneg %p163
      %p234 = pneg %p160
      %s235 = smul.u32 64, %s21
      %p236 = scmp.lt.s32.totalorder %s235, 191
      %s237 = scalar_select %p236, %s235, 191
      %s238 = smul.addr %s237, 4
      %s239 = scalar_lea.vmem %s5, %s238
      %s240 = ssub.s32 1, %s20
      %s241 = smul.u32 %s240, %s21
      %s242 = smul.u32 64, %s241
      %p243 = scmp.lt.s32.totalorder %s242, 191
      %s244 = scalar_select %p243, %s242, 191
      %s245 = smul.addr %s244, 2
      %s246 = smul.addr %s245, 4
      %s247 = scalar_lea.vmem %s0, %s246
      %s248 = ssub.s32 1, %s20
      %s249 = smul.u32 %s248, %s21
      %s250 = smul.u32 64, %s249
      %s251 = smul.u32 64, %s21
      %p252 = scmp.lt.s32.totalorder %s251, 191
      %s253 = scalar_select %p252, %s251, 191
      %s254 = smul.addr %s253, 4
      %s255 = scalar_lea.vmem %s5, %s254
      %s256 = smul.u32 64, %s21
      %p258 = scmp.eq.s32.totalorder %s20, 0
      // Predicated region
      $region41: #{generador_forward.8} parent=39 // pred_check
        %p259 = pneg %p258
      $region42: #{generador_forward.8} parent=39 // pred_check_branch
        %261 = sbr.rel (%p259) target = $region44
      $region43: #{generador_forward.8} parent=39 // pred_region
        %p262 = scmp.eq.s32.totalorder %s21, 0
        // Predicated region
        $region45: #{generador_forward.8} parent=43 // pred_check
          %p263 = pneg %p262
        $region46: #{generador_forward.8} parent=43 // pred_check_branch
          %265 = sbr.rel (%p263) target = $region48
        $region47: #{generador_forward.8} parent=43 // pred_region
          %266 = vst [vmem:[#allocation3] sm:$0x1] 0.0
          %267 = vst [vmem:[#allocation4] sm:$0x1] 0.0
        $region48: #{generador_forward.8} parent=43 // pred_fallthru
          _
        %v268 = vld [vmem:[%s247] sm:$0xff]
        %v269 = vld [vmem:[%s247 + $0x8] sm:$0xff]
        %v270 = vld [vmem:[%s247 + $0x10] sm:$0xff]
        %v271 = vld [vmem:[%s247 + $0x18] sm:$0xff]
        %v272 = vld [vmem:[%s247 + $0x20] sm:$0xff]
        %v273 = vld [vmem:[%s247 + $0x28] sm:$0xff]
        %v274 = vld [vmem:[%s247 + $0x30] sm:$0xff]
        %v275 = vld [vmem:[%s247 + $0x38] sm:$0xff]
        %v276 = vld [vmem:[%s247 + $0x40] sm:$0xff]
        %v277 = vld [vmem:[%s247 + $0x48] sm:$0xff]
        %v278 = vld [vmem:[%s247 + $0x50] sm:$0xff]
        %v279 = vld [vmem:[%s247 + $0x58] sm:$0xff]
        %v280 = vld [vmem:[%s247 + $0x60] sm:$0xff]
        %v281 = vld [vmem:[%s247 + $0x68] sm:$0xff]
        %v282 = vld [vmem:[%s247 + $0x70] sm:$0xff]
        %v283 = vld [vmem:[%s247 + $0x78] sm:$0xff]
        %v284 = vld [vmem:[%s247 + $0x80] sm:$0xff]
        %v285 = vld [vmem:[%s247 + $0x88] sm:$0xff]
        %v286 = vld [vmem:[%s247 + $0x90] sm:$0xff]
        %v287 = vld [vmem:[%s247 + $0x98] sm:$0xff]
        %v288 = vld [vmem:[%s247 + $0xa0] sm:$0xff]
        %v289 = vld [vmem:[%s247 + $0xa8] sm:$0xff]
        %v290 = vld [vmem:[%s247 + $0xb0] sm:$0xff]
        %v291 = vld [vmem:[%s247 + $0xb8] sm:$0xff]
        %v292 = vld [vmem:[%s247 + $0xc0] sm:$0xff]
        %v293 = vld [vmem:[%s247 + $0xc8] sm:$0xff]
        %v294 = vld [vmem:[%s247 + $0xd0] sm:$0xff]
        %v295 = vld [vmem:[%s247 + $0xd8] sm:$0xff]
        %v296 = vld [vmem:[%s247 + $0xe0] sm:$0xff]
        %v297 = vld [vmem:[%s247 + $0xe8] sm:$0xff]
        %v298 = vld [vmem:[%s247 + $0xf0] sm:$0xff]
        %v299 = vld [vmem:[%s247 + $0xf8] sm:$0xff]
        %v300 = vld [vmem:[%s247 + $0x100] sm:$0xff]
        %v301 = vld [vmem:[%s247 + $0x108] sm:$0xff]
        %v302 = vld [vmem:[%s247 + $0x110] sm:$0xff]
        %v303 = vld [vmem:[%s247 + $0x118] sm:$0xff]
        %v304 = vld [vmem:[%s247 + $0x120] sm:$0xff]
        %v305 = vld [vmem:[%s247 + $0x128] sm:$0xff]
        %v306 = vld [vmem:[%s247 + $0x130] sm:$0xff]
        %v307 = vld [vmem:[%s247 + $0x138] sm:$0xff]
        %v308 = vld [vmem:[%s247 + $0x140] sm:$0xff]
        %v309 = vld [vmem:[%s247 + $0x148] sm:$0xff]
        %v310 = vld [vmem:[%s247 + $0x150] sm:$0xff]
        %v311 = vld [vmem:[%s247 + $0x158] sm:$0xff]
        %v312 = vld [vmem:[%s247 + $0x160] sm:$0xff]
        %v313 = vld [vmem:[%s247 + $0x168] sm:$0xff]
        %v314 = vld [vmem:[%s247 + $0x170] sm:$0xff]
        %v315 = vld [vmem:[%s247 + $0x178] sm:$0xff]
        %v316 = vld [vmem:[%s247 + $0x180] sm:$0xff]
        %v317 = vld [vmem:[%s247 + $0x188] sm:$0xff]
        %v318 = vld [vmem:[%s247 + $0x190] sm:$0xff]
        %v319 = vld [vmem:[%s247 + $0x198] sm:$0xff]
        %v320 = vld [vmem:[%s247 + $0x1a0] sm:$0xff]
        %v321 = vld [vmem:[%s247 + $0x1a8] sm:$0xff]
        %v322 = vld [vmem:[%s247 + $0x1b0] sm:$0xff]
        %v323 = vld [vmem:[%s247 + $0x1b8] sm:$0xff]
        %v324 = vld [vmem:[%s247 + $0x1c0] sm:$0xff]
        %v325 = vld [vmem:[%s247 + $0x1c8] sm:$0xff]
        %v326 = vld [vmem:[%s247 + $0x1d0] sm:$0xff]
        %v327 = vld [vmem:[%s247 + $0x1d8] sm:$0xff]
        %v328 = vld [vmem:[%s247 + $0x1e0] sm:$0xff]
        %v329 = vld [vmem:[%s247 + $0x1e8] sm:$0xff]
        %v330 = vld [vmem:[%s247 + $0x1f0] sm:$0xff]
        %v331 = vld [vmem:[%s247 + $0x1f8] sm:$0xff]
        %v332 = vld [vmem:[%s1] sm:$0xf]
        %v333 = vld [vmem:[%s1 + $0x4] sm:$0xf]
        %v334 = vld [vmem:[%s1 + $0x8] sm:$0xf]
        %v335 = vld [vmem:[%s1 + $0xc] sm:$0xf]
        %v336 = vld [vmem:[%s1 + $0x10] sm:$0xf]
        %v337 = vld [vmem:[%s1 + $0x14] sm:$0xf]
        %v338 = vld [vmem:[%s1 + $0x18] sm:$0xf]
        %v339 = vld [vmem:[%s1 + $0x1c] sm:$0xf]
        %v340 = vld [vmem:[%s1 + $0x20] sm:$0xf]
        %v341 = vld [vmem:[%s1 + $0x24] sm:$0xf]
        %v342 = vld [vmem:[%s1 + $0x28] sm:$0xf]
        %v343 = vld [vmem:[%s1 + $0x2c] sm:$0xf]
        %v344 = vld [vmem:[%s1 + $0x30] sm:$0xf]
        %v345 = vld [vmem:[%s1 + $0x34] sm:$0xf]
        %v346 = vld [vmem:[%s1 + $0x38] sm:$0xf]
        %v347 = vld [vmem:[%s1 + $0x3c] sm:$0xf]
        %v348 = vld [vmem:[%s1 + $0x40] sm:$0xf]
        %v349 = vld [vmem:[%s1 + $0x44] sm:$0xf]
        %v350 = vld [vmem:[%s1 + $0x48] sm:$0xf]
        %v351 = vld [vmem:[%s1 + $0x4c] sm:$0xf]
        %v352 = vld [vmem:[%s1 + $0x50] sm:$0xf]
        %v353 = vld [vmem:[%s1 + $0x54] sm:$0xf]
        %v354 = vld [vmem:[%s1 + $0x58] sm:$0xf]
        %v355 = vld [vmem:[%s1 + $0x5c] sm:$0xf]
        %v356 = vld [vmem:[%s1 + $0x60] sm:$0xf]
        %v357 = vld [vmem:[%s1 + $0x64] sm:$0xf]
        %v358 = vld [vmem:[%s1 + $0x68] sm:$0xf]
        %v359 = vld [vmem:[%s1 + $0x6c] sm:$0xf]
        %v360 = vld [vmem:[%s1 + $0x70] sm:$0xf]
        %v361 = vld [vmem:[%s1 + $0x74] sm:$0xf]
        %v362 = vld [vmem:[%s1 + $0x78] sm:$0xf]
        %v363 = vld [vmem:[%s1 + $0x7c] sm:$0xf]
        %v364 = vld [vmem:[%s2] sm:$0x1]
        %v366 = vlaneseq
        %v367 = vshrl.u32 %v366, 7
        %v368 = vsub.s32 0, %v367
        %v369 = vrot.slane %v364, %v368
        %v435 = vunpack.c.l.b16 %v268
        %v436 = vunpack.c.h.b16 %v268
        %v437 = vunpack.c.l.b16 %v269
        %v438 = vunpack.c.h.b16 %v269
        %v439 = vunpack.c.l.b16 %v270
        %v440 = vunpack.c.h.b16 %v270
        %v441 = vunpack.c.l.b16 %v271
        %v442 = vunpack.c.h.b16 %v271
        %v443 = vunpack.c.l.b16 %v272
        %v444 = vunpack.c.h.b16 %v272
        %v445 = vunpack.c.l.b16 %v273
        %v446 = vunpack.c.h.b16 %v273
        %v447 = vunpack.c.l.b16 %v274
        %v448 = vunpack.c.h.b16 %v274
        %v449 = vunpack.c.l.b16 %v275
        %v450 = vunpack.c.h.b16 %v275
        %v451 = vunpack.c.l.b16 %v276
        %v452 = vunpack.c.h.b16 %v276
        %v453 = vunpack.c.l.b16 %v277
        %v454 = vunpack.c.h.b16 %v277
        %v455 = vunpack.c.l.b16 %v278
        %v456 = vunpack.c.h.b16 %v278
        %v457 = vunpack.c.l.b16 %v279
        %v458 = vunpack.c.h.b16 %v279
        %v459 = vunpack.c.l.b16 %v280
        %v460 = vunpack.c.h.b16 %v280
        %v461 = vunpack.c.l.b16 %v281
        %v462 = vunpack.c.h.b16 %v281
        %v463 = vunpack.c.l.b16 %v282
        %v464 = vunpack.c.h.b16 %v282
        %v465 = vunpack.c.l.b16 %v283
        %v466 = vunpack.c.h.b16 %v283
        %v467 = vunpack.c.l.b16 %v284
        %v468 = vunpack.c.h.b16 %v284
        %v469 = vunpack.c.l.b16 %v285
        %v470 = vunpack.c.h.b16 %v285
        %v471 = vunpack.c.l.b16 %v286
        %v472 = vunpack.c.h.b16 %v286
        %v473 = vunpack.c.l.b16 %v287
        %v474 = vunpack.c.h.b16 %v287
        %v475 = vunpack.c.l.b16 %v288
        %v476 = vunpack.c.h.b16 %v288
        %v477 = vunpack.c.l.b16 %v289
        %v478 = vunpack.c.h.b16 %v289
        %v479 = vunpack.c.l.b16 %v290
        %v480 = vunpack.c.h.b16 %v290
        %v481 = vunpack.c.l.b16 %v291
        %v482 = vunpack.c.h.b16 %v291
        %v483 = vunpack.c.l.b16 %v292
        %v484 = vunpack.c.h.b16 %v292
        %v485 = vunpack.c.l.b16 %v293
        %v486 = vunpack.c.h.b16 %v293
        %v487 = vunpack.c.l.b16 %v294
        %v488 = vunpack.c.h.b16 %v294
        %v489 = vunpack.c.l.b16 %v295
        %v490 = vunpack.c.h.b16 %v295
        %v491 = vunpack.c.l.b16 %v296
        %v492 = vunpack.c.h.b16 %v296
        %v493 = vunpack.c.l.b16 %v297
        %v494 = vunpack.c.h.b16 %v297
        %v495 = vunpack.c.l.b16 %v298
        %v496 = vunpack.c.h.b16 %v298
        %v497 = vunpack.c.l.b16 %v299
        %v498 = vunpack.c.h.b16 %v299
        %v499 = vunpack.c.l.b16 %v300
        %v500 = vunpack.c.h.b16 %v300
        %v501 = vunpack.c.l.b16 %v301
        %v502 = vunpack.c.h.b16 %v301
        %v503 = vunpack.c.l.b16 %v302
        %v504 = vunpack.c.h.b16 %v302
        %v505 = vunpack.c.l.b16 %v303
        %v506 = vunpack.c.h.b16 %v303
        %v507 = vunpack.c.l.b16 %v304
        %v508 = vunpack.c.h.b16 %v304
        %v509 = vunpack.c.l.b16 %v305
        %v510 = vunpack.c.h.b16 %v305
        %v511 = vunpack.c.l.b16 %v306
        %v512 = vunpack.c.h.b16 %v306
        %v513 = vunpack.c.l.b16 %v307
        %v514 = vunpack.c.h.b16 %v307
        %v515 = vunpack.c.l.b16 %v308
        %v516 = vunpack.c.h.b16 %v308
        %v517 = vunpack.c.l.b16 %v309
        %v518 = vunpack.c.h.b16 %v309
        %v519 = vunpack.c.l.b16 %v310
        %v520 = vunpack.c.h.b16 %v310
        %v521 = vunpack.c.l.b16 %v311
        %v522 = vunpack.c.h.b16 %v311
        %v523 = vunpack.c.l.b16 %v312
        %v524 = vunpack.c.h.b16 %v312
        %v525 = vunpack.c.l.b16 %v313
        %v526 = vunpack.c.h.b16 %v313
        %v527 = vunpack.c.l.b16 %v314
        %v528 = vunpack.c.h.b16 %v314
        %v529 = vunpack.c.l.b16 %v315
        %v530 = vunpack.c.h.b16 %v315
        %v531 = vunpack.c.l.b16 %v316
        %v532 = vunpack.c.h.b16 %v316
        %v533 = vunpack.c.l.b16 %v317
        %v534 = vunpack.c.h.b16 %v317
        %v535 = vunpack.c.l.b16 %v318
        %v536 = vunpack.c.h.b16 %v318
        %v537 = vunpack.c.l.b16 %v319
        %v538 = vunpack.c.h.b16 %v319
        %v539 = vunpack.c.l.b16 %v320
        %v540 = vunpack.c.h.b16 %v320
        %v541 = vunpack.c.l.b16 %v321
        %v542 = vunpack.c.h.b16 %v321
        %v543 = vunpack.c.l.b16 %v322
        %v544 = vunpack.c.h.b16 %v322
        %v545 = vunpack.c.l.b16 %v323
        %v546 = vunpack.c.h.b16 %v323
        %v547 = vunpack.c.l.b16 %v324
        %v548 = vunpack.c.h.b16 %v324
        %v549 = vunpack.c.l.b16 %v325
        %v550 = vunpack.c.h.b16 %v325
        %v551 = vunpack.c.l.b16 %v326
        %v552 = vunpack.c.h.b16 %v326
        %v553 = vunpack.c.l.b16 %v327
        %v554 = vunpack.c.h.b16 %v327
        %v555 = vunpack.c.l.b16 %v328
        %v556 = vunpack.c.h.b16 %v328
        %v557 = vunpack.c.l.b16 %v329
        %v558 = vunpack.c.h.b16 %v329
        %v559 = vunpack.c.l.b16 %v330
        %v560 = vunpack.c.h.b16 %v330
        %v561 = vunpack.c.l.b16 %v331
        %v562 = vunpack.c.h.b16 %v331
        %v563 = vpack.c.b16 %v437, %v435
        %v564 = vpack.c.b16 %v438, %v436
        %v565 = vpack.c.b16 %v441, %v439
        %v566 = vpack.c.b16 %v442, %v440
        %v567 = vpack.c.b16 %v445, %v443
        %v568 = vpack.c.b16 %v446, %v444
        %v569 = vpack.c.b16 %v449, %v447
        %v570 = vpack.c.b16 %v450, %v448
        %v571 = vpack.c.b16 %v453, %v451
        %v572 = vpack.c.b16 %v454, %v452
        %v573 = vpack.c.b16 %v457, %v455
        %v574 = vpack.c.b16 %v458, %v456
        %v575 = vpack.c.b16 %v461, %v459
        %v576 = vpack.c.b16 %v462, %v460
        %v577 = vpack.c.b16 %v465, %v463
        %v578 = vpack.c.b16 %v466, %v464
        %v579 = vpack.c.b16 %v469, %v467
        %v580 = vpack.c.b16 %v470, %v468
        %v581 = vpack.c.b16 %v473, %v471
        %v582 = vpack.c.b16 %v474, %v472
        %v583 = vpack.c.b16 %v477, %v475
        %v584 = vpack.c.b16 %v478, %v476
        %v585 = vpack.c.b16 %v481, %v479
        %v586 = vpack.c.b16 %v482, %v480
        %v587 = vpack.c.b16 %v485, %v483
        %v588 = vpack.c.b16 %v486, %v484
        %v589 = vpack.c.b16 %v489, %v487
        %v590 = vpack.c.b16 %v490, %v488
        %v591 = vpack.c.b16 %v493, %v491
        %v592 = vpack.c.b16 %v494, %v492
        %v593 = vpack.c.b16 %v497, %v495
        %v594 = vpack.c.b16 %v498, %v496
        %v595 = vpack.c.b16 %v501, %v499
        %v596 = vpack.c.b16 %v502, %v500
        %v597 = vpack.c.b16 %v505, %v503
        %v598 = vpack.c.b16 %v506, %v504
        %v599 = vpack.c.b16 %v509, %v507
        %v600 = vpack.c.b16 %v510, %v508
        %v601 = vpack.c.b16 %v513, %v511
        %v602 = vpack.c.b16 %v514, %v512
        %v603 = vpack.c.b16 %v517, %v515
        %v604 = vpack.c.b16 %v518, %v516
        %v605 = vpack.c.b16 %v521, %v519
        %v606 = vpack.c.b16 %v522, %v520
        %v607 = vpack.c.b16 %v525, %v523
        %v608 = vpack.c.b16 %v526, %v524
        %v609 = vpack.c.b16 %v529, %v527
        %v610 = vpack.c.b16 %v530, %v528
        %v611 = vpack.c.b16 %v533, %v531
        %v612 = vpack.c.b16 %v534, %v532
        %v613 = vpack.c.b16 %v537, %v535
        %v614 = vpack.c.b16 %v538, %v536
        %v615 = vpack.c.b16 %v541, %v539
        %v616 = vpack.c.b16 %v542, %v540
        %v617 = vpack.c.b16 %v545, %v543
        %v618 = vpack.c.b16 %v546, %v544
        %v619 = vpack.c.b16 %v549, %v547
        %v620 = vpack.c.b16 %v550, %v548
        %v621 = vpack.c.b16 %v553, %v551
        %v622 = vpack.c.b16 %v554, %v552
        %v623 = vpack.c.b16 %v557, %v555
        %v624 = vpack.c.b16 %v558, %v556
        %v625 = vpack.c.b16 %v561, %v559
        %v626 = vpack.c.b16 %v562, %v560
        %v723 = vunpack.c.l.b16 %v332
        %v724 = vunpack.c.l.b16 %v333
        %v725 = vunpack.c.l.b16 %v334
        %v726 = vunpack.c.l.b16 %v335
        %v727 = vunpack.c.l.b16 %v336
        %v728 = vunpack.c.l.b16 %v337
        %v729 = vunpack.c.l.b16 %v338
        %v730 = vunpack.c.l.b16 %v339
        %v731 = vunpack.c.l.b16 %v340
        %v732 = vunpack.c.l.b16 %v341
        %v733 = vunpack.c.l.b16 %v342
        %v734 = vunpack.c.l.b16 %v343
        %v735 = vunpack.c.l.b16 %v344
        %v736 = vunpack.c.l.b16 %v345
        %v737 = vunpack.c.l.b16 %v346
        %v738 = vunpack.c.l.b16 %v347
        %v739 = vunpack.c.l.b16 %v348
        %v740 = vunpack.c.l.b16 %v349
        %v741 = vunpack.c.l.b16 %v350
        %v742 = vunpack.c.l.b16 %v351
        %v743 = vunpack.c.l.b16 %v352
        %v744 = vunpack.c.l.b16 %v353
        %v745 = vunpack.c.l.b16 %v354
        %v746 = vunpack.c.l.b16 %v355
        %v747 = vunpack.c.l.b16 %v356
        %v748 = vunpack.c.l.b16 %v357
        %v749 = vunpack.c.l.b16 %v358
        %v750 = vunpack.c.l.b16 %v359
        %v751 = vunpack.c.l.b16 %v360
        %v752 = vunpack.c.l.b16 %v361
        %v753 = vunpack.c.l.b16 %v362
        %v754 = vunpack.c.l.b16 %v363
        %v755 = vpack.c.b16 %v724, %v723
        %v756 = vpack.c.b16 %v726, %v725
        %v757 = vpack.c.b16 %v728, %v727
        %v758 = vpack.c.b16 %v730, %v729
        %v759 = vpack.c.b16 %v732, %v731
        %v760 = vpack.c.b16 %v734, %v733
        %v761 = vpack.c.b16 %v736, %v735
        %v762 = vpack.c.b16 %v738, %v737
        %v763 = vpack.c.b16 %v740, %v739
        %v764 = vpack.c.b16 %v742, %v741
        %v765 = vpack.c.b16 %v744, %v743
        %v766 = vpack.c.b16 %v746, %v745
        %v767 = vpack.c.b16 %v748, %v747
        %v768 = vpack.c.b16 %v750, %v749
        %v769 = vpack.c.b16 %v752, %v751
        %v770 = vpack.c.b16 %v754, %v753
        %787 = vmatprep.subr.bf16.mxu0 0
        %788 = vmatpush1.bf16.msra.mxu0 %v755
        %789 = vmatprep.subr.bf16.mxu0 0
        %790 = vmatpush1.bf16.msra.mxu0 %v756
        %791 = vmatprep.subr.bf16.mxu0 0
        %792 = vmatpush1.bf16.msra.mxu0 %v757
        %793 = vmatprep.subr.bf16.mxu0 0
        %794 = vmatpush1.bf16.msra.mxu0 %v758
        %795 = vmatprep.subr.bf16.mxu0 0
        %796 = vmatpush1.bf16.msra.mxu0 %v759
        %797 = vmatprep.subr.bf16.mxu0 0
        %798 = vmatpush1.bf16.msra.mxu0 %v760
        %799 = vmatprep.subr.bf16.mxu0 0
        %800 = vmatpush1.bf16.msra.mxu0 %v761
        %801 = vmatprep.subr.bf16.mxu0 0
        %802 = vmatpush1.bf16.msra.mxu0 %v762
        %803 = vmatprep.subr.bf16.mxu0 0
        %804 = vmatpush1.bf16.msra.mxu0 %v763
        %805 = vmatprep.subr.bf16.mxu0 0
        %806 = vmatpush1.bf16.msra.mxu0 %v764
        %807 = vmatprep.subr.bf16.mxu0 0
        %808 = vmatpush1.bf16.msra.mxu0 %v765
        %809 = vmatprep.subr.bf16.mxu0 0
        %810 = vmatpush1.bf16.msra.mxu0 %v766
        %811 = vmatprep.subr.bf16.mxu0 0
        %812 = vmatpush1.bf16.msra.mxu0 %v767
        %813 = vmatprep.subr.bf16.mxu0 0
        %814 = vmatpush1.bf16.msra.mxu0 %v768
        %815 = vmatprep.subr.bf16.mxu0 0
        %816 = vmatpush1.bf16.msra.mxu0 %v769
        %817 = vmatprep.subr.bf16.mxu0 0
        %818 = vmatpush1.bf16.msra.mxu0 %v770
        %819 = vmatprep.mubr.bf16.mxu0 %v564
        %820 = vmatmul.mubr.bf16.gmra.mrb[0].mxu0 %v563
        %v821 = vpop.f32.mrb[0].mxu0
        %v822 = vadd.f32 %v369, %v821
        %v823 = vpop.f32.mrb[0].mxu0
        %v824 = vpop.f32.mrb[0].mxu0
        %v825 = vadd.f32 %v369, %v824
        %v826 = vpop.f32.mrb[0].mxu0
        %827 = vmatprep.mubr.bf16.mxu0 %v566
        %828 = vmatmul.mubr.bf16.gmra.mrb[0].mxu0 %v565
        %v829 = vpop.f32.mrb[0].mxu0
        %v830 = vadd.f32 %v369, %v829
        %v831 = vpop.f32.mrb[0].mxu0
        %v832 = vpop.f32.mrb[0].mxu0
        %v833 = vadd.f32 %v369, %v832
        %v834 = vpop.f32.mrb[0].mxu0
        %835 = vmatprep.mubr.bf16.mxu0 %v568
        %836 = vmatmul.mubr.bf16.gmra.mrb[0].mxu0 %v567
        %v837 = vpop.f32.mrb[0].mxu0
        %v838 = vadd.f32 %v369, %v837
        %v839 = vpop.f32.mrb[0].mxu0
        %v840 = vpop.f32.mrb[0].mxu0
        %v841 = vadd.f32 %v369, %v840
        %v842 = vpop.f32.mrb[0].mxu0
        %843 = vmatprep.mubr.bf16.mxu0 %v570
        %844 = vmatmul.mubr.bf16.gmra.mrb[0].mxu0 %v569
        %v845 = vpop.f32.mrb[0].mxu0
        %v846 = vadd.f32 %v369, %v845
        %v847 = vpop.f32.mrb[0].mxu0
        %v848 = vpop.f32.mrb[0].mxu0
        %v849 = vadd.f32 %v369, %v848
        %v850 = vpop.f32.mrb[0].mxu0
        %851 = vmatprep.mubr.bf16.mxu0 %v572
        %852 = vmatmul.mubr.bf16.gmra.mrb[0].mxu0 %v571
        %v853 = vpop.f32.mrb[0].mxu0
        %v854 = vadd.f32 %v369, %v853
        %v855 = vpop.f32.mrb[0].mxu0
        %v856 = vpop.f32.mrb[0].mxu0
        %v857 = vadd.f32 %v369, %v856
        %v858 = vpop.f32.mrb[0].mxu0
        %859 = vmatprep.mubr.bf16.mxu0 %v574
        %860 = vmatmul.mubr.bf16.gmra.mrb[0].mxu0 %v573
        %v861 = vpop.f32.mrb[0].mxu0
        %v862 = vadd.f32 %v369, %v861
        %v863 = vpop.f32.mrb[0].mxu0
        %v864 = vpop.f32.mrb[0].mxu0
        %v865 = vadd.f32 %v369, %v864
        %v866 = vpop.f32.mrb[0].mxu0
        %867 = vmatprep.mubr.bf16.mxu0 %v576
        %868 = vmatmul.mubr.bf16.gmra.mrb[0].mxu0 %v575
        %v869 = vpop.f32.mrb[0].mxu0
        %v870 = vadd.f32 %v369, %v869
        %v871 = vpop.f32.mrb[0].mxu0
        %v872 = vpop.f32.mrb[0].mxu0
        %v873 = vadd.f32 %v369, %v872
        %v874 = vpop.f32.mrb[0].mxu0
        %875 = vmatprep.mubr.bf16.mxu0 %v578
        %876 = vmatmul.mubr.bf16.gmra.mrb[0].mxu0 %v577
        %v877 = vpop.f32.mrb[0].mxu0
        %v878 = vadd.f32 %v369, %v877
        %v879 = vpop.f32.mrb[0].mxu0
        %v880 = vpop.f32.mrb[0].mxu0
        %v881 = vadd.f32 %v369, %v880
        %v882 = vpop.f32.mrb[0].mxu0
        %883 = vmatprep.mubr.bf16.mxu0 %v580
        %884 = vmatmul.mubr.bf16.gmra.mrb[0].mxu0 %v579
        %v885 = vpop.f32.mrb[0].mxu0
        %v886 = vadd.f32 %v369, %v885
        %v887 = vpop.f32.mrb[0].mxu0
        %v888 = vpop.f32.mrb[0].mxu0
        %v889 = vadd.f32 %v369, %v888
        %v890 = vpop.f32.mrb[0].mxu0
        %891 = vmatprep.mubr.bf16.mxu0 %v582
        %892 = vmatmul.mubr.bf16.gmra.mrb[0].mxu0 %v581
        %v893 = vpop.f32.mrb[0].mxu0
        %v894 = vadd.f32 %v369, %v893
        %v895 = vpop.f32.mrb[0].mxu0
        %v896 = vpop.f32.mrb[0].mxu0
        %v897 = vadd.f32 %v369, %v896
        %v898 = vpop.f32.mrb[0].mxu0
        %899 = vmatprep.mubr.bf16.mxu0 %v584
        %900 = vmatmul.mubr.bf16.gmra.mrb[0].mxu0 %v583
        %v901 = vpop.f32.mrb[0].mxu0
        %v902 = vadd.f32 %v369, %v901
        %v903 = vpop.f32.mrb[0].mxu0
        %v904 = vpop.f32.mrb[0].mxu0
        %v905 = vadd.f32 %v369, %v904
        %v906 = vpop.f32.mrb[0].mxu0
        %907 = vmatprep.mubr.bf16.mxu0 %v586
        %908 = vmatmul.mubr.bf16.gmra.mrb[0].mxu0 %v585
        %v909 = vpop.f32.mrb[0].mxu0
        %v910 = vadd.f32 %v369, %v909
        %v911 = vpop.f32.mrb[0].mxu0
        %v912 = vpop.f32.mrb[0].mxu0
        %v913 = vadd.f32 %v369, %v912
        %v914 = vpop.f32.mrb[0].mxu0
        %915 = vmatprep.mubr.bf16.mxu0 %v588
        %916 = vmatmul.mubr.bf16.gmra.mrb[0].mxu0 %v587
        %v917 = vpop.f32.mrb[0].mxu0
        %v918 = vadd.f32 %v369, %v917
        %v919 = vpop.f32.mrb[0].mxu0
        %v920 = vpop.f32.mrb[0].mxu0
        %v921 = vadd.f32 %v369, %v920
        %v922 = vpop.f32.mrb[0].mxu0
        %923 = vmatprep.mubr.bf16.mxu0 %v590
        %924 = vmatmul.mubr.bf16.gmra.mrb[0].mxu0 %v589
        %v925 = vpop.f32.mrb[0].mxu0
        %v926 = vadd.f32 %v369, %v925
        %v927 = vpop.f32.mrb[0].mxu0
        %v928 = vpop.f32.mrb[0].mxu0
        %v929 = vadd.f32 %v369, %v928
        %v930 = vpop.f32.mrb[0].mxu0
        %931 = vmatprep.mubr.bf16.mxu0 %v592
        %932 = vmatmul.mubr.bf16.gmra.mrb[0].mxu0 %v591
        %v933 = vpop.f32.mrb[0].mxu0
        %v934 = vadd.f32 %v369, %v933
        %v935 = vpop.f32.mrb[0].mxu0
        %v936 = vpop.f32.mrb[0].mxu0
        %v937 = vadd.f32 %v369, %v936
        %v938 = vpop.f32.mrb[0].mxu0
        %939 = vmatprep.mubr.bf16.mxu0 %v594
        %940 = vmatmul.mubr.bf16.gmra.mrb[0].mxu0 %v593
        %v941 = vpop.f32.mrb[0].mxu0
        %v942 = vadd.f32 %v369, %v941
        %v943 = vpop.f32.mrb[0].mxu0
        %v944 = vpop.f32.mrb[0].mxu0
        %v945 = vadd.f32 %v369, %v944
        %v946 = vpop.f32.mrb[0].mxu0
        %947 = vmatprep.mubr.bf16.mxu0 %v596
        %948 = vmatmul.mubr.bf16.gmra.mrb[0].mxu0 %v595
        %v949 = vpop.f32.mrb[0].mxu0
        %v950 = vadd.f32 %v369, %v949
        %v951 = vpop.f32.mrb[0].mxu0
        %v952 = vpop.f32.mrb[0].mxu0
        %v953 = vadd.f32 %v369, %v952
        %v954 = vpop.f32.mrb[0].mxu0
        %955 = vmatprep.mubr.bf16.mxu0 %v598
        %956 = vmatmul.mubr.bf16.gmra.mrb[0].mxu0 %v597
        %v957 = vpop.f32.mrb[0].mxu0
        %v958 = vadd.f32 %v369, %v957
        %v959 = vpop.f32.mrb[0].mxu0
        %v960 = vpop.f32.mrb[0].mxu0
        %v961 = vadd.f32 %v369, %v960
        %v962 = vpop.f32.mrb[0].mxu0
        %963 = vmatprep.mubr.bf16.mxu0 %v600
        %964 = vmatmul.mubr.bf16.gmra.mrb[0].mxu0 %v599
        %v965 = vpop.f32.mrb[0].mxu0
        %v966 = vadd.f32 %v369, %v965
        %v967 = vpop.f32.mrb[0].mxu0
        %v968 = vpop.f32.mrb[0].mxu0
        %v969 = vadd.f32 %v369, %v968
        %v970 = vpop.f32.mrb[0].mxu0
        %971 = vmatprep.mubr.bf16.mxu0 %v602
        %972 = vmatmul.mubr.bf16.gmra.mrb[0].mxu0 %v601
        %v973 = vpop.f32.mrb[0].mxu0
        %v974 = vadd.f32 %v369, %v973
        %v975 = vpop.f32.mrb[0].mxu0
        %v976 = vpop.f32.mrb[0].mxu0
        %v977 = vadd.f32 %v369, %v976
        %v978 = vpop.f32.mrb[0].mxu0
        %979 = vmatprep.mubr.bf16.mxu0 %v604
        %980 = vmatmul.mubr.bf16.gmra.mrb[0].mxu0 %v603
        %v981 = vpop.f32.mrb[0].mxu0
        %v982 = vadd.f32 %v369, %v981
        %v983 = vpop.f32.mrb[0].mxu0
        %v984 = vpop.f32.mrb[0].mxu0
        %v985 = vadd.f32 %v369, %v984
        %v986 = vpop.f32.mrb[0].mxu0
        %987 = vmatprep.mubr.bf16.mxu0 %v606
        %988 = vmatmul.mubr.bf16.gmra.mrb[0].mxu0 %v605
        %v989 = vpop.f32.mrb[0].mxu0
        %v990 = vadd.f32 %v369, %v989
        %v991 = vpop.f32.mrb[0].mxu0
        %v992 = vpop.f32.mrb[0].mxu0
        %v993 = vadd.f32 %v369, %v992
        %v994 = vpop.f32.mrb[0].mxu0
        %995 = vmatprep.mubr.bf16.mxu0 %v608
        %996 = vmatmul.mubr.bf16.gmra.mrb[0].mxu0 %v607
        %v997 = vpop.f32.mrb[0].mxu0
        %v998 = vadd.f32 %v369, %v997
        %v999 = vpop.f32.mrb[0].mxu0
        %v1000 = vpop.f32.mrb[0].mxu0
        %v1001 = vadd.f32 %v369, %v1000
        %v1002 = vpop.f32.mrb[0].mxu0
        %1003 = vmatprep.mubr.bf16.mxu0 %v610
        %1004 = vmatmul.mubr.bf16.gmra.mrb[0].mxu0 %v609
        %v1005 = vpop.f32.mrb[0].mxu0
        %v1006 = vadd.f32 %v369, %v1005
        %v1007 = vpop.f32.mrb[0].mxu0
        %v1008 = vpop.f32.mrb[0].mxu0
        %v1009 = vadd.f32 %v369, %v1008
        %v1010 = vpop.f32.mrb[0].mxu0
        %1011 = vmatprep.mubr.bf16.mxu0 %v612
        %1012 = vmatmul.mubr.bf16.gmra.mrb[0].mxu0 %v611
        %v1013 = vpop.f32.mrb[0].mxu0
        %v1014 = vadd.f32 %v369, %v1013
        %v1015 = vpop.f32.mrb[0].mxu0
        %v1016 = vpop.f32.mrb[0].mxu0
        %v1017 = vadd.f32 %v369, %v1016
        %v1018 = vpop.f32.mrb[0].mxu0
        %1019 = vmatprep.mubr.bf16.mxu0 %v614
        %1020 = vmatmul.mubr.bf16.gmra.mrb[0].mxu0 %v613
        %v1021 = vpop.f32.mrb[0].mxu0
        %v1022 = vadd.f32 %v369, %v1021
        %v1023 = vpop.f32.mrb[0].mxu0
        %v1024 = vpop.f32.mrb[0].mxu0
        %v1025 = vadd.f32 %v369, %v1024
        %v1026 = vpop.f32.mrb[0].mxu0
        %1027 = vmatprep.mubr.bf16.mxu0 %v616
        %1028 = vmatmul.mubr.bf16.gmra.mrb[0].mxu0 %v615
        %v1029 = vpop.f32.mrb[0].mxu0
        %v1030 = vadd.f32 %v369, %v1029
        %v1031 = vpop.f32.mrb[0].mxu0
        %v1032 = vpop.f32.mrb[0].mxu0
        %v1033 = vadd.f32 %v369, %v1032
        %v1034 = vpop.f32.mrb[0].mxu0
        %1035 = vmatprep.mubr.bf16.mxu0 %v618
        %1036 = vmatmul.mubr.bf16.gmra.mrb[0].mxu0 %v617
        %v1037 = vpop.f32.mrb[0].mxu0
        %v1038 = vadd.f32 %v369, %v1037
        %v1039 = vpop.f32.mrb[0].mxu0
        %v1040 = vpop.f32.mrb[0].mxu0
        %v1041 = vadd.f32 %v369, %v1040
        %v1042 = vpop.f32.mrb[0].mxu0
        %1043 = vmatprep.mubr.bf16.mxu0 %v620
        %1044 = vmatmul.mubr.bf16.gmra.mrb[0].mxu0 %v619
        %v1045 = vpop.f32.mrb[0].mxu0
        %v1046 = vadd.f32 %v369, %v1045
        %v1047 = vpop.f32.mrb[0].mxu0
        %v1048 = vpop.f32.mrb[0].mxu0
        %v1049 = vadd.f32 %v369, %v1048
        %v1050 = vpop.f32.mrb[0].mxu0
        %1051 = vmatprep.mubr.bf16.mxu0 %v622
        %1052 = vmatmul.mubr.bf16.gmra.mrb[0].mxu0 %v621
        %v1053 = vpop.f32.mrb[0].mxu0
        %v1054 = vadd.f32 %v369, %v1053
        %v1055 = vpop.f32.mrb[0].mxu0
        %v1056 = vpop.f32.mrb[0].mxu0
        %v1057 = vadd.f32 %v369, %v1056
        %v1058 = vpop.f32.mrb[0].mxu0
        %1059 = vmatprep.mubr.bf16.mxu0 %v624
        %1060 = vmatmul.mubr.bf16.gmra.mrb[0].mxu0 %v623
        %v1061 = vpop.f32.mrb[0].mxu0
        %v1062 = vadd.f32 %v369, %v1061
        %v1063 = vpop.f32.mrb[0].mxu0
        %v1064 = vpop.f32.mrb[0].mxu0
        %v1065 = vadd.f32 %v369, %v1064
        %v1066 = vpop.f32.mrb[0].mxu0
        %1067 = vmatprep.mubr.bf16.mxu0 %v626
        %1068 = vmatmul.mubr.bf16.gmra.mrb[0].mxu0 %v625
        %v1069 = vpop.f32.mrb[0].mxu0
        %v1070 = vadd.f32 %v369, %v1069
        %v1071 = vpop.f32.mrb[0].mxu0
        %v1072 = vpop.f32.mrb[0].mxu0
        %v1073 = vadd.f32 %v369, %v1072
        %v1074 = vpop.f32.mrb[0].mxu0
        %1075 = vdwg.mxu0
        %s1076 = smul.u32 %s21, 512
        %s1077 = scalar_lea.vmem [#allocation2], %s1076
        %1078 = vst [vmem:[%s1077] sm:$0xff] %v822
        %1079 = vst [vmem:[%s1077 + $0x8] sm:$0xff] %v825
        %1080 = vst [vmem:[%s1077 + $0x10] sm:$0xff] %v830
        %1081 = vst [vmem:[%s1077 + $0x18] sm:$0xff] %v833
        %1082 = vst [vmem:[%s1077 + $0x20] sm:$0xff] %v838
        %1083 = vst [vmem:[%s1077 + $0x28] sm:$0xff] %v841
        %1084 = vst [vmem:[%s1077 + $0x30] sm:$0xff] %v846
        %1085 = vst [vmem:[%s1077 + $0x38] sm:$0xff] %v849
        %1086 = vst [vmem:[%s1077 + $0x40] sm:$0xff] %v854
        %1087 = vst [vmem:[%s1077 + $0x48] sm:$0xff] %v857
        %1088 = vst [vmem:[%s1077 + $0x50] sm:$0xff] %v862
        %1089 = vst [vmem:[%s1077 + $0x58] sm:$0xff] %v865
        %1090 = vst [vmem:[%s1077 + $0x60] sm:$0xff] %v870
        %1091 = vst [vmem:[%s1077 + $0x68] sm:$0xff] %v873
        %1092 = vst [vmem:[%s1077 + $0x70] sm:$0xff] %v878
        %1093 = vst [vmem:[%s1077 + $0x78] sm:$0xff] %v881
        %1094 = vst [vmem:[%s1077 + $0x80] sm:$0xff] %v886
        %1095 = vst [vmem:[%s1077 + $0x88] sm:$0xff] %v889
        %1096 = vst [vmem:[%s1077 + $0x90] sm:$0xff] %v894
        %1097 = vst [vmem:[%s1077 + $0x98] sm:$0xff] %v897
        %1098 = vst [vmem:[%s1077 + $0xa0] sm:$0xff] %v902
        %1099 = vst [vmem:[%s1077 + $0xa8] sm:$0xff] %v905
        %1100 = vst [vmem:[%s1077 + $0xb0] sm:$0xff] %v910
        %1101 = vst [vmem:[%s1077 + $0xb8] sm:$0xff] %v913
        %1102 = vst [vmem:[%s1077 + $0xc0] sm:$0xff] %v918
        %1103 = vst [vmem:[%s1077 + $0xc8] sm:$0xff] %v921
        %1104 = vst [vmem:[%s1077 + $0xd0] sm:$0xff] %v926
        %1105 = vst [vmem:[%s1077 + $0xd8] sm:$0xff] %v929
        %1106 = vst [vmem:[%s1077 + $0xe0] sm:$0xff] %v934
        %1107 = vst [vmem:[%s1077 + $0xe8] sm:$0xff] %v937
        %1108 = vst [vmem:[%s1077 + $0xf0] sm:$0xff] %v942
        %1109 = vst [vmem:[%s1077 + $0xf8] sm:$0xff] %v945
        %1110 = vst [vmem:[%s1077 + $0x100] sm:$0xff] %v950
        %1111 = vst [vmem:[%s1077 + $0x108] sm:$0xff] %v953
        %1112 = vst [vmem:[%s1077 + $0x110] sm:$0xff] %v958
        %1113 = vst [vmem:[%s1077 + $0x118] sm:$0xff] %v961
        %1114 = vst [vmem:[%s1077 + $0x120] sm:$0xff] %v966
        %1115 = vst [vmem:[%s1077 + $0x128] sm:$0xff] %v969
        %1116 = vst [vmem:[%s1077 + $0x130] sm:$0xff] %v974
        %1117 = vst [vmem:[%s1077 + $0x138] sm:$0xff] %v977
        %1118 = vst [vmem:[%s1077 + $0x140] sm:$0xff] %v982
        %1119 = vst [vmem:[%s1077 + $0x148] sm:$0xff] %v985
        %1120 = vst [vmem:[%s1077 + $0x150] sm:$0xff] %v990
        %1121 = vst [vmem:[%s1077 + $0x158] sm:$0xff] %v993
        %1122 = vst [vmem:[%s1077 + $0x160] sm:$0xff] %v998
        %1123 = vst [vmem:[%s1077 + $0x168] sm:$0xff] %v1001
        %1124 = vst [vmem:[%s1077 + $0x170] sm:$0xff] %v1006
        %1125 = vst [vmem:[%s1077 + $0x178] sm:$0xff] %v1009
        %1126 = vst [vmem:[%s1077 + $0x180] sm:$0xff] %v1014
        %1127 = vst [vmem:[%s1077 + $0x188] sm:$0xff] %v1017
        %1128 = vst [vmem:[%s1077 + $0x190] sm:$0xff] %v1022
        %1129 = vst [vmem:[%s1077 + $0x198] sm:$0xff] %v1025
        %1130 = vst [vmem:[%s1077 + $0x1a0] sm:$0xff] %v1030
        %1131 = vst [vmem:[%s1077 + $0x1a8] sm:$0xff] %v1033
        %1132 = vst [vmem:[%s1077 + $0x1b0] sm:$0xff] %v1038
        %1133 = vst [vmem:[%s1077 + $0x1b8] sm:$0xff] %v1041
        %1134 = vst [vmem:[%s1077 + $0x1c0] sm:$0xff] %v1046
        %1135 = vst [vmem:[%s1077 + $0x1c8] sm:$0xff] %v1049
        %1136 = vst [vmem:[%s1077 + $0x1d0] sm:$0xff] %v1054
        %1137 = vst [vmem:[%s1077 + $0x1d8] sm:$0xff] %v1057
        %1138 = vst [vmem:[%s1077 + $0x1e0] sm:$0xff] %v1062
        %1139 = vst [vmem:[%s1077 + $0x1e8] sm:$0xff] %v1065
        %1140 = vst [vmem:[%s1077 + $0x1f0] sm:$0xff] %v1070
        %1141 = vst [vmem:[%s1077 + $0x1f8] sm:$0xff] %v1073
        %v1142 = vlaneseq
        %v1143 = vshrl.u32 %v1142, 7
        %v1144 = vadd.s32 %v1143, 8
        %v1145 = vadd.s32 %v1143, 16
        %v1146 = vadd.s32 %v1143, 24
        %v1147 = vadd.s32 %v1143, 32
        %v1148 = vadd.s32 %v1143, 40
        %v1149 = vadd.s32 %v1143, 48
        %v1150 = vadd.s32 %v1143, 56
        %v1151 = vadd.s32 %v1143, 64
        %v1152 = vadd.s32 %v1143, 72
        %v1153 = vadd.s32 %v1143, 80
        %v1154 = vadd.s32 %v1143, 88
        %v1155 = vadd.s32 %v1143, 96
        %v1156 = vadd.s32 %v1143, 104
        %v1157 = vadd.s32 %v1143, 112
        %v1158 = vadd.s32 %v1143, 120
        %v1159 = vadd.s32 %v1143, 128
        %v1160 = vadd.s32 %v1143, 136
        %v1161 = vadd.s32 %v1143, 144
        %v1162 = vadd.s32 %v1143, 152
        %v1163 = vadd.s32 %v1143, 160
        %v1164 = vadd.s32 %v1143, 168
        %v1165 = vadd.s32 %v1143, 176
        %v1166 = vadd.s32 %v1143, 184
        %v1167 = vadd.s32 %v1143, 192
        %v1168 = vadd.s32 %v1143, 200
        %v1169 = vadd.s32 %v1143, 208
        %v1170 = vadd.s32 %v1143, 216
        %v1171 = vadd.s32 %v1143, 224
        %v1172 = vadd.s32 %v1143, 232
        %v1173 = vadd.s32 %v1143, 240
        %v1174 = vadd.s32 %v1143, 248
        %v1175 = vadd.s32 %v1143, 256
        %v1176 = vadd.s32 %v1143, 264
        %v1177 = vadd.s32 %v1143, 272
        %v1178 = vadd.s32 %v1143, 280
        %v1179 = vadd.s32 %v1143, 288
        %v1180 = vadd.s32 %v1143, 296
        %v1181 = vadd.s32 %v1143, 304
        %v1182 = vadd.s32 %v1143, 312
        %v1183 = vadd.s32 %v1143, 320
        %v1184 = vadd.s32 %v1143, 328
        %v1185 = vadd.s32 %v1143, 336
        %v1186 = vadd.s32 %v1143, 344
        %v1187 = vadd.s32 %v1143, 352
        %v1188 = vadd.s32 %v1143, 360
        %v1189 = vadd.s32 %v1143, 368
        %v1190 = vadd.s32 %v1143, 376
        %v1191 = vadd.s32 %v1143, 384
        %v1192 = vadd.s32 %v1143, 392
        %v1193 = vadd.s32 %v1143, 400
        %v1194 = vadd.s32 %v1143, 408
        %v1195 = vadd.s32 %v1143, 416
        %v1196 = vadd.s32 %v1143, 424
        %v1197 = vadd.s32 %v1143, 432
        %v1198 = vadd.s32 %v1143, 440
        %v1199 = vadd.s32 %v1143, 448
        %v1200 = vadd.s32 %v1143, 456
        %v1201 = vadd.s32 %v1143, 464
        %v1202 = vadd.s32 %v1143, 472
        %v1203 = vadd.s32 %v1143, 480
        %v1204 = vadd.s32 %v1143, 488
        %v1205 = vadd.s32 %v1143, 496
        %v1206 = vadd.s32 %v1143, 504
        %v1207 = vstv %s1076
        %v1208 = vadd.s32 %v1207, %v1143
        %v1209 = vadd.s32 %v1207, %v1144
        %v1210 = vadd.s32 %v1207, %v1145
        %v1211 = vadd.s32 %v1207, %v1146
        %v1212 = vadd.s32 %v1207, %v1147
        %v1213 = vadd.s32 %v1207, %v1148
        %v1214 = vadd.s32 %v1207, %v1149
        %v1215 = vadd.s32 %v1207, %v1150
        %v1216 = vadd.s32 %v1207, %v1151
        %v1217 = vadd.s32 %v1207, %v1152
        %v1218 = vadd.s32 %v1207, %v1153
        %v1219 = vadd.s32 %v1207, %v1154
        %v1220 = vadd.s32 %v1207, %v1155
        %v1221 = vadd.s32 %v1207, %v1156
        %v1222 = vadd.s32 %v1207, %v1157
        %v1223 = vadd.s32 %v1207, %v1158
        %v1224 = vadd.s32 %v1207, %v1159
        %v1225 = vadd.s32 %v1207, %v1160
        %v1226 = vadd.s32 %v1207, %v1161
        %v1227 = vadd.s32 %v1207, %v1162
        %v1228 = vadd.s32 %v1207, %v1163
        %v1229 = vadd.s32 %v1207, %v1164
        %v1230 = vadd.s32 %v1207, %v1165
        %v1231 = vadd.s32 %v1207, %v1166
        %v1232 = vadd.s32 %v1207, %v1167
        %v1233 = vadd.s32 %v1207, %v1168
        %v1234 = vadd.s32 %v1207, %v1169
        %v1235 = vadd.s32 %v1207, %v1170
        %v1236 = vadd.s32 %v1207, %v1171
        %v1237 = vadd.s32 %v1207, %v1172
        %v1238 = vadd.s32 %v1207, %v1173
        %v1239 = vadd.s32 %v1207, %v1174
        %v1240 = vadd.s32 %v1207, %v1175
        %v1241 = vadd.s32 %v1207, %v1176
        %v1242 = vadd.s32 %v1207, %v1177
        %v1243 = vadd.s32 %v1207, %v1178
        %v1244 = vadd.s32 %v1207, %v1179
        %v1245 = vadd.s32 %v1207, %v1180
        %v1246 = vadd.s32 %v1207, %v1181
        %v1247 = vadd.s32 %v1207, %v1182
        %v1248 = vadd.s32 %v1207, %v1183
        %v1249 = vadd.s32 %v1207, %v1184
        %v1250 = vadd.s32 %v1207, %v1185
        %v1251 = vadd.s32 %v1207, %v1186
        %v1252 = vadd.s32 %v1207, %v1187
        %v1253 = vadd.s32 %v1207, %v1188
        %v1254 = vadd.s32 %v1207, %v1189
        %v1255 = vadd.s32 %v1207, %v1190
        %v1256 = vadd.s32 %v1207, %v1191
        %v1257 = vadd.s32 %v1207, %v1192
        %v1258 = vadd.s32 %v1207, %v1193
        %v1259 = vadd.s32 %v1207, %v1194
        %v1260 = vadd.s32 %v1207, %v1195
        %v1261 = vadd.s32 %v1207, %v1196
        %v1262 = vadd.s32 %v1207, %v1197
        %v1263 = vadd.s32 %v1207, %v1198
        %v1264 = vadd.s32 %v1207, %v1199
        %v1265 = vadd.s32 %v1207, %v1200
        %v1266 = vadd.s32 %v1207, %v1201
        %v1267 = vadd.s32 %v1207, %v1202
        %v1268 = vadd.s32 %v1207, %v1203
        %v1269 = vadd.s32 %v1207, %v1204
        %v1270 = vadd.s32 %v1207, %v1205
        %v1271 = vadd.s32 %v1207, %v1206
        %vm1272 = vcmp.lt.s32.totalorder %v1208, 1458
        %vm1273 = vcmp.lt.s32.totalorder %v1209, 1458
        %vm1274 = vcmp.lt.s32.totalorder %v1210, 1458
        %vm1275 = vcmp.lt.s32.totalorder %v1211, 1458
        %vm1276 = vcmp.lt.s32.totalorder %v1212, 1458
        %vm1277 = vcmp.lt.s32.totalorder %v1213, 1458
        %vm1278 = vcmp.lt.s32.totalorder %v1214, 1458
        %vm1279 = vcmp.lt.s32.totalorder %v1215, 1458
        %vm1280 = vcmp.lt.s32.totalorder %v1216, 1458
        %vm1281 = vcmp.lt.s32.totalorder %v1217, 1458
        %vm1282 = vcmp.lt.s32.totalorder %v1218, 1458
        %vm1283 = vcmp.lt.s32.totalorder %v1219, 1458
        %vm1284 = vcmp.lt.s32.totalorder %v1220, 1458
        %vm1285 = vcmp.lt.s32.totalorder %v1221, 1458
        %vm1286 = vcmp.lt.s32.totalorder %v1222, 1458
        %vm1287 = vcmp.lt.s32.totalorder %v1223, 1458
        %vm1288 = vcmp.lt.s32.totalorder %v1224, 1458
        %vm1289 = vcmp.lt.s32.totalorder %v1225, 1458
        %vm1290 = vcmp.lt.s32.totalorder %v1226, 1458
        %vm1291 = vcmp.lt.s32.totalorder %v1227, 1458
        %vm1292 = vcmp.lt.s32.totalorder %v1228, 1458
        %vm1293 = vcmp.lt.s32.totalorder %v1229, 1458
        %vm1294 = vcmp.lt.s32.totalorder %v1230, 1458
        %vm1295 = vcmp.lt.s32.totalorder %v1231, 1458
        %vm1296 = vcmp.lt.s32.totalorder %v1232, 1458
        %vm1297 = vcmp.lt.s32.totalorder %v1233, 1458
        %vm1298 = vcmp.lt.s32.totalorder %v1234, 1458
        %vm1299 = vcmp.lt.s32.totalorder %v1235, 1458
        %vm1300 = vcmp.lt.s32.totalorder %v1236, 1458
        %vm1301 = vcmp.lt.s32.totalorder %v1237, 1458
        %vm1302 = vcmp.lt.s32.totalorder %v1238, 1458
        %vm1303 = vcmp.lt.s32.totalorder %v1239, 1458
        %vm1304 = vcmp.lt.s32.totalorder %v1240, 1458
        %vm1305 = vcmp.lt.s32.totalorder %v1241, 1458
        %vm1306 = vcmp.lt.s32.totalorder %v1242, 1458
        %vm1307 = vcmp.lt.s32.totalorder %v1243, 1458
        %vm1308 = vcmp.lt.s32.totalorder %v1244, 1458
        %vm1309 = vcmp.lt.s32.totalorder %v1245, 1458
        %vm1310 = vcmp.lt.s32.totalorder %v1246, 1458
        %vm1311 = vcmp.lt.s32.totalorder %v1247, 1458
        %vm1312 = vcmp.lt.s32.totalorder %v1248, 1458
        %vm1313 = vcmp.lt.s32.totalorder %v1249, 1458
        %vm1314 = vcmp.lt.s32.totalorder %v1250, 1458
        %vm1315 = vcmp.lt.s32.totalorder %v1251, 1458
        %vm1316 = vcmp.lt.s32.totalorder %v1252, 1458
        %vm1317 = vcmp.lt.s32.totalorder %v1253, 1458
        %vm1318 = vcmp.lt.s32.totalorder %v1254, 1458
        %vm1319 = vcmp.lt.s32.totalorder %v1255, 1458
        %vm1320 = vcmp.lt.s32.totalorder %v1256, 1458
        %vm1321 = vcmp.lt.s32.totalorder %v1257, 1458
        %vm1322 = vcmp.lt.s32.totalorder %v1258, 1458
        %vm1323 = vcmp.lt.s32.totalorder %v1259, 1458
        %vm1324 = vcmp.lt.s32.totalorder %v1260, 1458
        %vm1325 = vcmp.lt.s32.totalorder %v1261, 1458
        %vm1326 = vcmp.lt.s32.totalorder %v1262, 1458
        %vm1327 = vcmp.lt.s32.totalorder %v1263, 1458
        %vm1328 = vcmp.lt.s32.totalorder %v1264, 1458
        %vm1329 = vcmp.lt.s32.totalorder %v1265, 1458
        %vm1330 = vcmp.lt.s32.totalorder %v1266, 1458
        %vm1331 = vcmp.lt.s32.totalorder %v1267, 1458
        %vm1332 = vcmp.lt.s32.totalorder %v1268, 1458
        %vm1333 = vcmp.lt.s32.totalorder %v1269, 1458
        %vm1334 = vcmp.lt.s32.totalorder %v1270, 1458
        %vm1335 = vcmp.lt.s32.totalorder %v1271, 1458
        %v1336 = vsel %vm1272, 1, 0
        %v1337 = vsel %vm1273, 1, 0
        %v1338 = vsel %vm1274, 1, 0
        %v1339 = vsel %vm1275, 1, 0
        %v1340 = vsel %vm1276, 1, 0
        %v1341 = vsel %vm1277, 1, 0
        %v1342 = vsel %vm1278, 1, 0
        %v1343 = vsel %vm1279, 1, 0
        %v1344 = vsel %vm1280, 1, 0
        %v1345 = vsel %vm1281, 1, 0
        %v1346 = vsel %vm1282, 1, 0
        %v1347 = vsel %vm1283, 1, 0
        %v1348 = vsel %vm1284, 1, 0
        %v1349 = vsel %vm1285, 1, 0
        %v1350 = vsel %vm1286, 1, 0
        %v1351 = vsel %vm1287, 1, 0
        %v1352 = vsel %vm1288, 1, 0
        %v1353 = vsel %vm1289, 1, 0
        %v1354 = vsel %vm1290, 1, 0
        %v1355 = vsel %vm1291, 1, 0
        %v1356 = vsel %vm1292, 1, 0
        %v1357 = vsel %vm1293, 1, 0
        %v1358 = vsel %vm1294, 1, 0
        %v1359 = vsel %vm1295, 1, 0
        %v1360 = vsel %vm1296, 1, 0
        %v1361 = vsel %vm1297, 1, 0
        %v1362 = vsel %vm1298, 1, 0
        %v1363 = vsel %vm1299, 1, 0
        %v1364 = vsel %vm1300, 1, 0
        %v1365 = vsel %vm1301, 1, 0
        %v1366 = vsel %vm1302, 1, 0
        %v1367 = vsel %vm1303, 1, 0
        %v1368 = vsel %vm1304, 1, 0
        %v1369 = vsel %vm1305, 1, 0
        %v1370 = vsel %vm1306, 1, 0
        %v1371 = vsel %vm1307, 1, 0
        %v1372 = vsel %vm1308, 1, 0
        %v1373 = vsel %vm1309, 1, 0
        %v1374 = vsel %vm1310, 1, 0
        %v1375 = vsel %vm1311, 1, 0
        %v1376 = vsel %vm1312, 1, 0
        %v1377 = vsel %vm1313, 1, 0
        %v1378 = vsel %vm1314, 1, 0
        %v1379 = vsel %vm1315, 1, 0
        %v1380 = vsel %vm1316, 1, 0
        %v1381 = vsel %vm1317, 1, 0
        %v1382 = vsel %vm1318, 1, 0
        %v1383 = vsel %vm1319, 1, 0
        %v1384 = vsel %vm1320, 1, 0
        %v1385 = vsel %vm1321, 1, 0
        %v1386 = vsel %vm1322, 1, 0
        %v1387 = vsel %vm1323, 1, 0
        %v1388 = vsel %vm1324, 1, 0
        %v1389 = vsel %vm1325, 1, 0
        %v1390 = vsel %vm1326, 1, 0
        %v1391 = vsel %vm1327, 1, 0
        %v1392 = vsel %vm1328, 1, 0
        %v1393 = vsel %vm1329, 1, 0
        %v1394 = vsel %vm1330, 1, 0
        %v1395 = vsel %vm1331, 1, 0
        %v1396 = vsel %vm1332, 1, 0
        %v1397 = vsel %vm1333, 1, 0
        %v1398 = vsel %vm1334, 1, 0
        %v1399 = vsel %vm1335, 1, 0
        %v1400 = vcvt.s32.f32 %v1336
        %v1401 = vcvt.s32.f32 %v1337
        %v1402 = vcvt.s32.f32 %v1338
        %v1403 = vcvt.s32.f32 %v1339
        %v1404 = vcvt.s32.f32 %v1340
        %v1405 = vcvt.s32.f32 %v1341
        %v1406 = vcvt.s32.f32 %v1342
        %v1407 = vcvt.s32.f32 %v1343
        %v1408 = vcvt.s32.f32 %v1344
        %v1409 = vcvt.s32.f32 %v1345
        %v1410 = vcvt.s32.f32 %v1346
        %v1411 = vcvt.s32.f32 %v1347
        %v1412 = vcvt.s32.f32 %v1348
        %v1413 = vcvt.s32.f32 %v1349
        %v1414 = vcvt.s32.f32 %v1350
        %v1415 = vcvt.s32.f32 %v1351
        %v1416 = vcvt.s32.f32 %v1352
        %v1417 = vcvt.s32.f32 %v1353
        %v1418 = vcvt.s32.f32 %v1354
        %v1419 = vcvt.s32.f32 %v1355
        %v1420 = vcvt.s32.f32 %v1356
        %v1421 = vcvt.s32.f32 %v1357
        %v1422 = vcvt.s32.f32 %v1358
        %v1423 = vcvt.s32.f32 %v1359
        %v1424 = vcvt.s32.f32 %v1360
        %v1425 = vcvt.s32.f32 %v1361
        %v1426 = vcvt.s32.f32 %v1362
        %v1427 = vcvt.s32.f32 %v1363
        %v1428 = vcvt.s32.f32 %v1364
        %v1429 = vcvt.s32.f32 %v1365
        %v1430 = vcvt.s32.f32 %v1366
        %v1431 = vcvt.s32.f32 %v1367
        %v1432 = vcvt.s32.f32 %v1368
        %v1433 = vcvt.s32.f32 %v1369
        %v1434 = vcvt.s32.f32 %v1370
        %v1435 = vcvt.s32.f32 %v1371
        %v1436 = vcvt.s32.f32 %v1372
        %v1437 = vcvt.s32.f32 %v1373
        %v1438 = vcvt.s32.f32 %v1374
        %v1439 = vcvt.s32.f32 %v1375
        %v1440 = vcvt.s32.f32 %v1376
        %v1441 = vcvt.s32.f32 %v1377
        %v1442 = vcvt.s32.f32 %v1378
        %v1443 = vcvt.s32.f32 %v1379
        %v1444 = vcvt.s32.f32 %v1380
        %v1445 = vcvt.s32.f32 %v1381
        %v1446 = vcvt.s32.f32 %v1382
        %v1447 = vcvt.s32.f32 %v1383
        %v1448 = vcvt.s32.f32 %v1384
        %v1449 = vcvt.s32.f32 %v1385
        %v1450 = vcvt.s32.f32 %v1386
        %v1451 = vcvt.s32.f32 %v1387
        %v1452 = vcvt.s32.f32 %v1388
        %v1453 = vcvt.s32.f32 %v1389
        %v1454 = vcvt.s32.f32 %v1390
        %v1455 = vcvt.s32.f32 %v1391
        %v1456 = vcvt.s32.f32 %v1392
        %v1457 = vcvt.s32.f32 %v1393
        %v1458 = vcvt.s32.f32 %v1394
        %v1459 = vcvt.s32.f32 %v1395
        %v1460 = vcvt.s32.f32 %v1396
        %v1461 = vcvt.s32.f32 %v1397
        %v1462 = vcvt.s32.f32 %v1398
        %v1463 = vcvt.s32.f32 %v1399
        %v1464 = vmul.f32 %v822, %v1400
        %v1465 = vmul.f32 %v825, %v1401
        %v1466 = vmul.f32 %v830, %v1402
        %v1467 = vmul.f32 %v833, %v1403
        %v1468 = vmul.f32 %v838, %v1404
        %v1469 = vmul.f32 %v841, %v1405
        %v1470 = vmul.f32 %v846, %v1406
        %v1471 = vmul.f32 %v849, %v1407
        %v1472 = vmul.f32 %v854, %v1408
        %v1473 = vmul.f32 %v857, %v1409
        %v1474 = vmul.f32 %v862, %v1410
        %v1475 = vmul.f32 %v865, %v1411
        %v1476 = vmul.f32 %v870, %v1412
        %v1477 = vmul.f32 %v873, %v1413
        %v1478 = vmul.f32 %v878, %v1414
        %v1479 = vmul.f32 %v881, %v1415
        %v1480 = vmul.f32 %v886, %v1416
        %v1481 = vmul.f32 %v889, %v1417
        %v1482 = vmul.f32 %v894, %v1418
        %v1483 = vmul.f32 %v897, %v1419
        %v1484 = vmul.f32 %v902, %v1420
        %v1485 = vmul.f32 %v905, %v1421
        %v1486 = vmul.f32 %v910, %v1422
        %v1487 = vmul.f32 %v913, %v1423
        %v1488 = vmul.f32 %v918, %v1424
        %v1489 = vmul.f32 %v921, %v1425
        %v1490 = vmul.f32 %v926, %v1426
        %v1491 = vmul.f32 %v929, %v1427
        %v1492 = vmul.f32 %v934, %v1428
        %v1493 = vmul.f32 %v937, %v1429
        %v1494 = vmul.f32 %v942, %v1430
        %v1495 = vmul.f32 %v945, %v1431
        %v1496 = vmul.f32 %v950, %v1432
        %v1497 = vmul.f32 %v953, %v1433
        %v1498 = vmul.f32 %v958, %v1434
        %v1499 = vmul.f32 %v961, %v1435
        %v1500 = vmul.f32 %v966, %v1436
        %v1501 = vmul.f32 %v969, %v1437
        %v1502 = vmul.f32 %v974, %v1438
        %v1503 = vmul.f32 %v977, %v1439
        %v1504 = vmul.f32 %v982, %v1440
        %v1505 = vmul.f32 %v985, %v1441
        %v1506 = vmul.f32 %v990, %v1442
        %v1507 = vmul.f32 %v993, %v1443
        %v1508 = vmul.f32 %v998, %v1444
        %v1509 = vmul.f32 %v1001, %v1445
        %v1510 = vmul.f32 %v1006, %v1446
        %v1511 = vmul.f32 %v1009, %v1447
        %v1512 = vmul.f32 %v1014, %v1448
        %v1513 = vmul.f32 %v1017, %v1449
        %v1514 = vmul.f32 %v1022, %v1450
        %v1515 = vmul.f32 %v1025, %v1451
        %v1516 = vmul.f32 %v1030, %v1452
        %v1517 = vmul.f32 %v1033, %v1453
        %v1518 = vmul.f32 %v1038, %v1454
        %v1519 = vmul.f32 %v1041, %v1455
        %v1520 = vmul.f32 %v1046, %v1456
        %v1521 = vmul.f32 %v1049, %v1457
        %v1522 = vmul.f32 %v1054, %v1458
        %v1523 = vmul.f32 %v1057, %v1459
        %v1524 = vmul.f32 %v1062, %v1460
        %v1525 = vmul.f32 %v1065, %v1461
        %v1526 = vmul.f32 %v1070, %v1462
        %v1527 = vmul.f32 %v1073, %v1463
        %v1528 = vld [vmem:[#allocation3] sm:$0x1]
        %v1529 = vadd.f32 %v1464, %v1465
        %v1530 = vadd.f32 %v1529, %v1466
        %v1531 = vadd.f32 %v1530, %v1467
        %v1532 = vadd.f32 %v1531, %v1468
        %v1533 = vadd.f32 %v1532, %v1469
        %v1534 = vadd.f32 %v1533, %v1470
        %v1535 = vadd.f32 %v1534, %v1471
        %v1536 = vadd.f32 %v1535, %v1472
        %v1537 = vadd.f32 %v1536, %v1473
        %v1538 = vadd.f32 %v1537, %v1474
        %v1539 = vadd.f32 %v1538, %v1475
        %v1540 = vadd.f32 %v1539, %v1476
        %v1541 = vadd.f32 %v1540, %v1477
        %v1542 = vadd.f32 %v1541, %v1478
        %v1543 = vadd.f32 %v1542, %v1479
        %v1544 = vadd.f32 %v1543, %v1480
        %v1545 = vadd.f32 %v1544, %v1481
        %v1546 = vadd.f32 %v1545, %v1482
        %v1547 = vadd.f32 %v1546, %v1483
        %v1548 = vadd.f32 %v1547, %v1484
        %v1549 = vadd.f32 %v1548, %v1485
        %v1550 = vadd.f32 %v1549, %v1486
        %v1551 = vadd.f32 %v1550, %v1487
        %v1552 = vadd.f32 %v1551, %v1488
        %v1553 = vadd.f32 %v1552, %v1489
        %v1554 = vadd.f32 %v1553, %v1490
        %v1555 = vadd.f32 %v1554, %v1491
        %v1556 = vadd.f32 %v1555, %v1492
        %v1557 = vadd.f32 %v1556, %v1493
        %v1558 = vadd.f32 %v1557, %v1494
        %v1559 = vadd.f32 %v1558, %v1495
        %v1560 = vadd.f32 %v1559, %v1496
        %v1561 = vadd.f32 %v1560, %v1497
        %v1562 = vadd.f32 %v1561, %v1498
        %v1563 = vadd.f32 %v1562, %v1499
        %v1564 = vadd.f32 %v1563, %v1500
        %v1565 = vadd.f32 %v1564, %v1501
        %v1566 = vadd.f32 %v1565, %v1502
        %v1567 = vadd.f32 %v1566, %v1503
        %v1568 = vadd.f32 %v1567, %v1504
        %v1569 = vadd.f32 %v1568, %v1505
        %v1570 = vadd.f32 %v1569, %v1506
        %v1571 = vadd.f32 %v1570, %v1507
        %v1572 = vadd.f32 %v1571, %v1508
        %v1573 = vadd.f32 %v1572, %v1509
        %v1574 = vadd.f32 %v1573, %v1510
        %v1575 = vadd.f32 %v1574, %v1511
        %v1576 = vadd.f32 %v1575, %v1512
        %v1577 = vadd.f32 %v1576, %v1513
        %v1578 = vadd.f32 %v1577, %v1514
        %v1579 = vadd.f32 %v1578, %v1515
        %v1580 = vadd.f32 %v1579, %v1516
        %v1581 = vadd.f32 %v1580, %v1517
        %v1582 = vadd.f32 %v1581, %v1518
        %v1583 = vadd.f32 %v1582, %v1519
        %v1584 = vadd.f32 %v1583, %v1520
        %v1585 = vadd.f32 %v1584, %v1521
        %v1586 = vadd.f32 %v1585, %v1522
        %v1587 = vadd.f32 %v1586, %v1523
        %v1588 = vadd.f32 %v1587, %v1524
        %v1589 = vadd.f32 %v1588, %v1525
        %v1590 = vadd.f32 %v1589, %v1526
        %v1591 = vadd.f32 %v1590, %v1527
        %v1592 = vrot.slane %v1591, 4
        %v1593 = vadd.f32 %v1591, %v1592
        %v1594 = vrot.slane %v1593, 2
        %v1595 = vadd.f32 %v1593, %v1594
        %v1596 = vrot.slane %v1595, 1
        %v1597 = vadd.f32 %v1595, %v1596
        %v1598 = vadd.f32 %v1528, %v1597
        %1599 = vst [vmem:[#allocation3] sm:$0x1] %v1598
        %v1600 = vld [vmem:[#allocation4] sm:$0x1]
        %v1601 = vmul.f32 %v1464, %v1464
        %v1602 = vmul.f32 %v1465, %v1465
        %v1603 = vmul.f32 %v1466, %v1466
        %v1604 = vmul.f32 %v1467, %v1467
        %v1605 = vmul.f32 %v1468, %v1468
        %v1606 = vmul.f32 %v1469, %v1469
        %v1607 = vmul.f32 %v1470, %v1470
        %v1608 = vmul.f32 %v1471, %v1471
        %v1609 = vmul.f32 %v1472, %v1472
        %v1610 = vmul.f32 %v1473, %v1473
        %v1611 = vmul.f32 %v1474, %v1474
        %v1612 = vmul.f32 %v1475, %v1475
        %v1613 = vmul.f32 %v1476, %v1476
        %v1614 = vmul.f32 %v1477, %v1477
        %v1615 = vmul.f32 %v1478, %v1478
        %v1616 = vmul.f32 %v1479, %v1479
        %v1617 = vmul.f32 %v1480, %v1480
        %v1618 = vmul.f32 %v1481, %v1481
        %v1619 = vmul.f32 %v1482, %v1482
        %v1620 = vmul.f32 %v1483, %v1483
        %v1621 = vmul.f32 %v1484, %v1484
        %v1622 = vmul.f32 %v1485, %v1485
        %v1623 = vmul.f32 %v1486, %v1486
        %v1624 = vmul.f32 %v1487, %v1487
        %v1625 = vmul.f32 %v1488, %v1488
        %v1626 = vmul.f32 %v1489, %v1489
        %v1627 = vmul.f32 %v1490, %v1490
        %v1628 = vmul.f32 %v1491, %v1491
        %v1629 = vmul.f32 %v1492, %v1492
        %v1630 = vmul.f32 %v1493, %v1493
        %v1631 = vmul.f32 %v1494, %v1494
        %v1632 = vmul.f32 %v1495, %v1495
        %v1633 = vmul.f32 %v1496, %v1496
        %v1634 = vmul.f32 %v1497, %v1497
        %v1635 = vmul.f32 %v1498, %v1498
        %v1636 = vmul.f32 %v1499, %v1499
        %v1637 = vmul.f32 %v1500, %v1500
        %v1638 = vmul.f32 %v1501, %v1501
        %v1639 = vmul.f32 %v1502, %v1502
        %v1640 = vmul.f32 %v1503, %v1503
        %v1641 = vmul.f32 %v1504, %v1504
        %v1642 = vmul.f32 %v1505, %v1505
        %v1643 = vmul.f32 %v1506, %v1506
        %v1644 = vmul.f32 %v1507, %v1507
        %v1645 = vmul.f32 %v1508, %v1508
        %v1646 = vmul.f32 %v1509, %v1509
        %v1647 = vmul.f32 %v1510, %v1510
        %v1648 = vmul.f32 %v1511, %v1511
        %v1649 = vmul.f32 %v1512, %v1512
        %v1650 = vmul.f32 %v1513, %v1513
        %v1651 = vmul.f32 %v1514, %v1514
        %v1652 = vmul.f32 %v1515, %v1515
        %v1653 = vmul.f32 %v1516, %v1516
        %v1654 = vmul.f32 %v1517, %v1517
        %v1655 = vmul.f32 %v1518, %v1518
        %v1656 = vmul.f32 %v1519, %v1519
        %v1657 = vmul.f32 %v1520, %v1520
        %v1658 = vmul.f32 %v1521, %v1521
        %v1659 = vmul.f32 %v1522, %v1522
        %v1660 = vmul.f32 %v1523, %v1523
        %v1661 = vmul.f32 %v1524, %v1524
        %v1662 = vmul.f32 %v1525, %v1525
        %v1663 = vmul.f32 %v1526, %v1526
        %v1664 = vmul.f32 %v1527, %v1527
        %v1665 = vadd.f32 %v1601, %v1602
        %v1666 = vadd.f32 %v1665, %v1603
        %v1667 = vadd.f32 %v1666, %v1604
        %v1668 = vadd.f32 %v1667, %v1605
        %v1669 = vadd.f32 %v1668, %v1606
        %v1670 = vadd.f32 %v1669, %v1607
        %v1671 = vadd.f32 %v1670, %v1608
        %v1672 = vadd.f32 %v1671, %v1609
        %v1673 = vadd.f32 %v1672, %v1610
        %v1674 = vadd.f32 %v1673, %v1611
        %v1675 = vadd.f32 %v1674, %v1612
        %v1676 = vadd.f32 %v1675, %v1613
        %v1677 = vadd.f32 %v1676, %v1614
        %v1678 = vadd.f32 %v1677, %v1615
        %v1679 = vadd.f32 %v1678, %v1616
        %v1680 = vadd.f32 %v1679, %v1617
        %v1681 = vadd.f32 %v1680, %v1618
        %v1682 = vadd.f32 %v1681, %v1619
        %v1683 = vadd.f32 %v1682, %v1620
        %v1684 = vadd.f32 %v1683, %v1621
        %v1685 = vadd.f32 %v1684, %v1622
        %v1686 = vadd.f32 %v1685, %v1623
        %v1687 = vadd.f32 %v1686, %v1624
        %v1688 = vadd.f32 %v1687, %v1625
        %v1689 = vadd.f32 %v1688, %v1626
        %v1690 = vadd.f32 %v1689, %v1627
        %v1691 = vadd.f32 %v1690, %v1628
        %v1692 = vadd.f32 %v1691, %v1629
        %v1693 = vadd.f32 %v1692, %v1630
        %v1694 = vadd.f32 %v1693, %v1631
        %v1695 = vadd.f32 %v1694, %v1632
        %v1696 = vadd.f32 %v1695, %v1633
        %v1697 = vadd.f32 %v1696, %v1634
        %v1698 = vadd.f32 %v1697, %v1635
        %v1699 = vadd.f32 %v1698, %v1636
        %v1700 = vadd.f32 %v1699, %v1637
        %v1701 = vadd.f32 %v1700, %v1638
        %v1702 = vadd.f32 %v1701, %v1639
        %v1703 = vadd.f32 %v1702, %v1640
        %v1704 = vadd.f32 %v1703, %v1641
        %v1705 = vadd.f32 %v1704, %v1642
        %v1706 = vadd.f32 %v1705, %v1643
        %v1707 = vadd.f32 %v1706, %v1644
        %v1708 = vadd.f32 %v1707, %v1645
        %v1709 = vadd.f32 %v1708, %v1646
        %v1710 = vadd.f32 %v1709, %v1647
        %v1711 = vadd.f32 %v1710, %v1648
        %v1712 = vadd.f32 %v1711, %v1649
        %v1713 = vadd.f32 %v1712, %v1650
        %v1714 = vadd.f32 %v1713, %v1651
        %v1715 = vadd.f32 %v1714, %v1652
        %v1716 = vadd.f32 %v1715, %v1653
        %v1717 = vadd.f32 %v1716, %v1654
        %v1718 = vadd.f32 %v1717, %v1655
        %v1719 = vadd.f32 %v1718, %v1656
        %v1720 = vadd.f32 %v1719, %v1657
        %v1721 = vadd.f32 %v1720, %v1658
        %v1722 = vadd.f32 %v1721, %v1659
        %v1723 = vadd.f32 %v1722, %v1660
        %v1724 = vadd.f32 %v1723, %v1661
        %v1725 = vadd.f32 %v1724, %v1662
        %v1726 = vadd.f32 %v1725, %v1663
        %v1727 = vadd.f32 %v1726, %v1664
        %v1728 = vrot.slane %v1727, 4
        %v1729 = vadd.f32 %v1727, %v1728
        %v1730 = vrot.slane %v1729, 2
        %v1731 = vadd.f32 %v1729, %v1730
        %v1732 = vrot.slane %v1731, 1
        %v1733 = vadd.f32 %v1731, %v1732
        %v1734 = vadd.f32 %v1600, %v1733
        %1735 = vst [vmem:[#allocation4] sm:$0x1] %v1734
      $region44: #{generador_forward.8} parent=39 // pred_fallthru
        _
      %p1736 = scmp.eq.s32.totalorder %s20, 1
      // Predicated region
      $region49: #{generador_forward.8} parent=39 // pred_check
        %p1737 = pneg %p1736
      $region50: #{generador_forward.8} parent=39 // pred_check_branch
        %1739 = sbr.rel (%p1737) target = $region52
      $region51: #{generador_forward.8} parent=39 // pred_region
        %v1740 = vld [vmem:[#allocation3] sm:$0x1]
        %v1741 = vmul.f32 %v1740, 0.00068587105
        %v1742 = vld [vmem:[#allocation4] sm:$0x1]
        %v1743 = vmul.f32 %v1742, 0.00068587105
        %v1744 = vmul.f32 %v1741, %v1741
        %v1745 = vsub.f32 %v1743, %v1744
        %v1746 = vmax.f32 %v1745, 0.0
        %v1747 = vld [vmem:[%s3] sm:$0x1]
        %v1748 = vadd.f32 %v1746, 1e-05
        %v1749 = vrsqrt.pop %v1748
        %v1750 = vmul.f32 %v1747, %v1749
        %v1751 = vld [vmem:[%s4] sm:$0x1]
        %v1752 = vmul.f32 %v1741, %v1750
        %v1753 = vsub.f32 %v1751, %v1752
        %s1754 = smul.u32 %s21, 512
        %s1755 = scalar_lea.vmem [#allocation2], %s1754
        %v1756 = vld [vmem:[%s1755] sm:$0xff]
        %v1757 = vld [vmem:[%s1755 + $0x8] sm:$0xff]
        %v1758 = vld [vmem:[%s1755 + $0x10] sm:$0xff]
        %v1759 = vld [vmem:[%s1755 + $0x18] sm:$0xff]
        %v1760 = vld [vmem:[%s1755 + $0x20] sm:$0xff]
        %v1761 = vld [vmem:[%s1755 + $0x28] sm:$0xff]
        %v1762 = vld [vmem:[%s1755 + $0x30] sm:$0xff]
        %v1763 = vld [vmem:[%s1755 + $0x38] sm:$0xff]
        %v1764 = vld [vmem:[%s1755 + $0x40] sm:$0xff]
        %v1765 = vld [vmem:[%s1755 + $0x48] sm:$0xff]
        %v1766 = vld [vmem:[%s1755 + $0x50] sm:$0xff]
        %v1767 = vld [vmem:[%s1755 + $0x58] sm:$0xff]
        %v1768 = vld [vmem:[%s1755 + $0x60] sm:$0xff]
        %v1769 = vld [vmem:[%s1755 + $0x68] sm:$0xff]
        %v1770 = vld [vmem:[%s1755 + $0x70] sm:$0xff]
        %v1771 = vld [vmem:[%s1755 + $0x78] sm:$0xff]
        %v1772 = vld [vmem:[%s1755 + $0x80] sm:$0xff]
        %v1773 = vld [vmem:[%s1755 + $0x88] sm:$0xff]
        %v1774 = vld [vmem:[%s1755 + $0x90] sm:$0xff]
        %v1775 = vld [vmem:[%s1755 + $0x98] sm:$0xff]
        %v1776 = vld [vmem:[%s1755 + $0xa0] sm:$0xff]
        %v1777 = vld [vmem:[%s1755 + $0xa8] sm:$0xff]
        %v1778 = vld [vmem:[%s1755 + $0xb0] sm:$0xff]
        %v1779 = vld [vmem:[%s1755 + $0xb8] sm:$0xff]
        %v1780 = vld [vmem:[%s1755 + $0xc0] sm:$0xff]
        %v1781 = vld [vmem:[%s1755 + $0xc8] sm:$0xff]
        %v1782 = vld [vmem:[%s1755 + $0xd0] sm:$0xff]
        %v1783 = vld [vmem:[%s1755 + $0xd8] sm:$0xff]
        %v1784 = vld [vmem:[%s1755 + $0xe0] sm:$0xff]
        %v1785 = vld [vmem:[%s1755 + $0xe8] sm:$0xff]
        %v1786 = vld [vmem:[%s1755 + $0xf0] sm:$0xff]
        %v1787 = vld [vmem:[%s1755 + $0xf8] sm:$0xff]
        %v1788 = vld [vmem:[%s1755 + $0x100] sm:$0xff]
        %v1789 = vld [vmem:[%s1755 + $0x108] sm:$0xff]
        %v1790 = vld [vmem:[%s1755 + $0x110] sm:$0xff]
        %v1791 = vld [vmem:[%s1755 + $0x118] sm:$0xff]
        %v1792 = vld [vmem:[%s1755 + $0x120] sm:$0xff]
        %v1793 = vld [vmem:[%s1755 + $0x128] sm:$0xff]
        %v1794 = vld [vmem:[%s1755 + $0x130] sm:$0xff]
        %v1795 = vld [vmem:[%s1755 + $0x138] sm:$0xff]
        %v1796 = vld [vmem:[%s1755 + $0x140] sm:$0xff]
        %v1797 = vld [vmem:[%s1755 + $0x148] sm:$0xff]
        %v1798 = vld [vmem:[%s1755 + $0x150] sm:$0xff]
        %v1799 = vld [vmem:[%s1755 + $0x158] sm:$0xff]
        %v1800 = vld [vmem:[%s1755 + $0x160] sm:$0xff]
        %v1801 = vld [vmem:[%s1755 + $0x168] sm:$0xff]
        %v1802 = vld [vmem:[%s1755 + $0x170] sm:$0xff]
        %v1803 = vld [vmem:[%s1755 + $0x178] sm:$0xff]
        %v1804 = vld [vmem:[%s1755 + $0x180] sm:$0xff]
        %v1805 = vld [vmem:[%s1755 + $0x188] sm:$0xff]
        %v1806 = vld [vmem:[%s1755 + $0x190] sm:$0xff]
        %v1807 = vld [vmem:[%s1755 + $0x198] sm:$0xff]
        %v1808 = vld [vmem:[%s1755 + $0x1a0] sm:$0xff]
        %v1809 = vld [vmem:[%s1755 + $0x1a8] sm:$0xff]
        %v1810 = vld [vmem:[%s1755 + $0x1b0] sm:$0xff]
        %v1811 = vld [vmem:[%s1755 + $0x1b8] sm:$0xff]
        %v1812 = vld [vmem:[%s1755 + $0x1c0] sm:$0xff]
        %v1813 = vld [vmem:[%s1755 + $0x1c8] sm:$0xff]
        %v1814 = vld [vmem:[%s1755 + $0x1d0] sm:$0xff]
        %v1815 = vld [vmem:[%s1755 + $0x1d8] sm:$0xff]
        %v1816 = vld [vmem:[%s1755 + $0x1e0] sm:$0xff]
        %v1817 = vld [vmem:[%s1755 + $0x1e8] sm:$0xff]
        %v1818 = vld [vmem:[%s1755 + $0x1f0] sm:$0xff]
        %v1819 = vld [vmem:[%s1755 + $0x1f8] sm:$0xff]
        %v1821 = vlaneseq
        %v1822 = vshrl.u32 %v1821, 7
        %v1823 = vsub.s32 0, %v1822
        %v1824 = vrot.slane %v1750, %v1823
        %v1826 = vmul.f32 %v1756, %v1824
        %v1827 = vmul.f32 %v1757, %v1824
        %v1828 = vmul.f32 %v1758, %v1824
        %v1829 = vmul.f32 %v1759, %v1824
        %v1830 = vmul.f32 %v1760, %v1824
        %v1831 = vmul.f32 %v1761, %v1824
        %v1832 = vmul.f32 %v1762, %v1824
        %v1833 = vmul.f32 %v1763, %v1824
        %v1834 = vmul.f32 %v1764, %v1824
        %v1835 = vmul.f32 %v1765, %v1824
        %v1836 = vmul.f32 %v1766, %v1824
        %v1837 = vmul.f32 %v1767, %v1824
        %v1838 = vmul.f32 %v1768, %v1824
        %v1839 = vmul.f32 %v1769, %v1824
        %v1840 = vmul.f32 %v1770, %v1824
        %v1841 = vmul.f32 %v1771, %v1824
        %v1842 = vmul.f32 %v1772, %v1824
        %v1843 = vmul.f32 %v1773, %v1824
        %v1844 = vmul.f32 %v1774, %v1824
        %v1845 = vmul.f32 %v1775, %v1824
        %v1846 = vmul.f32 %v1776, %v1824
        %v1847 = vmul.f32 %v1777, %v1824
        %v1848 = vmul.f32 %v1778, %v1824
        %v1849 = vmul.f32 %v1779, %v1824
        %v1850 = vmul.f32 %v1780, %v1824
        %v1851 = vmul.f32 %v1781, %v1824
        %v1852 = vmul.f32 %v1782, %v1824
        %v1853 = vmul.f32 %v1783, %v1824
        %v1854 = vmul.f32 %v1784, %v1824
        %v1855 = vmul.f32 %v1785, %v1824
        %v1856 = vmul.f32 %v1786, %v1824
        %v1857 = vmul.f32 %v1787, %v1824
        %v1858 = vmul.f32 %v1788, %v1824
        %v1859 = vmul.f32 %v1789, %v1824
        %v1860 = vmul.f32 %v1790, %v1824
        %v1861 = vmul.f32 %v1791, %v1824
        %v1862 = vmul.f32 %v1792, %v1824
        %v1863 = vmul.f32 %v1793, %v1824
        %v1864 = vmul.f32 %v1794, %v1824
        %v1865 = vmul.f32 %v1795, %v1824
        %v1866 = vmul.f32 %v1796, %v1824
        %v1867 = vmul.f32 %v1797, %v1824
        %v1868 = vmul.f32 %v1798, %v1824
        %v1869 = vmul.f32 %v1799, %v1824
        %v1870 = vmul.f32 %v1800, %v1824
        %v1871 = vmul.f32 %v1801, %v1824
        %v1872 = vmul.f32 %v1802, %v1824
        %v1873 = vmul.f32 %v1803, %v1824
        %v1874 = vmul.f32 %v1804, %v1824
        %v1875 = vmul.f32 %v1805, %v1824
        %v1876 = vmul.f32 %v1806, %v1824
        %v1877 = vmul.f32 %v1807, %v1824
        %v1878 = vmul.f32 %v1808, %v1824
        %v1879 = vmul.f32 %v1809, %v1824
        %v1880 = vmul.f32 %v1810, %v1824
        %v1881 = vmul.f32 %v1811, %v1824
        %v1882 = vmul.f32 %v1812, %v1824
        %v1883 = vmul.f32 %v1813, %v1824
        %v1884 = vmul.f32 %v1814, %v1824
        %v1885 = vmul.f32 %v1815, %v1824
        %v1886 = vmul.f32 %v1816, %v1824
        %v1887 = vmul.f32 %v1817, %v1824
        %v1888 = vmul.f32 %v1818, %v1824
        %v1889 = vmul.f32 %v1819, %v1824
        %v1891 = vlaneseq
        %v1892 = vshrl.u32 %v1891, 7
        %v1893 = vsub.s32 0, %v1892
        %v1894 = vrot.slane %v1753, %v1893
        %v1896 = vadd.f32 %v1826, %v1894
        %v1897 = vadd.f32 %v1827, %v1894
        %v1898 = vadd.f32 %v1828, %v1894
        %v1899 = vadd.f32 %v1829, %v1894
        %v1900 = vadd.f32 %v1830, %v1894
        %v1901 = vadd.f32 %v1831, %v1894
        %v1902 = vadd.f32 %v1832, %v1894
        %v1903 = vadd.f32 %v1833, %v1894
        %v1904 = vadd.f32 %v1834, %v1894
        %v1905 = vadd.f32 %v1835, %v1894
        %v1906 = vadd.f32 %v1836, %v1894
        %v1907 = vadd.f32 %v1837, %v1894
        %v1908 = vadd.f32 %v1838, %v1894
        %v1909 = vadd.f32 %v1839, %v1894
        %v1910 = vadd.f32 %v1840, %v1894
        %v1911 = vadd.f32 %v1841, %v1894
        %v1912 = vadd.f32 %v1842, %v1894
        %v1913 = vadd.f32 %v1843, %v1894
        %v1914 = vadd.f32 %v1844, %v1894
        %v1915 = vadd.f32 %v1845, %v1894
        %v1916 = vadd.f32 %v1846, %v1894
        %v1917 = vadd.f32 %v1847, %v1894
        %v1918 = vadd.f32 %v1848, %v1894
        %v1919 = vadd.f32 %v1849, %v1894
        %v1920 = vadd.f32 %v1850, %v1894
        %v1921 = vadd.f32 %v1851, %v1894
        %v1922 = vadd.f32 %v1852, %v1894
        %v1923 = vadd.f32 %v1853, %v1894
        %v1924 = vadd.f32 %v1854, %v1894
        %v1925 = vadd.f32 %v1855, %v1894
        %v1926 = vadd.f32 %v1856, %v1894
        %v1927 = vadd.f32 %v1857, %v1894
        %v1928 = vadd.f32 %v1858, %v1894
        %v1929 = vadd.f32 %v1859, %v1894
        %v1930 = vadd.f32 %v1860, %v1894
        %v1931 = vadd.f32 %v1861, %v1894
        %v1932 = vadd.f32 %v1862, %v1894
        %v1933 = vadd.f32 %v1863, %v1894
        %v1934 = vadd.f32 %v1864, %v1894
        %v1935 = vadd.f32 %v1865, %v1894
        %v1936 = vadd.f32 %v1866, %v1894
        %v1937 = vadd.f32 %v1867, %v1894
        %v1938 = vadd.f32 %v1868, %v1894
        %v1939 = vadd.f32 %v1869, %v1894
        %v1940 = vadd.f32 %v1870, %v1894
        %v1941 = vadd.f32 %v1871, %v1894
        %v1942 = vadd.f32 %v1872, %v1894
        %v1943 = vadd.f32 %v1873, %v1894
        %v1944 = vadd.f32 %v1874, %v1894
        %v1945 = vadd.f32 %v1875, %v1894
        %v1946 = vadd.f32 %v1876, %v1894
        %v1947 = vadd.f32 %v1877, %v1894
        %v1948 = vadd.f32 %v1878, %v1894
        %v1949 = vadd.f32 %v1879, %v1894
        %v1950 = vadd.f32 %v1880, %v1894
        %v1951 = vadd.f32 %v1881, %v1894
        %v1952 = vadd.f32 %v1882, %v1894
        %v1953 = vadd.f32 %v1883, %v1894
        %v1954 = vadd.f32 %v1884, %v1894
        %v1955 = vadd.f32 %v1885, %v1894
        %v1956 = vadd.f32 %v1886, %v1894
        %v1957 = vadd.f32 %v1887, %v1894
        %v1958 = vadd.f32 %v1888, %v1894
        %v1959 = vadd.f32 %v1889, %v1894
        %vm1960 = vcmp.ge.f32.partialorder %v1896, 0.0
        %vm1961 = vcmp.ge.f32.partialorder %v1897, 0.0
        %vm1962 = vcmp.ge.f32.partialorder %v1898, 0.0
        %vm1963 = vcmp.ge.f32.partialorder %v1899, 0.0
        %vm1964 = vcmp.ge.f32.partialorder %v1900, 0.0
        %vm1965 = vcmp.ge.f32.partialorder %v1901, 0.0
        %vm1966 = vcmp.ge.f32.partialorder %v1902, 0.0
        %vm1967 = vcmp.ge.f32.partialorder %v1903, 0.0
        %vm1968 = vcmp.ge.f32.partialorder %v1904, 0.0
        %vm1969 = vcmp.ge.f32.partialorder %v1905, 0.0
        %vm1970 = vcmp.ge.f32.partialorder %v1906, 0.0
        %vm1971 = vcmp.ge.f32.partialorder %v1907, 0.0
        %vm1972 = vcmp.ge.f32.partialorder %v1908, 0.0
        %vm1973 = vcmp.ge.f32.partialorder %v1909, 0.0
        %vm1974 = vcmp.ge.f32.partialorder %v1910, 0.0
        %vm1975 = vcmp.ge.f32.partialorder %v1911, 0.0
        %vm1976 = vcmp.ge.f32.partialorder %v1912, 0.0
        %vm1977 = vcmp.ge.f32.partialorder %v1913, 0.0
        %vm1978 = vcmp.ge.f32.partialorder %v1914, 0.0
        %vm1979 = vcmp.ge.f32.partialorder %v1915, 0.0
        %vm1980 = vcmp.ge.f32.partialorder %v1916, 0.0
        %vm1981 = vcmp.ge.f32.partialorder %v1917, 0.0
        %vm1982 = vcmp.ge.f32.partialorder %v1918, 0.0
        %vm1983 = vcmp.ge.f32.partialorder %v1919, 0.0
        %vm1984 = vcmp.ge.f32.partialorder %v1920, 0.0
        %vm1985 = vcmp.ge.f32.partialorder %v1921, 0.0
        %vm1986 = vcmp.ge.f32.partialorder %v1922, 0.0
        %vm1987 = vcmp.ge.f32.partialorder %v1923, 0.0
        %vm1988 = vcmp.ge.f32.partialorder %v1924, 0.0
        %vm1989 = vcmp.ge.f32.partialorder %v1925, 0.0
        %vm1990 = vcmp.ge.f32.partialorder %v1926, 0.0
        %vm1991 = vcmp.ge.f32.partialorder %v1927, 0.0
        %vm1992 = vcmp.ge.f32.partialorder %v1928, 0.0
        %vm1993 = vcmp.ge.f32.partialorder %v1929, 0.0
        %vm1994 = vcmp.ge.f32.partialorder %v1930, 0.0
        %vm1995 = vcmp.ge.f32.partialorder %v1931, 0.0
        %vm1996 = vcmp.ge.f32.partialorder %v1932, 0.0
        %vm1997 = vcmp.ge.f32.partialorder %v1933, 0.0
        %vm1998 = vcmp.ge.f32.partialorder %v1934, 0.0
        %vm1999 = vcmp.ge.f32.partialorder %v1935, 0.0
        %vm2000 = vcmp.ge.f32.partialorder %v1936, 0.0
        %vm2001 = vcmp.ge.f32.partialorder %v1937, 0.0
        %vm2002 = vcmp.ge.f32.partialorder %v1938, 0.0
        %vm2003 = vcmp.ge.f32.partialorder %v1939, 0.0
        %vm2004 = vcmp.ge.f32.partialorder %v1940, 0.0
        %vm2005 = vcmp.ge.f32.partialorder %v1941, 0.0
        %vm2006 = vcmp.ge.f32.partialorder %v1942, 0.0
        %vm2007 = vcmp.ge.f32.partialorder %v1943, 0.0
        %vm2008 = vcmp.ge.f32.partialorder %v1944, 0.0
        %vm2009 = vcmp.ge.f32.partialorder %v1945, 0.0
        %vm2010 = vcmp.ge.f32.partialorder %v1946, 0.0
        %vm2011 = vcmp.ge.f32.partialorder %v1947, 0.0
        %vm2012 = vcmp.ge.f32.partialorder %v1948, 0.0
        %vm2013 = vcmp.ge.f32.partialorder %v1949, 0.0
        %vm2014 = vcmp.ge.f32.partialorder %v1950, 0.0
        %vm2015 = vcmp.ge.f32.partialorder %v1951, 0.0
        %vm2016 = vcmp.ge.f32.partialorder %v1952, 0.0
        %vm2017 = vcmp.ge.f32.partialorder %v1953, 0.0
        %vm2018 = vcmp.ge.f32.partialorder %v1954, 0.0
        %vm2019 = vcmp.ge.f32.partialorder %v1955, 0.0
        %vm2020 = vcmp.ge.f32.partialorder %v1956, 0.0
        %vm2021 = vcmp.ge.f32.partialorder %v1957, 0.0
        %vm2022 = vcmp.ge.f32.partialorder %v1958, 0.0
        %vm2023 = vcmp.ge.f32.partialorder %v1959, 0.0
        %v2024 = vmul.f32 %v1896, 0.2
        %v2025 = vmul.f32 %v1897, 0.2
        %v2026 = vmul.f32 %v1898, 0.2
        %v2027 = vmul.f32 %v1899, 0.2
        %v2028 = vmul.f32 %v1900, 0.2
        %v2029 = vmul.f32 %v1901, 0.2
        %v2030 = vmul.f32 %v1902, 0.2
        %v2031 = vmul.f32 %v1903, 0.2
        %v2032 = vmul.f32 %v1904, 0.2
        %v2033 = vmul.f32 %v1905, 0.2
        %v2034 = vmul.f32 %v1906, 0.2
        %v2035 = vmul.f32 %v1907, 0.2
        %v2036 = vmul.f32 %v1908, 0.2
        %v2037 = vmul.f32 %v1909, 0.2
        %v2038 = vmul.f32 %v1910, 0.2
        %v2039 = vmul.f32 %v1911, 0.2
        %v2040 = vmul.f32 %v1912, 0.2
        %v2041 = vmul.f32 %v1913, 0.2
        %v2042 = vmul.f32 %v1914, 0.2
        %v2043 = vmul.f32 %v1915, 0.2
        %v2044 = vmul.f32 %v1916, 0.2
        %v2045 = vmul.f32 %v1917, 0.2
        %v2046 = vmul.f32 %v1918, 0.2
        %v2047 = vmul.f32 %v1919, 0.2
        %v2048 = vmul.f32 %v1920, 0.2
        %v2049 = vmul.f32 %v1921, 0.2
        %v2050 = vmul.f32 %v1922, 0.2
        %v2051 = vmul.f32 %v1923, 0.2
        %v2052 = vmul.f32 %v1924, 0.2
        %v2053 = vmul.f32 %v1925, 0.2
        %v2054 = vmul.f32 %v1926, 0.2
        %v2055 = vmul.f32 %v1927, 0.2
        %v2056 = vmul.f32 %v1928, 0.2
        %v2057 = vmul.f32 %v1929, 0.2
        %v2058 = vmul.f32 %v1930, 0.2
        %v2059 = vmul.f32 %v1931, 0.2
        %v2060 = vmul.f32 %v1932, 0.2
        %v2061 = vmul.f32 %v1933, 0.2
        %v2062 = vmul.f32 %v1934, 0.2
        %v2063 = vmul.f32 %v1935, 0.2
        %v2064 = vmul.f32 %v1936, 0.2
        %v2065 = vmul.f32 %v1937, 0.2
        %v2066 = vmul.f32 %v1938, 0.2
        %v2067 = vmul.f32 %v1939, 0.2
        %v2068 = vmul.f32 %v1940, 0.2
        %v2069 = vmul.f32 %v1941, 0.2
        %v2070 = vmul.f32 %v1942, 0.2
        %v2071 = vmul.f32 %v1943, 0.2
        %v2072 = vmul.f32 %v1944, 0.2
        %v2073 = vmul.f32 %v1945, 0.2
        %v2074 = vmul.f32 %v1946, 0.2
        %v2075 = vmul.f32 %v1947, 0.2
        %v2076 = vmul.f32 %v1948, 0.2
        %v2077 = vmul.f32 %v1949, 0.2
        %v2078 = vmul.f32 %v1950, 0.2
        %v2079 = vmul.f32 %v1951, 0.2
        %v2080 = vmul.f32 %v1952, 0.2
        %v2081 = vmul.f32 %v1953, 0.2
        %v2082 = vmul.f32 %v1954, 0.2
        %v2083 = vmul.f32 %v1955, 0.2
        %v2084 = vmul.f32 %v1956, 0.2
        %v2085 = vmul.f32 %v1957, 0.2
        %v2086 = vmul.f32 %v1958, 0.2
        %v2087 = vmul.f32 %v1959, 0.2
        %v2088 = vsel %vm1960, %v1896, %v2024
        %v2089 = vsel %vm1961, %v1897, %v2025
        %v2090 = vsel %vm1962, %v1898, %v2026
        %v2091 = vsel %vm1963, %v1899, %v2027
        %v2092 = vsel %vm1964, %v1900, %v2028
        %v2093 = vsel %vm1965, %v1901, %v2029
        %v2094 = vsel %vm1966, %v1902, %v2030
        %v2095 = vsel %vm1967, %v1903, %v2031
        %v2096 = vsel %vm1968, %v1904, %v2032
        %v2097 = vsel %vm1969, %v1905, %v2033
        %v2098 = vsel %vm1970, %v1906, %v2034
        %v2099 = vsel %vm1971, %v1907, %v2035
        %v2100 = vsel %vm1972, %v1908, %v2036
        %v2101 = vsel %vm1973, %v1909, %v2037
        %v2102 = vsel %vm1974, %v1910, %v2038
        %v2103 = vsel %vm1975, %v1911, %v2039
        %v2104 = vsel %vm1976, %v1912, %v2040
        %v2105 = vsel %vm1977, %v1913, %v2041
        %v2106 = vsel %vm1978, %v1914, %v2042
        %v2107 = vsel %vm1979, %v1915, %v2043
        %v2108 = vsel %vm1980, %v1916, %v2044
        %v2109 = vsel %vm1981, %v1917, %v2045
        %v2110 = vsel %vm1982, %v1918, %v2046
        %v2111 = vsel %vm1983, %v1919, %v2047
        %v2112 = vsel %vm1984, %v1920, %v2048
        %v2113 = vsel %vm1985, %v1921, %v2049
        %v2114 = vsel %vm1986, %v1922, %v2050
        %v2115 = vsel %vm1987, %v1923, %v2051
        %v2116 = vsel %vm1988, %v1924, %v2052
        %v2117 = vsel %vm1989, %v1925, %v2053
        %v2118 = vsel %vm1990, %v1926, %v2054
        %v2119 = vsel %vm1991, %v1927, %v2055
        %v2120 = vsel %vm1992, %v1928, %v2056
        %v2121 = vsel %vm1993, %v1929, %v2057
        %v2122 = vsel %vm1994, %v1930, %v2058
        %v2123 = vsel %vm1995, %v1931, %v2059
        %v2124 = vsel %vm1996, %v1932, %v2060
        %v2125 = vsel %vm1997, %v1933, %v2061
        %v2126 = vsel %vm1998, %v1934, %v2062
        %v2127 = vsel %vm1999, %v1935, %v2063
        %v2128 = vsel %vm2000, %v1936, %v2064
        %v2129 = vsel %vm2001, %v1937, %v2065
        %v2130 = vsel %vm2002, %v1938, %v2066
        %v2131 = vsel %vm2003, %v1939, %v2067
        %v2132 = vsel %vm2004, %v1940, %v2068
        %v2133 = vsel %vm2005, %v1941, %v2069
        %v2134 = vsel %vm2006, %v1942, %v2070
        %v2135 = vsel %vm2007, %v1943, %v2071
        %v2136 = vsel %vm2008, %v1944, %v2072
        %v2137 = vsel %vm2009, %v1945, %v2073
        %v2138 = vsel %vm2010, %v1946, %v2074
        %v2139 = vsel %vm2011, %v1947, %v2075
        %v2140 = vsel %vm2012, %v1948, %v2076
        %v2141 = vsel %vm2013, %v1949, %v2077
        %v2142 = vsel %vm2014, %v1950, %v2078
        %v2143 = vsel %vm2015, %v1951, %v2079
        %v2144 = vsel %vm2016, %v1952, %v2080
        %v2145 = vsel %vm2017, %v1953, %v2081
        %v2146 = vsel %vm2018, %v1954, %v2082
        %v2147 = vsel %vm2019, %v1955, %v2083
        %v2148 = vsel %vm2020, %v1956, %v2084
        %v2149 = vsel %vm2021, %v1957, %v2085
        %v2150 = vsel %vm2022, %v1958, %v2086
        %v2151 = vsel %vm2023, %v1959, %v2087
        %v2152 = vpack.c.bf16 %v2089, %v2088
        %v2153 = vpack.c.bf16 %v2091, %v2090
        %v2154 = vpack.c.bf16 %v2093, %v2092
        %v2155 = vpack.c.bf16 %v2095, %v2094
        %v2156 = vpack.c.bf16 %v2097, %v2096
        %v2157 = vpack.c.bf16 %v2099, %v2098
        %v2158 = vpack.c.bf16 %v2101, %v2100
        %v2159 = vpack.c.bf16 %v2103, %v2102
        %v2160 = vpack.c.bf16 %v2105, %v2104
        %v2161 = vpack.c.bf16 %v2107, %v2106
        %v2162 = vpack.c.bf16 %v2109, %v2108
        %v2163 = vpack.c.bf16 %v2111, %v2110
        %v2164 = vpack.c.bf16 %v2113, %v2112
        %v2165 = vpack.c.bf16 %v2115, %v2114
        %v2166 = vpack.c.bf16 %v2117, %v2116
        %v2167 = vpack.c.bf16 %v2119, %v2118
        %v2168 = vpack.c.bf16 %v2121, %v2120
        %v2169 = vpack.c.bf16 %v2123, %v2122
        %v2170 = vpack.c.bf16 %v2125, %v2124
        %v2171 = vpack.c.bf16 %v2127, %v2126
        %v2172 = vpack.c.bf16 %v2129, %v2128
        %v2173 = vpack.c.bf16 %v2131, %v2130
        %v2174 = vpack.c.bf16 %v2133, %v2132
        %v2175 = vpack.c.bf16 %v2135, %v2134
        %v2176 = vpack.c.bf16 %v2137, %v2136
        %v2177 = vpack.c.bf16 %v2139, %v2138
        %v2178 = vpack.c.bf16 %v2141, %v2140
        %v2179 = vpack.c.bf16 %v2143, %v2142
        %v2180 = vpack.c.bf16 %v2145, %v2144
        %v2181 = vpack.c.bf16 %v2147, %v2146
        %v2182 = vpack.c.bf16 %v2149, %v2148
        %v2183 = vpack.c.bf16 %v2151, %v2150
        %v2216 = vunpack.c.l.b16 %v2152
        %v2217 = vunpack.c.h.b16 %v2152
        %v2218 = vunpack.c.l.b16 %v2153
        %v2219 = vunpack.c.h.b16 %v2153
        %v2220 = vunpack.c.l.b16 %v2154
        %v2221 = vunpack.c.h.b16 %v2154
        %v2222 = vunpack.c.l.b16 %v2155
        %v2223 = vunpack.c.h.b16 %v2155
        %v2224 = vunpack.c.l.b16 %v2156
        %v2225 = vunpack.c.h.b16 %v2156
        %v2226 = vunpack.c.l.b16 %v2157
        %v2227 = vunpack.c.h.b16 %v2157
        %v2228 = vunpack.c.l.b16 %v2158
        %v2229 = vunpack.c.h.b16 %v2158
        %v2230 = vunpack.c.l.b16 %v2159
        %v2231 = vunpack.c.h.b16 %v2159
        %v2232 = vunpack.c.l.b16 %v2160
        %v2233 = vunpack.c.h.b16 %v2160
        %v2234 = vunpack.c.l.b16 %v2161
        %v2235 = vunpack.c.h.b16 %v2161
        %v2236 = vunpack.c.l.b16 %v2162
        %v2237 = vunpack.c.h.b16 %v2162
        %v2238 = vunpack.c.l.b16 %v2163
        %v2239 = vunpack.c.h.b16 %v2163
        %v2240 = vunpack.c.l.b16 %v2164
        %v2241 = vunpack.c.h.b16 %v2164
        %v2242 = vunpack.c.l.b16 %v2165
        %v2243 = vunpack.c.h.b16 %v2165
        %v2244 = vunpack.c.l.b16 %v2166
        %v2245 = vunpack.c.h.b16 %v2166
        %v2246 = vunpack.c.l.b16 %v2167
        %v2247 = vunpack.c.h.b16 %v2167
        %v2248 = vunpack.c.l.b16 %v2168
        %v2249 = vunpack.c.h.b16 %v2168
        %v2250 = vunpack.c.l.b16 %v2169
        %v2251 = vunpack.c.h.b16 %v2169
        %v2252 = vunpack.c.l.b16 %v2170
        %v2253 = vunpack.c.h.b16 %v2170
        %v2254 = vunpack.c.l.b16 %v2171
        %v2255 = vunpack.c.h.b16 %v2171
        %v2256 = vunpack.c.l.b16 %v2172
        %v2257 = vunpack.c.h.b16 %v2172
        %v2258 = vunpack.c.l.b16 %v2173
        %v2259 = vunpack.c.h.b16 %v2173
        %v2260 = vunpack.c.l.b16 %v2174
        %v2261 = vunpack.c.h.b16 %v2174
        %v2262 = vunpack.c.l.b16 %v2175
        %v2263 = vunpack.c.h.b16 %v2175
        %v2264 = vunpack.c.l.b16 %v2176
        %v2265 = vunpack.c.h.b16 %v2176
        %v2266 = vunpack.c.l.b16 %v2177
        %v2267 = vunpack.c.h.b16 %v2177
        %v2268 = vunpack.c.l.b16 %v2178
        %v2269 = vunpack.c.h.b16 %v2178
        %v2270 = vunpack.c.l.b16 %v2179
        %v2271 = vunpack.c.h.b16 %v2179
        %v2272 = vunpack.c.l.b16 %v2180
        %v2273 = vunpack.c.h.b16 %v2180
        %v2274 = vunpack.c.l.b16 %v2181
        %v2275 = vunpack.c.h.b16 %v2181
        %v2276 = vunpack.c.l.b16 %v2182
        %v2277 = vunpack.c.h.b16 %v2182
        %v2278 = vunpack.c.l.b16 %v2183
        %v2279 = vunpack.c.h.b16 %v2183
        %v2280 = vpack.c.b16 %v2216, %v2216
        %v2281 = vpack.c.b16 %v2217, %v2217
        %v2282 = vpack.c.b16 %v2218, %v2218
        %v2283 = vpack.c.b16 %v2219, %v2219
        %v2284 = vpack.c.b16 %v2220, %v2220
        %v2285 = vpack.c.b16 %v2221, %v2221
        %v2286 = vpack.c.b16 %v2222, %v2222
        %v2287 = vpack.c.b16 %v2223, %v2223
        %v2288 = vpack.c.b16 %v2224, %v2224
        %v2289 = vpack.c.b16 %v2225, %v2225
        %v2290 = vpack.c.b16 %v2226, %v2226
        %v2291 = vpack.c.b16 %v2227, %v2227
        %v2292 = vpack.c.b16 %v2228, %v2228
        %v2293 = vpack.c.b16 %v2229, %v2229
        %v2294 = vpack.c.b16 %v2230, %v2230
        %v2295 = vpack.c.b16 %v2231, %v2231
        %v2296 = vpack.c.b16 %v2232, %v2232
        %v2297 = vpack.c.b16 %v2233, %v2233
        %v2298 = vpack.c.b16 %v2234, %v2234
        %v2299 = vpack.c.b16 %v2235, %v2235
        %v2300 = vpack.c.b16 %v2236, %v2236
        %v2301 = vpack.c.b16 %v2237, %v2237
        %v2302 = vpack.c.b16 %v2238, %v2238
        %v2303 = vpack.c.b16 %v2239, %v2239
        %v2304 = vpack.c.b16 %v2240, %v2240
        %v2305 = vpack.c.b16 %v2241, %v2241
        %v2306 = vpack.c.b16 %v2242, %v2242
        %v2307 = vpack.c.b16 %v2243, %v2243
        %v2308 = vpack.c.b16 %v2244, %v2244
        %v2309 = vpack.c.b16 %v2245, %v2245
        %v2310 = vpack.c.b16 %v2246, %v2246
        %v2311 = vpack.c.b16 %v2247, %v2247
        %v2312 = vpack.c.b16 %v2248, %v2248
        %v2313 = vpack.c.b16 %v2249, %v2249
        %v2314 = vpack.c.b16 %v2250, %v2250
        %v2315 = vpack.c.b16 %v2251, %v2251
        %v2316 = vpack.c.b16 %v2252, %v2252
        %v2317 = vpack.c.b16 %v2253, %v2253
        %v2318 = vpack.c.b16 %v2254, %v2254
        %v2319 = vpack.c.b16 %v2255, %v2255
        %v2320 = vpack.c.b16 %v2256, %v2256
        %v2321 = vpack.c.b16 %v2257, %v2257
        %v2322 = vpack.c.b16 %v2258, %v2258
        %v2323 = vpack.c.b16 %v2259, %v2259
        %v2324 = vpack.c.b16 %v2260, %v2260
        %v2325 = vpack.c.b16 %v2261, %v2261
        %v2326 = vpack.c.b16 %v2262, %v2262
        %v2327 = vpack.c.b16 %v2263, %v2263
        %v2328 = vpack.c.b16 %v2264, %v2264
        %v2329 = vpack.c.b16 %v2265, %v2265
        %v2330 = vpack.c.b16 %v2266, %v2266
        %v2331 = vpack.c.b16 %v2267, %v2267
        %v2332 = vpack.c.b16 %v2268, %v2268
        %v2333 = vpack.c.b16 %v2269, %v2269
        %v2334 = vpack.c.b16 %v2270, %v2270
        %v2335 = vpack.c.b16 %v2271, %v2271
        %v2336 = vpack.c.b16 %v2272, %v2272
        %v2337 = vpack.c.b16 %v2273, %v2273
        %v2338 = vpack.c.b16 %v2274, %v2274
        %v2339 = vpack.c.b16 %v2275, %v2275
        %v2340 = vpack.c.b16 %v2276, %v2276
        %v2341 = vpack.c.b16 %v2277, %v2277
        %v2342 = vpack.c.b16 %v2278, %v2278
        %v2343 = vpack.c.b16 %v2279, %v2279
        %2408 = vst [vmem:[%s255] sm:$0xf] %v2280
        %2409 = vst [vmem:[%s255 + $0x4] sm:$0xf] %v2281
        %2410 = vst [vmem:[%s255 + $0x8] sm:$0xf] %v2282
        %2411 = vst [vmem:[%s255 + $0xc] sm:$0xf] %v2283
        %2412 = vst [vmem:[%s255 + $0x10] sm:$0xf] %v2284
        %2413 = vst [vmem:[%s255 + $0x14] sm:$0xf] %v2285
        %2414 = vst [vmem:[%s255 + $0x18] sm:$0xf] %v2286
        %2415 = vst [vmem:[%s255 + $0x1c] sm:$0xf] %v2287
        %2416 = vst [vmem:[%s255 + $0x20] sm:$0xf] %v2288
        %2417 = vst [vmem:[%s255 + $0x24] sm:$0xf] %v2289
        %2418 = vst [vmem:[%s255 + $0x28] sm:$0xf] %v2290
        %2419 = vst [vmem:[%s255 + $0x2c] sm:$0xf] %v2291
        %2420 = vst [vmem:[%s255 + $0x30] sm:$0xf] %v2292
        %2421 = vst [vmem:[%s255 + $0x34] sm:$0xf] %v2293
        %2422 = vst [vmem:[%s255 + $0x38] sm:$0xf] %v2294
        %2423 = vst [vmem:[%s255 + $0x3c] sm:$0xf] %v2295
        %2424 = vst [vmem:[%s255 + $0x40] sm:$0xf] %v2296
        %2425 = vst [vmem:[%s255 + $0x44] sm:$0xf] %v2297
        %2426 = vst [vmem:[%s255 + $0x48] sm:$0xf] %v2298
        %2427 = vst [vmem:[%s255 + $0x4c] sm:$0xf] %v2299
        %2428 = vst [vmem:[%s255 + $0x50] sm:$0xf] %v2300
        %2429 = vst [vmem:[%s255 + $0x54] sm:$0xf] %v2301
        %2430 = vst [vmem:[%s255 + $0x58] sm:$0xf] %v2302
        %2431 = vst [vmem:[%s255 + $0x5c] sm:$0xf] %v2303
        %2432 = vst [vmem:[%s255 + $0x60] sm:$0xf] %v2304
        %2433 = vst [vmem:[%s255 + $0x64] sm:$0xf] %v2305
        %2434 = vst [vmem:[%s255 + $0x68] sm:$0xf] %v2306
        %2435 = vst [vmem:[%s255 + $0x6c] sm:$0xf] %v2307
        %2436 = vst [vmem:[%s255 + $0x70] sm:$0xf] %v2308
        %2437 = vst [vmem:[%s255 + $0x74] sm:$0xf] %v2309
        %2438 = vst [vmem:[%s255 + $0x78] sm:$0xf] %v2310
        %2439 = vst [vmem:[%s255 + $0x7c] sm:$0xf] %v2311
        %2440 = vst [vmem:[%s255 + $0x80] sm:$0xf] %v2312
        %2441 = vst [vmem:[%s255 + $0x84] sm:$0xf] %v2313
        %2442 = vst [vmem:[%s255 + $0x88] sm:$0xf] %v2314
        %2443 = vst [vmem:[%s255 + $0x8c] sm:$0xf] %v2315
        %2444 = vst [vmem:[%s255 + $0x90] sm:$0xf] %v2316
        %2445 = vst [vmem:[%s255 + $0x94] sm:$0xf] %v2317
        %2446 = vst [vmem:[%s255 + $0x98] sm:$0xf] %v2318
        %2447 = vst [vmem:[%s255 + $0x9c] sm:$0xf] %v2319
        %2448 = vst [vmem:[%s255 + $0xa0] sm:$0xf] %v2320
        %2449 = vst [vmem:[%s255 + $0xa4] sm:$0xf] %v2321
        %2450 = vst [vmem:[%s255 + $0xa8] sm:$0xf] %v2322
        %2451 = vst [vmem:[%s255 + $0xac] sm:$0xf] %v2323
        %2452 = vst [vmem:[%s255 + $0xb0] sm:$0xf] %v2324
        %2453 = vst [vmem:[%s255 + $0xb4] sm:$0xf] %v2325
        %2454 = vst [vmem:[%s255 + $0xb8] sm:$0xf] %v2326
        %2455 = vst [vmem:[%s255 + $0xbc] sm:$0xf] %v2327
        %2456 = vst [vmem:[%s255 + $0xc0] sm:$0xf] %v2328
        %2457 = vst [vmem:[%s255 + $0xc4] sm:$0xf] %v2329
        %2458 = vst [vmem:[%s255 + $0xc8] sm:$0xf] %v2330
        %2459 = vst [vmem:[%s255 + $0xcc] sm:$0xf] %v2331
        %2460 = vst [vmem:[%s255 + $0xd0] sm:$0xf] %v2332
        %2461 = vst [vmem:[%s255 + $0xd4] sm:$0xf] %v2333
        %2462 = vst [vmem:[%s255 + $0xd8] sm:$0xf] %v2334
        %2463 = vst [vmem:[%s255 + $0xdc] sm:$0xf] %v2335
        %2464 = vst [vmem:[%s255 + $0xe0] sm:$0xf] %v2336
        %2465 = vst [vmem:[%s255 + $0xe4] sm:$0xf] %v2337
        %2466 = vst [vmem:[%s255 + $0xe8] sm:$0xf] %v2338
        %2467 = vst [vmem:[%s255 + $0xec] sm:$0xf] %v2339
        %2468 = vst [vmem:[%s255 + $0xf0] sm:$0xf] %v2340
        %2469 = vst [vmem:[%s255 + $0xf4] sm:$0xf] %v2341
        %2470 = vst [vmem:[%s255 + $0xf8] sm:$0xf] %v2342
        %2471 = vst [vmem:[%s255 + $0xfc] sm:$0xf] %v2343
      $region52: #{generador_forward.8} parent=39 // pred_fallthru
        _
      %s2472 = smul.u32 64, %s21
      %p2473 = scmp.lt.s32.totalorder %s2472, 191
      %s2474 = scalar_select %p2473, %s2472, 191
      %s2475 = smul.addr %s2474, 4
      %s2476 = scalar_lea.vmem %s5, %s2475
      // Predicated region
      $region53: #{generador_forward.8} parent=39 // pred_check
        %p2477 = pneg %p160
      $region54: #{generador_forward.8} parent=39 // pred_check_branch
        %2479 = sbr.rel (%p2477) target = $region56
      $region55: #{generador_forward.8} parent=39 // pred_region
        %s2480 = smul.u32 64, %s21
      $region56: #{generador_forward.8} parent=39 // pred_fallthru
        _
    $region40: #{generador_forward.8} parent=5 // pred_fallthru
      _
    %p2481 = scmp.le.s32.totalorder 2, %s11
    // Predicated region
    $region57: #{generador_forward.8} parent=5 // pred_check
      %p2482 = pneg %p2481
    $region58: #{generador_forward.8} parent=5 // pred_check_branch
      %2484 = sbr.rel (%p2482) target = $region60
    $region59: #{generador_forward.8} parent=5 // pred_region
      %s2485 = ssub.s32 %s11, 2
      // Predicated region
      $region61: #{generador_forward.8} parent=59 // pred_check
        %p2486 = pneg %p166
      $region62: #{generador_forward.8} parent=59 // pred_check_branch
        %2488 = sbr.rel (%p2486) target = $region64
      $region63: #{generador_forward.8} parent=59 // pred_region
        %s2489 = smul.u32 64, %s23
        %p2490 = scmp.lt.s32.totalorder %s2489, 191
        %s2491 = scalar_select %p2490, %s2489, 191
        %s2492 = smul.addr %s2491, 4
        %s2493 = scalar_lea.vmem %s5, %s2492
      $region64: #{generador_forward.8} parent=59 // pred_fallthru
        _
    $region60: #{generador_forward.8} parent=5 // pred_fallthru
      _
  $region6: #{generador_forward.8} parent=0 // loop_footer
    %s15 = sadd.s32 1, %s11
  $region7: #{generador_forward.8} parent=0 // loop_footer_branch
    %10 = sbr.rel target = $region3
  $region8: #{generador_forward.8} parent=0 // loop_exit
    _

// kernel: generador_forward.9
$region0: #{generador_forward.9}
  #allocation0 [shape = 'u32[]', space=smem, size = 0x4, offset = 0x4, fixed_abs, tag = 'smem constant byte address 0x4 - core index']
  #allocation1 [shape = 'u32[144,128]{1,0:T(1,128)}', space=vmem, size = 0x12000, scoped, tag = 'internal scratch']
  %s0 = inlined_call_operand.vmem [shape: bf16[6272,128], index: 0, kind: input, shape index: {}]
  %s1 = inlined_call_operand.vmem [shape: bf16[128,128], index: 1, kind: input, shape index: {}]
  %s2 = inlined_call_operand.vmem [shape: f32[1,128], index: 2, kind: input, shape index: {}]
  %s3 = inlined_call_operand.vmem [shape: f32[6272,128], index: 3, kind: output, shape index: {}]
  %s4 = sld [smem:[#allocation0]]
  $region45: #{generador_forward.9} parent=0
    _
  %s6 = ssub.s32 1, %s4
  %s7 = scalar_select 0, %s6, %s4
  loop: start=0, step=1, limit=16
  $region2: #{generador_forward.9} parent=0 // loop_pre_header
    _
  $region3: #{generador_forward.9} parent=0 // loop_header
    %s9 = sphi 0, %s13
    %p10 = scmp.ge.s32.totalorder %s9, 16
    %s19 = sphi 0, %s21
    %s22 = sphi 0, %s19
    %s23 = sphi 0, %s22
    %s39 = sphi 0, %s23
    %s43 = sphi 0, %s43
    %s45 = sphi 0, %s43
    %s46 = sphi 0, %s45
    %s60 = sphi 0, %s46
    %s64 = sphi 0, %s64
    %s66 = sphi 0, %s64
    %s67 = sphi 0, %s66
    %s81 = sphi 0, %s67
    %s87 = sphi 0, %s89
    %s90 = sphi 0, %s87
    %s91 = sphi 0, %s90
    %s107 = sphi 0, %s91
  $region4: #{generador_forward.9} parent=0 // loop_header_branch
    %12 = sbr.rel (%p10) target = $region8
  $region5: #{generador_forward.9} parent=0 // loop_body
    %s14 = ssub.s32 %s9, 1
    %s15 = ssub.s32 %s9, 2
    %s16 = sadd.s32 %s9, 1
    %s17 = ssub.s32 %s9, %s16
    %p18 = scmp.eq.s32.totalorder %s17, 0
    %s20 = sadd.s32 %s19, 1
    %s21 = scalar_select %p18, %s19, %s20
    %p24 = pneg %p18
    %p25 = scmp.eq.s32.totalorder %s9, 13
    %p26 = por %p24, %p25
    %p27 = scmp.ne.s32.totalorder %s19, %s22
    %p28 = scmp.eq.s32.totalorder %s9, 0
    %p29 = por %p27, %p28
    %p30 = scmp.ne.s32.totalorder %s19, %s22
    %p31 = scmp.eq.s32.totalorder %s14, 13
    %p32 = por %p30, %p31
    %p33 = scmp.ne.s32.totalorder %s22, %s23
    %p34 = scmp.eq.s32.totalorder %s14, 0
    %p35 = por %p33, %p34
    %p36 = scmp.ne.s32.totalorder %s22, %s23
    %p37 = scmp.eq.s32.totalorder %s15, 13
    %p38 = por %p36, %p37
    %p40 = scmp.ne.s32.totalorder %s23, %s39
    %p41 = scmp.eq.s32.totalorder %s15, 0
    %p42 = por %p40, %p41
    %s44 = sadd.s32 %s43, 1
    %p47 = scmp.eq.s32.totalorder %s9, 13
    %p48 = scmp.ne.s32.totalorder %s43, %s45
    %p49 = scmp.eq.s32.totalorder %s9, 0
    %p50 = por %p48, %p49
    %p51 = scmp.ne.s32.totalorder %s43, %s45
    %p52 = scmp.eq.s32.totalorder %s14, 13
    %p53 = por %p51, %p52
    %p54 = scmp.ne.s32.totalorder %s45, %s46
    %p55 = scmp.eq.s32.totalorder %s14, 0
    %p56 = por %p54, %p55
    %p57 = scmp.ne.s32.totalorder %s45, %s46
    %p58 = scmp.eq.s32.totalorder %s15, 13
    %p59 = por %p57, %p58
    %p61 = scmp.ne.s32.totalorder %s46, %s60
    %p62 = scmp.eq.s32.totalorder %s15, 0
    %p63 = por %p61, %p62
    %s65 = sadd.s32 %s64, 1
    %p68 = scmp.eq.s32.totalorder %s9, 13
    %p69 = scmp.ne.s32.totalorder %s64, %s66
    %p70 = scmp.eq.s32.totalorder %s9, 0
    %p71 = por %p69, %p70
    %p72 = scmp.ne.s32.totalorder %s64, %s66
    %p73 = scmp.eq.s32.totalorder %s14, 13
    %p74 = por %p72, %p73
    %p75 = scmp.ne.s32.totalorder %s66, %s67
    %p76 = scmp.eq.s32.totalorder %s14, 0
    %p77 = por %p75, %p76
    %p78 = scmp.ne.s32.totalorder %s66, %s67
    %p79 = scmp.eq.s32.totalorder %s15, 13
    %p80 = por %p78, %p79
    %p82 = scmp.ne.s32.totalorder %s67, %s81
    %p83 = scmp.eq.s32.totalorder %s15, 0
    %p84 = por %p82, %p83
    %s85 = ssub.s32 %s9, %s16
    %p86 = scmp.eq.s32.totalorder %s85, 0
    %s88 = sadd.s32 %s87, 1
    %s89 = scalar_select %p86, %s87, %s88
    %p92 = pneg %p86
    %p93 = scmp.eq.s32.totalorder %s9, 13
    %p94 = por %p92, %p93
    %p95 = scmp.ne.s32.totalorder %s87, %s90
    %p96 = scmp.eq.s32.totalorder %s9, 0
    %p97 = por %p95, %p96
    %p98 = scmp.ne.s32.totalorder %s87, %s90
    %p99 = scmp.eq.s32.totalorder %s14, 13
    %p100 = por %p98, %p99
    %p101 = scmp.ne.s32.totalorder %s90, %s91
    %p102 = scmp.eq.s32.totalorder %s14, 0
    %p103 = por %p101, %p102
    %p104 = scmp.ne.s32.totalorder %s90, %s91
    %p105 = scmp.eq.s32.totalorder %s15, 13
    %p106 = por %p104, %p105
    %p108 = scmp.ne.s32.totalorder %s91, %s107
    %p109 = scmp.eq.s32.totalorder %s15, 0
    %p110 = por %p108, %p109
    %p111 = scmp.le.s32.totalorder 1, %s9
    %p112 = scmp.lt.s32.totalorder %s9, 15
    %p113 = pnand %p111, %p112
    %p114 = pneg %p113
    // Predicated region
    $region9: #{generador_forward.9} parent=5 // pred_check
      _
    $region10: #{generador_forward.9} parent=5 // pred_check_branch
      %116 = sbr.rel (%p113) target = $region12
    $region11: #{generador_forward.9} parent=5 // pred_region
      %s117 = ssub.s32 %s9, 1
      // Predicated region
      $region13: #{generador_forward.9} parent=11 // pred_check
        %p118 = pneg %p56
      $region14: #{generador_forward.9} parent=11 // pred_check_branch
        %120 = sbr.rel (%p118) target = $region16
      $region15: #{generador_forward.9} parent=11 // pred_region
        _
      $region16: #{generador_forward.9} parent=11 // pred_fallthru
        _
      // Predicated region
      $region17: #{generador_forward.9} parent=11 // pred_check
        %p121 = pneg %p77
      $region18: #{generador_forward.9} parent=11 // pred_check_branch
        %123 = sbr.rel (%p121) target = $region20
      $region19: #{generador_forward.9} parent=11 // pred_region
        _
      $region20: #{generador_forward.9} parent=11 // pred_fallthru
        _
    $region12: #{generador_forward.9} parent=5 // pred_fallthru
      _
    %p124 = scmp.lt.s32.totalorder %s9, 14
    // Predicated region
    $region21: #{generador_forward.9} parent=5 // pred_check
      %p125 = pneg %p124
    $region22: #{generador_forward.9} parent=5 // pred_check_branch
      %127 = sbr.rel (%p125) target = $region24
    $region23: #{generador_forward.9} parent=5 // pred_region
      // Predicated region
      $region25: #{generador_forward.9} parent=23 // pred_check
        %p128 = pneg %p29
      $region26: #{generador_forward.9} parent=23 // pred_check_branch
        %130 = sbr.rel (%p128) target = $region28
      $region27: #{generador_forward.9} parent=23 // pred_region
        %s131 = smul.u32 56, %s9
        %p132 = scmp.lt.s32.totalorder %s131, 783
        %s133 = scalar_select %p132, %s131, 783
        %s134 = smul.addr %s133, 4
        %s135 = scalar_lea.vmem %s0, %s134
        %s136 = smul.u32 56, %s9
      $region28: #{generador_forward.9} parent=23 // pred_fallthru
        _
    $region24: #{generador_forward.9} parent=5 // pred_fallthru
      _
    %p137 = scmp.le.s32.totalorder 1, %s9
    %p138 = scmp.lt.s32.totalorder %s9, 15
    %p139 = pnand %p137, %p138
    %p140 = pneg %p139
    // Predicated region
    $region29: #{generador_forward.9} parent=5 // pred_check
      _
    $region30: #{generador_forward.9} parent=5 // pred_check_branch
      %142 = sbr.rel (%p139) target = $region32
    $region31: #{generador_forward.9} parent=5 // pred_region
      %s143 = ssub.s32 %s9, 1
      %s144 = smul.u32 56, %s14
      %p145 = scmp.lt.s32.totalorder %s144, 783
      %s146 = scalar_select %p145, %s144, 783
      %s147 = smul.addr %s146, 4
      %s148 = scalar_lea.vmem %s0, %s147
      %p149 = pneg %p35
      %p150 = pneg %p32
      %p151 = pneg %p56
      %p152 = pneg %p53
      %p153 = pneg %p77
      %p154 = pneg %p74
      %p155 = pneg %p103
      %p156 = pneg %p100
      %s157 = smul.u32 56, %s14
      %p158 = scmp.lt.s32.totalorder %s157, 783
      %s159 = scalar_select %p158, %s157, 783
      %s160 = smul.addr %s159, 8
      %s161 = scalar_lea.vmem %s3, %s160
      %s162 = smul.u32 56, %s14
      %p163 = scmp.lt.s32.totalorder %s162, 783
      %s164 = scalar_select %p163, %s162, 783
      %s165 = smul.addr %s164, 4
      %s166 = scalar_lea.vmem %s0, %s165
      %s167 = smul.u32 56, %s14
      %s168 = smul.u32 56, %s14
      %p169 = scmp.lt.s32.totalorder %s168, 783
      %s170 = scalar_select %p169, %s168, 783
      %s171 = smul.addr %s170, 8
      %s172 = scalar_lea.vmem %s3, %s171
      %s173 = smul.u32 56, %s14
      %v175 = vld [vmem:[%s166] sm:$0xf]
      %v176 = vld [vmem:[%s166 + $0x4] sm:$0xf]
      %v177 = vld [vmem:[%s166 + $0x8] sm:$0xf]
      %v178 = vld [vmem:[%s166 + $0xc] sm:$0xf]
      %v179 = vld [vmem:[%s166 + $0x10] sm:$0xf]
      %v180 = vld [vmem:[%s166 + $0x14] sm:$0xf]
      %v181 = vld [vmem:[%s166 + $0x18] sm:$0xf]
      %v182 = vld [vmem:[%s166 + $0x1c] sm:$0xf]
      %v183 = vld [vmem:[%s166 + $0x20] sm:$0xf]
      %v184 = vld [vmem:[%s166 + $0x24] sm:$0xf]
      %v185 = vld [vmem:[%s166 + $0x28] sm:$0xf]
      %v186 = vld [vmem:[%s166 + $0x2c] sm:$0xf]
      %v187 = vld [vmem:[%s166 + $0x30] sm:$0xf]
      %v188 = vld [vmem:[%s166 + $0x34] sm:$0xf]
      %v189 = vld [vmem:[%s166 + $0x38] sm:$0xf]
      %v190 = vld [vmem:[%s166 + $0x3c] sm:$0xf]
      %v191 = vld [vmem:[%s166 + $0x40] sm:$0xf]
      %v192 = vld [vmem:[%s166 + $0x44] sm:$0xf]
      %v193 = vld [vmem:[%s166 + $0x48] sm:$0xf]
      %v194 = vld [vmem:[%s166 + $0x4c] sm:$0xf]
      %v195 = vld [vmem:[%s166 + $0x50] sm:$0xf]
      %v196 = vld [vmem:[%s166 + $0x54] sm:$0xf]
      %v197 = vld [vmem:[%s166 + $0x58] sm:$0xf]
      %v198 = vld [vmem:[%s166 + $0x5c] sm:$0xf]
      %v199 = vld [vmem:[%s166 + $0x60] sm:$0xf]
      %v200 = vld [vmem:[%s166 + $0x64] sm:$0xf]
      %v201 = vld [vmem:[%s166 + $0x68] sm:$0xf]
      %v202 = vld [vmem:[%s166 + $0x6c] sm:$0xf]
      %v203 = vld [vmem:[%s166 + $0x70] sm:$0xf]
      %v204 = vld [vmem:[%s166 + $0x74] sm:$0xf]
      %v205 = vld [vmem:[%s166 + $0x78] sm:$0xf]
      %v206 = vld [vmem:[%s166 + $0x7c] sm:$0xf]
      %v207 = vld [vmem:[%s166 + $0x80] sm:$0xf]
      %v208 = vld [vmem:[%s166 + $0x84] sm:$0xf]
      %v209 = vld [vmem:[%s166 + $0x88] sm:$0xf]
      %v210 = vld [vmem:[%s166 + $0x8c] sm:$0xf]
      %v211 = vld [vmem:[%s166 + $0x90] sm:$0xf]
      %v212 = vld [vmem:[%s166 + $0x94] sm:$0xf]
      %v213 = vld [vmem:[%s166 + $0x98] sm:$0xf]
      %v214 = vld [vmem:[%s166 + $0x9c] sm:$0xf]
      %v215 = vld [vmem:[%s166 + $0xa0] sm:$0xf]
      %v216 = vld [vmem:[%s166 + $0xa4] sm:$0xf]
      %v217 = vld [vmem:[%s166 + $0xa8] sm:$0xf]
      %v218 = vld [vmem:[%s166 + $0xac] sm:$0xf]
      %v219 = vld [vmem:[%s166 + $0xb0] sm:$0xf]
      %v220 = vld [vmem:[%s166 + $0xb4] sm:$0xf]
      %v221 = vld [vmem:[%s166 + $0xb8] sm:$0xf]
      %v222 = vld [vmem:[%s166 + $0xbc] sm:$0xf]
      %v223 = vld [vmem:[%s166 + $0xc0] sm:$0xf]
      %v224 = vld [vmem:[%s166 + $0xc4] sm:$0xf]
      %v225 = vld [vmem:[%s166 + $0xc8] sm:$0xf]
      %v226 = vld [vmem:[%s166 + $0xcc] sm:$0xf]
      %v227 = vld [vmem:[%s166 + $0xd0] sm:$0xf]
      %v228 = vld [vmem:[%s166 + $0xd4] sm:$0xf]
      %v229 = vld [vmem:[%s166 + $0xd8] sm:$0xf]
      %v230 = vld [vmem:[%s166 + $0xdc] sm:$0xf]
      %v231 = vld [vmem:[%s1] sm:$0xf]
      %v232 = vld [vmem:[%s1 + $0x4] sm:$0xf]
      %v233 = vld [vmem:[%s1 + $0x8] sm:$0xf]
      %v234 = vld [vmem:[%s1 + $0xc] sm:$0xf]
      %v235 = vld [vmem:[%s1 + $0x10] sm:$0xf]
      %v236 = vld [vmem:[%s1 + $0x14] sm:$0xf]
      %v237 = vld [vmem:[%s1 + $0x18] sm:$0xf]
      %v238 = vld [vmem:[%s1 + $0x1c] sm:$0xf]
      %v239 = vld [vmem:[%s1 + $0x20] sm:$0xf]
      %v240 = vld [vmem:[%s1 + $0x24] sm:$0xf]
      %v241 = vld [vmem:[%s1 + $0x28] sm:$0xf]
      %v242 = vld [vmem:[%s1 + $0x2c] sm:$0xf]
      %v243 = vld [vmem:[%s1 + $0x30] sm:$0xf]
      %v244 = vld [vmem:[%s1 + $0x34] sm:$0xf]
      %v245 = vld [vmem:[%s1 + $0x38] sm:$0xf]
      %v246 = vld [vmem:[%s1 + $0x3c] sm:$0xf]
      %v247 = vld [vmem:[%s2] sm:$0x1]
      %v249 = vlaneseq
      %v250 = vshrl.u32 %v249, 7
      %v251 = vsub.s32 0, %v250
      %v252 = vrot.slane %v247, %v251
      %v310 = vunpack.c.l.b16 %v175
      %v311 = vunpack.c.l.b16 %v176
      %v312 = vunpack.c.l.b16 %v177
      %v313 = vunpack.c.l.b16 %v178
      %v314 = vunpack.c.l.b16 %v179
      %v315 = vunpack.c.l.b16 %v180
      %v316 = vunpack.c.l.b16 %v181
      %v317 = vunpack.c.l.b16 %v182
      %v318 = vunpack.c.l.b16 %v183
      %v319 = vunpack.c.l.b16 %v184
      %v320 = vunpack.c.l.b16 %v185
      %v321 = vunpack.c.l.b16 %v186
      %v322 = vunpack.c.l.b16 %v187
      %v323 = vunpack.c.l.b16 %v188
      %v324 = vunpack.c.l.b16 %v189
      %v325 = vunpack.c.l.b16 %v190
      %v326 = vunpack.c.l.b16 %v191
      %v327 = vunpack.c.l.b16 %v192
      %v328 = vunpack.c.l.b16 %v193
      %v329 = vunpack.c.l.b16 %v194
      %v330 = vunpack.c.l.b16 %v195
      %v331 = vunpack.c.l.b16 %v196
      %v332 = vunpack.c.l.b16 %v197
      %v333 = vunpack.c.l.b16 %v198
      %v334 = vunpack.c.l.b16 %v199
      %v335 = vunpack.c.l.b16 %v200
      %v336 = vunpack.c.l.b16 %v201
      %v337 = vunpack.c.l.b16 %v202
      %v338 = vunpack.c.l.b16 %v203
      %v339 = vunpack.c.l.b16 %v204
      %v340 = vunpack.c.l.b16 %v205
      %v341 = vunpack.c.l.b16 %v206
      %v342 = vunpack.c.l.b16 %v207
      %v343 = vunpack.c.l.b16 %v208
      %v344 = vunpack.c.l.b16 %v209
      %v345 = vunpack.c.l.b16 %v210
      %v346 = vunpack.c.l.b16 %v211
      %v347 = vunpack.c.l.b16 %v212
      %v348 = vunpack.c.l.b16 %v213
      %v349 = vunpack.c.l.b16 %v214
      %v350 = vunpack.c.l.b16 %v215
      %v351 = vunpack.c.l.b16 %v216
      %v352 = vunpack.c.l.b16 %v217
      %v353 = vunpack.c.l.b16 %v218
      %v354 = vunpack.c.l.b16 %v219
      %v355 = vunpack.c.l.b16 %v220
      %v356 = vunpack.c.l.b16 %v221
      %v357 = vunpack.c.l.b16 %v222
      %v358 = vunpack.c.l.b16 %v223
      %v359 = vunpack.c.l.b16 %v224
      %v360 = vunpack.c.l.b16 %v225
      %v361 = vunpack.c.l.b16 %v226
      %v362 = vunpack.c.l.b16 %v227
      %v363 = vunpack.c.l.b16 %v228
      %v364 = vunpack.c.l.b16 %v229
      %v365 = vunpack.c.l.b16 %v230
      %v366 = vpack.c.b16 %v311, %v310
      %v367 = vpack.c.b16 %v313, %v312
      %v368 = vpack.c.b16 %v315, %v314
      %v369 = vpack.c.b16 %v317, %v316
      %v370 = vpack.c.b16 %v319, %v318
      %v371 = vpack.c.b16 %v321, %v320
      %v372 = vpack.c.b16 %v323, %v322
      %v373 = vpack.c.b16 %v325, %v324
      %v374 = vpack.c.b16 %v327, %v326
      %v375 = vpack.c.b16 %v329, %v328
      %v376 = vpack.c.b16 %v331, %v330
      %v377 = vpack.c.b16 %v333, %v332
      %v378 = vpack.c.b16 %v335, %v334
      %v379 = vpack.c.b16 %v337, %v336
      %v380 = vpack.c.b16 %v339, %v338
      %v381 = vpack.c.b16 %v341, %v340
      %v382 = vpack.c.b16 %v343, %v342
      %v383 = vpack.c.b16 %v345, %v344
      %v384 = vpack.c.b16 %v347, %v346
      %v385 = vpack.c.b16 %v349, %v348
      %v386 = vpack.c.b16 %v351, %v350
      %v387 = vpack.c.b16 %v353, %v352
      %v388 = vpack.c.b16 %v355, %v354
      %v389 = vpack.c.b16 %v357, %v356
      %v390 = vpack.c.b16 %v359, %v358
      %v391 = vpack.c.b16 %v361, %v360
      %v392 = vpack.c.b16 %v363, %v362
      %v393 = vpack.c.b16 %v365, %v364
      %v438 = vunpack.c.l.b16 %v231
      %v439 = vunpack.c.l.b16 %v232
      %v440 = vunpack.c.l.b16 %v233
      %v441 = vunpack.c.l.b16 %v234
      %v442 = vunpack.c.l.b16 %v235
      %v443 = vunpack.c.l.b16 %v236
      %v444 = vunpack.c.l.b16 %v237
      %v445 = vunpack.c.l.b16 %v238
      %v446 = vunpack.c.l.b16 %v239
      %v447 = vunpack.c.l.b16 %v240
      %v448 = vunpack.c.l.b16 %v241
      %v449 = vunpack.c.l.b16 %v242
      %v450 = vunpack.c.l.b16 %v243
      %v451 = vunpack.c.l.b16 %v244
      %v452 = vunpack.c.l.b16 %v245
      %v453 = vunpack.c.l.b16 %v246
      %v454 = vpack.c.b16 %v439, %v438
      %v455 = vpack.c.b16 %v441, %v440
      %v456 = vpack.c.b16 %v443, %v442
      %v457 = vpack.c.b16 %v445, %v444
      %v458 = vpack.c.b16 %v447, %v446
      %v459 = vpack.c.b16 %v449, %v448
      %v460 = vpack.c.b16 %v451, %v450
      %v461 = vpack.c.b16 %v453, %v452
      %470 = vmatprep.subr.bf16.mxu0 0
      %471 = vmatpush1.bf16.msra.mxu0 %v454
      %472 = vmatprep.subr.bf16.mxu0 0
      %473 = vmatpush1.bf16.msra.mxu0 %v455
      %474 = vmatprep.subr.bf16.mxu0 0
      %475 = vmatpush1.bf16.msra.mxu0 %v456
      %476 = vmatprep.subr.bf16.mxu0 0
      %477 = vmatpush1.bf16.msra.mxu0 %v457
      %478 = vmatprep.subr.bf16.mxu0 0
      %479 = vmatpush1.bf16.msra.mxu0 %v458
      %480 = vmatprep.subr.bf16.mxu0 0
      %481 = vmatpush1.bf16.msra.mxu0 %v459
      %482 = vmatprep.subr.bf16.mxu0 0
      %483 = vmatpush1.bf16.msra.mxu0 %v460
      %484 = vmatprep.subr.bf16.mxu0 0
      %485 = vmatpush1.bf16.msra.mxu0 %v461
      %486 = vmatprep.subr.bf16.mxu0 0
      %487 = vmatpush1.bf16.msra.mxu0 0
      %488 = vmatprep.subr.bf16.mxu0 0
      %489 = vmatpush1.bf16.msra.mxu0 0
      %490 = vmatprep.subr.bf16.mxu0 0
      %491 = vmatpush1.bf16.msra.mxu0 0
      %492 = vmatprep.subr.bf16.mxu0 0
      %493 = vmatpush1.bf16.msra.mxu0 0
      %494 = vmatprep.subr.bf16.mxu0 0
      %495 = vmatpush1.bf16.msra.mxu0 0
      %496 = vmatprep.subr.bf16.mxu0 0
      %497 = vmatpush1.bf16.msra.mxu0 0
      %498 = vmatprep.subr.bf16.mxu0 0
      %499 = vmatpush1.bf16.msra.mxu0 0
      %500 = vmatprep.subr.bf16.mxu0 0
      %501 = vmatpush1.bf16.msra.mxu0 0
      %502 = vmatprep.mubr.bf16.mxu0 0
      %503 = vmatmul.mubr.bf16.gmra.mrb[0].mxu0 %v366
      %v504 = vpop.f32.mrb[0].mxu0
      %v505 = vadd.f32 %v252, %v504
      %v506 = vpop.f32.mrb[0].mxu0
      %v507 = vpop.f32.mrb[0].mxu0
      %v508 = vadd.f32 %v252, %v507
      %v509 = vpop.f32.mrb[0].mxu0
      %510 = vmatprep.mubr.bf16.mxu0 0
      %511 = vmatmul.mubr.bf16.gmra.mrb[0].mxu0 %v367
      %v512 = vpop.f32.mrb[0].mxu0
      %v513 = vadd.f32 %v252, %v512
      %v514 = vpop.f32.mrb[0].mxu0
      %v515 = vpop.f32.mrb[0].mxu0
      %v516 = vadd.f32 %v252, %v515
      %v517 = vpop.f32.mrb[0].mxu0
      %518 = vmatprep.mubr.bf16.mxu0 0
      %519 = vmatmul.mubr.bf16.gmra.mrb[0].mxu0 %v368
      %v520 = vpop.f32.mrb[0].mxu0
      %v521 = vadd.f32 %v252, %v520
      %v522 = vpop.f32.mrb[0].mxu0
      %v523 = vpop.f32.mrb[0].mxu0
      %v524 = vadd.f32 %v252, %v523
      %v525 = vpop.f32.mrb[0].mxu0
      %526 = vmatprep.mubr.bf16.mxu0 0
      %527 = vmatmul.mubr.bf16.gmra.mrb[0].mxu0 %v369
      %v528 = vpop.f32.mrb[0].mxu0
      %v529 = vadd.f32 %v252, %v528
      %v530 = vpop.f32.mrb[0].mxu0
      %v531 = vpop.f32.mrb[0].mxu0
      %v532 = vadd.f32 %v252, %v531
      %v533 = vpop.f32.mrb[0].mxu0
      %534 = vmatprep.mubr.bf16.mxu0 0
      %535 = vmatmul.mubr.bf16.gmra.mrb[0].mxu0 %v370
      %v536 = vpop.f32.mrb[0].mxu0
      %v537 = vadd.f32 %v252, %v536
      %v538 = vpop.f32.mrb[0].mxu0
      %v539 = vpop.f32.mrb[0].mxu0
      %v540 = vadd.f32 %v252, %v539
      %v541 = vpop.f32.mrb[0].mxu0
      %542 = vmatprep.mubr.bf16.mxu0 0
      %543 = vmatmul.mubr.bf16.gmra.mrb[0].mxu0 %v371
      %v544 = vpop.f32.mrb[0].mxu0
      %v545 = vadd.f32 %v252, %v544
      %v546 = vpop.f32.mrb[0].mxu0
      %v547 = vpop.f32.mrb[0].mxu0
      %v548 = vadd.f32 %v252, %v547
      %v549 = vpop.f32.mrb[0].mxu0
      %550 = vmatprep.mubr.bf16.mxu0 0
      %551 = vmatmul.mubr.bf16.gmra.mrb[0].mxu0 %v372
      %v552 = vpop.f32.mrb[0].mxu0
      %v553 = vadd.f32 %v252, %v552
      %v554 = vpop.f32.mrb[0].mxu0
      %v555 = vpop.f32.mrb[0].mxu0
      %v556 = vadd.f32 %v252, %v555
      %v557 = vpop.f32.mrb[0].mxu0
      %558 = vmatprep.mubr.bf16.mxu0 0
      %559 = vmatmul.mubr.bf16.gmra.mrb[0].mxu0 %v373
      %v560 = vpop.f32.mrb[0].mxu0
      %v561 = vadd.f32 %v252, %v560
      %v562 = vpop.f32.mrb[0].mxu0
      %v563 = vpop.f32.mrb[0].mxu0
      %v564 = vadd.f32 %v252, %v563
      %v565 = vpop.f32.mrb[0].mxu0
      %566 = vmatprep.mubr.bf16.mxu0 0
      %567 = vmatmul.mubr.bf16.gmra.mrb[0].mxu0 %v374
      %v568 = vpop.f32.mrb[0].mxu0
      %v569 = vadd.f32 %v252, %v568
      %v570 = vpop.f32.mrb[0].mxu0
      %v571 = vpop.f32.mrb[0].mxu0
      %v572 = vadd.f32 %v252, %v571
      %v573 = vpop.f32.mrb[0].mxu0
      %574 = vmatprep.mubr.bf16.mxu0 0
      %575 = vmatmul.mubr.bf16.gmra.mrb[0].mxu0 %v375
      %v576 = vpop.f32.mrb[0].mxu0
      %v577 = vadd.f32 %v252, %v576
      %v578 = vpop.f32.mrb[0].mxu0
      %v579 = vpop.f32.mrb[0].mxu0
      %v580 = vadd.f32 %v252, %v579
      %v581 = vpop.f32.mrb[0].mxu0
      %582 = vmatprep.mubr.bf16.mxu0 0
      %583 = vmatmul.mubr.bf16.gmra.mrb[0].mxu0 %v376
      %v584 = vpop.f32.mrb[0].mxu0
      %v585 = vadd.f32 %v252, %v584
      %v586 = vpop.f32.mrb[0].mxu0
      %v587 = vpop.f32.mrb[0].mxu0
      %v588 = vadd.f32 %v252, %v587
      %v589 = vpop.f32.mrb[0].mxu0
      %590 = vmatprep.mubr.bf16.mxu0 0
      %591 = vmatmul.mubr.bf16.gmra.mrb[0].mxu0 %v377
      %v592 = vpop.f32.mrb[0].mxu0
      %v593 = vadd.f32 %v252, %v592
      %v594 = vpop.f32.mrb[0].mxu0
      %v595 = vpop.f32.mrb[0].mxu0
      %v596 = vadd.f32 %v252, %v595
      %v597 = vpop.f32.mrb[0].mxu0
      %598 = vmatprep.mubr.bf16.mxu0 0
      %599 = vmatmul.mubr.bf16.gmra.mrb[0].mxu0 %v378
      %v600 = vpop.f32.mrb[0].mxu0
      %v601 = vadd.f32 %v252, %v600
      %v602 = vpop.f32.mrb[0].mxu0
      %v603 = vpop.f32.mrb[0].mxu0
      %v604 = vadd.f32 %v252, %v603
      %v605 = vpop.f32.mrb[0].mxu0
      %606 = vmatprep.mubr.bf16.mxu0 0
      %607 = vmatmul.mubr.bf16.gmra.mrb[0].mxu0 %v379
      %v608 = vpop.f32.mrb[0].mxu0
      %v609 = vadd.f32 %v252, %v608
      %v610 = vpop.f32.mrb[0].mxu0
      %v611 = vpop.f32.mrb[0].mxu0
      %v612 = vadd.f32 %v252, %v611
      %v613 = vpop.f32.mrb[0].mxu0
      %614 = vmatprep.mubr.bf16.mxu0 0
      %615 = vmatmul.mubr.bf16.gmra.mrb[0].mxu0 %v380
      %v616 = vpop.f32.mrb[0].mxu0
      %v617 = vadd.f32 %v252, %v616
      %v618 = vpop.f32.mrb[0].mxu0
      %v619 = vpop.f32.mrb[0].mxu0
      %v620 = vadd.f32 %v252, %v619
      %v621 = vpop.f32.mrb[0].mxu0
      %622 = vmatprep.mubr.bf16.mxu0 0
      %623 = vmatmul.mubr.bf16.gmra.mrb[0].mxu0 %v381
      %v624 = vpop.f32.mrb[0].mxu0
      %v625 = vadd.f32 %v252, %v624
      %v626 = vpop.f32.mrb[0].mxu0
      %v627 = vpop.f32.mrb[0].mxu0
      %v628 = vadd.f32 %v252, %v627
      %v629 = vpop.f32.mrb[0].mxu0
      %630 = vmatprep.mubr.bf16.mxu0 0
      %631 = vmatmul.mubr.bf16.gmra.mrb[0].mxu0 %v382
      %v632 = vpop.f32.mrb[0].mxu0
      %v633 = vadd.f32 %v252, %v632
      %v634 = vpop.f32.mrb[0].mxu0
      %v635 = vpop.f32.mrb[0].mxu0
      %v636 = vadd.f32 %v252, %v635
      %v637 = vpop.f32.mrb[0].mxu0
      %638 = vmatprep.mubr.bf16.mxu0 0
      %639 = vmatmul.mubr.bf16.gmra.mrb[0].mxu0 %v383
      %v640 = vpop.f32.mrb[0].mxu0
      %v641 = vadd.f32 %v252, %v640
      %v642 = vpop.f32.mrb[0].mxu0
      %v643 = vpop.f32.mrb[0].mxu0
      %v644 = vadd.f32 %v252, %v643
      %v645 = vpop.f32.mrb[0].mxu0
      %646 = vmatprep.mubr.bf16.mxu0 0
      %647 = vmatmul.mubr.bf16.gmra.mrb[0].mxu0 %v384
      %v648 = vpop.f32.mrb[0].mxu0
      %v649 = vadd.f32 %v252, %v648
      %v650 = vpop.f32.mrb[0].mxu0
      %v651 = vpop.f32.mrb[0].mxu0
      %v652 = vadd.f32 %v252, %v651
      %v653 = vpop.f32.mrb[0].mxu0
      %654 = vmatprep.mubr.bf16.mxu0 0
      %655 = vmatmul.mubr.bf16.gmra.mrb[0].mxu0 %v385
      %v656 = vpop.f32.mrb[0].mxu0
      %v657 = vadd.f32 %v252, %v656
      %v658 = vpop.f32.mrb[0].mxu0
      %v659 = vpop.f32.mrb[0].mxu0
      %v660 = vadd.f32 %v252, %v659
      %v661 = vpop.f32.mrb[0].mxu0
      %662 = vmatprep.mubr.bf16.mxu0 0
      %663 = vmatmul.mubr.bf16.gmra.mrb[0].mxu0 %v386
      %v664 = vpop.f32.mrb[0].mxu0
      %v665 = vadd.f32 %v252, %v664
      %v666 = vpop.f32.mrb[0].mxu0
      %v667 = vpop.f32.mrb[0].mxu0
      %v668 = vadd.f32 %v252, %v667
      %v669 = vpop.f32.mrb[0].mxu0
      %670 = vmatprep.mubr.bf16.mxu0 0
      %671 = vmatmul.mubr.bf16.gmra.mrb[0].mxu0 %v387
      %v672 = vpop.f32.mrb[0].mxu0
      %v673 = vadd.f32 %v252, %v672
      %v674 = vpop.f32.mrb[0].mxu0
      %v675 = vpop.f32.mrb[0].mxu0
      %v676 = vadd.f32 %v252, %v675
      %v677 = vpop.f32.mrb[0].mxu0
      %678 = vmatprep.mubr.bf16.mxu0 0
      %679 = vmatmul.mubr.bf16.gmra.mrb[0].mxu0 %v388
      %v680 = vpop.f32.mrb[0].mxu0
      %v681 = vadd.f32 %v252, %v680
      %v682 = vpop.f32.mrb[0].mxu0
      %v683 = vpop.f32.mrb[0].mxu0
      %v684 = vadd.f32 %v252, %v683
      %v685 = vpop.f32.mrb[0].mxu0
      %686 = vmatprep.mubr.bf16.mxu0 0
      %687 = vmatmul.mubr.bf16.gmra.mrb[0].mxu0 %v389
      %v688 = vpop.f32.mrb[0].mxu0
      %v689 = vadd.f32 %v252, %v688
      %v690 = vpop.f32.mrb[0].mxu0
      %v691 = vpop.f32.mrb[0].mxu0
      %v692 = vadd.f32 %v252, %v691
      %v693 = vpop.f32.mrb[0].mxu0
      %694 = vmatprep.mubr.bf16.mxu0 0
      %695 = vmatmul.mubr.bf16.gmra.mrb[0].mxu0 %v390
      %v696 = vpop.f32.mrb[0].mxu0
      %v697 = vadd.f32 %v252, %v696
      %v698 = vpop.f32.mrb[0].mxu0
      %v699 = vpop.f32.mrb[0].mxu0
      %v700 = vadd.f32 %v252, %v699
      %v701 = vpop.f32.mrb[0].mxu0
      %702 = vmatprep.mubr.bf16.mxu0 0
      %703 = vmatmul.mubr.bf16.gmra.mrb[0].mxu0 %v391
      %v704 = vpop.f32.mrb[0].mxu0
      %v705 = vadd.f32 %v252, %v704
      %v706 = vpop.f32.mrb[0].mxu0
      %v707 = vpop.f32.mrb[0].mxu0
      %v708 = vadd.f32 %v252, %v707
      %v709 = vpop.f32.mrb[0].mxu0
      %710 = vmatprep.mubr.bf16.mxu0 0
      %711 = vmatmul.mubr.bf16.gmra.mrb[0].mxu0 %v392
      %v712 = vpop.f32.mrb[0].mxu0
      %v713 = vadd.f32 %v252, %v712
      %v714 = vpop.f32.mrb[0].mxu0
      %v715 = vpop.f32.mrb[0].mxu0
      %v716 = vadd.f32 %v252, %v715
      %v717 = vpop.f32.mrb[0].mxu0
      %718 = vmatprep.mubr.bf16.mxu0 0
      %719 = vmatmul.mubr.bf16.gmra.mrb[0].mxu0 %v393
      %v720 = vpop.f32.mrb[0].mxu0
      %v721 = vadd.f32 %v252, %v720
      %v722 = vpop.f32.mrb[0].mxu0
      %v723 = vpop.f32.mrb[0].mxu0
      %v724 = vadd.f32 %v252, %v723
      %v725 = vpop.f32.mrb[0].mxu0
      %726 = vdwg.mxu0
      %v727 = vtanh.pop %v505
      %v728 = vtanh.pop %v508
      %v729 = vtanh.pop %v513
      %v730 = vtanh.pop %v516
      %v731 = vtanh.pop %v521
      %v732 = vtanh.pop %v524
      %v733 = vtanh.pop %v529
      %v734 = vtanh.pop %v532
      %v735 = vtanh.pop %v537
      %v736 = vtanh.pop %v540
      %v737 = vtanh.pop %v545
      %v738 = vtanh.pop %v548
      %v739 = vtanh.pop %v553
      %v740 = vtanh.pop %v556
      %v741 = vtanh.pop %v561
      %v742 = vtanh.pop %v564
      %v743 = vtanh.pop %v569
      %v744 = vtanh.pop %v572
      %v745 = vtanh.pop %v577
      %v746 = vtanh.pop %v580
      %v747 = vtanh.pop %v585
      %v748 = vtanh.pop %v588
      %v749 = vtanh.pop %v593
      %v750 = vtanh.pop %v596
      %v751 = vtanh.pop %v601
      %v752 = vtanh.pop %v604
      %v753 = vtanh.pop %v609
      %v754 = vtanh.pop %v612
      %v755 = vtanh.pop %v617
      %v756 = vtanh.pop %v620
      %v757 = vtanh.pop %v625
      %v758 = vtanh.pop %v628
      %v759 = vtanh.pop %v633
      %v760 = vtanh.pop %v636
      %v761 = vtanh.pop %v641
      %v762 = vtanh.pop %v644
      %v763 = vtanh.pop %v649
      %v764 = vtanh.pop %v652
      %v765 = vtanh.pop %v657
      %v766 = vtanh.pop %v660
      %v767 = vtanh.pop %v665
      %v768 = vtanh.pop %v668
      %v769 = vtanh.pop %v673
      %v770 = vtanh.pop %v676
      %v771 = vtanh.pop %v681
      %v772 = vtanh.pop %v684
      %v773 = vtanh.pop %v689
      %v774 = vtanh.pop %v692
      %v775 = vtanh.pop %v697
      %v776 = vtanh.pop %v700
      %v777 = vtanh.pop %v705
      %v778 = vtanh.pop %v708
      %v779 = vtanh.pop %v713
      %v780 = vtanh.pop %v716
      %v781 = vtanh.pop %v721
      %v782 = vtanh.pop %v724
      %783 = vst [vmem:[%s172] sm:$0xff] %v727
      %784 = vst [vmem:[%s172 + $0x8] sm:$0xff] %v728
      %785 = vst [vmem:[%s172 + $0x10] sm:$0xff] %v729
      %786 = vst [vmem:[%s172 + $0x18] sm:$0xff] %v730
      %787 = vst [vmem:[%s172 + $0x20] sm:$0xff] %v731
      %788 = vst [vmem:[%s172 + $0x28] sm:$0xff] %v732
      %789 = vst [vmem:[%s172 + $0x30] sm:$0xff] %v733
      %790 = vst [vmem:[%s172 + $0x38] sm:$0xff] %v734
      %791 = vst [vmem:[%s172 + $0x40] sm:$0xff] %v735
      %792 = vst [vmem:[%s172 + $0x48] sm:$0xff] %v736
      %793 = vst [vmem:[%s172 + $0x50] sm:$0xff] %v737
      %794 = vst [vmem:[%s172 + $0x58] sm:$0xff] %v738
      %795 = vst [vmem:[%s172 + $0x60] sm:$0xff] %v739
      %796 = vst [vmem:[%s172 + $0x68] sm:$0xff] %v740
      %797 = vst [vmem:[%s172 + $0x70] sm:$0xff] %v741
      %798 = vst [vmem:[%s172 + $0x78] sm:$0xff] %v742
      %799 = vst [vmem:[%s172 + $0x80] sm:$0xff] %v743
      %800 = vst [vmem:[%s172 + $0x88] sm:$0xff] %v744
      %801 = vst [vmem:[%s172 + $0x90] sm:$0xff] %v745
      %802 = vst [vmem:[%s172 + $0x98] sm:$0xff] %v746
      %803 = vst [vmem:[%s172 + $0xa0] sm:$0xff] %v747
      %804 = vst [vmem:[%s172 + $0xa8] sm:$0xff] %v748
      %805 = vst [vmem:[%s172 + $0xb0] sm:$0xff] %v749
      %806 = vst [vmem:[%s172 + $0xb8] sm:$0xff] %v750
      %807 = vst [vmem:[%s172 + $0xc0] sm:$0xff] %v751
      %808 = vst [vmem:[%s172 + $0xc8] sm:$0xff] %v752
      %809 = vst [vmem:[%s172 + $0xd0] sm:$0xff] %v753
      %810 = vst [vmem:[%s172 + $0xd8] sm:$0xff] %v754
      %811 = vst [vmem:[%s172 + $0xe0] sm:$0xff] %v755
      %812 = vst [vmem:[%s172 + $0xe8] sm:$0xff] %v756
      %813 = vst [vmem:[%s172 + $0xf0] sm:$0xff] %v757
      %814 = vst [vmem:[%s172 + $0xf8] sm:$0xff] %v758
      %815 = vst [vmem:[%s172 + $0x100] sm:$0xff] %v759
      %816 = vst [vmem:[%s172 + $0x108] sm:$0xff] %v760
      %817 = vst [vmem:[%s172 + $0x110] sm:$0xff] %v761
      %818 = vst [vmem:[%s172 + $0x118] sm:$0xff] %v762
      %819 = vst [vmem:[%s172 + $0x120] sm:$0xff] %v763
      %820 = vst [vmem:[%s172 + $0x128] sm:$0xff] %v764
      %821 = vst [vmem:[%s172 + $0x130] sm:$0xff] %v765
      %822 = vst [vmem:[%s172 + $0x138] sm:$0xff] %v766
      %823 = vst [vmem:[%s172 + $0x140] sm:$0xff] %v767
      %824 = vst [vmem:[%s172 + $0x148] sm:$0xff] %v768
      %825 = vst [vmem:[%s172 + $0x150] sm:$0xff] %v769
      %826 = vst [vmem:[%s172 + $0x158] sm:$0xff] %v770
      %827 = vst [vmem:[%s172 + $0x160] sm:$0xff] %v771
      %828 = vst [vmem:[%s172 + $0x168] sm:$0xff] %v772
      %829 = vst [vmem:[%s172 + $0x170] sm:$0xff] %v773
      %830 = vst [vmem:[%s172 + $0x178] sm:$0xff] %v774
      %831 = vst [vmem:[%s172 + $0x180] sm:$0xff] %v775
      %832 = vst [vmem:[%s172 + $0x188] sm:$0xff] %v776
      %833 = vst [vmem:[%s172 + $0x190] sm:$0xff] %v777
      %834 = vst [vmem:[%s172 + $0x198] sm:$0xff] %v778
      %835 = vst [vmem:[%s172 + $0x1a0] sm:$0xff] %v779
      %836 = vst [vmem:[%s172 + $0x1a8] sm:$0xff] %v780
      %837 = vst [vmem:[%s172 + $0x1b0] sm:$0xff] %v781
      %838 = vst [vmem:[%s172 + $0x1b8] sm:$0xff] %v782
      %s839 = smul.u32 56, %s14
      %p840 = scmp.lt.s32.totalorder %s839, 783
      %s841 = scalar_select %p840, %s839, 783
      %s842 = smul.addr %s841, 8
      %s843 = scalar_lea.vmem %s3, %s842
      // Predicated region
      $region33: #{generador_forward.9} parent=31 // pred_check
        %p844 = pneg %p100
      $region34: #{generador_forward.9} parent=31 // pred_check_branch
        %846 = sbr.rel (%p844) target = $region36
      $region35: #{generador_forward.9} parent=31 // pred_region
        %s847 = smul.u32 56, %s14
      $region36: #{generador_forward.9} parent=31 // pred_fallthru
        _
    $region32: #{generador_forward.9} parent=5 // pred_fallthru
      _
    %p848 = scmp.le.s32.totalorder 2, %s9
    // Predicated region
    $region37: #{generador_forward.9} parent=5 // pred_check
      %p849 = pneg %p848
    $region38: #{generador_forward.9} parent=5 // pred_check_branch
      %851 = sbr.rel (%p849) target = $region40
    $region39: #{generador_forward.9} parent=5 // pred_region
      %s852 = ssub.s32 %s9, 2
      // Predicated region
      $region41: #{generador_forward.9} parent=39 // pred_check
        %p853 = pneg %p106
      $region42: #{generador_forward.9} parent=39 // pred_check_branch
        %855 = sbr.rel (%p853) target = $region44
      $region43: #{generador_forward.9} parent=39 // pred_region
        %s856 = smul.u32 56, %s15
        %p857 = scmp.lt.s32.totalorder %s856, 783
        %s858 = scalar_select %p857, %s856, 783
        %s859 = smul.addr %s858, 8
        %s860 = scalar_lea.vmem %s3, %s859
      $region44: #{generador_forward.9} parent=39 // pred_fallthru
        _
    $region40: #{generador_forward.9} parent=5 // pred_fallthru
      _
  $region6: #{generador_forward.9} parent=0 // loop_footer
    %s13 = sadd.s32 1, %s9
  $region7: #{generador_forward.9} parent=0 // loop_footer_branch
    %8 = sbr.rel target = $region3
  $region8: #{generador_forward.9} parent=0 // loop_exit
    _

</llo_original>
